<compile_context>
chip_gen: v7x
topology: tpu7x:2x2x1
jax: 0.10.0
libtpu: 0.0.40
codegen_flags: <defaults>
</compile_context>

<pallas_src>
import math

import jax
import jax.numpy as jnp
from jax.experimental import pallas as pl
from jax.experimental.pallas import tpu as pltpu


# ----------------------------------------------------------------------------
# Kernel
# ----------------------------------------------------------------------------
def _layernorm(x, w, b, eps=1e-5):
    mean = jnp.mean(x, axis=-1, keepdims=True)
    var = jnp.mean((x - mean) ** 2, axis=-1, keepdims=True)
    return (x - mean) * jax.lax.rsqrt(var + eps) * w + b


def _make_fused_kernel(nhead, seq_len, batch_block):
    H = nhead
    S = seq_len
    TB = batch_block
    BS = TB * S
    G = TB * H          # one attention "group" per (batch element, head)

    def kernel(tok_ref, emb_ref, pos_ref,
               wqkv_ref, bqkv_ref, wo_ref, bo_ref, ln1w_ref, ln1b_ref,
               w1_ref, b1_ref, w2_ref, b2_ref, ln2w_ref, ln2b_ref,
               fcw_ref, fcb_ref, out_ref):
        V, D = emb_ref.shape
        L = wqkv_ref.shape[0]
        Dp = wqkv_ref.shape[2] // 3          # = 128 * H (head-padded width)
        Vp = fcw_ref.shape[1]

        # ---- fused embedding gather (exact one-hot matmul) + positional add ----
        tok = tok_ref[...]                                            # [BS, 1] int32
        onehot = (tok == jax.lax.broadcasted_iota(jnp.int32, (BS, V), 1)
                  ).astype(jnp.float32)                               # [BS, V]
        x = jnp.dot(onehot, emb_ref[...], preferred_element_type=jnp.float32)
        pos = jnp.broadcast_to(pos_ref[...][None], (TB, S, D)).reshape(BS, D)
        x = x + pos                                                   # [BS, D] f32

        # ---- causal mask built in-kernel, broadcast hoisted out of layer loop --
        r = jax.lax.broadcasted_iota(jnp.int32, (S, S), 0)
        c = jax.lax.broadcasted_iota(jnp.int32, (S, S), 1)
        mask = jnp.where(c > r, -1e30, 0.0).astype(jnp.float32)       # [S, S]
        mask_g = jnp.broadcast_to(mask, (G, S, S))                    # [G, S, S]

        for l in range(L):      # static unroll; all stacked weights VMEM-resident
            # -- fused QKV projection; each head owns a 128-lane chunk ----------
            qkv = jnp.dot(x.astype(jnp.bfloat16), wqkv_ref[l],
                          preferred_element_type=jnp.float32) + bqkv_ref[l]   # [BS, 3*Dp]

            def heads(col0, _qkv=qkv):
                # every slice is one full (8,128)-aligned vreg tile: no lane shuffles
                return jnp.stack(
                    [_qkv[b * S:(b + 1) * S, col0 + h * 128: col0 + (h + 1) * 128]
                     for b in range(TB) for h in range(H)], axis=0)    # [G, S, 128]

            qh = heads(0).astype(jnp.bfloat16)          # 1/sqrt(hd) folded into Wq
            kh = heads(Dp).astype(jnp.bfloat16)
            vh = heads(2 * Dp).astype(jnp.bfloat16)

            # head/batch-batched attention, softmax in f32
            s = jnp.einsum('gqe,gke->gqk', qh, kh,
                           preferred_element_type=jnp.float32) + mask_g        # [G,S,S]
            s = s - jnp.max(s, axis=-1, keepdims=True)
            p = jnp.exp(s)
            p = p * pl.reciprocal(jnp.sum(p, axis=-1, keepdims=True), approx=True)
            ctx = jnp.einsum('gqk,gke->gqe', p.astype(jnp.bfloat16), vh,
                             preferred_element_type=jnp.float32)               # [G,S,128]
            # heads live in disjoint lanes -> summing over the head axis IS the
            # concat-of-heads (no lane concat / relayout); then ONE out-proj matmul
            ctx = ctx.reshape(TB, H, S, 128).sum(axis=1).reshape(BS, 128)
            attn = jnp.dot(ctx.astype(jnp.bfloat16), wo_ref[l],
                           preferred_element_type=jnp.float32) + bo_ref[l]     # [BS, D]

            # -- residual + LayerNorm1 (post-norm, f32) -------------------------
            y = _layernorm(x + attn, ln1w_ref[l], ln1b_ref[l])

            # -- feed-forward: linear1 -> ReLU -> linear2 -----------------------
            h1 = jnp.maximum(
                jnp.dot(y.astype(jnp.bfloat16), w1_ref[l],
                        preferred_element_type=jnp.float32) + b1_ref[l], 0.0)
            h2 = jnp.dot(h1.astype(jnp.bfloat16), w2_ref[l],
                         preferred_element_type=jnp.float32) + b2_ref[l]

            # -- residual + LayerNorm2 ------------------------------------------
            x = _layernorm(y + h2, ln2w_ref[l], ln2b_ref[l])

        # ---- final fc, vocab padded to 128 lanes (unmasked vst) ----------------
        logits = jnp.dot(x.astype(jnp.bfloat16), fcw_ref[...],
                         preferred_element_type=jnp.float32) + fcb_ref[...]    # [BS, Vp]
        out_ref[...] = logits.reshape(TB, S, Vp).astype(out_ref.dtype)

    return kernel


# ----------------------------------------------------------------------------
# Wrapper (pallas_call plumbing)
# ----------------------------------------------------------------------------
def character_transformer_forward(x_tokens, src_mask, params, nhead, *,
                                  batch_block=None):
    # src_mask is assumed to be the standard causal mask (regenerated in-kernel).
    del src_mask
    B, S = x_tokens.shape
    V, D = params["embedding"].shape
    Vp = params["fc_w"].shape[1]

    # Whole batch in one block by default (best on v5e/v6e single-TC and at small B).
    # On v7x with larger B, pass batch_block = cdiv(B, 2) to shard across both TCs.
    TB = B if batch_block is None else batch_block
    assert B % TB == 0
    nb = B // TB

    tok = x_tokens.reshape(B * S, 1).astype(jnp.int32)
    pos = params["pos_embedding"][:S]                        # [S, D], static slice

    def full(shape):
        return pl.BlockSpec(shape, lambda i, _n=len(shape): (0,) * _n)

    kernel = _make_fused_kernel(nhead, S, TB)
    out = pl.pallas_call(
        kernel,
        out_shape=jax.ShapeDtypeStruct((B, S, Vp), jnp.float32),
        grid=(nb,),
        in_specs=[
            pl.BlockSpec((TB * S, 1), lambda i: (i, 0)),      # token ids
            full((V, D)),                                     # embedding table
            full((S, D)),                                     # positional table
            full(params["wqkv"].shape), full(params["bqkv"].shape),
            full(params["wo"].shape),   full(params["bo"].shape),
            full(params["ln1w"].shape), full(params["ln1b"].shape),
            full(params["w1"].shape),   full(params["b1"].shape),
            full(params["w2"].shape),   full(params["b2"].shape),
            full(params["ln2w"].shape), full(params["ln2b"].shape),
            full(params["fc_w"].shape), full(params["fc_b"].shape),
        ],
        out_specs=pl.BlockSpec((TB, S, Vp), lambda i: (i, 0, 0)),
        compiler_params=pltpu.CompilerParams(
            dimension_semantics=("parallel",),
            vmem_limit_bytes=32 * 1024 * 1024),
    )(tok, params["embedding"], pos,
      params["wqkv"], params["bqkv"], params["wo"], params["bo"],
      params["ln1w"], params["ln1b"], params["w1"], params["b1"],
      params["w2"], params["b2"], params["ln2w"], params["ln2b"],
      params["fc_w"], params["fc_b"])
    return out[:, :, :V]                                      # strip vocab padding


# ----------------------------------------------------------------------------
# Parameters
# ----------------------------------------------------------------------------
def generate_square_subsequent_mask(sz):
    # torch.triu(torch.ones(sz, sz) * float('-inf'), diagonal=1)
    return jnp.triu(jnp.full((sz, sz), -jnp.inf, dtype=jnp.float32), k=1)


def init_params(key, vocab_size, d_model, nhead, num_layers, dff, max_seq_len):
    # TODO(synk): init is for smoke-testing only; exact parity with a trained
    # PyTorch checkpoint requires loading real weights (xavier_uniform_ in_proj etc.)
    # through the same padded/transposed layout prep below.
    H = nhead
    hd = d_model // nhead
    Dp = 128 * H
    Vp = ((vocab_size + 127) // 128) * 128
    scale = 1.0 / math.sqrt(hd)
    # original concat-of-heads column j -> padded lane (j // hd) * 128 + j
    col_idx = (jnp.arange(d_model) // hd) * 128 + jnp.arange(d_model)

    keys = jax.random.split(key, 4 + num_layers)

    def normal(k, shape, scl=0.02):
        return (scl * jax.random.normal(k, shape)).astype(jnp.float32)

    def pad_head_cols(w):   # [Din, D] -> [Din, Dp]
        return jnp.zeros((w.shape[0], Dp), w.dtype).at[:, col_idx].set(w)

    def pad_head_vec(b):    # [D] -> [Dp]
        return jnp.zeros((Dp,), b.dtype).at[col_idx].set(b)

    params = {
        "embedding": normal(keys[0], (vocab_size, d_model), 1.0),
        "pos_embedding": normal(keys[1], (max_seq_len, d_model), 1.0),
    }
    fc_w = normal(keys[2], (vocab_size, d_model))           # nn.Linear weight [V, D]
    fc_b = normal(keys[3], (vocab_size,))
    params["fc_w"] = (jnp.zeros((d_model, Vp), jnp.float32)
                      .at[:, :vocab_size].set(fc_w.T).astype(jnp.bfloat16))
    params["fc_b"] = jnp.zeros((1, Vp), jnp.float32).at[0, :vocab_size].set(fc_b)

    wqkv, bqkv, wo, bo, w1, b1, w2, b2 = ([] for _ in range(8))
    for l in range(num_layers):
        lk = jax.random.split(keys[4 + l], 8)
        in_w = normal(lk[0], (3 * d_model, d_model))        # in_proj_weight [3D, D]
        in_b = normal(lk[1], (3 * d_model,))                # in_proj_bias
        out_w = normal(lk[2], (d_model, d_model))           # out_proj.weight
        out_b = normal(lk[3], (d_model,))
        l1_w = normal(lk[4], (dff, d_model)); l1_b = normal(lk[5], (dff,))
        l2_w = normal(lk[6], (d_model, dff)); l2_b = normal(lk[7], (d_model,))

        wq, wk, wv = in_w[:d_model], in_w[d_model:2 * d_model], in_w[2 * d_model:]
        bq, bk, bv = in_b[:d_model], in_b[d_model:2 * d_model], in_b[2 * d_model:]
        wq = wq * scale                                      # fold 1/sqrt(hd) into Q
        bq = bq * scale
        wqkv.append(jnp.concatenate([pad_head_cols(wq.T), pad_head_cols(wk.T),
                                     pad_head_cols(wv.T)], axis=1))    # [D, 3*Dp]
        bqkv.append(jnp.concatenate([pad_head_vec(bq), pad_head_vec(bk),
                                     pad_head_vec(bv)]).reshape(1, 3 * Dp))
        wo.append(jnp.zeros((128, d_model), jnp.float32).at[:d_model].set(out_w.T))
        bo.append(out_b.reshape(1, d_model))
        w1.append(l1_w.T)                                    # [D, dff]
        b1.append(l1_b.reshape(1, dff))
        w2.append(l2_w.T)                                    # [dff, D]
        b2.append(l2_b.reshape(1, d_model))

    L = num_layers
    params.update({
        "wqkv": jnp.stack(wqkv).astype(jnp.bfloat16),
        "bqkv": jnp.stack(bqkv),                             # f32
        "wo":   jnp.stack(wo).astype(jnp.bfloat16),          # [L, 128, D]
        "bo":   jnp.stack(bo),
        "ln1w": jnp.ones((L, 1, d_model), jnp.float32),
        "ln1b": jnp.zeros((L, 1, d_model), jnp.float32),
        "w1":   jnp.stack(w1).astype(jnp.bfloat16),
        "b1":   jnp.stack(b1),
        "w2":   jnp.stack(w2).astype(jnp.bfloat16),
        "b2":   jnp.stack(b2),
        "ln2w": jnp.ones((L, 1, d_model), jnp.float32),
        "ln2b": jnp.zeros((L, 1, d_model), jnp.float32),
    })
    return params


# ----------------------------------------------------------------------------
if __name__ == "__main__":
    key = jax.random.PRNGKey(0)
    vocab_size = 16
    d_model = 32
    nhead = 4
    num_layers = 2
    max_seq_len = 32
    dff = 2048            # nn.TransformerEncoderLayer default dim_feedforward
    B, S = 2, 8

    pkey, xkey = jax.random.split(key)
    params = init_params(pkey, vocab_size, d_model, nhead, num_layers, dff, max_seq_len)
    x_tokens = jax.random.randint(xkey, (B, S), 0, vocab_size, dtype=jnp.int32)
    src_mask = generate_square_subsequent_mask(S)

    logits = character_transformer_forward(x_tokens, src_mask, params, nhead)
    logits = jax.block_until_ready(logits)

    assert logits.shape == (B, S, vocab_size), logits.shape
    assert bool(jnp.all(jnp.isfinite(logits)))
    print("KERNEL_OK")
</pallas_src>

<mosaic_0001>
module attributes {stable_mosaic.version = 11 : i64} {
  func.func @kernel(%arg0: i32, %arg1: memref<16x1xi32, #tpu.memory_space<vmem>>, %arg2: memref<16x32xf32, #tpu.memory_space<vmem>>, %arg3: memref<8x32xf32, #tpu.memory_space<vmem>>, %arg4: memref<2x32x1536xbf16, #tpu.memory_space<vmem>>, %arg5: memref<2x1x1536xf32, #tpu.memory_space<vmem>>, %arg6: memref<2x128x32xbf16, #tpu.memory_space<vmem>>, %arg7: memref<2x1x32xf32, #tpu.memory_space<vmem>>, %arg8: memref<2x1x32xf32, #tpu.memory_space<vmem>>, %arg9: memref<2x1x32xf32, #tpu.memory_space<vmem>>, %arg10: memref<2x32x2048xbf16, #tpu.memory_space<vmem>>, %arg11: memref<2x1x2048xf32, #tpu.memory_space<vmem>>, %arg12: memref<2x2048x32xbf16, #tpu.memory_space<vmem>>, %arg13: memref<2x1x32xf32, #tpu.memory_space<vmem>>, %arg14: memref<2x1x32xf32, #tpu.memory_space<vmem>>, %arg15: memref<2x1x32xf32, #tpu.memory_space<vmem>>, %arg16: memref<32x128xbf16, #tpu.memory_space<vmem>>, %arg17: memref<1x128xf32, #tpu.memory_space<vmem>>, %arg18: memref<2x8x128xf32, #tpu.memory_space<vmem>>) attributes {dimension_semantics = [#tpu.dimension_semantics<parallel>], iteration_bounds = array<i64: 1>, scalar_prefetch = 0 : i64, scratch_operands = 0 : i64, tpu.core_type = #tpu.core_type<tc>, window_params = [{transform_indices = @transform_0, window_bounds = array<i64: 16, 1>}, {pipeline_mode = #tpu.pipeline_mode<synchronous>, transform_indices = @transform_1, window_bounds = array<i64: 16, 32>}, {pipeline_mode = #tpu.pipeline_mode<synchronous>, transform_indices = @transform_2, window_bounds = array<i64: 8, 32>}, {pipeline_mode = #tpu.pipeline_mode<synchronous>, transform_indices = @transform_3, window_bounds = array<i64: 2, 32, 1536>}, {pipeline_mode = #tpu.pipeline_mode<synchronous>, transform_indices = @transform_4, window_bounds = array<i64: 2, 1, 1536>}, {pipeline_mode = #tpu.pipeline_mode<synchronous>, transform_indices = @transform_5, window_bounds = array<i64: 2, 128, 32>}, {pipeline_mode = #tpu.pipeline_mode<synchronous>, transform_indices = @transform_6, window_bounds = array<i64: 2, 1, 32>}, {pipeline_mode = #tpu.pipeline_mode<synchronous>, transform_indices = @transform_7, window_bounds = array<i64: 2, 1, 32>}, {pipeline_mode = #tpu.pipeline_mode<synchronous>, transform_indices = @transform_8, window_bounds = array<i64: 2, 1, 32>}, {pipeline_mode = #tpu.pipeline_mode<synchronous>, transform_indices = @transform_9, window_bounds = array<i64: 2, 32, 2048>}, {pipeline_mode = #tpu.pipeline_mode<synchronous>, transform_indices = @transform_10, window_bounds = array<i64: 2, 1, 2048>}, {pipeline_mode = #tpu.pipeline_mode<synchronous>, transform_indices = @transform_11, window_bounds = array<i64: 2, 2048, 32>}, {pipeline_mode = #tpu.pipeline_mode<synchronous>, transform_indices = @transform_12, window_bounds = array<i64: 2, 1, 32>}, {pipeline_mode = #tpu.pipeline_mode<synchronous>, transform_indices = @transform_13, window_bounds = array<i64: 2, 1, 32>}, {pipeline_mode = #tpu.pipeline_mode<synchronous>, transform_indices = @transform_14, window_bounds = array<i64: 2, 1, 32>}, {pipeline_mode = #tpu.pipeline_mode<synchronous>, transform_indices = @transform_15, window_bounds = array<i64: 32, 128>}, {pipeline_mode = #tpu.pipeline_mode<synchronous>, transform_indices = @transform_16, window_bounds = array<i64: 1, 128>}, {transform_indices = @transform_17, window_bounds = array<i64: 2, 8, 128>}]} {
    %c0 = arith.constant 0 : index
    %c0_0 = arith.constant 0 : index
    %0 = vector.load %arg1[%c0, %c0_0] : memref<16x1xi32, #tpu.memory_space<vmem>>, vector<16x1xi32>
    %1 = tpu.iota {dimensions = array<i32: 1>} : vector<16x16xi32>
    %2 = vector.broadcast %0 : vector<16x1xi32> to vector<16x16xi32>
    %3 = arith.cmpi eq, %2, %1 : vector<16x16xi32>
    %4 = arith.extui %3 : vector<16x16xi1> to vector<16x16xi32>
    %5 = arith.sitofp %4 : vector<16x16xi32> to vector<16x16xf32>
    %c0_1 = arith.constant 0 : index
    %c0_2 = arith.constant 0 : index
    %6 = vector.load %arg2[%c0_1, %c0_2] : memref<16x32xf32, #tpu.memory_space<vmem>>, vector<16x32xf32>
    %cst = arith.constant dense<0.000000e+00> : vector<16x32xf32>
    %7 = tpu.matmul %5, %6, %cst {dimension_numbers = #tpu.dot_dimension_numbers<[1], [0], [0], [1], [0, 0, 1, 1], [], []>} : vector<16x16xf32>, vector<16x32xf32>, vector<16x32xf32> -> vector<16x32xf32>
    %c0_3 = arith.constant 0 : index
    %c0_4 = arith.constant 0 : index
    %8 = vector.load %arg3[%c0_3, %c0_4] : memref<8x32xf32, #tpu.memory_space<vmem>>, vector<8x32xf32>
    %9 = vector.shape_cast %8 : vector<8x32xf32> to vector<1x8x32xf32>
    %10 = vector.shape_cast %9 : vector<1x8x32xf32> to vector<1x8x32xf32>
    %11 = vector.broadcast %10 : vector<1x8x32xf32> to vector<2x8x32xf32>
    %12 = vector.shape_cast %11 : vector<2x8x32xf32> to vector<16x32xf32>
    %13 = arith.addf %7, %12 : vector<16x32xf32>
    %14 = tpu.iota {dimensions = array<i32: 0>} : vector<8x8xi32>
    %15 = tpu.iota {dimensions = array<i32: 1>} : vector<8x8xi32>
    %16 = arith.cmpi sgt, %15, %14 : vector<8x8xi32>
    %cst_5 = arith.constant -1.000000e+30 : f32
    %cst_6 = arith.constant 0.000000e+00 : f32
    %17 = vector.broadcast %cst_5 : f32 to vector<8x8xf32>
    %18 = vector.broadcast %cst_6 : f32 to vector<8x8xf32>
    %19 = arith.select %16, %17, %18 : vector<8x8xi1>, vector<8x8xf32>
    %20 = vector.shape_cast %19 : vector<8x8xf32> to vector<1x8x8xf32>
    %21 = vector.broadcast %20 : vector<1x8x8xf32> to vector<8x8x8xf32>
    %22 = arith.truncf %13 : vector<16x32xf32> to vector<16x32xbf16>
    %c0_7 = arith.constant 0 : index
    %c0_8 = arith.constant 0 : index
    %c0_9 = arith.constant 0 : index
    %23 = vector.load %arg4[%c0_7, %c0_8, %c0_9] : memref<2x32x1536xbf16, #tpu.memory_space<vmem>>, vector<1x32x1536xbf16>
    %24 = vector.shape_cast %23 : vector<1x32x1536xbf16> to vector<32x1536xbf16>
    %cst_10 = arith.constant dense<0.000000e+00> : vector<16x1536xf32>
    %25 = tpu.matmul %22, %24, %cst_10 {dimension_numbers = #tpu.dot_dimension_numbers<[1], [0], [0], [1], [0, 0, 1, 1], [], []>} : vector<16x32xbf16>, vector<32x1536xbf16>, vector<16x1536xf32> -> vector<16x1536xf32>
    %c0_11 = arith.constant 0 : index
    %c0_12 = arith.constant 0 : index
    %c0_13 = arith.constant 0 : index
    %26 = vector.load %arg5[%c0_11, %c0_12, %c0_13] : memref<2x1x1536xf32, #tpu.memory_space<vmem>>, vector<1x1x1536xf32>
    %27 = vector.shape_cast %26 : vector<1x1x1536xf32> to vector<1x1536xf32>
    %28 = vector.broadcast %27 : vector<1x1536xf32> to vector<16x1536xf32>
    %29 = arith.addf %25, %28 : vector<16x1536xf32>
    %30 = vector.extract_strided_slice %29 {offsets = [0, 0], sizes = [8, 128], strides = [1, 1]} : vector<16x1536xf32> to vector<8x128xf32>
    %31 = vector.extract_strided_slice %29 {offsets = [0, 128], sizes = [8, 128], strides = [1, 1]} : vector<16x1536xf32> to vector<8x128xf32>
    %32 = vector.extract_strided_slice %29 {offsets = [0, 256], sizes = [8, 128], strides = [1, 1]} : vector<16x1536xf32> to vector<8x128xf32>
    %33 = vector.extract_strided_slice %29 {offsets = [0, 384], sizes = [8, 128], strides = [1, 1]} : vector<16x1536xf32> to vector<8x128xf32>
    %34 = vector.extract_strided_slice %29 {offsets = [8, 0], sizes = [8, 128], strides = [1, 1]} : vector<16x1536xf32> to vector<8x128xf32>
    %35 = vector.extract_strided_slice %29 {offsets = [8, 128], sizes = [8, 128], strides = [1, 1]} : vector<16x1536xf32> to vector<8x128xf32>
    %36 = vector.extract_strided_slice %29 {offsets = [8, 256], sizes = [8, 128], strides = [1, 1]} : vector<16x1536xf32> to vector<8x128xf32>
    %37 = vector.extract_strided_slice %29 {offsets = [8, 384], sizes = [8, 128], strides = [1, 1]} : vector<16x1536xf32> to vector<8x128xf32>
    %38 = vector.shape_cast %30 : vector<8x128xf32> to vector<1x8x128xf32>
    %39 = vector.shape_cast %31 : vector<8x128xf32> to vector<1x8x128xf32>
    %40 = vector.shape_cast %32 : vector<8x128xf32> to vector<1x8x128xf32>
    %41 = vector.shape_cast %33 : vector<8x128xf32> to vector<1x8x128xf32>
    %42 = vector.shape_cast %34 : vector<8x128xf32> to vector<1x8x128xf32>
    %43 = vector.shape_cast %35 : vector<8x128xf32> to vector<1x8x128xf32>
    %44 = vector.shape_cast %36 : vector<8x128xf32> to vector<1x8x128xf32>
    %45 = vector.shape_cast %37 : vector<8x128xf32> to vector<1x8x128xf32>
    %46 = tpu.concatenate %38, %39, %40, %41, %42, %43, %44, %45 in 0 : vector<1x8x128xf32>, vector<1x8x128xf32>, vector<1x8x128xf32>, vector<1x8x128xf32>, vector<1x8x128xf32>, vector<1x8x128xf32>, vector<1x8x128xf32>, vector<1x8x128xf32> -> vector<8x8x128xf32>
    %47 = arith.truncf %46 : vector<8x8x128xf32> to vector<8x8x128xbf16>
    %48 = vector.extract_strided_slice %29 {offsets = [0, 512], sizes = [8, 128], strides = [1, 1]} : vector<16x1536xf32> to vector<8x128xf32>
    %49 = vector.extract_strided_slice %29 {offsets = [0, 640], sizes = [8, 128], strides = [1, 1]} : vector<16x1536xf32> to vector<8x128xf32>
    %50 = vector.extract_strided_slice %29 {offsets = [0, 768], sizes = [8, 128], strides = [1, 1]} : vector<16x1536xf32> to vector<8x128xf32>
    %51 = vector.extract_strided_slice %29 {offsets = [0, 896], sizes = [8, 128], strides = [1, 1]} : vector<16x1536xf32> to vector<8x128xf32>
    %52 = vector.extract_strided_slice %29 {offsets = [8, 512], sizes = [8, 128], strides = [1, 1]} : vector<16x1536xf32> to vector<8x128xf32>
    %53 = vector.extract_strided_slice %29 {offsets = [8, 640], sizes = [8, 128], strides = [1, 1]} : vector<16x1536xf32> to vector<8x128xf32>
    %54 = vector.extract_strided_slice %29 {offsets = [8, 768], sizes = [8, 128], strides = [1, 1]} : vector<16x1536xf32> to vector<8x128xf32>
    %55 = vector.extract_strided_slice %29 {offsets = [8, 896], sizes = [8, 128], strides = [1, 1]} : vector<16x1536xf32> to vector<8x128xf32>
    %56 = vector.shape_cast %48 : vector<8x128xf32> to vector<1x8x128xf32>
    %57 = vector.shape_cast %49 : vector<8x128xf32> to vector<1x8x128xf32>
    %58 = vector.shape_cast %50 : vector<8x128xf32> to vector<1x8x128xf32>
    %59 = vector.shape_cast %51 : vector<8x128xf32> to vector<1x8x128xf32>
    %60 = vector.shape_cast %52 : vector<8x128xf32> to vector<1x8x128xf32>
    %61 = vector.shape_cast %53 : vector<8x128xf32> to vector<1x8x128xf32>
    %62 = vector.shape_cast %54 : vector<8x128xf32> to vector<1x8x128xf32>
    %63 = vector.shape_cast %55 : vector<8x128xf32> to vector<1x8x128xf32>
    %64 = tpu.concatenate %56, %57, %58, %59, %60, %61, %62, %63 in 0 : vector<1x8x128xf32>, vector<1x8x128xf32>, vector<1x8x128xf32>, vector<1x8x128xf32>, vector<1x8x128xf32>, vector<1x8x128xf32>, vector<1x8x128xf32>, vector<1x8x128xf32> -> vector<8x8x128xf32>
    %65 = arith.truncf %64 : vector<8x8x128xf32> to vector<8x8x128xbf16>
    %66 = vector.extract_strided_slice %29 {offsets = [0, 1024], sizes = [8, 128], strides = [1, 1]} : vector<16x1536xf32> to vector<8x128xf32>
    %67 = vector.extract_strided_slice %29 {offsets = [0, 1152], sizes = [8, 128], strides = [1, 1]} : vector<16x1536xf32> to vector<8x128xf32>
    %68 = vector.extract_strided_slice %29 {offsets = [0, 1280], sizes = [8, 128], strides = [1, 1]} : vector<16x1536xf32> to vector<8x128xf32>
    %69 = vector.extract_strided_slice %29 {offsets = [0, 1408], sizes = [8, 128], strides = [1, 1]} : vector<16x1536xf32> to vector<8x128xf32>
    %70 = vector.extract_strided_slice %29 {offsets = [8, 1024], sizes = [8, 128], strides = [1, 1]} : vector<16x1536xf32> to vector<8x128xf32>
    %71 = vector.extract_strided_slice %29 {offsets = [8, 1152], sizes = [8, 128], strides = [1, 1]} : vector<16x1536xf32> to vector<8x128xf32>
    %72 = vector.extract_strided_slice %29 {offsets = [8, 1280], sizes = [8, 128], strides = [1, 1]} : vector<16x1536xf32> to vector<8x128xf32>
    %73 = vector.extract_strided_slice %29 {offsets = [8, 1408], sizes = [8, 128], strides = [1, 1]} : vector<16x1536xf32> to vector<8x128xf32>
    %74 = vector.shape_cast %66 : vector<8x128xf32> to vector<1x8x128xf32>
    %75 = vector.shape_cast %67 : vector<8x128xf32> to vector<1x8x128xf32>
    %76 = vector.shape_cast %68 : vector<8x128xf32> to vector<1x8x128xf32>
    %77 = vector.shape_cast %69 : vector<8x128xf32> to vector<1x8x128xf32>
    %78 = vector.shape_cast %70 : vector<8x128xf32> to vector<1x8x128xf32>
    %79 = vector.shape_cast %71 : vector<8x128xf32> to vector<1x8x128xf32>
    %80 = vector.shape_cast %72 : vector<8x128xf32> to vector<1x8x128xf32>
    %81 = vector.shape_cast %73 : vector<8x128xf32> to vector<1x8x128xf32>
    %82 = tpu.concatenate %74, %75, %76, %77, %78, %79, %80, %81 in 0 : vector<1x8x128xf32>, vector<1x8x128xf32>, vector<1x8x128xf32>, vector<1x8x128xf32>, vector<1x8x128xf32>, vector<1x8x128xf32>, vector<1x8x128xf32>, vector<1x8x128xf32> -> vector<8x8x128xf32>
    %83 = arith.truncf %82 : vector<8x8x128xf32> to vector<8x8x128xbf16>
    "tpu.trace_start"() <{level = 10 : i32, message = "gqe,gke->gqk"}> : () -> ()
    %cst_14 = arith.constant dense<0.000000e+00> : vector<8x8x8xf32>
    %84 = tpu.matmul %47, %65, %cst_14 {dimension_numbers = #tpu.dot_dimension_numbers<[2], [2], [1], [1], [0, 0, 0, 1, 1, 1], [0], [0]>} : vector<8x8x128xbf16>, vector<8x8x128xbf16>, vector<8x8x8xf32> -> vector<8x8x8xf32>
    "tpu.trace_stop"() : () -> ()
    %85 = arith.addf %84, %21 : vector<8x8x8xf32>
    %cst_15 = arith.constant dense<0xFF800000> : vector<8x8xf32>
    %86 = vector.multi_reduction <maximumf>, %85, %cst_15 [2] : vector<8x8x8xf32> to vector<8x8xf32>
    %87 = vector.shape_cast %86 : vector<8x8xf32> to vector<8x8x1xf32>
    %88 = vector.broadcast %87 : vector<8x8x1xf32> to vector<8x8x8xf32>
    %89 = arith.subf %85, %88 : vector<8x8x8xf32>
    %90 = math.exp %89 : vector<8x8x8xf32>
    %cst_16 = arith.constant dense<0.000000e+00> : vector<8x8xf32>
    %91 = vector.multi_reduction <add>, %90, %cst_16 [2] : vector<8x8x8xf32> to vector<8x8xf32>
    %92 = vector.shape_cast %91 : vector<8x8xf32> to vector<8x8x1xf32>
    %93 = tpu.reciprocal %92 {approx = true} : vector<8x8x1xf32> -> vector<8x8x1xf32>
    %94 = vector.broadcast %93 : vector<8x8x1xf32> to vector<8x8x8xf32>
    %95 = arith.mulf %90, %94 : vector<8x8x8xf32>
    %96 = arith.truncf %95 : vector<8x8x8xf32> to vector<8x8x8xbf16>
    "tpu.trace_start"() <{level = 10 : i32, message = "gqk,gke->gqe"}> : () -> ()
    %cst_17 = arith.constant dense<0.000000e+00> : vector<8x8x128xf32>
    %97 = tpu.matmul %96, %83, %cst_17 {dimension_numbers = #tpu.dot_dimension_numbers<[2], [1], [1], [2], [0, 0, 0, 1, 1, 2], [0], [0]>} : vector<8x8x8xbf16>, vector<8x8x128xbf16>, vector<8x8x128xf32> -> vector<8x8x128xf32>
    "tpu.trace_stop"() : () -> ()
    %98 = vector.shape_cast %97 : vector<8x8x128xf32> to vector<2x4x8x128xf32>
    %cst_18 = arith.constant dense<0.000000e+00> : vector<2x8x128xf32>
    %99 = vector.multi_reduction <add>, %98, %cst_18 [1] : vector<2x4x8x128xf32> to vector<2x8x128xf32>
    %100 = vector.shape_cast %99 : vector<2x8x128xf32> to vector<16x128xf32>
    %101 = arith.truncf %100 : vector<16x128xf32> to vector<16x128xbf16>
    %c0_19 = arith.constant 0 : index
    %c0_20 = arith.constant 0 : index
    %c0_21 = arith.constant 0 : index
    %102 = vector.load %arg6[%c0_19, %c0_20, %c0_21] : memref<2x128x32xbf16, #tpu.memory_space<vmem>>, vector<1x128x32xbf16>
    %103 = vector.shape_cast %102 : vector<1x128x32xbf16> to vector<128x32xbf16>
    %cst_22 = arith.constant dense<0.000000e+00> : vector<16x32xf32>
    %104 = tpu.matmul %101, %103, %cst_22 {dimension_numbers = #tpu.dot_dimension_numbers<[1], [0], [0], [1], [0, 0, 1, 1], [], []>} : vector<16x128xbf16>, vector<128x32xbf16>, vector<16x32xf32> -> vector<16x32xf32>
    %c0_23 = arith.constant 0 : index
    %c0_24 = arith.constant 0 : index
    %c0_25 = arith.constant 0 : index
    %105 = vector.load %arg7[%c0_23, %c0_24, %c0_25] : memref<2x1x32xf32, #tpu.memory_space<vmem>>, vector<1x1x32xf32>
    %106 = vector.shape_cast %105 : vector<1x1x32xf32> to vector<1x32xf32>
    %107 = vector.broadcast %106 : vector<1x32xf32> to vector<16x32xf32>
    %108 = arith.addf %104, %107 : vector<16x32xf32>
    %109 = arith.addf %13, %108 : vector<16x32xf32>
    %c0_26 = arith.constant 0 : index
    %c0_27 = arith.constant 0 : index
    %c0_28 = arith.constant 0 : index
    %110 = vector.load %arg8[%c0_26, %c0_27, %c0_28] : memref<2x1x32xf32, #tpu.memory_space<vmem>>, vector<1x1x32xf32>
    %111 = vector.shape_cast %110 : vector<1x1x32xf32> to vector<1x32xf32>
    %c0_29 = arith.constant 0 : index
    %c0_30 = arith.constant 0 : index
    %c0_31 = arith.constant 0 : index
    %112 = vector.load %arg9[%c0_29, %c0_30, %c0_31] : memref<2x1x32xf32, #tpu.memory_space<vmem>>, vector<1x1x32xf32>
    %113 = vector.shape_cast %112 : vector<1x1x32xf32> to vector<1x32xf32>
    %cst_32 = arith.constant dense<0.000000e+00> : vector<16xf32>
    %114 = vector.multi_reduction <add>, %109, %cst_32 [1] : vector<16x32xf32> to vector<16xf32>
    %115 = vector.shape_cast %114 : vector<16xf32> to vector<16x1xf32>
    %cst_33 = arith.constant 3.200000e+01 : f32
    %116 = vector.broadcast %cst_33 : f32 to vector<16x1xf32>
    %117 = arith.divf %115, %116 : vector<16x1xf32>
    %118 = vector.broadcast %117 : vector<16x1xf32> to vector<16x32xf32>
    %119 = arith.subf %109, %118 : vector<16x32xf32>
    %120 = arith.mulf %119, %119 : vector<16x32xf32>
    %cst_34 = arith.constant dense<0.000000e+00> : vector<16xf32>
    %121 = vector.multi_reduction <add>, %120, %cst_34 [1] : vector<16x32xf32> to vector<16xf32>
    %122 = vector.shape_cast %121 : vector<16xf32> to vector<16x1xf32>
    %cst_35 = arith.constant 3.200000e+01 : f32
    %123 = vector.broadcast %cst_35 : f32 to vector<16x1xf32>
    %124 = arith.divf %122, %123 : vector<16x1xf32>
    %125 = vector.broadcast %117 : vector<16x1xf32> to vector<16x32xf32>
    %126 = arith.subf %109, %125 : vector<16x32xf32>
    %cst_36 = arith.constant 9.99999974E-6 : f32
    %127 = vector.broadcast %cst_36 : f32 to vector<16x1xf32>
    %128 = arith.addf %124, %127 : vector<16x1xf32>
    %129 = math.rsqrt %128 : vector<16x1xf32>
    %130 = vector.broadcast %129 : vector<16x1xf32> to vector<16x32xf32>
    %131 = arith.mulf %126, %130 : vector<16x32xf32>
    %132 = vector.broadcast %111 : vector<1x32xf32> to vector<16x32xf32>
    %133 = arith.mulf %131, %132 : vector<16x32xf32>
    %134 = vector.broadcast %113 : vector<1x32xf32> to vector<16x32xf32>
    %135 = arith.addf %133, %134 : vector<16x32xf32>
    %136 = arith.truncf %135 : vector<16x32xf32> to vector<16x32xbf16>
    %c0_37 = arith.constant 0 : index
    %c0_38 = arith.constant 0 : index
    %c0_39 = arith.constant 0 : index
    %137 = vector.load %arg10[%c0_37, %c0_38, %c0_39] : memref<2x32x2048xbf16, #tpu.memory_space<vmem>>, vector<1x32x2048xbf16>
    %138 = vector.shape_cast %137 : vector<1x32x2048xbf16> to vector<32x2048xbf16>
    %cst_40 = arith.constant dense<0.000000e+00> : vector<16x2048xf32>
    %139 = tpu.matmul %136, %138, %cst_40 {dimension_numbers = #tpu.dot_dimension_numbers<[1], [0], [0], [1], [0, 0, 1, 1], [], []>} : vector<16x32xbf16>, vector<32x2048xbf16>, vector<16x2048xf32> -> vector<16x2048xf32>
    %c0_41 = arith.constant 0 : index
    %c0_42 = arith.constant 0 : index
    %c0_43 = arith.constant 0 : index
    %140 = vector.load %arg11[%c0_41, %c0_42, %c0_43] : memref<2x1x2048xf32, #tpu.memory_space<vmem>>, vector<1x1x2048xf32>
    %141 = vector.shape_cast %140 : vector<1x1x2048xf32> to vector<1x2048xf32>
    %142 = vector.broadcast %141 : vector<1x2048xf32> to vector<16x2048xf32>
    %143 = arith.addf %139, %142 : vector<16x2048xf32>
    %cst_44 = arith.constant 0.000000e+00 : f32
    %144 = vector.broadcast %cst_44 : f32 to vector<16x2048xf32>
    %145 = arith.maximumf %143, %144 : vector<16x2048xf32>
    %146 = arith.truncf %145 : vector<16x2048xf32> to vector<16x2048xbf16>
    %c0_45 = arith.constant 0 : index
    %c0_46 = arith.constant 0 : index
    %c0_47 = arith.constant 0 : index
    %147 = vector.load %arg12[%c0_45, %c0_46, %c0_47] : memref<2x2048x32xbf16, #tpu.memory_space<vmem>>, vector<1x2048x32xbf16>
    %148 = vector.shape_cast %147 : vector<1x2048x32xbf16> to vector<2048x32xbf16>
    %cst_48 = arith.constant dense<0.000000e+00> : vector<16x32xf32>
    %149 = tpu.matmul %146, %148, %cst_48 {dimension_numbers = #tpu.dot_dimension_numbers<[1], [0], [0], [1], [0, 0, 1, 1], [], []>} : vector<16x2048xbf16>, vector<2048x32xbf16>, vector<16x32xf32> -> vector<16x32xf32>
    %c0_49 = arith.constant 0 : index
    %c0_50 = arith.constant 0 : index
    %c0_51 = arith.constant 0 : index
    %150 = vector.load %arg13[%c0_49, %c0_50, %c0_51] : memref<2x1x32xf32, #tpu.memory_space<vmem>>, vector<1x1x32xf32>
    %151 = vector.shape_cast %150 : vector<1x1x32xf32> to vector<1x32xf32>
    %152 = vector.broadcast %151 : vector<1x32xf32> to vector<16x32xf32>
    %153 = arith.addf %149, %152 : vector<16x32xf32>
    %154 = arith.addf %135, %153 : vector<16x32xf32>
    %c0_52 = arith.constant 0 : index
    %c0_53 = arith.constant 0 : index
    %c0_54 = arith.constant 0 : index
    %155 = vector.load %arg14[%c0_52, %c0_53, %c0_54] : memref<2x1x32xf32, #tpu.memory_space<vmem>>, vector<1x1x32xf32>
    %156 = vector.shape_cast %155 : vector<1x1x32xf32> to vector<1x32xf32>
    %c0_55 = arith.constant 0 : index
    %c0_56 = arith.constant 0 : index
    %c0_57 = arith.constant 0 : index
    %157 = vector.load %arg15[%c0_55, %c0_56, %c0_57] : memref<2x1x32xf32, #tpu.memory_space<vmem>>, vector<1x1x32xf32>
    %158 = vector.shape_cast %157 : vector<1x1x32xf32> to vector<1x32xf32>
    %cst_58 = arith.constant dense<0.000000e+00> : vector<16xf32>
    %159 = vector.multi_reduction <add>, %154, %cst_58 [1] : vector<16x32xf32> to vector<16xf32>
    %160 = vector.shape_cast %159 : vector<16xf32> to vector<16x1xf32>
    %cst_59 = arith.constant 3.200000e+01 : f32
    %161 = vector.broadcast %cst_59 : f32 to vector<16x1xf32>
    %162 = arith.divf %160, %161 : vector<16x1xf32>
    %163 = vector.broadcast %162 : vector<16x1xf32> to vector<16x32xf32>
    %164 = arith.subf %154, %163 : vector<16x32xf32>
    %165 = arith.mulf %164, %164 : vector<16x32xf32>
    %cst_60 = arith.constant dense<0.000000e+00> : vector<16xf32>
    %166 = vector.multi_reduction <add>, %165, %cst_60 [1] : vector<16x32xf32> to vector<16xf32>
    %167 = vector.shape_cast %166 : vector<16xf32> to vector<16x1xf32>
    %cst_61 = arith.constant 3.200000e+01 : f32
    %168 = vector.broadcast %cst_61 : f32 to vector<16x1xf32>
    %169 = arith.divf %167, %168 : vector<16x1xf32>
    %170 = vector.broadcast %162 : vector<16x1xf32> to vector<16x32xf32>
    %171 = arith.subf %154, %170 : vector<16x32xf32>
    %cst_62 = arith.constant 9.99999974E-6 : f32
    %172 = vector.broadcast %cst_62 : f32 to vector<16x1xf32>
    %173 = arith.addf %169, %172 : vector<16x1xf32>
    %174 = math.rsqrt %173 : vector<16x1xf32>
    %175 = vector.broadcast %174 : vector<16x1xf32> to vector<16x32xf32>
    %176 = arith.mulf %171, %175 : vector<16x32xf32>
    %177 = vector.broadcast %156 : vector<1x32xf32> to vector<16x32xf32>
    %178 = arith.mulf %176, %177 : vector<16x32xf32>
    %179 = vector.broadcast %158 : vector<1x32xf32> to vector<16x32xf32>
    %180 = arith.addf %178, %179 : vector<16x32xf32>
    %181 = arith.truncf %180 : vector<16x32xf32> to vector<16x32xbf16>
    %c1 = arith.constant 1 : index
    %c0_63 = arith.constant 0 : index
    %c0_64 = arith.constant 0 : index
    %182 = vector.load %arg4[%c1, %c0_63, %c0_64] : memref<2x32x1536xbf16, #tpu.memory_space<vmem>>, vector<1x32x1536xbf16>
    %183 = vector.shape_cast %182 : vector<1x32x1536xbf16> to vector<32x1536xbf16>
    %cst_65 = arith.constant dense<0.000000e+00> : vector<16x1536xf32>
    %184 = tpu.matmul %181, %183, %cst_65 {dimension_numbers = #tpu.dot_dimension_numbers<[1], [0], [0], [1], [0, 0, 1, 1], [], []>} : vector<16x32xbf16>, vector<32x1536xbf16>, vector<16x1536xf32> -> vector<16x1536xf32>
    %c1_66 = arith.constant 1 : index
    %c0_67 = arith.constant 0 : index
    %c0_68 = arith.constant 0 : index
    %185 = vector.load %arg5[%c1_66, %c0_67, %c0_68] : memref<2x1x1536xf32, #tpu.memory_space<vmem>>, vector<1x1x1536xf32>
    %186 = vector.shape_cast %185 : vector<1x1x1536xf32> to vector<1x1536xf32>
    %187 = vector.broadcast %186 : vector<1x1536xf32> to vector<16x1536xf32>
    %188 = arith.addf %184, %187 : vector<16x1536xf32>
    %189 = vector.extract_strided_slice %188 {offsets = [0, 0], sizes = [8, 128], strides = [1, 1]} : vector<16x1536xf32> to vector<8x128xf32>
    %190 = vector.extract_strided_slice %188 {offsets = [0, 128], sizes = [8, 128], strides = [1, 1]} : vector<16x1536xf32> to vector<8x128xf32>
    %191 = vector.extract_strided_slice %188 {offsets = [0, 256], sizes = [8, 128], strides = [1, 1]} : vector<16x1536xf32> to vector<8x128xf32>
    %192 = vector.extract_strided_slice %188 {offsets = [0, 384], sizes = [8, 128], strides = [1, 1]} : vector<16x1536xf32> to vector<8x128xf32>
    %193 = vector.extract_strided_slice %188 {offsets = [8, 0], sizes = [8, 128], strides = [1, 1]} : vector<16x1536xf32> to vector<8x128xf32>
    %194 = vector.extract_strided_slice %188 {offsets = [8, 128], sizes = [8, 128], strides = [1, 1]} : vector<16x1536xf32> to vector<8x128xf32>
    %195 = vector.extract_strided_slice %188 {offsets = [8, 256], sizes = [8, 128], strides = [1, 1]} : vector<16x1536xf32> to vector<8x128xf32>
    %196 = vector.extract_strided_slice %188 {offsets = [8, 384], sizes = [8, 128], strides = [1, 1]} : vector<16x1536xf32> to vector<8x128xf32>
    %197 = vector.shape_cast %189 : vector<8x128xf32> to vector<1x8x128xf32>
    %198 = vector.shape_cast %190 : vector<8x128xf32> to vector<1x8x128xf32>
    %199 = vector.shape_cast %191 : vector<8x128xf32> to vector<1x8x128xf32>
    %200 = vector.shape_cast %192 : vector<8x128xf32> to vector<1x8x128xf32>
    %201 = vector.shape_cast %193 : vector<8x128xf32> to vector<1x8x128xf32>
    %202 = vector.shape_cast %194 : vector<8x128xf32> to vector<1x8x128xf32>
    %203 = vector.shape_cast %195 : vector<8x128xf32> to vector<1x8x128xf32>
    %204 = vector.shape_cast %196 : vector<8x128xf32> to vector<1x8x128xf32>
    %205 = tpu.concatenate %197, %198, %199, %200, %201, %202, %203, %204 in 0 : vector<1x8x128xf32>, vector<1x8x128xf32>, vector<1x8x128xf32>, vector<1x8x128xf32>, vector<1x8x128xf32>, vector<1x8x128xf32>, vector<1x8x128xf32>, vector<1x8x128xf32> -> vector<8x8x128xf32>
    %206 = arith.truncf %205 : vector<8x8x128xf32> to vector<8x8x128xbf16>
    %207 = vector.extract_strided_slice %188 {offsets = [0, 512], sizes = [8, 128], strides = [1, 1]} : vector<16x1536xf32> to vector<8x128xf32>
    %208 = vector.extract_strided_slice %188 {offsets = [0, 640], sizes = [8, 128], strides = [1, 1]} : vector<16x1536xf32> to vector<8x128xf32>
    %209 = vector.extract_strided_slice %188 {offsets = [0, 768], sizes = [8, 128], strides = [1, 1]} : vector<16x1536xf32> to vector<8x128xf32>
    %210 = vector.extract_strided_slice %188 {offsets = [0, 896], sizes = [8, 128], strides = [1, 1]} : vector<16x1536xf32> to vector<8x128xf32>
    %211 = vector.extract_strided_slice %188 {offsets = [8, 512], sizes = [8, 128], strides = [1, 1]} : vector<16x1536xf32> to vector<8x128xf32>
    %212 = vector.extract_strided_slice %188 {offsets = [8, 640], sizes = [8, 128], strides = [1, 1]} : vector<16x1536xf32> to vector<8x128xf32>
    %213 = vector.extract_strided_slice %188 {offsets = [8, 768], sizes = [8, 128], strides = [1, 1]} : vector<16x1536xf32> to vector<8x128xf32>
    %214 = vector.extract_strided_slice %188 {offsets = [8, 896], sizes = [8, 128], strides = [1, 1]} : vector<16x1536xf32> to vector<8x128xf32>
    %215 = vector.shape_cast %207 : vector<8x128xf32> to vector<1x8x128xf32>
    %216 = vector.shape_cast %208 : vector<8x128xf32> to vector<1x8x128xf32>
    %217 = vector.shape_cast %209 : vector<8x128xf32> to vector<1x8x128xf32>
    %218 = vector.shape_cast %210 : vector<8x128xf32> to vector<1x8x128xf32>
    %219 = vector.shape_cast %211 : vector<8x128xf32> to vector<1x8x128xf32>
    %220 = vector.shape_cast %212 : vector<8x128xf32> to vector<1x8x128xf32>
    %221 = vector.shape_cast %213 : vector<8x128xf32> to vector<1x8x128xf32>
    %222 = vector.shape_cast %214 : vector<8x128xf32> to vector<1x8x128xf32>
    %223 = tpu.concatenate %215, %216, %217, %218, %219, %220, %221, %222 in 0 : vector<1x8x128xf32>, vector<1x8x128xf32>, vector<1x8x128xf32>, vector<1x8x128xf32>, vector<1x8x128xf32>, vector<1x8x128xf32>, vector<1x8x128xf32>, vector<1x8x128xf32> -> vector<8x8x128xf32>
    %224 = arith.truncf %223 : vector<8x8x128xf32> to vector<8x8x128xbf16>
    %225 = vector.extract_strided_slice %188 {offsets = [0, 1024], sizes = [8, 128], strides = [1, 1]} : vector<16x1536xf32> to vector<8x128xf32>
    %226 = vector.extract_strided_slice %188 {offsets = [0, 1152], sizes = [8, 128], strides = [1, 1]} : vector<16x1536xf32> to vector<8x128xf32>
    %227 = vector.extract_strided_slice %188 {offsets = [0, 1280], sizes = [8, 128], strides = [1, 1]} : vector<16x1536xf32> to vector<8x128xf32>
    %228 = vector.extract_strided_slice %188 {offsets = [0, 1408], sizes = [8, 128], strides = [1, 1]} : vector<16x1536xf32> to vector<8x128xf32>
    %229 = vector.extract_strided_slice %188 {offsets = [8, 1024], sizes = [8, 128], strides = [1, 1]} : vector<16x1536xf32> to vector<8x128xf32>
    %230 = vector.extract_strided_slice %188 {offsets = [8, 1152], sizes = [8, 128], strides = [1, 1]} : vector<16x1536xf32> to vector<8x128xf32>
    %231 = vector.extract_strided_slice %188 {offsets = [8, 1280], sizes = [8, 128], strides = [1, 1]} : vector<16x1536xf32> to vector<8x128xf32>
    %232 = vector.extract_strided_slice %188 {offsets = [8, 1408], sizes = [8, 128], strides = [1, 1]} : vector<16x1536xf32> to vector<8x128xf32>
    %233 = vector.shape_cast %225 : vector<8x128xf32> to vector<1x8x128xf32>
    %234 = vector.shape_cast %226 : vector<8x128xf32> to vector<1x8x128xf32>
    %235 = vector.shape_cast %227 : vector<8x128xf32> to vector<1x8x128xf32>
    %236 = vector.shape_cast %228 : vector<8x128xf32> to vector<1x8x128xf32>
    %237 = vector.shape_cast %229 : vector<8x128xf32> to vector<1x8x128xf32>
    %238 = vector.shape_cast %230 : vector<8x128xf32> to vector<1x8x128xf32>
    %239 = vector.shape_cast %231 : vector<8x128xf32> to vector<1x8x128xf32>
    %240 = vector.shape_cast %232 : vector<8x128xf32> to vector<1x8x128xf32>
    %241 = tpu.concatenate %233, %234, %235, %236, %237, %238, %239, %240 in 0 : vector<1x8x128xf32>, vector<1x8x128xf32>, vector<1x8x128xf32>, vector<1x8x128xf32>, vector<1x8x128xf32>, vector<1x8x128xf32>, vector<1x8x128xf32>, vector<1x8x128xf32> -> vector<8x8x128xf32>
    %242 = arith.truncf %241 : vector<8x8x128xf32> to vector<8x8x128xbf16>
    "tpu.trace_start"() <{level = 10 : i32, message = "gqe,gke->gqk"}> : () -> ()
    %cst_69 = arith.constant dense<0.000000e+00> : vector<8x8x8xf32>
    %243 = tpu.matmul %206, %224, %cst_69 {dimension_numbers = #tpu.dot_dimension_numbers<[2], [2], [1], [1], [0, 0, 0, 1, 1, 1], [0], [0]>} : vector<8x8x128xbf16>, vector<8x8x128xbf16>, vector<8x8x8xf32> -> vector<8x8x8xf32>
    "tpu.trace_stop"() : () -> ()
    %244 = arith.addf %243, %21 : vector<8x8x8xf32>
    %cst_70 = arith.constant dense<0xFF800000> : vector<8x8xf32>
    %245 = vector.multi_reduction <maximumf>, %244, %cst_70 [2] : vector<8x8x8xf32> to vector<8x8xf32>
    %246 = vector.shape_cast %245 : vector<8x8xf32> to vector<8x8x1xf32>
    %247 = vector.broadcast %246 : vector<8x8x1xf32> to vector<8x8x8xf32>
    %248 = arith.subf %244, %247 : vector<8x8x8xf32>
    %249 = math.exp %248 : vector<8x8x8xf32>
    %cst_71 = arith.constant dense<0.000000e+00> : vector<8x8xf32>
    %250 = vector.multi_reduction <add>, %249, %cst_71 [2] : vector<8x8x8xf32> to vector<8x8xf32>
    %251 = vector.shape_cast %250 : vector<8x8xf32> to vector<8x8x1xf32>
    %252 = tpu.reciprocal %251 {approx = true} : vector<8x8x1xf32> -> vector<8x8x1xf32>
    %253 = vector.broadcast %252 : vector<8x8x1xf32> to vector<8x8x8xf32>
    %254 = arith.mulf %249, %253 : vector<8x8x8xf32>
    %255 = arith.truncf %254 : vector<8x8x8xf32> to vector<8x8x8xbf16>
    "tpu.trace_start"() <{level = 10 : i32, message = "gqk,gke->gqe"}> : () -> ()
    %cst_72 = arith.constant dense<0.000000e+00> : vector<8x8x128xf32>
    %256 = tpu.matmul %255, %242, %cst_72 {dimension_numbers = #tpu.dot_dimension_numbers<[2], [1], [1], [2], [0, 0, 0, 1, 1, 2], [0], [0]>} : vector<8x8x8xbf16>, vector<8x8x128xbf16>, vector<8x8x128xf32> -> vector<8x8x128xf32>
    "tpu.trace_stop"() : () -> ()
    %257 = vector.shape_cast %256 : vector<8x8x128xf32> to vector<2x4x8x128xf32>
    %cst_73 = arith.constant dense<0.000000e+00> : vector<2x8x128xf32>
    %258 = vector.multi_reduction <add>, %257, %cst_73 [1] : vector<2x4x8x128xf32> to vector<2x8x128xf32>
    %259 = vector.shape_cast %258 : vector<2x8x128xf32> to vector<16x128xf32>
    %260 = arith.truncf %259 : vector<16x128xf32> to vector<16x128xbf16>
    %c1_74 = arith.constant 1 : index
    %c0_75 = arith.constant 0 : index
    %c0_76 = arith.constant 0 : index
    %261 = vector.load %arg6[%c1_74, %c0_75, %c0_76] : memref<2x128x32xbf16, #tpu.memory_space<vmem>>, vector<1x128x32xbf16>
    %262 = vector.shape_cast %261 : vector<1x128x32xbf16> to vector<128x32xbf16>
    %cst_77 = arith.constant dense<0.000000e+00> : vector<16x32xf32>
    %263 = tpu.matmul %260, %262, %cst_77 {dimension_numbers = #tpu.dot_dimension_numbers<[1], [0], [0], [1], [0, 0, 1, 1], [], []>} : vector<16x128xbf16>, vector<128x32xbf16>, vector<16x32xf32> -> vector<16x32xf32>
    %c1_78 = arith.constant 1 : index
    %c0_79 = arith.constant 0 : index
    %c0_80 = arith.constant 0 : index
    %264 = vector.load %arg7[%c1_78, %c0_79, %c0_80] : memref<2x1x32xf32, #tpu.memory_space<vmem>>, vector<1x1x32xf32>
    %265 = vector.shape_cast %264 : vector<1x1x32xf32> to vector<1x32xf32>
    %266 = vector.broadcast %265 : vector<1x32xf32> to vector<16x32xf32>
    %267 = arith.addf %263, %266 : vector<16x32xf32>
    %268 = arith.addf %180, %267 : vector<16x32xf32>
    %c1_81 = arith.constant 1 : index
    %c0_82 = arith.constant 0 : index
    %c0_83 = arith.constant 0 : index
    %269 = vector.load %arg8[%c1_81, %c0_82, %c0_83] : memref<2x1x32xf32, #tpu.memory_space<vmem>>, vector<1x1x32xf32>
    %270 = vector.shape_cast %269 : vector<1x1x32xf32> to vector<1x32xf32>
    %c1_84 = arith.constant 1 : index
    %c0_85 = arith.constant 0 : index
    %c0_86 = arith.constant 0 : index
    %271 = vector.load %arg9[%c1_84, %c0_85, %c0_86] : memref<2x1x32xf32, #tpu.memory_space<vmem>>, vector<1x1x32xf32>
    %272 = vector.shape_cast %271 : vector<1x1x32xf32> to vector<1x32xf32>
    %cst_87 = arith.constant dense<0.000000e+00> : vector<16xf32>
    %273 = vector.multi_reduction <add>, %268, %cst_87 [1] : vector<16x32xf32> to vector<16xf32>
    %274 = vector.shape_cast %273 : vector<16xf32> to vector<16x1xf32>
    %cst_88 = arith.constant 3.200000e+01 : f32
    %275 = vector.broadcast %cst_88 : f32 to vector<16x1xf32>
    %276 = arith.divf %274, %275 : vector<16x1xf32>
    %277 = vector.broadcast %276 : vector<16x1xf32> to vector<16x32xf32>
    %278 = arith.subf %268, %277 : vector<16x32xf32>
    %279 = arith.mulf %278, %278 : vector<16x32xf32>
    %cst_89 = arith.constant dense<0.000000e+00> : vector<16xf32>
    %280 = vector.multi_reduction <add>, %279, %cst_89 [1] : vector<16x32xf32> to vector<16xf32>
    %281 = vector.shape_cast %280 : vector<16xf32> to vector<16x1xf32>
    %cst_90 = arith.constant 3.200000e+01 : f32
    %282 = vector.broadcast %cst_90 : f32 to vector<16x1xf32>
    %283 = arith.divf %281, %282 : vector<16x1xf32>
    %284 = vector.broadcast %276 : vector<16x1xf32> to vector<16x32xf32>
    %285 = arith.subf %268, %284 : vector<16x32xf32>
    %cst_91 = arith.constant 9.99999974E-6 : f32
    %286 = vector.broadcast %cst_91 : f32 to vector<16x1xf32>
    %287 = arith.addf %283, %286 : vector<16x1xf32>
    %288 = math.rsqrt %287 : vector<16x1xf32>
    %289 = vector.broadcast %288 : vector<16x1xf32> to vector<16x32xf32>
    %290 = arith.mulf %285, %289 : vector<16x32xf32>
    %291 = vector.broadcast %270 : vector<1x32xf32> to vector<16x32xf32>
    %292 = arith.mulf %290, %291 : vector<16x32xf32>
    %293 = vector.broadcast %272 : vector<1x32xf32> to vector<16x32xf32>
    %294 = arith.addf %292, %293 : vector<16x32xf32>
    %295 = arith.truncf %294 : vector<16x32xf32> to vector<16x32xbf16>
    %c1_92 = arith.constant 1 : index
    %c0_93 = arith.constant 0 : index
    %c0_94 = arith.constant 0 : index
    %296 = vector.load %arg10[%c1_92, %c0_93, %c0_94] : memref<2x32x2048xbf16, #tpu.memory_space<vmem>>, vector<1x32x2048xbf16>
    %297 = vector.shape_cast %296 : vector<1x32x2048xbf16> to vector<32x2048xbf16>
    %cst_95 = arith.constant dense<0.000000e+00> : vector<16x2048xf32>
    %298 = tpu.matmul %295, %297, %cst_95 {dimension_numbers = #tpu.dot_dimension_numbers<[1], [0], [0], [1], [0, 0, 1, 1], [], []>} : vector<16x32xbf16>, vector<32x2048xbf16>, vector<16x2048xf32> -> vector<16x2048xf32>
    %c1_96 = arith.constant 1 : index
    %c0_97 = arith.constant 0 : index
    %c0_98 = arith.constant 0 : index
    %299 = vector.load %arg11[%c1_96, %c0_97, %c0_98] : memref<2x1x2048xf32, #tpu.memory_space<vmem>>, vector<1x1x2048xf32>
    %300 = vector.shape_cast %299 : vector<1x1x2048xf32> to vector<1x2048xf32>
    %301 = vector.broadcast %300 : vector<1x2048xf32> to vector<16x2048xf32>
    %302 = arith.addf %298, %301 : vector<16x2048xf32>
    %cst_99 = arith.constant 0.000000e+00 : f32
    %303 = vector.broadcast %cst_99 : f32 to vector<16x2048xf32>
    %304 = arith.maximumf %302, %303 : vector<16x2048xf32>
    %305 = arith.truncf %304 : vector<16x2048xf32> to vector<16x2048xbf16>
    %c1_100 = arith.constant 1 : index
    %c0_101 = arith.constant 0 : index
    %c0_102 = arith.constant 0 : index
    %306 = vector.load %arg12[%c1_100, %c0_101, %c0_102] : memref<2x2048x32xbf16, #tpu.memory_space<vmem>>, vector<1x2048x32xbf16>
    %307 = vector.shape_cast %306 : vector<1x2048x32xbf16> to vector<2048x32xbf16>
    %cst_103 = arith.constant dense<0.000000e+00> : vector<16x32xf32>
    %308 = tpu.matmul %305, %307, %cst_103 {dimension_numbers = #tpu.dot_dimension_numbers<[1], [0], [0], [1], [0, 0, 1, 1], [], []>} : vector<16x2048xbf16>, vector<2048x32xbf16>, vector<16x32xf32> -> vector<16x32xf32>
    %c1_104 = arith.constant 1 : index
    %c0_105 = arith.constant 0 : index
    %c0_106 = arith.constant 0 : index
    %309 = vector.load %arg13[%c1_104, %c0_105, %c0_106] : memref<2x1x32xf32, #tpu.memory_space<vmem>>, vector<1x1x32xf32>
    %310 = vector.shape_cast %309 : vector<1x1x32xf32> to vector<1x32xf32>
    %311 = vector.broadcast %310 : vector<1x32xf32> to vector<16x32xf32>
    %312 = arith.addf %308, %311 : vector<16x32xf32>
    %313 = arith.addf %294, %312 : vector<16x32xf32>
    %c1_107 = arith.constant 1 : index
    %c0_108 = arith.constant 0 : index
    %c0_109 = arith.constant 0 : index
    %314 = vector.load %arg14[%c1_107, %c0_108, %c0_109] : memref<2x1x32xf32, #tpu.memory_space<vmem>>, vector<1x1x32xf32>
    %315 = vector.shape_cast %314 : vector<1x1x32xf32> to vector<1x32xf32>
    %c1_110 = arith.constant 1 : index
    %c0_111 = arith.constant 0 : index
    %c0_112 = arith.constant 0 : index
    %316 = vector.load %arg15[%c1_110, %c0_111, %c0_112] : memref<2x1x32xf32, #tpu.memory_space<vmem>>, vector<1x1x32xf32>
    %317 = vector.shape_cast %316 : vector<1x1x32xf32> to vector<1x32xf32>
    %cst_113 = arith.constant dense<0.000000e+00> : vector<16xf32>
    %318 = vector.multi_reduction <add>, %313, %cst_113 [1] : vector<16x32xf32> to vector<16xf32>
    %319 = vector.shape_cast %318 : vector<16xf32> to vector<16x1xf32>
    %cst_114 = arith.constant 3.200000e+01 : f32
    %320 = vector.broadcast %cst_114 : f32 to vector<16x1xf32>
    %321 = arith.divf %319, %320 : vector<16x1xf32>
    %322 = vector.broadcast %321 : vector<16x1xf32> to vector<16x32xf32>
    %323 = arith.subf %313, %322 : vector<16x32xf32>
    %324 = arith.mulf %323, %323 : vector<16x32xf32>
    %cst_115 = arith.constant dense<0.000000e+00> : vector<16xf32>
    %325 = vector.multi_reduction <add>, %324, %cst_115 [1] : vector<16x32xf32> to vector<16xf32>
    %326 = vector.shape_cast %325 : vector<16xf32> to vector<16x1xf32>
    %cst_116 = arith.constant 3.200000e+01 : f32
    %327 = vector.broadcast %cst_116 : f32 to vector<16x1xf32>
    %328 = arith.divf %326, %327 : vector<16x1xf32>
    %329 = vector.broadcast %321 : vector<16x1xf32> to vector<16x32xf32>
    %330 = arith.subf %313, %329 : vector<16x32xf32>
    %cst_117 = arith.constant 9.99999974E-6 : f32
    %331 = vector.broadcast %cst_117 : f32 to vector<16x1xf32>
    %332 = arith.addf %328, %331 : vector<16x1xf32>
    %333 = math.rsqrt %332 : vector<16x1xf32>
    %334 = vector.broadcast %333 : vector<16x1xf32> to vector<16x32xf32>
    %335 = arith.mulf %330, %334 : vector<16x32xf32>
    %336 = vector.broadcast %315 : vector<1x32xf32> to vector<16x32xf32>
    %337 = arith.mulf %335, %336 : vector<16x32xf32>
    %338 = vector.broadcast %317 : vector<1x32xf32> to vector<16x32xf32>
    %339 = arith.addf %337, %338 : vector<16x32xf32>
    %340 = arith.truncf %339 : vector<16x32xf32> to vector<16x32xbf16>
    %c0_118 = arith.constant 0 : index
    %c0_119 = arith.constant 0 : index
    %341 = vector.load %arg16[%c0_118, %c0_119] : memref<32x128xbf16, #tpu.memory_space<vmem>>, vector<32x128xbf16>
    %cst_120 = arith.constant dense<0.000000e+00> : vector<16x128xf32>
    %342 = tpu.matmul %340, %341, %cst_120 {dimension_numbers = #tpu.dot_dimension_numbers<[1], [0], [0], [1], [0, 0, 1, 1], [], []>} : vector<16x32xbf16>, vector<32x128xbf16>, vector<16x128xf32> -> vector<16x128xf32>
    %c0_121 = arith.constant 0 : index
    %c0_122 = arith.constant 0 : index
    %343 = vector.load %arg17[%c0_121, %c0_122] : memref<1x128xf32, #tpu.memory_space<vmem>>, vector<1x128xf32>
    %344 = vector.broadcast %343 : vector<1x128xf32> to vector<16x128xf32>
    %345 = arith.addf %342, %344 : vector<16x128xf32>
    %346 = vector.shape_cast %345 : vector<16x128xf32> to vector<2x8x128xf32>
    %c0_123 = arith.constant 0 : index
    %c0_124 = arith.constant 0 : index
    %c0_125 = arith.constant 0 : index
    %347 = vector.load %arg18[%c0_123, %c0_124, %c0_125] : memref<2x8x128xf32, #tpu.memory_space<vmem>>, vector<2x8x128xf32>
    tpu.vector_store %arg18[%c0_123, %c0_124, %c0_125], %346 {strides = array<i32>} : memref<2x8x128xf32, #tpu.memory_space<vmem>>, vector<2x8x128xf32>,
    return
  }
  func.func @transform_0(%arg0: i32) -> (i32, i32) {
    %c0_i32 = arith.constant 0 : i32
    %c0_i32_0 = arith.constant 0 : i32
    return %arg0, %c0_i32 : i32, i32
  }
  func.func @transform_1(%arg0: i32) -> (i32, i32) {
    %c0_i32 = arith.constant 0 : i32
    %c0_i32_0 = arith.constant 0 : i32
    %c0_i32_1 = arith.constant 0 : i32
    return %c0_i32, %c0_i32_0 : i32, i32
  }
  func.func @transform_2(%arg0: i32) -> (i32, i32) {
    %c0_i32 = arith.constant 0 : i32
    %c0_i32_0 = arith.constant 0 : i32
    %c0_i32_1 = arith.constant 0 : i32
    return %c0_i32, %c0_i32_0 : i32, i32
  }
  func.func @transform_3(%arg0: i32) -> (i32, i32, i32) {
    %c0_i32 = arith.constant 0 : i32
    %c0_i32_0 = arith.constant 0 : i32
    %c0_i32_1 = arith.constant 0 : i32
    %c0_i32_2 = arith.constant 0 : i32
    return %c0_i32, %c0_i32_0, %c0_i32_1 : i32, i32, i32
  }
  func.func @transform_4(%arg0: i32) -> (i32, i32, i32) {
    %c0_i32 = arith.constant 0 : i32
    %c0_i32_0 = arith.constant 0 : i32
    %c0_i32_1 = arith.constant 0 : i32
    %c0_i32_2 = arith.constant 0 : i32
    return %c0_i32, %c0_i32_0, %c0_i32_1 : i32, i32, i32
  }
  func.func @transform_5(%arg0: i32) -> (i32, i32, i32) {
    %c0_i32 = arith.constant 0 : i32
    %c0_i32_0 = arith.constant 0 : i32
    %c0_i32_1 = arith.constant 0 : i32
    %c0_i32_2 = arith.constant 0 : i32
    return %c0_i32, %c0_i32_0, %c0_i32_1 : i32, i32, i32
  }
  func.func @transform_6(%arg0: i32) -> (i32, i32, i32) {
    %c0_i32 = arith.constant 0 : i32
    %c0_i32_0 = arith.constant 0 : i32
    %c0_i32_1 = arith.constant 0 : i32
    %c0_i32_2 = arith.constant 0 : i32
    return %c0_i32, %c0_i32_0, %c0_i32_1 : i32, i32, i32
  }
  func.func @transform_7(%arg0: i32) -> (i32, i32, i32) {
    %c0_i32 = arith.constant 0 : i32
    %c0_i32_0 = arith.constant 0 : i32
    %c0_i32_1 = arith.constant 0 : i32
    %c0_i32_2 = arith.constant 0 : i32
    return %c0_i32, %c0_i32_0, %c0_i32_1 : i32, i32, i32
  }
  func.func @transform_8(%arg0: i32) -> (i32, i32, i32) {
    %c0_i32 = arith.constant 0 : i32
    %c0_i32_0 = arith.constant 0 : i32
    %c0_i32_1 = arith.constant 0 : i32
    %c0_i32_2 = arith.constant 0 : i32
    return %c0_i32, %c0_i32_0, %c0_i32_1 : i32, i32, i32
  }
  func.func @transform_9(%arg0: i32) -> (i32, i32, i32) {
    %c0_i32 = arith.constant 0 : i32
    %c0_i32_0 = arith.constant 0 : i32
    %c0_i32_1 = arith.constant 0 : i32
    %c0_i32_2 = arith.constant 0 : i32
    return %c0_i32, %c0_i32_0, %c0_i32_1 : i32, i32, i32
  }
  func.func @transform_10(%arg0: i32) -> (i32, i32, i32) {
    %c0_i32 = arith.constant 0 : i32
    %c0_i32_0 = arith.constant 0 : i32
    %c0_i32_1 = arith.constant 0 : i32
    %c0_i32_2 = arith.constant 0 : i32
    return %c0_i32, %c0_i32_0, %c0_i32_1 : i32, i32, i32
  }
  func.func @transform_11(%arg0: i32) -> (i32, i32, i32) {
    %c0_i32 = arith.constant 0 : i32
    %c0_i32_0 = arith.constant 0 : i32
    %c0_i32_1 = arith.constant 0 : i32
    %c0_i32_2 = arith.constant 0 : i32
    return %c0_i32, %c0_i32_0, %c0_i32_1 : i32, i32, i32
  }
  func.func @transform_12(%arg0: i32) -> (i32, i32, i32) {
    %c0_i32 = arith.constant 0 : i32
    %c0_i32_0 = arith.constant 0 : i32
    %c0_i32_1 = arith.constant 0 : i32
    %c0_i32_2 = arith.constant 0 : i32
    return %c0_i32, %c0_i32_0, %c0_i32_1 : i32, i32, i32
  }
  func.func @transform_13(%arg0: i32) -> (i32, i32, i32) {
    %c0_i32 = arith.constant 0 : i32
    %c0_i32_0 = arith.constant 0 : i32
    %c0_i32_1 = arith.constant 0 : i32
    %c0_i32_2 = arith.constant 0 : i32
    return %c0_i32, %c0_i32_0, %c0_i32_1 : i32, i32, i32
  }
  func.func @transform_14(%arg0: i32) -> (i32, i32, i32) {
    %c0_i32 = arith.constant 0 : i32
    %c0_i32_0 = arith.constant 0 : i32
    %c0_i32_1 = arith.constant 0 : i32
    %c0_i32_2 = arith.constant 0 : i32
    return %c0_i32, %c0_i32_0, %c0_i32_1 : i32, i32, i32
  }
  func.func @transform_15(%arg0: i32) -> (i32, i32) {
    %c0_i32 = arith.constant 0 : i32
    %c0_i32_0 = arith.constant 0 : i32
    %c0_i32_1 = arith.constant 0 : i32
    return %c0_i32, %c0_i32_0 : i32, i32
  }
  func.func @transform_16(%arg0: i32) -> (i32, i32) {
    %c0_i32 = arith.constant 0 : i32
    %c0_i32_0 = arith.constant 0 : i32
    %c0_i32_1 = arith.constant 0 : i32
    return %c0_i32, %c0_i32_0 : i32, i32
  }
  func.func @transform_17(%arg0: i32) -> (i32, i32, i32) {
    %c0_i32 = arith.constant 0 : i32
    %c0_i32_0 = arith.constant 0 : i32
    %c0_i32_1 = arith.constant 0 : i32
    return %arg0, %c0_i32, %c0_i32_0 : i32, i32, i32
  }
}

</mosaic_0001>

<llo_original>
// kernel: tpu_custom_call.1
$region0: #{tpu_custom_call.1}
  #allocation0 [shape = 'u32[]', space=smem, size = 0x4, offset = 0x4, fixed_abs, tag = 'smem constant byte address 0x4 - core index']
  #allocation1 [shape = 'u32[144,128]{1,0:T(1,128)}', space=vmem, size = 0x12000, scoped, tag = 'internal scratch']
  %s0 = inlined_call_operand.vmem [shape: s32[16,1], index: 0, kind: input, shape index: {}]
  %s1 = inlined_call_operand.vmem [shape: f32[16,32], index: 1, kind: input, shape index: {}]
  %s2 = inlined_call_operand.vmem [shape: f32[8,32], index: 2, kind: input, shape index: {}]
  %s3 = inlined_call_operand.vmem [shape: bf16[2,32,1536], index: 3, kind: input, shape index: {}]
  %s4 = inlined_call_operand.vmem [shape: f32[2,1,1536], index: 4, kind: input, shape index: {}]
  %s5 = inlined_call_operand.vmem [shape: bf16[2,128,32], index: 5, kind: input, shape index: {}]
  %s6 = inlined_call_operand.vmem [shape: f32[2,1,32], index: 6, kind: input, shape index: {}]
  %s7 = inlined_call_operand.vmem [shape: f32[2,1,32], index: 7, kind: input, shape index: {}]
  %s8 = inlined_call_operand.vmem [shape: f32[2,1,32], index: 8, kind: input, shape index: {}]
  %s9 = inlined_call_operand.vmem [shape: bf16[2,32,2048], index: 9, kind: input, shape index: {}]
  %s10 = inlined_call_operand.vmem [shape: f32[2,1,2048], index: 10, kind: input, shape index: {}]
  %s11 = inlined_call_operand.vmem [shape: bf16[2,2048,32], index: 11, kind: input, shape index: {}]
  %s12 = inlined_call_operand.vmem [shape: f32[2,1,32], index: 12, kind: input, shape index: {}]
  %s13 = inlined_call_operand.vmem [shape: f32[2,1,32], index: 13, kind: input, shape index: {}]
  %s14 = inlined_call_operand.vmem [shape: f32[2,1,32], index: 14, kind: input, shape index: {}]
  %s15 = inlined_call_operand.vmem [shape: bf16[32,128], index: 15, kind: input, shape index: {}]
  %s16 = inlined_call_operand.vmem [shape: f32[1,128], index: 16, kind: input, shape index: {}]
  %s17 = inlined_call_operand.hbm [shape: f32[2,8,128], index: 17, kind: output, shape index: {}]
  %s18 = sld [smem:[#allocation0]]
  $region78: #{tpu_custom_call.1} parent=0
    _
  %s20 = ssub.s32 1, %s18
  %s21 = scalar_select 0, %s20, %s18
  $region1: #{tpu_custom_call.1} parent=0
    #allocation2 [shape = 'u8[8192]{0}', space=vmem, size = 0x2000, scoped, tag = 'output window, operand 0, single buffered']
    #allocation3 [shape = 's32[1]{0}', space=sflag, size = 0x4, scoped, tag = 'scoped memory for tpu_custom_call.1']
    %22 = vsyncpa [#allocation3], 0
    // Predicated region
    $region2: #{tpu_custom_call.1} parent=1 // pred_check
      _
    $region3: #{tpu_custom_call.1} parent=1 // pred_check_branch
      %24 = sbr.rel (0) target = $region5
    $region4: #{tpu_custom_call.1} parent=1 // pred_region
      _
    $region5: #{tpu_custom_call.1} parent=1 // pred_fallthru
      _
    // Predicated region
    $region6: #{tpu_custom_call.1} parent=1 // pred_check
      _
    $region7: #{tpu_custom_call.1} parent=1 // pred_check_branch
      %26 = sbr.rel (0) target = $region9
    $region8: #{tpu_custom_call.1} parent=1 // pred_region
      _
    $region9: #{tpu_custom_call.1} parent=1 // pred_fallthru
      _
    // Predicated region
    $region10: #{tpu_custom_call.1} parent=1 // pred_check
      _
    $region11: #{tpu_custom_call.1} parent=1 // pred_check_branch
      %28 = sbr.rel (0) target = $region13
    $region12: #{tpu_custom_call.1} parent=1 // pred_region
      _
    $region13: #{tpu_custom_call.1} parent=1 // pred_fallthru
      _
    // Predicated region
    $region14: #{tpu_custom_call.1} parent=1 // pred_check
      _
    $region15: #{tpu_custom_call.1} parent=1 // pred_check_branch
      %30 = sbr.rel (0) target = $region17
    $region16: #{tpu_custom_call.1} parent=1 // pred_region
      _
    $region17: #{tpu_custom_call.1} parent=1 // pred_fallthru
      _
    // Predicated region
    $region18: #{tpu_custom_call.1} parent=1 // pred_check
      _
    $region19: #{tpu_custom_call.1} parent=1 // pred_check_branch
      %32 = sbr.rel (0) target = $region21
    $region20: #{tpu_custom_call.1} parent=1 // pred_region
      _
    $region21: #{tpu_custom_call.1} parent=1 // pred_fallthru
      _
    // Predicated region
    $region22: #{tpu_custom_call.1} parent=1 // pred_check
      _
    $region23: #{tpu_custom_call.1} parent=1 // pred_check_branch
      %34 = sbr.rel (0) target = $region25
    $region24: #{tpu_custom_call.1} parent=1 // pred_region
      _
    $region25: #{tpu_custom_call.1} parent=1 // pred_fallthru
      _
    // Predicated region
    $region26: #{tpu_custom_call.1} parent=1 // pred_check
      _
    $region27: #{tpu_custom_call.1} parent=1 // pred_check_branch
      %36 = sbr.rel (0) target = $region29
    $region28: #{tpu_custom_call.1} parent=1 // pred_region
      _
    $region29: #{tpu_custom_call.1} parent=1 // pred_fallthru
      _
    // Predicated region
    $region30: #{tpu_custom_call.1} parent=1 // pred_check
      _
    $region31: #{tpu_custom_call.1} parent=1 // pred_check_branch
      %38 = sbr.rel (0) target = $region33
    $region32: #{tpu_custom_call.1} parent=1 // pred_region
      _
    $region33: #{tpu_custom_call.1} parent=1 // pred_fallthru
      _
    // Predicated region
    $region34: #{tpu_custom_call.1} parent=1 // pred_check
      _
    $region35: #{tpu_custom_call.1} parent=1 // pred_check_branch
      %40 = sbr.rel (0) target = $region37
    $region36: #{tpu_custom_call.1} parent=1 // pred_region
      _
    $region37: #{tpu_custom_call.1} parent=1 // pred_fallthru
      _
    // Predicated region
    $region38: #{tpu_custom_call.1} parent=1 // pred_check
      _
    $region39: #{tpu_custom_call.1} parent=1 // pred_check_branch
      %42 = sbr.rel (0) target = $region41
    $region40: #{tpu_custom_call.1} parent=1 // pred_region
      _
    $region41: #{tpu_custom_call.1} parent=1 // pred_fallthru
      _
    // Predicated region
    $region42: #{tpu_custom_call.1} parent=1 // pred_check
      _
    $region43: #{tpu_custom_call.1} parent=1 // pred_check_branch
      %44 = sbr.rel (0) target = $region45
    $region44: #{tpu_custom_call.1} parent=1 // pred_region
      _
    $region45: #{tpu_custom_call.1} parent=1 // pred_fallthru
      _
    // Predicated region
    $region46: #{tpu_custom_call.1} parent=1 // pred_check
      _
    $region47: #{tpu_custom_call.1} parent=1 // pred_check_branch
      %46 = sbr.rel (0) target = $region49
    $region48: #{tpu_custom_call.1} parent=1 // pred_region
      _
    $region49: #{tpu_custom_call.1} parent=1 // pred_fallthru
      _
    // Predicated region
    $region50: #{tpu_custom_call.1} parent=1 // pred_check
      _
    $region51: #{tpu_custom_call.1} parent=1 // pred_check_branch
      %48 = sbr.rel (0) target = $region53
    $region52: #{tpu_custom_call.1} parent=1 // pred_region
      _
    $region53: #{tpu_custom_call.1} parent=1 // pred_fallthru
      _
    // Predicated region
    $region54: #{tpu_custom_call.1} parent=1 // pred_check
      _
    $region55: #{tpu_custom_call.1} parent=1 // pred_check_branch
      %50 = sbr.rel (0) target = $region57
    $region56: #{tpu_custom_call.1} parent=1 // pred_region
      _
    $region57: #{tpu_custom_call.1} parent=1 // pred_fallthru
      _
    // Predicated region
    $region58: #{tpu_custom_call.1} parent=1 // pred_check
      _
    $region59: #{tpu_custom_call.1} parent=1 // pred_check_branch
      %52 = sbr.rel (0) target = $region61
    $region60: #{tpu_custom_call.1} parent=1 // pred_region
      _
    $region61: #{tpu_custom_call.1} parent=1 // pred_fallthru
      _
    // Predicated region
    $region62: #{tpu_custom_call.1} parent=1 // pred_check
      _
    $region63: #{tpu_custom_call.1} parent=1 // pred_check_branch
      %54 = sbr.rel (0) target = $region65
    $region64: #{tpu_custom_call.1} parent=1 // pred_region
      _
    $region65: #{tpu_custom_call.1} parent=1 // pred_fallthru
      _
    // Predicated region
    $region66: #{tpu_custom_call.1} parent=1 // pred_check
      _
    $region67: #{tpu_custom_call.1} parent=1 // pred_check_branch
      %56 = sbr.rel (0) target = $region69
    $region68: #{tpu_custom_call.1} parent=1 // pred_region
      _
    $region69: #{tpu_custom_call.1} parent=1 // pred_fallthru
      _
    %v58 = vld [vmem:[%s0] sm:$0xff]
    %v59 = vld [vmem:[%s0 + $0x8] sm:$0xff]
    %v60 = vlaneseq
    %v61 = vand.u32 %v60, 127
    %62 = vset.pattern.permute.xlu0 0
    %63 = vperm.xlu0 %62, %v58
    %v64 = vpop.permute.xlu0 %63
    %65 = vset.pattern.permute.xlu0 0
    %66 = vperm.xlu0 %65, %v59
    %v67 = vpop.permute.xlu0 %66
    %vm68 = vcmp.eq.s32.totalorder %v64, %v61
    %vm69 = vcmp.eq.s32.totalorder %v67, %v61
    %v70 = vsel %vm68, 1, 0
    %v71 = vsel %vm69, 1, 0
    %v72 = vcvt.s32.f32 %v70
    %v73 = vcvt.s32.f32 %v71
    %v74 = vld [vmem:[%s1] sm:$0xff]
    %v75 = vld [vmem:[%s1 + $0x8] sm:$0xff]
    %v76 = vld [vmem:[%s2] sm:$0xff]
    %vm77 = vcmask 130048
    %v79 = vsel %vm77, %v72, 0
    %v82 = vsel %vm77, %v73, 0
    %84 = vmatprep.subr.mxu0 0.0
    %85 = vmatpush1.msra.mxu0 %v74
    %86 = vmatprep.subr.mxu0 0.0
    %87 = vmatpush1.msra.mxu0 %v75
    %88 = vmatprep.subr.mxu0 0.0
    %89 = vmatpush1.msra.mxu0 0.0
    %90 = vmatprep.subr.mxu0 0.0
    %91 = vmatpush1.msra.mxu0 0.0
    %92 = vmatprep.subr.mxu0 0.0
    %93 = vmatpush1.msra.mxu0 0.0
    %94 = vmatprep.subr.mxu0 0.0
    %95 = vmatpush1.msra.mxu0 0.0
    %96 = vmatprep.subr.mxu0 0.0
    %97 = vmatpush1.msra.mxu0 0.0
    %98 = vmatprep.subr.mxu0 0.0
    %99 = vmatpush1.msra.mxu0 0.0
    %100 = vmatprep.subr.mxu0 0.0
    %101 = vmatpush1.msra.mxu0 0.0
    %102 = vmatprep.subr.mxu0 0.0
    %103 = vmatpush1.msra.mxu0 0.0
    %104 = vmatprep.subr.mxu0 0.0
    %105 = vmatpush1.msra.mxu0 0.0
    %106 = vmatprep.subr.mxu0 0.0
    %107 = vmatpush1.msra.mxu0 0.0
    %108 = vmatprep.subr.mxu0 0.0
    %109 = vmatpush1.msra.mxu0 0.0
    %110 = vmatprep.subr.mxu0 0.0
    %111 = vmatpush1.msra.mxu0 0.0
    %112 = vmatprep.subr.mxu0 0.0
    %113 = vmatpush1.msra.mxu0 0.0
    %114 = vmatprep.subr.mxu0 0.0
    %115 = vmatpush1.msra.mxu0 0.0
    %116 = vmatprep.subr.mxu0 0.0
    %117 = vmatpush1.msra.mxu0 0.0
    %118 = vmatprep.subr.mxu0 0.0
    %119 = vmatpush1.msra.mxu0 0.0
    %120 = vmatprep.subr.mxu0 0.0
    %121 = vmatpush1.msra.mxu0 0.0
    %122 = vmatprep.subr.mxu0 0.0
    %123 = vmatpush1.msra.mxu0 0.0
    %124 = vmatprep.subr.mxu0 0.0
    %125 = vmatpush1.msra.mxu0 0.0
    %126 = vmatprep.subr.mxu0 0.0
    %127 = vmatpush1.msra.mxu0 0.0
    %128 = vmatprep.subr.mxu0 0.0
    %129 = vmatpush1.msra.mxu0 0.0
    %130 = vmatprep.subr.mxu0 0.0
    %131 = vmatpush1.msra.mxu0 0.0
    %132 = vmatprep.subr.mxu0 0.0
    %133 = vmatpush1.msra.mxu0 0.0
    %134 = vmatprep.subr.mxu0 0.0
    %135 = vmatpush1.msra.mxu0 0.0
    %136 = vmatprep.subr.mxu0 0.0
    %137 = vmatpush1.msra.mxu0 0.0
    %138 = vmatprep.subr.mxu0 0.0
    %139 = vmatpush1.msra.mxu0 0.0
    %140 = vmatprep.subr.mxu0 0.0
    %141 = vmatpush1.msra.mxu0 0.0
    %142 = vmatprep.subr.mxu0 0.0
    %143 = vmatpush1.msra.mxu0 0.0
    %144 = vmatprep.subr.mxu0 0.0
    %145 = vmatpush1.msra.mxu0 0.0
    %146 = vmatprep.subr.mxu0 0.0
    %147 = vmatpush1.msra.mxu0 0.0
    %148 = vmatprep.mubr.f32.mxu0 0.0
    %149 = vmatmul.mubr.f32.gmra.mrb[0].mxu0 %v79
    %v150 = vpop.f32.mrb[0].mxu0
    %v151 = vadd.f32 %v76, %v150
    %v152 = vpop.f32.mrb[0].mxu0
    %153 = vmatprep.mubr.f32.mxu0 0.0
    %154 = vmatmul.mubr.f32.gmra.mrb[0].mxu0 %v82
    %v155 = vpop.f32.mrb[0].mxu0
    %v156 = vadd.f32 %v76, %v155
    %v157 = vpop.f32.mrb[0].mxu0
    %158 = vdwg.mxu0
    %v159 = vlaneseq
    %v160 = vshrl.u32 %v159, 7
    %vm161 = vcmp.gt.s32.totalorder %v61, %v160
    %v162 = vsel %vm161, -1e+30, 0.0
    %v163 = vpack.c.bf16 %v156, %v151
    %v164 = vld [vmem:[%s3] sm:$0xff]
    %v165 = vld [vmem:[%s3 + $0x8] sm:$0xff]
    %v166 = vld [vmem:[%s3 + $0x10] sm:$0xff]
    %v167 = vld [vmem:[%s3 + $0x18] sm:$0xff]
    %v168 = vld [vmem:[%s3 + $0x20] sm:$0xff]
    %v169 = vld [vmem:[%s3 + $0x28] sm:$0xff]
    %v170 = vld [vmem:[%s3 + $0x30] sm:$0xff]
    %v171 = vld [vmem:[%s3 + $0x38] sm:$0xff]
    %v172 = vld [vmem:[%s3 + $0x40] sm:$0xff]
    %v173 = vld [vmem:[%s3 + $0x48] sm:$0xff]
    %v174 = vld [vmem:[%s3 + $0x50] sm:$0xff]
    %v175 = vld [vmem:[%s3 + $0x58] sm:$0xff]
    %v176 = vld [vmem:[%s3 + $0x60] sm:$0xff]
    %v177 = vld [vmem:[%s3 + $0x68] sm:$0xff]
    %v178 = vld [vmem:[%s3 + $0x70] sm:$0xff]
    %v179 = vld [vmem:[%s3 + $0x78] sm:$0xff]
    %v180 = vld [vmem:[%s3 + $0x80] sm:$0xff]
    %v181 = vld [vmem:[%s3 + $0x88] sm:$0xff]
    %v182 = vld [vmem:[%s3 + $0x90] sm:$0xff]
    %v183 = vld [vmem:[%s3 + $0x98] sm:$0xff]
    %v184 = vld [vmem:[%s3 + $0xa0] sm:$0xff]
    %v185 = vld [vmem:[%s3 + $0xa8] sm:$0xff]
    %v186 = vld [vmem:[%s3 + $0xb0] sm:$0xff]
    %v187 = vld [vmem:[%s3 + $0xb8] sm:$0xff]
    %v188 = vld [vmem:[%s4] sm:$0xff]
    %v189 = vld [vmem:[%s4 + $0x8] sm:$0xf]
    %v192 = vlaneseq
    %v193 = vshrl.u32 %v192, 7
    %v194 = vsub.s32 0, %v193
    %v195 = vrot.slane %v188, %v194
    %v196 = vlaneseq
    %v197 = vshrl.u32 %v196, 7
    %v198 = vsub.s32 1, %v197
    %v199 = vrot.slane %v188, %v198
    %v200 = vlaneseq
    %v201 = vshrl.u32 %v200, 7
    %v202 = vsub.s32 2, %v201
    %v203 = vrot.slane %v188, %v202
    %v204 = vlaneseq
    %v205 = vshrl.u32 %v204, 7
    %v206 = vsub.s32 3, %v205
    %v207 = vrot.slane %v188, %v206
    %v208 = vlaneseq
    %v209 = vshrl.u32 %v208, 7
    %v210 = vsub.s32 4, %v209
    %v211 = vrot.slane %v188, %v210
    %v212 = vlaneseq
    %v213 = vshrl.u32 %v212, 7
    %v214 = vsub.s32 5, %v213
    %v215 = vrot.slane %v188, %v214
    %v216 = vlaneseq
    %v217 = vshrl.u32 %v216, 7
    %v218 = vsub.s32 6, %v217
    %v219 = vrot.slane %v188, %v218
    %v220 = vlaneseq
    %v221 = vshrl.u32 %v220, 7
    %v222 = vsub.s32 7, %v221
    %v223 = vrot.slane %v188, %v222
    %v224 = vlaneseq
    %v225 = vshrl.u32 %v224, 7
    %v226 = vsub.s32 0, %v225
    %v227 = vrot.slane %v189, %v226
    %v228 = vlaneseq
    %v229 = vshrl.u32 %v228, 7
    %v230 = vsub.s32 1, %v229
    %v231 = vrot.slane %v189, %v230
    %v232 = vlaneseq
    %v233 = vshrl.u32 %v232, 7
    %v234 = vsub.s32 2, %v233
    %v235 = vrot.slane %v189, %v234
    %v236 = vlaneseq
    %v237 = vshrl.u32 %v236, 7
    %v238 = vsub.s32 3, %v237
    %v239 = vrot.slane %v189, %v238
    %v276 = vunpack.c.l.b16 %v164
    %v277 = vunpack.c.h.b16 %v164
    %v278 = vunpack.c.l.b16 %v165
    %v279 = vunpack.c.h.b16 %v165
    %v280 = vunpack.c.l.b16 %v166
    %v281 = vunpack.c.h.b16 %v166
    %v282 = vunpack.c.l.b16 %v167
    %v283 = vunpack.c.h.b16 %v167
    %v284 = vunpack.c.l.b16 %v168
    %v285 = vunpack.c.h.b16 %v168
    %v286 = vunpack.c.l.b16 %v169
    %v287 = vunpack.c.h.b16 %v169
    %v288 = vunpack.c.l.b16 %v170
    %v289 = vunpack.c.h.b16 %v170
    %v290 = vunpack.c.l.b16 %v171
    %v291 = vunpack.c.h.b16 %v171
    %v292 = vunpack.c.l.b16 %v172
    %v293 = vunpack.c.h.b16 %v172
    %v294 = vunpack.c.l.b16 %v173
    %v295 = vunpack.c.h.b16 %v173
    %v296 = vunpack.c.l.b16 %v174
    %v297 = vunpack.c.h.b16 %v174
    %v298 = vunpack.c.l.b16 %v175
    %v299 = vunpack.c.h.b16 %v175
    %v300 = vunpack.c.l.b16 %v176
    %v301 = vunpack.c.h.b16 %v176
    %v302 = vunpack.c.l.b16 %v177
    %v303 = vunpack.c.h.b16 %v177
    %v304 = vunpack.c.l.b16 %v178
    %v305 = vunpack.c.h.b16 %v178
    %v306 = vunpack.c.l.b16 %v179
    %v307 = vunpack.c.h.b16 %v179
    %v308 = vunpack.c.l.b16 %v180
    %v309 = vunpack.c.h.b16 %v180
    %v310 = vunpack.c.l.b16 %v181
    %v311 = vunpack.c.h.b16 %v181
    %v312 = vunpack.c.l.b16 %v182
    %v313 = vunpack.c.h.b16 %v182
    %v314 = vunpack.c.l.b16 %v183
    %v315 = vunpack.c.h.b16 %v183
    %v316 = vunpack.c.l.b16 %v184
    %v317 = vunpack.c.h.b16 %v184
    %v318 = vunpack.c.l.b16 %v185
    %v319 = vunpack.c.h.b16 %v185
    %v320 = vunpack.c.l.b16 %v186
    %v321 = vunpack.c.h.b16 %v186
    %v322 = vunpack.c.l.b16 %v187
    %v323 = vunpack.c.h.b16 %v187
    %v324 = vpack.c.b16 %v288, %v276
    %v325 = vpack.c.b16 %v289, %v277
    %v326 = vpack.c.b16 %v290, %v278
    %v327 = vpack.c.b16 %v291, %v279
    %v328 = vpack.c.b16 %v292, %v280
    %v329 = vpack.c.b16 %v293, %v281
    %v330 = vpack.c.b16 %v294, %v282
    %v331 = vpack.c.b16 %v295, %v283
    %v332 = vpack.c.b16 %v296, %v284
    %v333 = vpack.c.b16 %v297, %v285
    %v334 = vpack.c.b16 %v298, %v286
    %v335 = vpack.c.b16 %v299, %v287
    %v336 = vpack.c.b16 %v312, %v300
    %v337 = vpack.c.b16 %v313, %v301
    %v338 = vpack.c.b16 %v314, %v302
    %v339 = vpack.c.b16 %v315, %v303
    %v340 = vpack.c.b16 %v316, %v304
    %v341 = vpack.c.b16 %v317, %v305
    %v342 = vpack.c.b16 %v318, %v306
    %v343 = vpack.c.b16 %v319, %v307
    %v344 = vpack.c.b16 %v320, %v308
    %v345 = vpack.c.b16 %v321, %v309
    %v346 = vpack.c.b16 %v322, %v310
    %v347 = vpack.c.b16 %v323, %v311
    %vm372 = vcmask 261120
    %v374 = vsel %vm372, %v163, 0
    %376 = vmatprep.subr.bf16.mxu0 %v325
    %377 = vmatpush1.bf16.msra.mxu0 %v324
    %378 = vmatprep.subr.bf16.mxu0 %v337
    %379 = vmatpush1.bf16.msra.mxu0 %v336
    %380 = vmatprep.subr.bf16.mxu0 0
    %381 = vmatpush1.bf16.msra.mxu0 0
    %382 = vmatprep.subr.bf16.mxu0 0
    %383 = vmatpush1.bf16.msra.mxu0 0
    %384 = vmatprep.subr.bf16.mxu0 0
    %385 = vmatpush1.bf16.msra.mxu0 0
    %386 = vmatprep.subr.bf16.mxu0 0
    %387 = vmatpush1.bf16.msra.mxu0 0
    %388 = vmatprep.subr.bf16.mxu0 0
    %389 = vmatpush1.bf16.msra.mxu0 0
    %390 = vmatprep.subr.bf16.mxu0 0
    %391 = vmatpush1.bf16.msra.mxu0 0
    %392 = vmatprep.subr.bf16.mxu0 0
    %393 = vmatpush1.bf16.msra.mxu0 0
    %394 = vmatprep.subr.bf16.mxu0 0
    %395 = vmatpush1.bf16.msra.mxu0 0
    %396 = vmatprep.subr.bf16.mxu0 0
    %397 = vmatpush1.bf16.msra.mxu0 0
    %398 = vmatprep.subr.bf16.mxu0 0
    %399 = vmatpush1.bf16.msra.mxu0 0
    %400 = vmatprep.subr.bf16.mxu0 0
    %401 = vmatpush1.bf16.msra.mxu0 0
    %402 = vmatprep.subr.bf16.mxu0 0
    %403 = vmatpush1.bf16.msra.mxu0 0
    %404 = vmatprep.subr.bf16.mxu0 0
    %405 = vmatpush1.bf16.msra.mxu0 0
    %406 = vmatprep.subr.bf16.mxu0 0
    %407 = vmatpush1.bf16.msra.mxu0 0
    %408 = vmatprep.mubr.bf16.mxu0 0
    %409 = vmatmul.mubr.bf16.gmra.mrb[0].mxu0 %v374
    %v410 = vpop.f32.mrb[0].mxu0
    %v411 = vadd.f32 %v195, %v410
    %v412 = vpop.f32.mrb[0].mxu0
    %v413 = vadd.f32 %v199, %v412
    %v414 = vpop.f32.mrb[0].mxu0
    %v415 = vadd.f32 %v195, %v414
    %v416 = vpop.f32.mrb[0].mxu0
    %v417 = vadd.f32 %v199, %v416
    %418 = vdwg.mxu0
    %419 = vmatprep.subr.bf16.mxu0 %v327
    %420 = vmatpush1.bf16.msra.mxu0 %v326
    %421 = vmatprep.subr.bf16.mxu0 %v339
    %422 = vmatpush1.bf16.msra.mxu0 %v338
    %423 = vmatprep.subr.bf16.mxu0 0
    %424 = vmatpush1.bf16.msra.mxu0 0
    %425 = vmatprep.subr.bf16.mxu0 0
    %426 = vmatpush1.bf16.msra.mxu0 0
    %427 = vmatprep.subr.bf16.mxu0 0
    %428 = vmatpush1.bf16.msra.mxu0 0
    %429 = vmatprep.subr.bf16.mxu0 0
    %430 = vmatpush1.bf16.msra.mxu0 0
    %431 = vmatprep.subr.bf16.mxu0 0
    %432 = vmatpush1.bf16.msra.mxu0 0
    %433 = vmatprep.subr.bf16.mxu0 0
    %434 = vmatpush1.bf16.msra.mxu0 0
    %435 = vmatprep.subr.bf16.mxu0 0
    %436 = vmatpush1.bf16.msra.mxu0 0
    %437 = vmatprep.subr.bf16.mxu0 0
    %438 = vmatpush1.bf16.msra.mxu0 0
    %439 = vmatprep.subr.bf16.mxu0 0
    %440 = vmatpush1.bf16.msra.mxu0 0
    %441 = vmatprep.subr.bf16.mxu0 0
    %442 = vmatpush1.bf16.msra.mxu0 0
    %443 = vmatprep.subr.bf16.mxu0 0
    %444 = vmatpush1.bf16.msra.mxu0 0
    %445 = vmatprep.subr.bf16.mxu0 0
    %446 = vmatpush1.bf16.msra.mxu0 0
    %447 = vmatprep.subr.bf16.mxu0 0
    %448 = vmatpush1.bf16.msra.mxu0 0
    %449 = vmatprep.subr.bf16.mxu0 0
    %450 = vmatpush1.bf16.msra.mxu0 0
    %451 = vmatprep.mubr.bf16.mxu0 0
    %452 = vmatmul.mubr.bf16.gmra.mrb[0].mxu0 %v374
    %v453 = vpop.f32.mrb[0].mxu0
    %v454 = vadd.f32 %v203, %v453
    %v455 = vpop.f32.mrb[0].mxu0
    %v456 = vadd.f32 %v207, %v455
    %v457 = vpop.f32.mrb[0].mxu0
    %v458 = vadd.f32 %v203, %v457
    %v459 = vpop.f32.mrb[0].mxu0
    %v460 = vadd.f32 %v207, %v459
    %461 = vdwg.mxu0
    %462 = vmatprep.subr.bf16.mxu0 %v329
    %463 = vmatpush1.bf16.msra.mxu0 %v328
    %464 = vmatprep.subr.bf16.mxu0 %v341
    %465 = vmatpush1.bf16.msra.mxu0 %v340
    %466 = vmatprep.subr.bf16.mxu0 0
    %467 = vmatpush1.bf16.msra.mxu0 0
    %468 = vmatprep.subr.bf16.mxu0 0
    %469 = vmatpush1.bf16.msra.mxu0 0
    %470 = vmatprep.subr.bf16.mxu0 0
    %471 = vmatpush1.bf16.msra.mxu0 0
    %472 = vmatprep.subr.bf16.mxu0 0
    %473 = vmatpush1.bf16.msra.mxu0 0
    %474 = vmatprep.subr.bf16.mxu0 0
    %475 = vmatpush1.bf16.msra.mxu0 0
    %476 = vmatprep.subr.bf16.mxu0 0
    %477 = vmatpush1.bf16.msra.mxu0 0
    %478 = vmatprep.subr.bf16.mxu0 0
    %479 = vmatpush1.bf16.msra.mxu0 0
    %480 = vmatprep.subr.bf16.mxu0 0
    %481 = vmatpush1.bf16.msra.mxu0 0
    %482 = vmatprep.subr.bf16.mxu0 0
    %483 = vmatpush1.bf16.msra.mxu0 0
    %484 = vmatprep.subr.bf16.mxu0 0
    %485 = vmatpush1.bf16.msra.mxu0 0
    %486 = vmatprep.subr.bf16.mxu0 0
    %487 = vmatpush1.bf16.msra.mxu0 0
    %488 = vmatprep.subr.bf16.mxu0 0
    %489 = vmatpush1.bf16.msra.mxu0 0
    %490 = vmatprep.subr.bf16.mxu0 0
    %491 = vmatpush1.bf16.msra.mxu0 0
    %492 = vmatprep.subr.bf16.mxu0 0
    %493 = vmatpush1.bf16.msra.mxu0 0
    %494 = vmatprep.mubr.bf16.mxu0 0
    %495 = vmatmul.mubr.bf16.gmra.mrb[0].mxu0 %v374
    %v496 = vpop.f32.mrb[0].mxu0
    %v497 = vadd.f32 %v211, %v496
    %v498 = vpop.f32.mrb[0].mxu0
    %v499 = vadd.f32 %v215, %v498
    %v500 = vpop.f32.mrb[0].mxu0
    %v501 = vadd.f32 %v211, %v500
    %v502 = vpop.f32.mrb[0].mxu0
    %v503 = vadd.f32 %v215, %v502
    %504 = vdwg.mxu0
    %505 = vmatprep.subr.bf16.mxu0 %v331
    %506 = vmatpush1.bf16.msra.mxu0 %v330
    %507 = vmatprep.subr.bf16.mxu0 %v343
    %508 = vmatpush1.bf16.msra.mxu0 %v342
    %509 = vmatprep.subr.bf16.mxu0 0
    %510 = vmatpush1.bf16.msra.mxu0 0
    %511 = vmatprep.subr.bf16.mxu0 0
    %512 = vmatpush1.bf16.msra.mxu0 0
    %513 = vmatprep.subr.bf16.mxu0 0
    %514 = vmatpush1.bf16.msra.mxu0 0
    %515 = vmatprep.subr.bf16.mxu0 0
    %516 = vmatpush1.bf16.msra.mxu0 0
    %517 = vmatprep.subr.bf16.mxu0 0
    %518 = vmatpush1.bf16.msra.mxu0 0
    %519 = vmatprep.subr.bf16.mxu0 0
    %520 = vmatpush1.bf16.msra.mxu0 0
    %521 = vmatprep.subr.bf16.mxu0 0
    %522 = vmatpush1.bf16.msra.mxu0 0
    %523 = vmatprep.subr.bf16.mxu0 0
    %524 = vmatpush1.bf16.msra.mxu0 0
    %525 = vmatprep.subr.bf16.mxu0 0
    %526 = vmatpush1.bf16.msra.mxu0 0
    %527 = vmatprep.subr.bf16.mxu0 0
    %528 = vmatpush1.bf16.msra.mxu0 0
    %529 = vmatprep.subr.bf16.mxu0 0
    %530 = vmatpush1.bf16.msra.mxu0 0
    %531 = vmatprep.subr.bf16.mxu0 0
    %532 = vmatpush1.bf16.msra.mxu0 0
    %533 = vmatprep.subr.bf16.mxu0 0
    %534 = vmatpush1.bf16.msra.mxu0 0
    %535 = vmatprep.subr.bf16.mxu0 0
    %536 = vmatpush1.bf16.msra.mxu0 0
    %537 = vmatprep.mubr.bf16.mxu0 0
    %538 = vmatmul.mubr.bf16.gmra.mrb[0].mxu0 %v374
    %v539 = vpop.f32.mrb[0].mxu0
    %v540 = vadd.f32 %v219, %v539
    %v541 = vpop.f32.mrb[0].mxu0
    %v542 = vadd.f32 %v223, %v541
    %v543 = vpop.f32.mrb[0].mxu0
    %v544 = vadd.f32 %v219, %v543
    %v545 = vpop.f32.mrb[0].mxu0
    %v546 = vadd.f32 %v223, %v545
    %547 = vdwg.mxu0
    %548 = vmatprep.subr.bf16.mxu0 %v333
    %549 = vmatpush1.bf16.msra.mxu0 %v332
    %550 = vmatprep.subr.bf16.mxu0 %v345
    %551 = vmatpush1.bf16.msra.mxu0 %v344
    %552 = vmatprep.subr.bf16.mxu0 0
    %553 = vmatpush1.bf16.msra.mxu0 0
    %554 = vmatprep.subr.bf16.mxu0 0
    %555 = vmatpush1.bf16.msra.mxu0 0
    %556 = vmatprep.subr.bf16.mxu0 0
    %557 = vmatpush1.bf16.msra.mxu0 0
    %558 = vmatprep.subr.bf16.mxu0 0
    %559 = vmatpush1.bf16.msra.mxu0 0
    %560 = vmatprep.subr.bf16.mxu0 0
    %561 = vmatpush1.bf16.msra.mxu0 0
    %562 = vmatprep.subr.bf16.mxu0 0
    %563 = vmatpush1.bf16.msra.mxu0 0
    %564 = vmatprep.subr.bf16.mxu0 0
    %565 = vmatpush1.bf16.msra.mxu0 0
    %566 = vmatprep.subr.bf16.mxu0 0
    %567 = vmatpush1.bf16.msra.mxu0 0
    %568 = vmatprep.subr.bf16.mxu0 0
    %569 = vmatpush1.bf16.msra.mxu0 0
    %570 = vmatprep.subr.bf16.mxu0 0
    %571 = vmatpush1.bf16.msra.mxu0 0
    %572 = vmatprep.subr.bf16.mxu0 0
    %573 = vmatpush1.bf16.msra.mxu0 0
    %574 = vmatprep.subr.bf16.mxu0 0
    %575 = vmatpush1.bf16.msra.mxu0 0
    %576 = vmatprep.subr.bf16.mxu0 0
    %577 = vmatpush1.bf16.msra.mxu0 0
    %578 = vmatprep.subr.bf16.mxu0 0
    %579 = vmatpush1.bf16.msra.mxu0 0
    %580 = vmatprep.mubr.bf16.mxu0 0
    %581 = vmatmul.mubr.bf16.gmra.mrb[0].mxu0 %v374
    %v582 = vpop.f32.mrb[0].mxu0
    %v583 = vadd.f32 %v227, %v582
    %v584 = vpop.f32.mrb[0].mxu0
    %v585 = vadd.f32 %v231, %v584
    %v586 = vpop.f32.mrb[0].mxu0
    %v587 = vadd.f32 %v227, %v586
    %v588 = vpop.f32.mrb[0].mxu0
    %v589 = vadd.f32 %v231, %v588
    %590 = vdwg.mxu0
    %591 = vmatprep.subr.bf16.mxu0 %v335
    %592 = vmatpush1.bf16.msra.mxu0 %v334
    %593 = vmatprep.subr.bf16.mxu0 %v347
    %594 = vmatpush1.bf16.msra.mxu0 %v346
    %595 = vmatprep.subr.bf16.mxu0 0
    %596 = vmatpush1.bf16.msra.mxu0 0
    %597 = vmatprep.subr.bf16.mxu0 0
    %598 = vmatpush1.bf16.msra.mxu0 0
    %599 = vmatprep.subr.bf16.mxu0 0
    %600 = vmatpush1.bf16.msra.mxu0 0
    %601 = vmatprep.subr.bf16.mxu0 0
    %602 = vmatpush1.bf16.msra.mxu0 0
    %603 = vmatprep.subr.bf16.mxu0 0
    %604 = vmatpush1.bf16.msra.mxu0 0
    %605 = vmatprep.subr.bf16.mxu0 0
    %606 = vmatpush1.bf16.msra.mxu0 0
    %607 = vmatprep.subr.bf16.mxu0 0
    %608 = vmatpush1.bf16.msra.mxu0 0
    %609 = vmatprep.subr.bf16.mxu0 0
    %610 = vmatpush1.bf16.msra.mxu0 0
    %611 = vmatprep.subr.bf16.mxu0 0
    %612 = vmatpush1.bf16.msra.mxu0 0
    %613 = vmatprep.subr.bf16.mxu0 0
    %614 = vmatpush1.bf16.msra.mxu0 0
    %615 = vmatprep.subr.bf16.mxu0 0
    %616 = vmatpush1.bf16.msra.mxu0 0
    %617 = vmatprep.subr.bf16.mxu0 0
    %618 = vmatpush1.bf16.msra.mxu0 0
    %619 = vmatprep.subr.bf16.mxu0 0
    %620 = vmatpush1.bf16.msra.mxu0 0
    %621 = vmatprep.subr.bf16.mxu0 0
    %622 = vmatpush1.bf16.msra.mxu0 0
    %623 = vmatprep.mubr.bf16.mxu0 0
    %624 = vmatmul.mubr.bf16.gmra.mrb[0].mxu0 %v374
    %v625 = vpop.f32.mrb[0].mxu0
    %v626 = vadd.f32 %v235, %v625
    %v627 = vpop.f32.mrb[0].mxu0
    %v628 = vadd.f32 %v239, %v627
    %v629 = vpop.f32.mrb[0].mxu0
    %v630 = vadd.f32 %v235, %v629
    %v631 = vpop.f32.mrb[0].mxu0
    %v632 = vadd.f32 %v239, %v631
    %633 = vdwg.mxu0
    %v634 = vpack.c.bf16 %v411, %v411
    %v635 = vpack.c.bf16 %v413, %v413
    %v636 = vpack.c.bf16 %v454, %v454
    %v637 = vpack.c.bf16 %v456, %v456
    %v638 = vpack.c.bf16 %v415, %v415
    %v639 = vpack.c.bf16 %v417, %v417
    %v640 = vpack.c.bf16 %v458, %v458
    %v641 = vpack.c.bf16 %v460, %v460
    %v642 = vpack.c.bf16 %v497, %v497
    %v643 = vpack.c.bf16 %v499, %v499
    %v644 = vpack.c.bf16 %v540, %v540
    %v645 = vpack.c.bf16 %v542, %v542
    %v646 = vpack.c.bf16 %v501, %v501
    %v647 = vpack.c.bf16 %v503, %v503
    %v648 = vpack.c.bf16 %v544, %v544
    %v649 = vpack.c.bf16 %v546, %v546
    %v650 = vpack.c.bf16 %v583, %v583
    %v651 = vpack.c.bf16 %v585, %v585
    %v652 = vpack.c.bf16 %v626, %v626
    %v653 = vpack.c.bf16 %v628, %v628
    %v654 = vpack.c.bf16 %v587, %v587
    %v655 = vpack.c.bf16 %v589, %v589
    %v656 = vpack.c.bf16 %v630, %v630
    %v657 = vpack.c.bf16 %v632, %v632
    %658 = vmatprep.subr.bf16.mxu0 0
    %659 = vmatpush1.bf16.xpose.msra.mxu0 %v642
    %660 = vmatprep.subr.bf16.mxu0 0
    %661 = vmatpush1.bf16.xpose.msra.mxu0 0
    %662 = vmatprep.subr.bf16.mxu0 0
    %663 = vmatpush1.bf16.xpose.msra.mxu0 0
    %664 = vmatprep.subr.bf16.mxu0 0
    %665 = vmatpush1.bf16.xpose.msra.mxu0 0
    %666 = vmatprep.subr.bf16.mxu0 0
    %667 = vmatpush1.bf16.xpose.msra.mxu0 0
    %668 = vmatprep.subr.bf16.mxu0 0
    %669 = vmatpush1.bf16.xpose.msra.mxu0 0
    %670 = vmatprep.subr.bf16.mxu0 0
    %671 = vmatpush1.bf16.xpose.msra.mxu0 0
    %672 = vmatprep.subr.bf16.mxu0 0
    %673 = vmatpush1.bf16.xpose.msra.mxu0 0
    %674 = vmatprep.subr.bf16.mxu0 0
    %675 = vmatpush1.bf16.xpose.msra.mxu0 0
    %676 = vmatprep.subr.bf16.mxu0 0
    %677 = vmatpush1.bf16.xpose.msra.mxu0 0
    %678 = vmatprep.subr.bf16.mxu0 0
    %679 = vmatpush1.bf16.xpose.msra.mxu0 0
    %680 = vmatprep.subr.bf16.mxu0 0
    %681 = vmatpush1.bf16.xpose.msra.mxu0 0
    %682 = vmatprep.subr.bf16.mxu0 0
    %683 = vmatpush1.bf16.xpose.msra.mxu0 0
    %684 = vmatprep.subr.bf16.mxu0 0
    %685 = vmatpush1.bf16.xpose.msra.mxu0 0
    %686 = vmatprep.subr.bf16.mxu0 0
    %687 = vmatpush1.bf16.xpose.msra.mxu0 0
    %688 = vmatprep.subr.bf16.mxu0 0
    %689 = vmatpush1.bf16.xpose.msra.mxu0 0
    %690 = vmatprep.mubr.bf16.mxu0 0
    %691 = vmatmul.mubr.bf16.gmra.mrb[0].mxu0 %v634
    %v692 = vpop.f32.mrb[0].mxu0
    %v693 = vadd.f32 %v162, %v692
    %v694 = vpop.f32.mrb[0].mxu0
    %v695 = vpop.f32.mrb[0].mxu0
    %v696 = vpop.f32.mrb[0].mxu0
    %697 = vdwg.mxu0
    %698 = vmatprep.subr.bf16.mxu0 0
    %699 = vmatpush1.bf16.xpose.msra.mxu0 %v643
    %700 = vmatprep.subr.bf16.mxu0 0
    %701 = vmatpush1.bf16.xpose.msra.mxu0 0
    %702 = vmatprep.subr.bf16.mxu0 0
    %703 = vmatpush1.bf16.xpose.msra.mxu0 0
    %704 = vmatprep.subr.bf16.mxu0 0
    %705 = vmatpush1.bf16.xpose.msra.mxu0 0
    %706 = vmatprep.subr.bf16.mxu0 0
    %707 = vmatpush1.bf16.xpose.msra.mxu0 0
    %708 = vmatprep.subr.bf16.mxu0 0
    %709 = vmatpush1.bf16.xpose.msra.mxu0 0
    %710 = vmatprep.subr.bf16.mxu0 0
    %711 = vmatpush1.bf16.xpose.msra.mxu0 0
    %712 = vmatprep.subr.bf16.mxu0 0
    %713 = vmatpush1.bf16.xpose.msra.mxu0 0
    %714 = vmatprep.subr.bf16.mxu0 0
    %715 = vmatpush1.bf16.xpose.msra.mxu0 0
    %716 = vmatprep.subr.bf16.mxu0 0
    %717 = vmatpush1.bf16.xpose.msra.mxu0 0
    %718 = vmatprep.subr.bf16.mxu0 0
    %719 = vmatpush1.bf16.xpose.msra.mxu0 0
    %720 = vmatprep.subr.bf16.mxu0 0
    %721 = vmatpush1.bf16.xpose.msra.mxu0 0
    %722 = vmatprep.subr.bf16.mxu0 0
    %723 = vmatpush1.bf16.xpose.msra.mxu0 0
    %724 = vmatprep.subr.bf16.mxu0 0
    %725 = vmatpush1.bf16.xpose.msra.mxu0 0
    %726 = vmatprep.subr.bf16.mxu0 0
    %727 = vmatpush1.bf16.xpose.msra.mxu0 0
    %728 = vmatprep.subr.bf16.mxu0 0
    %729 = vmatpush1.bf16.xpose.msra.mxu0 0
    %730 = vmatprep.mubr.bf16.mxu0 0
    %731 = vmatmul.mubr.bf16.gmra.mrb[0].mxu0 %v635
    %v732 = vpop.f32.mrb[0].mxu0
    %v733 = vadd.f32 %v162, %v732
    %v734 = vpop.f32.mrb[0].mxu0
    %v735 = vpop.f32.mrb[0].mxu0
    %v736 = vpop.f32.mrb[0].mxu0
    %737 = vdwg.mxu0
    %738 = vmatprep.subr.bf16.mxu0 0
    %739 = vmatpush1.bf16.xpose.msra.mxu0 %v644
    %740 = vmatprep.subr.bf16.mxu0 0
    %741 = vmatpush1.bf16.xpose.msra.mxu0 0
    %742 = vmatprep.subr.bf16.mxu0 0
    %743 = vmatpush1.bf16.xpose.msra.mxu0 0
    %744 = vmatprep.subr.bf16.mxu0 0
    %745 = vmatpush1.bf16.xpose.msra.mxu0 0
    %746 = vmatprep.subr.bf16.mxu0 0
    %747 = vmatpush1.bf16.xpose.msra.mxu0 0
    %748 = vmatprep.subr.bf16.mxu0 0
    %749 = vmatpush1.bf16.xpose.msra.mxu0 0
    %750 = vmatprep.subr.bf16.mxu0 0
    %751 = vmatpush1.bf16.xpose.msra.mxu0 0
    %752 = vmatprep.subr.bf16.mxu0 0
    %753 = vmatpush1.bf16.xpose.msra.mxu0 0
    %754 = vmatprep.subr.bf16.mxu0 0
    %755 = vmatpush1.bf16.xpose.msra.mxu0 0
    %756 = vmatprep.subr.bf16.mxu0 0
    %757 = vmatpush1.bf16.xpose.msra.mxu0 0
    %758 = vmatprep.subr.bf16.mxu0 0
    %759 = vmatpush1.bf16.xpose.msra.mxu0 0
    %760 = vmatprep.subr.bf16.mxu0 0
    %761 = vmatpush1.bf16.xpose.msra.mxu0 0
    %762 = vmatprep.subr.bf16.mxu0 0
    %763 = vmatpush1.bf16.xpose.msra.mxu0 0
    %764 = vmatprep.subr.bf16.mxu0 0
    %765 = vmatpush1.bf16.xpose.msra.mxu0 0
    %766 = vmatprep.subr.bf16.mxu0 0
    %767 = vmatpush1.bf16.xpose.msra.mxu0 0
    %768 = vmatprep.subr.bf16.mxu0 0
    %769 = vmatpush1.bf16.xpose.msra.mxu0 0
    %770 = vmatprep.mubr.bf16.mxu0 0
    %771 = vmatmul.mubr.bf16.gmra.mrb[0].mxu0 %v636
    %v772 = vpop.f32.mrb[0].mxu0
    %v773 = vadd.f32 %v162, %v772
    %v774 = vpop.f32.mrb[0].mxu0
    %v775 = vpop.f32.mrb[0].mxu0
    %v776 = vpop.f32.mrb[0].mxu0
    %777 = vdwg.mxu0
    %778 = vmatprep.subr.bf16.mxu0 0
    %779 = vmatpush1.bf16.xpose.msra.mxu0 %v645
    %780 = vmatprep.subr.bf16.mxu0 0
    %781 = vmatpush1.bf16.xpose.msra.mxu0 0
    %782 = vmatprep.subr.bf16.mxu0 0
    %783 = vmatpush1.bf16.xpose.msra.mxu0 0
    %784 = vmatprep.subr.bf16.mxu0 0
    %785 = vmatpush1.bf16.xpose.msra.mxu0 0
    %786 = vmatprep.subr.bf16.mxu0 0
    %787 = vmatpush1.bf16.xpose.msra.mxu0 0
    %788 = vmatprep.subr.bf16.mxu0 0
    %789 = vmatpush1.bf16.xpose.msra.mxu0 0
    %790 = vmatprep.subr.bf16.mxu0 0
    %791 = vmatpush1.bf16.xpose.msra.mxu0 0
    %792 = vmatprep.subr.bf16.mxu0 0
    %793 = vmatpush1.bf16.xpose.msra.mxu0 0
    %794 = vmatprep.subr.bf16.mxu0 0
    %795 = vmatpush1.bf16.xpose.msra.mxu0 0
    %796 = vmatprep.subr.bf16.mxu0 0
    %797 = vmatpush1.bf16.xpose.msra.mxu0 0
    %798 = vmatprep.subr.bf16.mxu0 0
    %799 = vmatpush1.bf16.xpose.msra.mxu0 0
    %800 = vmatprep.subr.bf16.mxu0 0
    %801 = vmatpush1.bf16.xpose.msra.mxu0 0
    %802 = vmatprep.subr.bf16.mxu0 0
    %803 = vmatpush1.bf16.xpose.msra.mxu0 0
    %804 = vmatprep.subr.bf16.mxu0 0
    %805 = vmatpush1.bf16.xpose.msra.mxu0 0
    %806 = vmatprep.subr.bf16.mxu0 0
    %807 = vmatpush1.bf16.xpose.msra.mxu0 0
    %808 = vmatprep.subr.bf16.mxu0 0
    %809 = vmatpush1.bf16.xpose.msra.mxu0 0
    %810 = vmatprep.mubr.bf16.mxu0 0
    %811 = vmatmul.mubr.bf16.gmra.mrb[0].mxu0 %v637
    %v812 = vpop.f32.mrb[0].mxu0
    %v813 = vadd.f32 %v162, %v812
    %v814 = vpop.f32.mrb[0].mxu0
    %v815 = vpop.f32.mrb[0].mxu0
    %v816 = vpop.f32.mrb[0].mxu0
    %817 = vdwg.mxu0
    %818 = vmatprep.subr.bf16.mxu0 0
    %819 = vmatpush1.bf16.xpose.msra.mxu0 %v646
    %820 = vmatprep.subr.bf16.mxu0 0
    %821 = vmatpush1.bf16.xpose.msra.mxu0 0
    %822 = vmatprep.subr.bf16.mxu0 0
    %823 = vmatpush1.bf16.xpose.msra.mxu0 0
    %824 = vmatprep.subr.bf16.mxu0 0
    %825 = vmatpush1.bf16.xpose.msra.mxu0 0
    %826 = vmatprep.subr.bf16.mxu0 0
    %827 = vmatpush1.bf16.xpose.msra.mxu0 0
    %828 = vmatprep.subr.bf16.mxu0 0
    %829 = vmatpush1.bf16.xpose.msra.mxu0 0
    %830 = vmatprep.subr.bf16.mxu0 0
    %831 = vmatpush1.bf16.xpose.msra.mxu0 0
    %832 = vmatprep.subr.bf16.mxu0 0
    %833 = vmatpush1.bf16.xpose.msra.mxu0 0
    %834 = vmatprep.subr.bf16.mxu0 0
    %835 = vmatpush1.bf16.xpose.msra.mxu0 0
    %836 = vmatprep.subr.bf16.mxu0 0
    %837 = vmatpush1.bf16.xpose.msra.mxu0 0
    %838 = vmatprep.subr.bf16.mxu0 0
    %839 = vmatpush1.bf16.xpose.msra.mxu0 0
    %840 = vmatprep.subr.bf16.mxu0 0
    %841 = vmatpush1.bf16.xpose.msra.mxu0 0
    %842 = vmatprep.subr.bf16.mxu0 0
    %843 = vmatpush1.bf16.xpose.msra.mxu0 0
    %844 = vmatprep.subr.bf16.mxu0 0
    %845 = vmatpush1.bf16.xpose.msra.mxu0 0
    %846 = vmatprep.subr.bf16.mxu0 0
    %847 = vmatpush1.bf16.xpose.msra.mxu0 0
    %848 = vmatprep.subr.bf16.mxu0 0
    %849 = vmatpush1.bf16.xpose.msra.mxu0 0
    %850 = vmatprep.mubr.bf16.mxu0 0
    %851 = vmatmul.mubr.bf16.gmra.mrb[0].mxu0 %v638
    %v852 = vpop.f32.mrb[0].mxu0
    %v853 = vadd.f32 %v162, %v852
    %v854 = vpop.f32.mrb[0].mxu0
    %v855 = vpop.f32.mrb[0].mxu0
    %v856 = vpop.f32.mrb[0].mxu0
    %857 = vdwg.mxu0
    %858 = vmatprep.subr.bf16.mxu0 0
    %859 = vmatpush1.bf16.xpose.msra.mxu0 %v647
    %860 = vmatprep.subr.bf16.mxu0 0
    %861 = vmatpush1.bf16.xpose.msra.mxu0 0
    %862 = vmatprep.subr.bf16.mxu0 0
    %863 = vmatpush1.bf16.xpose.msra.mxu0 0
    %864 = vmatprep.subr.bf16.mxu0 0
    %865 = vmatpush1.bf16.xpose.msra.mxu0 0
    %866 = vmatprep.subr.bf16.mxu0 0
    %867 = vmatpush1.bf16.xpose.msra.mxu0 0
    %868 = vmatprep.subr.bf16.mxu0 0
    %869 = vmatpush1.bf16.xpose.msra.mxu0 0
    %870 = vmatprep.subr.bf16.mxu0 0
    %871 = vmatpush1.bf16.xpose.msra.mxu0 0
    %872 = vmatprep.subr.bf16.mxu0 0
    %873 = vmatpush1.bf16.xpose.msra.mxu0 0
    %874 = vmatprep.subr.bf16.mxu0 0
    %875 = vmatpush1.bf16.xpose.msra.mxu0 0
    %876 = vmatprep.subr.bf16.mxu0 0
    %877 = vmatpush1.bf16.xpose.msra.mxu0 0
    %878 = vmatprep.subr.bf16.mxu0 0
    %879 = vmatpush1.bf16.xpose.msra.mxu0 0
    %880 = vmatprep.subr.bf16.mxu0 0
    %881 = vmatpush1.bf16.xpose.msra.mxu0 0
    %882 = vmatprep.subr.bf16.mxu0 0
    %883 = vmatpush1.bf16.xpose.msra.mxu0 0
    %884 = vmatprep.subr.bf16.mxu0 0
    %885 = vmatpush1.bf16.xpose.msra.mxu0 0
    %886 = vmatprep.subr.bf16.mxu0 0
    %887 = vmatpush1.bf16.xpose.msra.mxu0 0
    %888 = vmatprep.subr.bf16.mxu0 0
    %889 = vmatpush1.bf16.xpose.msra.mxu0 0
    %890 = vmatprep.mubr.bf16.mxu0 0
    %891 = vmatmul.mubr.bf16.gmra.mrb[0].mxu0 %v639
    %v892 = vpop.f32.mrb[0].mxu0
    %v893 = vadd.f32 %v162, %v892
    %v894 = vpop.f32.mrb[0].mxu0
    %v895 = vpop.f32.mrb[0].mxu0
    %v896 = vpop.f32.mrb[0].mxu0
    %897 = vdwg.mxu0
    %898 = vmatprep.subr.bf16.mxu0 0
    %899 = vmatpush1.bf16.xpose.msra.mxu0 %v648
    %900 = vmatprep.subr.bf16.mxu0 0
    %901 = vmatpush1.bf16.xpose.msra.mxu0 0
    %902 = vmatprep.subr.bf16.mxu0 0
    %903 = vmatpush1.bf16.xpose.msra.mxu0 0
    %904 = vmatprep.subr.bf16.mxu0 0
    %905 = vmatpush1.bf16.xpose.msra.mxu0 0
    %906 = vmatprep.subr.bf16.mxu0 0
    %907 = vmatpush1.bf16.xpose.msra.mxu0 0
    %908 = vmatprep.subr.bf16.mxu0 0
    %909 = vmatpush1.bf16.xpose.msra.mxu0 0
    %910 = vmatprep.subr.bf16.mxu0 0
    %911 = vmatpush1.bf16.xpose.msra.mxu0 0
    %912 = vmatprep.subr.bf16.mxu0 0
    %913 = vmatpush1.bf16.xpose.msra.mxu0 0
    %914 = vmatprep.subr.bf16.mxu0 0
    %915 = vmatpush1.bf16.xpose.msra.mxu0 0
    %916 = vmatprep.subr.bf16.mxu0 0
    %917 = vmatpush1.bf16.xpose.msra.mxu0 0
    %918 = vmatprep.subr.bf16.mxu0 0
    %919 = vmatpush1.bf16.xpose.msra.mxu0 0
    %920 = vmatprep.subr.bf16.mxu0 0
    %921 = vmatpush1.bf16.xpose.msra.mxu0 0
    %922 = vmatprep.subr.bf16.mxu0 0
    %923 = vmatpush1.bf16.xpose.msra.mxu0 0
    %924 = vmatprep.subr.bf16.mxu0 0
    %925 = vmatpush1.bf16.xpose.msra.mxu0 0
    %926 = vmatprep.subr.bf16.mxu0 0
    %927 = vmatpush1.bf16.xpose.msra.mxu0 0
    %928 = vmatprep.subr.bf16.mxu0 0
    %929 = vmatpush1.bf16.xpose.msra.mxu0 0
    %930 = vmatprep.mubr.bf16.mxu0 0
    %931 = vmatmul.mubr.bf16.gmra.mrb[0].mxu0 %v640
    %v932 = vpop.f32.mrb[0].mxu0
    %v933 = vadd.f32 %v162, %v932
    %v934 = vpop.f32.mrb[0].mxu0
    %v935 = vpop.f32.mrb[0].mxu0
    %v936 = vpop.f32.mrb[0].mxu0
    %937 = vdwg.mxu0
    %938 = vmatprep.subr.bf16.mxu0 0
    %939 = vmatpush1.bf16.xpose.msra.mxu0 %v649
    %940 = vmatprep.subr.bf16.mxu0 0
    %941 = vmatpush1.bf16.xpose.msra.mxu0 0
    %942 = vmatprep.subr.bf16.mxu0 0
    %943 = vmatpush1.bf16.xpose.msra.mxu0 0
    %944 = vmatprep.subr.bf16.mxu0 0
    %945 = vmatpush1.bf16.xpose.msra.mxu0 0
    %946 = vmatprep.subr.bf16.mxu0 0
    %947 = vmatpush1.bf16.xpose.msra.mxu0 0
    %948 = vmatprep.subr.bf16.mxu0 0
    %949 = vmatpush1.bf16.xpose.msra.mxu0 0
    %950 = vmatprep.subr.bf16.mxu0 0
    %951 = vmatpush1.bf16.xpose.msra.mxu0 0
    %952 = vmatprep.subr.bf16.mxu0 0
    %953 = vmatpush1.bf16.xpose.msra.mxu0 0
    %954 = vmatprep.subr.bf16.mxu0 0
    %955 = vmatpush1.bf16.xpose.msra.mxu0 0
    %956 = vmatprep.subr.bf16.mxu0 0
    %957 = vmatpush1.bf16.xpose.msra.mxu0 0
    %958 = vmatprep.subr.bf16.mxu0 0
    %959 = vmatpush1.bf16.xpose.msra.mxu0 0
    %960 = vmatprep.subr.bf16.mxu0 0
    %961 = vmatpush1.bf16.xpose.msra.mxu0 0
    %962 = vmatprep.subr.bf16.mxu0 0
    %963 = vmatpush1.bf16.xpose.msra.mxu0 0
    %964 = vmatprep.subr.bf16.mxu0 0
    %965 = vmatpush1.bf16.xpose.msra.mxu0 0
    %966 = vmatprep.subr.bf16.mxu0 0
    %967 = vmatpush1.bf16.xpose.msra.mxu0 0
    %968 = vmatprep.subr.bf16.mxu0 0
    %969 = vmatpush1.bf16.xpose.msra.mxu0 0
    %970 = vmatprep.mubr.bf16.mxu0 0
    %971 = vmatmul.mubr.bf16.gmra.mrb[0].mxu0 %v641
    %v972 = vpop.f32.mrb[0].mxu0
    %v973 = vadd.f32 %v162, %v972
    %v974 = vpop.f32.mrb[0].mxu0
    %v975 = vpop.f32.mrb[0].mxu0
    %v976 = vpop.f32.mrb[0].mxu0
    %977 = vdwg.mxu0
    %vm978 = vcmask 64512
    %v979 = vsel %vm978, %v693, -inf
    %980 = vmax.xlane.f32.xlu0 %v979
    %v981 = vpop.xlane.xlu0 %980
    %v982 = vsel %vm978, %v733, -inf
    %983 = vmax.xlane.f32.xlu0 %v982
    %v984 = vpop.xlane.xlu0 %983
    %v985 = vsel %vm978, %v773, -inf
    %986 = vmax.xlane.f32.xlu0 %v985
    %v987 = vpop.xlane.xlu0 %986
    %v988 = vsel %vm978, %v813, -inf
    %989 = vmax.xlane.f32.xlu0 %v988
    %v990 = vpop.xlane.xlu0 %989
    %v991 = vsel %vm978, %v853, -inf
    %992 = vmax.xlane.f32.xlu0 %v991
    %v993 = vpop.xlane.xlu0 %992
    %v994 = vsel %vm978, %v893, -inf
    %995 = vmax.xlane.f32.xlu0 %v994
    %v996 = vpop.xlane.xlu0 %995
    %v997 = vsel %vm978, %v933, -inf
    %998 = vmax.xlane.f32.xlu0 %v997
    %v999 = vpop.xlane.xlu0 %998
    %v1000 = vsel %vm978, %v973, -inf
    %1001 = vmax.xlane.f32.xlu0 %v1000
    %v1002 = vpop.xlane.xlu0 %1001
    %v1003 = vsub.f32 %v693, %v981
    %v1004 = vsub.f32 %v733, %v984
    %v1005 = vsub.f32 %v773, %v987
    %v1006 = vsub.f32 %v813, %v990
    %v1007 = vsub.f32 %v853, %v993
    %v1008 = vsub.f32 %v893, %v996
    %v1009 = vsub.f32 %v933, %v999
    %v1010 = vsub.f32 %v973, %v1002
    %v1011 = vmul.f32 %v1003, 1.442695
    %v1012 = vpow.pop %v1011
    %v1013 = vmul.f32 %v1004, 1.442695
    %v1014 = vpow.pop %v1013
    %v1015 = vmul.f32 %v1005, 1.442695
    %v1016 = vpow.pop %v1015
    %v1017 = vmul.f32 %v1006, 1.442695
    %v1018 = vpow.pop %v1017
    %v1019 = vmul.f32 %v1007, 1.442695
    %v1020 = vpow.pop %v1019
    %v1021 = vmul.f32 %v1008, 1.442695
    %v1022 = vpow.pop %v1021
    %v1023 = vmul.f32 %v1009, 1.442695
    %v1024 = vpow.pop %v1023
    %v1025 = vmul.f32 %v1010, 1.442695
    %v1026 = vpow.pop %v1025
    %v1027 = vsel %vm978, %v1012, 0.0
    %1028 = vadd.xlane.f32.xlu0 %v1027
    %v1029 = vpop.xlane.xlu0 %1028
    %v1030 = vsel %vm978, %v1014, 0.0
    %1031 = vadd.xlane.f32.xlu0 %v1030
    %v1032 = vpop.xlane.xlu0 %1031
    %v1033 = vsel %vm978, %v1016, 0.0
    %1034 = vadd.xlane.f32.xlu0 %v1033
    %v1035 = vpop.xlane.xlu0 %1034
    %v1036 = vsel %vm978, %v1018, 0.0
    %1037 = vadd.xlane.f32.xlu0 %v1036
    %v1038 = vpop.xlane.xlu0 %1037
    %v1039 = vsel %vm978, %v1020, 0.0
    %1040 = vadd.xlane.f32.xlu0 %v1039
    %v1041 = vpop.xlane.xlu0 %1040
    %v1042 = vsel %vm978, %v1022, 0.0
    %1043 = vadd.xlane.f32.xlu0 %v1042
    %v1044 = vpop.xlane.xlu0 %1043
    %v1045 = vsel %vm978, %v1024, 0.0
    %1046 = vadd.xlane.f32.xlu0 %v1045
    %v1047 = vpop.xlane.xlu0 %1046
    %v1048 = vsel %vm978, %v1026, 0.0
    %1049 = vadd.xlane.f32.xlu0 %v1048
    %v1050 = vpop.xlane.xlu0 %1049
    %v1051 = vrcp.pop %v1029
    %v1052 = vrcp.pop %v1032
    %v1053 = vrcp.pop %v1035
    %v1054 = vrcp.pop %v1038
    %v1055 = vrcp.pop %v1041
    %v1056 = vrcp.pop %v1044
    %v1057 = vrcp.pop %v1047
    %v1058 = vrcp.pop %v1050
    %v1059 = vmul.f32 %v1012, %v1051
    %v1060 = vmul.f32 %v1014, %v1052
    %v1061 = vmul.f32 %v1016, %v1053
    %v1062 = vmul.f32 %v1018, %v1054
    %v1063 = vmul.f32 %v1020, %v1055
    %v1064 = vmul.f32 %v1022, %v1056
    %v1065 = vmul.f32 %v1024, %v1057
    %v1066 = vmul.f32 %v1026, %v1058
    %v1067 = vpack.c.bf16 %v1059, %v1059
    %v1068 = vpack.c.bf16 %v1060, %v1060
    %v1069 = vpack.c.bf16 %v1061, %v1061
    %v1070 = vpack.c.bf16 %v1062, %v1062
    %v1071 = vpack.c.bf16 %v1063, %v1063
    %v1072 = vpack.c.bf16 %v1064, %v1064
    %v1073 = vpack.c.bf16 %v1065, %v1065
    %v1074 = vpack.c.bf16 %v1066, %v1066
    %v1076 = vsel %vm978, %v1067, 0
    %vm1078 = vcmask 1043456
    %v1080 = vsel %vm1078, %v650, 0
    %1082 = vmatprep.subr.bf16.mxu0 0
    %1083 = vmatpush1.bf16.msra.mxu0 %v1080
    %1084 = vmatprep.subr.bf16.mxu0 0
    %1085 = vmatpush1.bf16.msra.mxu0 0
    %1086 = vmatprep.subr.bf16.mxu0 0
    %1087 = vmatpush1.bf16.msra.mxu0 0
    %1088 = vmatprep.subr.bf16.mxu0 0
    %1089 = vmatpush1.bf16.msra.mxu0 0
    %1090 = vmatprep.subr.bf16.mxu0 0
    %1091 = vmatpush1.bf16.msra.mxu0 0
    %1092 = vmatprep.subr.bf16.mxu0 0
    %1093 = vmatpush1.bf16.msra.mxu0 0
    %1094 = vmatprep.subr.bf16.mxu0 0
    %1095 = vmatpush1.bf16.msra.mxu0 0
    %1096 = vmatprep.subr.bf16.mxu0 0
    %1097 = vmatpush1.bf16.msra.mxu0 0
    %1098 = vmatprep.subr.bf16.mxu0 0
    %1099 = vmatpush1.bf16.msra.mxu0 0
    %1100 = vmatprep.subr.bf16.mxu0 0
    %1101 = vmatpush1.bf16.msra.mxu0 0
    %1102 = vmatprep.subr.bf16.mxu0 0
    %1103 = vmatpush1.bf16.msra.mxu0 0
    %1104 = vmatprep.subr.bf16.mxu0 0
    %1105 = vmatpush1.bf16.msra.mxu0 0
    %1106 = vmatprep.subr.bf16.mxu0 0
    %1107 = vmatpush1.bf16.msra.mxu0 0
    %1108 = vmatprep.subr.bf16.mxu0 0
    %1109 = vmatpush1.bf16.msra.mxu0 0
    %1110 = vmatprep.subr.bf16.mxu0 0
    %1111 = vmatpush1.bf16.msra.mxu0 0
    %1112 = vmatprep.subr.bf16.mxu0 0
    %1113 = vmatpush1.bf16.msra.mxu0 0
    %1114 = vmatprep.mubr.bf16.mxu0 0
    %1115 = vmatmul.mubr.bf16.gmra.mrb[0].mxu0 %v1076
    %v1116 = vpop.f32.mrb[0].mxu0
    %v1117 = vadd.f32 0.0, %v1116
    %v1118 = vpop.f32.mrb[0].mxu0
    %v1119 = vpop.f32.mrb[0].mxu0
    %v1120 = vpop.f32.mrb[0].mxu0
    %1121 = vdwg.mxu0
    %v1123 = vsel %vm978, %v1068, 0
    %v1126 = vsel %vm1078, %v651, 0
    %1128 = vmatprep.subr.bf16.mxu0 0
    %1129 = vmatpush1.bf16.msra.mxu0 %v1126
    %1130 = vmatprep.subr.bf16.mxu0 0
    %1131 = vmatpush1.bf16.msra.mxu0 0
    %1132 = vmatprep.subr.bf16.mxu0 0
    %1133 = vmatpush1.bf16.msra.mxu0 0
    %1134 = vmatprep.subr.bf16.mxu0 0
    %1135 = vmatpush1.bf16.msra.mxu0 0
    %1136 = vmatprep.subr.bf16.mxu0 0
    %1137 = vmatpush1.bf16.msra.mxu0 0
    %1138 = vmatprep.subr.bf16.mxu0 0
    %1139 = vmatpush1.bf16.msra.mxu0 0
    %1140 = vmatprep.subr.bf16.mxu0 0
    %1141 = vmatpush1.bf16.msra.mxu0 0
    %1142 = vmatprep.subr.bf16.mxu0 0
    %1143 = vmatpush1.bf16.msra.mxu0 0
    %1144 = vmatprep.subr.bf16.mxu0 0
    %1145 = vmatpush1.bf16.msra.mxu0 0
    %1146 = vmatprep.subr.bf16.mxu0 0
    %1147 = vmatpush1.bf16.msra.mxu0 0
    %1148 = vmatprep.subr.bf16.mxu0 0
    %1149 = vmatpush1.bf16.msra.mxu0 0
    %1150 = vmatprep.subr.bf16.mxu0 0
    %1151 = vmatpush1.bf16.msra.mxu0 0
    %1152 = vmatprep.subr.bf16.mxu0 0
    %1153 = vmatpush1.bf16.msra.mxu0 0
    %1154 = vmatprep.subr.bf16.mxu0 0
    %1155 = vmatpush1.bf16.msra.mxu0 0
    %1156 = vmatprep.subr.bf16.mxu0 0
    %1157 = vmatpush1.bf16.msra.mxu0 0
    %1158 = vmatprep.subr.bf16.mxu0 0
    %1159 = vmatpush1.bf16.msra.mxu0 0
    %1160 = vmatprep.mubr.bf16.mxu0 0
    %1161 = vmatmul.mubr.bf16.gmra.mrb[0].mxu0 %v1123
    %v1162 = vpop.f32.mrb[0].mxu0
    %v1163 = vadd.f32 0.0, %v1162
    %v1164 = vpop.f32.mrb[0].mxu0
    %v1165 = vpop.f32.mrb[0].mxu0
    %v1166 = vpop.f32.mrb[0].mxu0
    %1167 = vdwg.mxu0
    %v1169 = vsel %vm978, %v1069, 0
    %v1172 = vsel %vm1078, %v652, 0
    %1174 = vmatprep.subr.bf16.mxu0 0
    %1175 = vmatpush1.bf16.msra.mxu0 %v1172
    %1176 = vmatprep.subr.bf16.mxu0 0
    %1177 = vmatpush1.bf16.msra.mxu0 0
    %1178 = vmatprep.subr.bf16.mxu0 0
    %1179 = vmatpush1.bf16.msra.mxu0 0
    %1180 = vmatprep.subr.bf16.mxu0 0
    %1181 = vmatpush1.bf16.msra.mxu0 0
    %1182 = vmatprep.subr.bf16.mxu0 0
    %1183 = vmatpush1.bf16.msra.mxu0 0
    %1184 = vmatprep.subr.bf16.mxu0 0
    %1185 = vmatpush1.bf16.msra.mxu0 0
    %1186 = vmatprep.subr.bf16.mxu0 0
    %1187 = vmatpush1.bf16.msra.mxu0 0
    %1188 = vmatprep.subr.bf16.mxu0 0
    %1189 = vmatpush1.bf16.msra.mxu0 0
    %1190 = vmatprep.subr.bf16.mxu0 0
    %1191 = vmatpush1.bf16.msra.mxu0 0
    %1192 = vmatprep.subr.bf16.mxu0 0
    %1193 = vmatpush1.bf16.msra.mxu0 0
    %1194 = vmatprep.subr.bf16.mxu0 0
    %1195 = vmatpush1.bf16.msra.mxu0 0
    %1196 = vmatprep.subr.bf16.mxu0 0
    %1197 = vmatpush1.bf16.msra.mxu0 0
    %1198 = vmatprep.subr.bf16.mxu0 0
    %1199 = vmatpush1.bf16.msra.mxu0 0
    %1200 = vmatprep.subr.bf16.mxu0 0
    %1201 = vmatpush1.bf16.msra.mxu0 0
    %1202 = vmatprep.subr.bf16.mxu0 0
    %1203 = vmatpush1.bf16.msra.mxu0 0
    %1204 = vmatprep.subr.bf16.mxu0 0
    %1205 = vmatpush1.bf16.msra.mxu0 0
    %1206 = vmatprep.mubr.bf16.mxu0 0
    %1207 = vmatmul.mubr.bf16.gmra.mrb[0].mxu0 %v1169
    %v1208 = vpop.f32.mrb[0].mxu0
    %v1209 = vadd.f32 0.0, %v1208
    %v1210 = vpop.f32.mrb[0].mxu0
    %v1211 = vpop.f32.mrb[0].mxu0
    %v1212 = vpop.f32.mrb[0].mxu0
    %1213 = vdwg.mxu0
    %v1215 = vsel %vm978, %v1070, 0
    %v1218 = vsel %vm1078, %v653, 0
    %1220 = vmatprep.subr.bf16.mxu0 0
    %1221 = vmatpush1.bf16.msra.mxu0 %v1218
    %1222 = vmatprep.subr.bf16.mxu0 0
    %1223 = vmatpush1.bf16.msra.mxu0 0
    %1224 = vmatprep.subr.bf16.mxu0 0
    %1225 = vmatpush1.bf16.msra.mxu0 0
    %1226 = vmatprep.subr.bf16.mxu0 0
    %1227 = vmatpush1.bf16.msra.mxu0 0
    %1228 = vmatprep.subr.bf16.mxu0 0
    %1229 = vmatpush1.bf16.msra.mxu0 0
    %1230 = vmatprep.subr.bf16.mxu0 0
    %1231 = vmatpush1.bf16.msra.mxu0 0
    %1232 = vmatprep.subr.bf16.mxu0 0
    %1233 = vmatpush1.bf16.msra.mxu0 0
    %1234 = vmatprep.subr.bf16.mxu0 0
    %1235 = vmatpush1.bf16.msra.mxu0 0
    %1236 = vmatprep.subr.bf16.mxu0 0
    %1237 = vmatpush1.bf16.msra.mxu0 0
    %1238 = vmatprep.subr.bf16.mxu0 0
    %1239 = vmatpush1.bf16.msra.mxu0 0
    %1240 = vmatprep.subr.bf16.mxu0 0
    %1241 = vmatpush1.bf16.msra.mxu0 0
    %1242 = vmatprep.subr.bf16.mxu0 0
    %1243 = vmatpush1.bf16.msra.mxu0 0
    %1244 = vmatprep.subr.bf16.mxu0 0
    %1245 = vmatpush1.bf16.msra.mxu0 0
    %1246 = vmatprep.subr.bf16.mxu0 0
    %1247 = vmatpush1.bf16.msra.mxu0 0
    %1248 = vmatprep.subr.bf16.mxu0 0
    %1249 = vmatpush1.bf16.msra.mxu0 0
    %1250 = vmatprep.subr.bf16.mxu0 0
    %1251 = vmatpush1.bf16.msra.mxu0 0
    %1252 = vmatprep.mubr.bf16.mxu0 0
    %1253 = vmatmul.mubr.bf16.gmra.mrb[0].mxu0 %v1215
    %v1254 = vpop.f32.mrb[0].mxu0
    %v1255 = vadd.f32 0.0, %v1254
    %v1256 = vpop.f32.mrb[0].mxu0
    %v1257 = vpop.f32.mrb[0].mxu0
    %v1258 = vpop.f32.mrb[0].mxu0
    %1259 = vdwg.mxu0
    %v1261 = vsel %vm978, %v1071, 0
    %v1264 = vsel %vm1078, %v654, 0
    %1266 = vmatprep.subr.bf16.mxu0 0
    %1267 = vmatpush1.bf16.msra.mxu0 %v1264
    %1268 = vmatprep.subr.bf16.mxu0 0
    %1269 = vmatpush1.bf16.msra.mxu0 0
    %1270 = vmatprep.subr.bf16.mxu0 0
    %1271 = vmatpush1.bf16.msra.mxu0 0
    %1272 = vmatprep.subr.bf16.mxu0 0
    %1273 = vmatpush1.bf16.msra.mxu0 0
    %1274 = vmatprep.subr.bf16.mxu0 0
    %1275 = vmatpush1.bf16.msra.mxu0 0
    %1276 = vmatprep.subr.bf16.mxu0 0
    %1277 = vmatpush1.bf16.msra.mxu0 0
    %1278 = vmatprep.subr.bf16.mxu0 0
    %1279 = vmatpush1.bf16.msra.mxu0 0
    %1280 = vmatprep.subr.bf16.mxu0 0
    %1281 = vmatpush1.bf16.msra.mxu0 0
    %1282 = vmatprep.subr.bf16.mxu0 0
    %1283 = vmatpush1.bf16.msra.mxu0 0
    %1284 = vmatprep.subr.bf16.mxu0 0
    %1285 = vmatpush1.bf16.msra.mxu0 0
    %1286 = vmatprep.subr.bf16.mxu0 0
    %1287 = vmatpush1.bf16.msra.mxu0 0
    %1288 = vmatprep.subr.bf16.mxu0 0
    %1289 = vmatpush1.bf16.msra.mxu0 0
    %1290 = vmatprep.subr.bf16.mxu0 0
    %1291 = vmatpush1.bf16.msra.mxu0 0
    %1292 = vmatprep.subr.bf16.mxu0 0
    %1293 = vmatpush1.bf16.msra.mxu0 0
    %1294 = vmatprep.subr.bf16.mxu0 0
    %1295 = vmatpush1.bf16.msra.mxu0 0
    %1296 = vmatprep.subr.bf16.mxu0 0
    %1297 = vmatpush1.bf16.msra.mxu0 0
    %1298 = vmatprep.mubr.bf16.mxu0 0
    %1299 = vmatmul.mubr.bf16.gmra.mrb[0].mxu0 %v1261
    %v1300 = vpop.f32.mrb[0].mxu0
    %v1301 = vadd.f32 0.0, %v1300
    %v1302 = vpop.f32.mrb[0].mxu0
    %v1303 = vpop.f32.mrb[0].mxu0
    %v1304 = vpop.f32.mrb[0].mxu0
    %1305 = vdwg.mxu0
    %v1307 = vsel %vm978, %v1072, 0
    %v1310 = vsel %vm1078, %v655, 0
    %1312 = vmatprep.subr.bf16.mxu0 0
    %1313 = vmatpush1.bf16.msra.mxu0 %v1310
    %1314 = vmatprep.subr.bf16.mxu0 0
    %1315 = vmatpush1.bf16.msra.mxu0 0
    %1316 = vmatprep.subr.bf16.mxu0 0
    %1317 = vmatpush1.bf16.msra.mxu0 0
    %1318 = vmatprep.subr.bf16.mxu0 0
    %1319 = vmatpush1.bf16.msra.mxu0 0
    %1320 = vmatprep.subr.bf16.mxu0 0
    %1321 = vmatpush1.bf16.msra.mxu0 0
    %1322 = vmatprep.subr.bf16.mxu0 0
    %1323 = vmatpush1.bf16.msra.mxu0 0
    %1324 = vmatprep.subr.bf16.mxu0 0
    %1325 = vmatpush1.bf16.msra.mxu0 0
    %1326 = vmatprep.subr.bf16.mxu0 0
    %1327 = vmatpush1.bf16.msra.mxu0 0
    %1328 = vmatprep.subr.bf16.mxu0 0
    %1329 = vmatpush1.bf16.msra.mxu0 0
    %1330 = vmatprep.subr.bf16.mxu0 0
    %1331 = vmatpush1.bf16.msra.mxu0 0
    %1332 = vmatprep.subr.bf16.mxu0 0
    %1333 = vmatpush1.bf16.msra.mxu0 0
    %1334 = vmatprep.subr.bf16.mxu0 0
    %1335 = vmatpush1.bf16.msra.mxu0 0
    %1336 = vmatprep.subr.bf16.mxu0 0
    %1337 = vmatpush1.bf16.msra.mxu0 0
    %1338 = vmatprep.subr.bf16.mxu0 0
    %1339 = vmatpush1.bf16.msra.mxu0 0
    %1340 = vmatprep.subr.bf16.mxu0 0
    %1341 = vmatpush1.bf16.msra.mxu0 0
    %1342 = vmatprep.subr.bf16.mxu0 0
    %1343 = vmatpush1.bf16.msra.mxu0 0
    %1344 = vmatprep.mubr.bf16.mxu0 0
    %1345 = vmatmul.mubr.bf16.gmra.mrb[0].mxu0 %v1307
    %v1346 = vpop.f32.mrb[0].mxu0
    %v1347 = vadd.f32 0.0, %v1346
    %v1348 = vpop.f32.mrb[0].mxu0
    %v1349 = vpop.f32.mrb[0].mxu0
    %v1350 = vpop.f32.mrb[0].mxu0
    %1351 = vdwg.mxu0
    %v1353 = vsel %vm978, %v1073, 0
    %v1356 = vsel %vm1078, %v656, 0
    %1358 = vmatprep.subr.bf16.mxu0 0
    %1359 = vmatpush1.bf16.msra.mxu0 %v1356
    %1360 = vmatprep.subr.bf16.mxu0 0
    %1361 = vmatpush1.bf16.msra.mxu0 0
    %1362 = vmatprep.subr.bf16.mxu0 0
    %1363 = vmatpush1.bf16.msra.mxu0 0
    %1364 = vmatprep.subr.bf16.mxu0 0
    %1365 = vmatpush1.bf16.msra.mxu0 0
    %1366 = vmatprep.subr.bf16.mxu0 0
    %1367 = vmatpush1.bf16.msra.mxu0 0
    %1368 = vmatprep.subr.bf16.mxu0 0
    %1369 = vmatpush1.bf16.msra.mxu0 0
    %1370 = vmatprep.subr.bf16.mxu0 0
    %1371 = vmatpush1.bf16.msra.mxu0 0
    %1372 = vmatprep.subr.bf16.mxu0 0
    %1373 = vmatpush1.bf16.msra.mxu0 0
    %1374 = vmatprep.subr.bf16.mxu0 0
    %1375 = vmatpush1.bf16.msra.mxu0 0
    %1376 = vmatprep.subr.bf16.mxu0 0
    %1377 = vmatpush1.bf16.msra.mxu0 0
    %1378 = vmatprep.subr.bf16.mxu0 0
    %1379 = vmatpush1.bf16.msra.mxu0 0
    %1380 = vmatprep.subr.bf16.mxu0 0
    %1381 = vmatpush1.bf16.msra.mxu0 0
    %1382 = vmatprep.subr.bf16.mxu0 0
    %1383 = vmatpush1.bf16.msra.mxu0 0
    %1384 = vmatprep.subr.bf16.mxu0 0
    %1385 = vmatpush1.bf16.msra.mxu0 0
    %1386 = vmatprep.subr.bf16.mxu0 0
    %1387 = vmatpush1.bf16.msra.mxu0 0
    %1388 = vmatprep.subr.bf16.mxu0 0
    %1389 = vmatpush1.bf16.msra.mxu0 0
    %1390 = vmatprep.mubr.bf16.mxu0 0
    %1391 = vmatmul.mubr.bf16.gmra.mrb[0].mxu0 %v1353
    %v1392 = vpop.f32.mrb[0].mxu0
    %v1393 = vadd.f32 0.0, %v1392
    %v1394 = vpop.f32.mrb[0].mxu0
    %v1395 = vpop.f32.mrb[0].mxu0
    %v1396 = vpop.f32.mrb[0].mxu0
    %1397 = vdwg.mxu0
    %v1399 = vsel %vm978, %v1074, 0
    %v1402 = vsel %vm1078, %v657, 0
    %1404 = vmatprep.subr.bf16.mxu0 0
    %1405 = vmatpush1.bf16.msra.mxu0 %v1402
    %1406 = vmatprep.subr.bf16.mxu0 0
    %1407 = vmatpush1.bf16.msra.mxu0 0
    %1408 = vmatprep.subr.bf16.mxu0 0
    %1409 = vmatpush1.bf16.msra.mxu0 0
    %1410 = vmatprep.subr.bf16.mxu0 0
    %1411 = vmatpush1.bf16.msra.mxu0 0
    %1412 = vmatprep.subr.bf16.mxu0 0
    %1413 = vmatpush1.bf16.msra.mxu0 0
    %1414 = vmatprep.subr.bf16.mxu0 0
    %1415 = vmatpush1.bf16.msra.mxu0 0
    %1416 = vmatprep.subr.bf16.mxu0 0
    %1417 = vmatpush1.bf16.msra.mxu0 0
    %1418 = vmatprep.subr.bf16.mxu0 0
    %1419 = vmatpush1.bf16.msra.mxu0 0
    %1420 = vmatprep.subr.bf16.mxu0 0
    %1421 = vmatpush1.bf16.msra.mxu0 0
    %1422 = vmatprep.subr.bf16.mxu0 0
    %1423 = vmatpush1.bf16.msra.mxu0 0
    %1424 = vmatprep.subr.bf16.mxu0 0
    %1425 = vmatpush1.bf16.msra.mxu0 0
    %1426 = vmatprep.subr.bf16.mxu0 0
    %1427 = vmatpush1.bf16.msra.mxu0 0
    %1428 = vmatprep.subr.bf16.mxu0 0
    %1429 = vmatpush1.bf16.msra.mxu0 0
    %1430 = vmatprep.subr.bf16.mxu0 0
    %1431 = vmatpush1.bf16.msra.mxu0 0
    %1432 = vmatprep.subr.bf16.mxu0 0
    %1433 = vmatpush1.bf16.msra.mxu0 0
    %1434 = vmatprep.subr.bf16.mxu0 0
    %1435 = vmatpush1.bf16.msra.mxu0 0
    %1436 = vmatprep.mubr.bf16.mxu0 0
    %1437 = vmatmul.mubr.bf16.gmra.mrb[0].mxu0 %v1399
    %v1438 = vpop.f32.mrb[0].mxu0
    %v1439 = vadd.f32 0.0, %v1438
    %v1440 = vpop.f32.mrb[0].mxu0
    %v1441 = vpop.f32.mrb[0].mxu0
    %v1442 = vpop.f32.mrb[0].mxu0
    %1443 = vdwg.mxu0
    %v1444 = vadd.f32 %v1117, %v1163
    %v1445 = vadd.f32 %v1444, %v1209
    %v1446 = vadd.f32 %v1445, %v1255
    %v1447 = vadd.f32 %v1301, %v1347
    %v1448 = vadd.f32 %v1447, %v1393
    %v1449 = vadd.f32 %v1448, %v1439
    %v1450 = vpack.c.bf16 %v1449, %v1446
    %v1451 = vld [vmem:[%s5] sm:$0xf]
    %v1452 = vld [vmem:[%s5 + $0x4] sm:$0xf]
    %v1453 = vld [vmem:[%s5 + $0x8] sm:$0xf]
    %v1454 = vld [vmem:[%s5 + $0xc] sm:$0xf]
    %v1455 = vld [vmem:[%s5 + $0x10] sm:$0xf]
    %v1456 = vld [vmem:[%s5 + $0x14] sm:$0xf]
    %v1457 = vld [vmem:[%s5 + $0x18] sm:$0xf]
    %v1458 = vld [vmem:[%s5 + $0x1c] sm:$0xf]
    %v1459 = vld [vmem:[%s5 + $0x20] sm:$0xf]
    %v1460 = vld [vmem:[%s5 + $0x24] sm:$0xf]
    %v1461 = vld [vmem:[%s5 + $0x28] sm:$0xf]
    %v1462 = vld [vmem:[%s5 + $0x2c] sm:$0xf]
    %v1463 = vld [vmem:[%s5 + $0x30] sm:$0xf]
    %v1464 = vld [vmem:[%s5 + $0x34] sm:$0xf]
    %v1465 = vld [vmem:[%s5 + $0x38] sm:$0xf]
    %v1466 = vld [vmem:[%s5 + $0x3c] sm:$0xf]
    %v1467 = vld [vmem:[%s6] sm:$0x1]
    %v1469 = vlaneseq
    %v1470 = vshrl.u32 %v1469, 7
    %v1471 = vsub.s32 0, %v1470
    %v1472 = vrot.slane %v1467, %v1471
    %v1490 = vunpack.c.l.b16 %v1451
    %v1491 = vunpack.c.l.b16 %v1452
    %v1492 = vunpack.c.l.b16 %v1453
    %v1493 = vunpack.c.l.b16 %v1454
    %v1494 = vunpack.c.l.b16 %v1455
    %v1495 = vunpack.c.l.b16 %v1456
    %v1496 = vunpack.c.l.b16 %v1457
    %v1497 = vunpack.c.l.b16 %v1458
    %v1498 = vunpack.c.l.b16 %v1459
    %v1499 = vunpack.c.l.b16 %v1460
    %v1500 = vunpack.c.l.b16 %v1461
    %v1501 = vunpack.c.l.b16 %v1462
    %v1502 = vunpack.c.l.b16 %v1463
    %v1503 = vunpack.c.l.b16 %v1464
    %v1504 = vunpack.c.l.b16 %v1465
    %v1505 = vunpack.c.l.b16 %v1466
    %v1506 = vpack.c.b16 %v1491, %v1490
    %v1507 = vpack.c.b16 %v1493, %v1492
    %v1508 = vpack.c.b16 %v1495, %v1494
    %v1509 = vpack.c.b16 %v1497, %v1496
    %v1510 = vpack.c.b16 %v1499, %v1498
    %v1511 = vpack.c.b16 %v1501, %v1500
    %v1512 = vpack.c.b16 %v1503, %v1502
    %v1513 = vpack.c.b16 %v1505, %v1504
    %1522 = vmatprep.subr.bf16.mxu0 0
    %1523 = vmatpush1.bf16.msra.mxu0 %v1506
    %1524 = vmatprep.subr.bf16.mxu0 0
    %1525 = vmatpush1.bf16.msra.mxu0 %v1507
    %1526 = vmatprep.subr.bf16.mxu0 0
    %1527 = vmatpush1.bf16.msra.mxu0 %v1508
    %1528 = vmatprep.subr.bf16.mxu0 0
    %1529 = vmatpush1.bf16.msra.mxu0 %v1509
    %1530 = vmatprep.subr.bf16.mxu0 0
    %1531 = vmatpush1.bf16.msra.mxu0 %v1510
    %1532 = vmatprep.subr.bf16.mxu0 0
    %1533 = vmatpush1.bf16.msra.mxu0 %v1511
    %1534 = vmatprep.subr.bf16.mxu0 0
    %1535 = vmatpush1.bf16.msra.mxu0 %v1512
    %1536 = vmatprep.subr.bf16.mxu0 0
    %1537 = vmatpush1.bf16.msra.mxu0 %v1513
    %1538 = vmatprep.subr.bf16.mxu0 0
    %1539 = vmatpush1.bf16.msra.mxu0 0
    %1540 = vmatprep.subr.bf16.mxu0 0
    %1541 = vmatpush1.bf16.msra.mxu0 0
    %1542 = vmatprep.subr.bf16.mxu0 0
    %1543 = vmatpush1.bf16.msra.mxu0 0
    %1544 = vmatprep.subr.bf16.mxu0 0
    %1545 = vmatpush1.bf16.msra.mxu0 0
    %1546 = vmatprep.subr.bf16.mxu0 0
    %1547 = vmatpush1.bf16.msra.mxu0 0
    %1548 = vmatprep.subr.bf16.mxu0 0
    %1549 = vmatpush1.bf16.msra.mxu0 0
    %1550 = vmatprep.subr.bf16.mxu0 0
    %1551 = vmatpush1.bf16.msra.mxu0 0
    %1552 = vmatprep.subr.bf16.mxu0 0
    %1553 = vmatpush1.bf16.msra.mxu0 0
    %1554 = vmatprep.mubr.bf16.mxu0 0
    %1555 = vmatmul.mubr.bf16.gmra.mrb[0].mxu0 %v1450
    %v1556 = vpop.f32.mrb[0].mxu0
    %v1557 = vadd.f32 %v1472, %v1556
    %v1558 = vpop.f32.mrb[0].mxu0
    %v1559 = vpop.f32.mrb[0].mxu0
    %v1560 = vadd.f32 %v1472, %v1559
    %v1561 = vpop.f32.mrb[0].mxu0
    %1562 = vdwg.mxu0
    %v1563 = vadd.f32 %v151, %v1557
    %v1564 = vadd.f32 %v156, %v1560
    %v1565 = vld [vmem:[%s7] sm:$0x1]
    %v1566 = vld [vmem:[%s8] sm:$0x1]
    %v1567 = vsel %vm372, %v1563, 0.0
    %1568 = vadd.xlane.f32.xlu0 %v1567
    %v1569 = vpop.xlane.xlu0 %1568
    %v1570 = vsel %vm372, %v1564, 0.0
    %1571 = vadd.xlane.f32.xlu0 %v1570
    %v1572 = vpop.xlane.xlu0 %1571
    %v1573 = vrcp.pop 32.0
    %v1574 = vmul.f32 %v1569, %v1573
    %v1575 = vmul.f32 %v1572, %v1573
    %v1576 = vsub.f32 %v1563, %v1574
    %v1577 = vsub.f32 %v1564, %v1575
    %v1578 = vmul.f32 %v1576, %v1576
    %v1579 = vmul.f32 %v1577, %v1577
    %v1580 = vsel %vm372, %v1578, 0.0
    %1581 = vadd.xlane.f32.xlu0 %v1580
    %v1582 = vpop.xlane.xlu0 %1581
    %v1583 = vsel %vm372, %v1579, 0.0
    %1584 = vadd.xlane.f32.xlu0 %v1583
    %v1585 = vpop.xlane.xlu0 %1584
    %v1586 = vmul.f32 %v1582, %v1573
    %v1587 = vmul.f32 %v1585, %v1573
    %v1588 = vadd.f32 %v1586, 1e-05
    %v1589 = vadd.f32 %v1587, 1e-05
    %v1590 = vrsqrt.pop %v1588
    %v1591 = vrsqrt.pop %v1589
    %v1592 = vmul.f32 %v1576, %v1590
    %v1593 = vmul.f32 %v1577, %v1591
    %v1595 = vlaneseq
    %v1596 = vshrl.u32 %v1595, 7
    %v1597 = vsub.s32 0, %v1596
    %v1598 = vrot.slane %v1565, %v1597
    %v1600 = vmul.f32 %v1592, %v1598
    %v1601 = vmul.f32 %v1593, %v1598
    %v1603 = vlaneseq
    %v1604 = vshrl.u32 %v1603, 7
    %v1605 = vsub.s32 0, %v1604
    %v1606 = vrot.slane %v1566, %v1605
    %v1608 = vadd.f32 %v1600, %v1606
    %v1609 = vadd.f32 %v1601, %v1606
    %v1610 = vpack.c.bf16 %v1609, %v1608
    %v1611 = vld [vmem:[%s9] sm:$0xff]
    %v1612 = vld [vmem:[%s9 + $0x8] sm:$0xff]
    %v1613 = vld [vmem:[%s9 + $0x10] sm:$0xff]
    %v1614 = vld [vmem:[%s9 + $0x18] sm:$0xff]
    %v1615 = vld [vmem:[%s9 + $0x20] sm:$0xff]
    %v1616 = vld [vmem:[%s9 + $0x28] sm:$0xff]
    %v1617 = vld [vmem:[%s9 + $0x30] sm:$0xff]
    %v1618 = vld [vmem:[%s9 + $0x38] sm:$0xff]
    %v1619 = vld [vmem:[%s9 + $0x40] sm:$0xff]
    %v1620 = vld [vmem:[%s9 + $0x48] sm:$0xff]
    %v1621 = vld [vmem:[%s9 + $0x50] sm:$0xff]
    %v1622 = vld [vmem:[%s9 + $0x58] sm:$0xff]
    %v1623 = vld [vmem:[%s9 + $0x60] sm:$0xff]
    %v1624 = vld [vmem:[%s9 + $0x68] sm:$0xff]
    %v1625 = vld [vmem:[%s9 + $0x70] sm:$0xff]
    %v1626 = vld [vmem:[%s9 + $0x78] sm:$0xff]
    %v1627 = vld [vmem:[%s9 + $0x80] sm:$0xff]
    %v1628 = vld [vmem:[%s9 + $0x88] sm:$0xff]
    %v1629 = vld [vmem:[%s9 + $0x90] sm:$0xff]
    %v1630 = vld [vmem:[%s9 + $0x98] sm:$0xff]
    %v1631 = vld [vmem:[%s9 + $0xa0] sm:$0xff]
    %v1632 = vld [vmem:[%s9 + $0xa8] sm:$0xff]
    %v1633 = vld [vmem:[%s9 + $0xb0] sm:$0xff]
    %v1634 = vld [vmem:[%s9 + $0xb8] sm:$0xff]
    %v1635 = vld [vmem:[%s9 + $0xc0] sm:$0xff]
    %v1636 = vld [vmem:[%s9 + $0xc8] sm:$0xff]
    %v1637 = vld [vmem:[%s9 + $0xd0] sm:$0xff]
    %v1638 = vld [vmem:[%s9 + $0xd8] sm:$0xff]
    %v1639 = vld [vmem:[%s9 + $0xe0] sm:$0xff]
    %v1640 = vld [vmem:[%s9 + $0xe8] sm:$0xff]
    %v1641 = vld [vmem:[%s9 + $0xf0] sm:$0xff]
    %v1642 = vld [vmem:[%s9 + $0xf8] sm:$0xff]
    %v1643 = vld [vmem:[%s10] sm:$0xff]
    %v1644 = vld [vmem:[%s10 + $0x8] sm:$0xff]
    %v1647 = vlaneseq
    %v1648 = vshrl.u32 %v1647, 7
    %v1649 = vsub.s32 0, %v1648
    %v1650 = vrot.slane %v1643, %v1649
    %v1651 = vlaneseq
    %v1652 = vshrl.u32 %v1651, 7
    %v1653 = vsub.s32 1, %v1652
    %v1654 = vrot.slane %v1643, %v1653
    %v1655 = vlaneseq
    %v1656 = vshrl.u32 %v1655, 7
    %v1657 = vsub.s32 2, %v1656
    %v1658 = vrot.slane %v1643, %v1657
    %v1659 = vlaneseq
    %v1660 = vshrl.u32 %v1659, 7
    %v1661 = vsub.s32 3, %v1660
    %v1662 = vrot.slane %v1643, %v1661
    %v1663 = vlaneseq
    %v1664 = vshrl.u32 %v1663, 7
    %v1665 = vsub.s32 4, %v1664
    %v1666 = vrot.slane %v1643, %v1665
    %v1667 = vlaneseq
    %v1668 = vshrl.u32 %v1667, 7
    %v1669 = vsub.s32 5, %v1668
    %v1670 = vrot.slane %v1643, %v1669
    %v1671 = vlaneseq
    %v1672 = vshrl.u32 %v1671, 7
    %v1673 = vsub.s32 6, %v1672
    %v1674 = vrot.slane %v1643, %v1673
    %v1675 = vlaneseq
    %v1676 = vshrl.u32 %v1675, 7
    %v1677 = vsub.s32 7, %v1676
    %v1678 = vrot.slane %v1643, %v1677
    %v1679 = vlaneseq
    %v1680 = vshrl.u32 %v1679, 7
    %v1681 = vsub.s32 0, %v1680
    %v1682 = vrot.slane %v1644, %v1681
    %v1683 = vlaneseq
    %v1684 = vshrl.u32 %v1683, 7
    %v1685 = vsub.s32 1, %v1684
    %v1686 = vrot.slane %v1644, %v1685
    %v1687 = vlaneseq
    %v1688 = vshrl.u32 %v1687, 7
    %v1689 = vsub.s32 2, %v1688
    %v1690 = vrot.slane %v1644, %v1689
    %v1691 = vlaneseq
    %v1692 = vshrl.u32 %v1691, 7
    %v1693 = vsub.s32 3, %v1692
    %v1694 = vrot.slane %v1644, %v1693
    %v1695 = vlaneseq
    %v1696 = vshrl.u32 %v1695, 7
    %v1697 = vsub.s32 4, %v1696
    %v1698 = vrot.slane %v1644, %v1697
    %v1699 = vlaneseq
    %v1700 = vshrl.u32 %v1699, 7
    %v1701 = vsub.s32 5, %v1700
    %v1702 = vrot.slane %v1644, %v1701
    %v1703 = vlaneseq
    %v1704 = vshrl.u32 %v1703, 7
    %v1705 = vsub.s32 6, %v1704
    %v1706 = vrot.slane %v1644, %v1705
    %v1707 = vlaneseq
    %v1708 = vshrl.u32 %v1707, 7
    %v1709 = vsub.s32 7, %v1708
    %v1710 = vrot.slane %v1644, %v1709
    %v1759 = vunpack.c.l.b16 %v1611
    %v1760 = vunpack.c.h.b16 %v1611
    %v1761 = vunpack.c.l.b16 %v1612
    %v1762 = vunpack.c.h.b16 %v1612
    %v1763 = vunpack.c.l.b16 %v1613
    %v1764 = vunpack.c.h.b16 %v1613
    %v1765 = vunpack.c.l.b16 %v1614
    %v1766 = vunpack.c.h.b16 %v1614
    %v1767 = vunpack.c.l.b16 %v1615
    %v1768 = vunpack.c.h.b16 %v1615
    %v1769 = vunpack.c.l.b16 %v1616
    %v1770 = vunpack.c.h.b16 %v1616
    %v1771 = vunpack.c.l.b16 %v1617
    %v1772 = vunpack.c.h.b16 %v1617
    %v1773 = vunpack.c.l.b16 %v1618
    %v1774 = vunpack.c.h.b16 %v1618
    %v1775 = vunpack.c.l.b16 %v1619
    %v1776 = vunpack.c.h.b16 %v1619
    %v1777 = vunpack.c.l.b16 %v1620
    %v1778 = vunpack.c.h.b16 %v1620
    %v1779 = vunpack.c.l.b16 %v1621
    %v1780 = vunpack.c.h.b16 %v1621
    %v1781 = vunpack.c.l.b16 %v1622
    %v1782 = vunpack.c.h.b16 %v1622
    %v1783 = vunpack.c.l.b16 %v1623
    %v1784 = vunpack.c.h.b16 %v1623
    %v1785 = vunpack.c.l.b16 %v1624
    %v1786 = vunpack.c.h.b16 %v1624
    %v1787 = vunpack.c.l.b16 %v1625
    %v1788 = vunpack.c.h.b16 %v1625
    %v1789 = vunpack.c.l.b16 %v1626
    %v1790 = vunpack.c.h.b16 %v1626
    %v1791 = vunpack.c.l.b16 %v1627
    %v1792 = vunpack.c.h.b16 %v1627
    %v1793 = vunpack.c.l.b16 %v1628
    %v1794 = vunpack.c.h.b16 %v1628
    %v1795 = vunpack.c.l.b16 %v1629
    %v1796 = vunpack.c.h.b16 %v1629
    %v1797 = vunpack.c.l.b16 %v1630
    %v1798 = vunpack.c.h.b16 %v1630
    %v1799 = vunpack.c.l.b16 %v1631
    %v1800 = vunpack.c.h.b16 %v1631
    %v1801 = vunpack.c.l.b16 %v1632
    %v1802 = vunpack.c.h.b16 %v1632
    %v1803 = vunpack.c.l.b16 %v1633
    %v1804 = vunpack.c.h.b16 %v1633
    %v1805 = vunpack.c.l.b16 %v1634
    %v1806 = vunpack.c.h.b16 %v1634
    %v1807 = vunpack.c.l.b16 %v1635
    %v1808 = vunpack.c.h.b16 %v1635
    %v1809 = vunpack.c.l.b16 %v1636
    %v1810 = vunpack.c.h.b16 %v1636
    %v1811 = vunpack.c.l.b16 %v1637
    %v1812 = vunpack.c.h.b16 %v1637
    %v1813 = vunpack.c.l.b16 %v1638
    %v1814 = vunpack.c.h.b16 %v1638
    %v1815 = vunpack.c.l.b16 %v1639
    %v1816 = vunpack.c.h.b16 %v1639
    %v1817 = vunpack.c.l.b16 %v1640
    %v1818 = vunpack.c.h.b16 %v1640
    %v1819 = vunpack.c.l.b16 %v1641
    %v1820 = vunpack.c.h.b16 %v1641
    %v1821 = vunpack.c.l.b16 %v1642
    %v1822 = vunpack.c.h.b16 %v1642
    %v1823 = vpack.c.b16 %v1775, %v1759
    %v1824 = vpack.c.b16 %v1776, %v1760
    %v1825 = vpack.c.b16 %v1777, %v1761
    %v1826 = vpack.c.b16 %v1778, %v1762
    %v1827 = vpack.c.b16 %v1779, %v1763
    %v1828 = vpack.c.b16 %v1780, %v1764
    %v1829 = vpack.c.b16 %v1781, %v1765
    %v1830 = vpack.c.b16 %v1782, %v1766
    %v1831 = vpack.c.b16 %v1783, %v1767
    %v1832 = vpack.c.b16 %v1784, %v1768
    %v1833 = vpack.c.b16 %v1785, %v1769
    %v1834 = vpack.c.b16 %v1786, %v1770
    %v1835 = vpack.c.b16 %v1787, %v1771
    %v1836 = vpack.c.b16 %v1788, %v1772
    %v1837 = vpack.c.b16 %v1789, %v1773
    %v1838 = vpack.c.b16 %v1790, %v1774
    %v1839 = vpack.c.b16 %v1807, %v1791
    %v1840 = vpack.c.b16 %v1808, %v1792
    %v1841 = vpack.c.b16 %v1809, %v1793
    %v1842 = vpack.c.b16 %v1810, %v1794
    %v1843 = vpack.c.b16 %v1811, %v1795
    %v1844 = vpack.c.b16 %v1812, %v1796
    %v1845 = vpack.c.b16 %v1813, %v1797
    %v1846 = vpack.c.b16 %v1814, %v1798
    %v1847 = vpack.c.b16 %v1815, %v1799
    %v1848 = vpack.c.b16 %v1816, %v1800
    %v1849 = vpack.c.b16 %v1817, %v1801
    %v1850 = vpack.c.b16 %v1818, %v1802
    %v1851 = vpack.c.b16 %v1819, %v1803
    %v1852 = vpack.c.b16 %v1820, %v1804
    %v1853 = vpack.c.b16 %v1821, %v1805
    %v1854 = vpack.c.b16 %v1822, %v1806
    %v1888 = vsel %vm372, %v1610, 0
    %1890 = vmatprep.subr.bf16.mxu0 %v1824
    %1891 = vmatpush1.bf16.msra.mxu0 %v1823
    %1892 = vmatprep.subr.bf16.mxu0 %v1840
    %1893 = vmatpush1.bf16.msra.mxu0 %v1839
    %1894 = vmatprep.subr.bf16.mxu0 0
    %1895 = vmatpush1.bf16.msra.mxu0 0
    %1896 = vmatprep.subr.bf16.mxu0 0
    %1897 = vmatpush1.bf16.msra.mxu0 0
    %1898 = vmatprep.subr.bf16.mxu0 0
    %1899 = vmatpush1.bf16.msra.mxu0 0
    %1900 = vmatprep.subr.bf16.mxu0 0
    %1901 = vmatpush1.bf16.msra.mxu0 0
    %1902 = vmatprep.subr.bf16.mxu0 0
    %1903 = vmatpush1.bf16.msra.mxu0 0
    %1904 = vmatprep.subr.bf16.mxu0 0
    %1905 = vmatpush1.bf16.msra.mxu0 0
    %1906 = vmatprep.subr.bf16.mxu0 0
    %1907 = vmatpush1.bf16.msra.mxu0 0
    %1908 = vmatprep.subr.bf16.mxu0 0
    %1909 = vmatpush1.bf16.msra.mxu0 0
    %1910 = vmatprep.subr.bf16.mxu0 0
    %1911 = vmatpush1.bf16.msra.mxu0 0
    %1912 = vmatprep.subr.bf16.mxu0 0
    %1913 = vmatpush1.bf16.msra.mxu0 0
    %1914 = vmatprep.subr.bf16.mxu0 0
    %1915 = vmatpush1.bf16.msra.mxu0 0
    %1916 = vmatprep.subr.bf16.mxu0 0
    %1917 = vmatpush1.bf16.msra.mxu0 0
    %1918 = vmatprep.subr.bf16.mxu0 0
    %1919 = vmatpush1.bf16.msra.mxu0 0
    %1920 = vmatprep.subr.bf16.mxu0 0
    %1921 = vmatpush1.bf16.msra.mxu0 0
    %1922 = vmatprep.mubr.bf16.mxu0 0
    %1923 = vmatmul.mubr.bf16.gmra.mrb[0].mxu0 %v1888
    %v1924 = vpop.f32.mrb[0].mxu0
    %v1925 = vadd.f32 %v1650, %v1924
    %v1926 = vpop.f32.mrb[0].mxu0
    %v1927 = vadd.f32 %v1654, %v1926
    %v1928 = vpop.f32.mrb[0].mxu0
    %v1929 = vadd.f32 %v1650, %v1928
    %v1930 = vpop.f32.mrb[0].mxu0
    %v1931 = vadd.f32 %v1654, %v1930
    %1932 = vdwg.mxu0
    %1933 = vmatprep.subr.bf16.mxu0 %v1826
    %1934 = vmatpush1.bf16.msra.mxu0 %v1825
    %1935 = vmatprep.subr.bf16.mxu0 %v1842
    %1936 = vmatpush1.bf16.msra.mxu0 %v1841
    %1937 = vmatprep.subr.bf16.mxu0 0
    %1938 = vmatpush1.bf16.msra.mxu0 0
    %1939 = vmatprep.subr.bf16.mxu0 0
    %1940 = vmatpush1.bf16.msra.mxu0 0
    %1941 = vmatprep.subr.bf16.mxu0 0
    %1942 = vmatpush1.bf16.msra.mxu0 0
    %1943 = vmatprep.subr.bf16.mxu0 0
    %1944 = vmatpush1.bf16.msra.mxu0 0
    %1945 = vmatprep.subr.bf16.mxu0 0
    %1946 = vmatpush1.bf16.msra.mxu0 0
    %1947 = vmatprep.subr.bf16.mxu0 0
    %1948 = vmatpush1.bf16.msra.mxu0 0
    %1949 = vmatprep.subr.bf16.mxu0 0
    %1950 = vmatpush1.bf16.msra.mxu0 0
    %1951 = vmatprep.subr.bf16.mxu0 0
    %1952 = vmatpush1.bf16.msra.mxu0 0
    %1953 = vmatprep.subr.bf16.mxu0 0
    %1954 = vmatpush1.bf16.msra.mxu0 0
    %1955 = vmatprep.subr.bf16.mxu0 0
    %1956 = vmatpush1.bf16.msra.mxu0 0
    %1957 = vmatprep.subr.bf16.mxu0 0
    %1958 = vmatpush1.bf16.msra.mxu0 0
    %1959 = vmatprep.subr.bf16.mxu0 0
    %1960 = vmatpush1.bf16.msra.mxu0 0
    %1961 = vmatprep.subr.bf16.mxu0 0
    %1962 = vmatpush1.bf16.msra.mxu0 0
    %1963 = vmatprep.subr.bf16.mxu0 0
    %1964 = vmatpush1.bf16.msra.mxu0 0
    %1965 = vmatprep.mubr.bf16.mxu0 0
    %1966 = vmatmul.mubr.bf16.gmra.mrb[0].mxu0 %v1888
    %v1967 = vpop.f32.mrb[0].mxu0
    %v1968 = vadd.f32 %v1658, %v1967
    %v1969 = vpop.f32.mrb[0].mxu0
    %v1970 = vadd.f32 %v1662, %v1969
    %v1971 = vpop.f32.mrb[0].mxu0
    %v1972 = vadd.f32 %v1658, %v1971
    %v1973 = vpop.f32.mrb[0].mxu0
    %v1974 = vadd.f32 %v1662, %v1973
    %1975 = vdwg.mxu0
    %1976 = vmatprep.subr.bf16.mxu0 %v1828
    %1977 = vmatpush1.bf16.msra.mxu0 %v1827
    %1978 = vmatprep.subr.bf16.mxu0 %v1844
    %1979 = vmatpush1.bf16.msra.mxu0 %v1843
    %1980 = vmatprep.subr.bf16.mxu0 0
    %1981 = vmatpush1.bf16.msra.mxu0 0
    %1982 = vmatprep.subr.bf16.mxu0 0
    %1983 = vmatpush1.bf16.msra.mxu0 0
    %1984 = vmatprep.subr.bf16.mxu0 0
    %1985 = vmatpush1.bf16.msra.mxu0 0
    %1986 = vmatprep.subr.bf16.mxu0 0
    %1987 = vmatpush1.bf16.msra.mxu0 0
    %1988 = vmatprep.subr.bf16.mxu0 0
    %1989 = vmatpush1.bf16.msra.mxu0 0
    %1990 = vmatprep.subr.bf16.mxu0 0
    %1991 = vmatpush1.bf16.msra.mxu0 0
    %1992 = vmatprep.subr.bf16.mxu0 0
    %1993 = vmatpush1.bf16.msra.mxu0 0
    %1994 = vmatprep.subr.bf16.mxu0 0
    %1995 = vmatpush1.bf16.msra.mxu0 0
    %1996 = vmatprep.subr.bf16.mxu0 0
    %1997 = vmatpush1.bf16.msra.mxu0 0
    %1998 = vmatprep.subr.bf16.mxu0 0
    %1999 = vmatpush1.bf16.msra.mxu0 0
    %2000 = vmatprep.subr.bf16.mxu0 0
    %2001 = vmatpush1.bf16.msra.mxu0 0
    %2002 = vmatprep.subr.bf16.mxu0 0
    %2003 = vmatpush1.bf16.msra.mxu0 0
    %2004 = vmatprep.subr.bf16.mxu0 0
    %2005 = vmatpush1.bf16.msra.mxu0 0
    %2006 = vmatprep.subr.bf16.mxu0 0
    %2007 = vmatpush1.bf16.msra.mxu0 0
    %2008 = vmatprep.mubr.bf16.mxu0 0
    %2009 = vmatmul.mubr.bf16.gmra.mrb[0].mxu0 %v1888
    %v2010 = vpop.f32.mrb[0].mxu0
    %v2011 = vadd.f32 %v1666, %v2010
    %v2012 = vpop.f32.mrb[0].mxu0
    %v2013 = vadd.f32 %v1670, %v2012
    %v2014 = vpop.f32.mrb[0].mxu0
    %v2015 = vadd.f32 %v1666, %v2014
    %v2016 = vpop.f32.mrb[0].mxu0
    %v2017 = vadd.f32 %v1670, %v2016
    %2018 = vdwg.mxu0
    %2019 = vmatprep.subr.bf16.mxu0 %v1830
    %2020 = vmatpush1.bf16.msra.mxu0 %v1829
    %2021 = vmatprep.subr.bf16.mxu0 %v1846
    %2022 = vmatpush1.bf16.msra.mxu0 %v1845
    %2023 = vmatprep.subr.bf16.mxu0 0
    %2024 = vmatpush1.bf16.msra.mxu0 0
    %2025 = vmatprep.subr.bf16.mxu0 0
    %2026 = vmatpush1.bf16.msra.mxu0 0
    %2027 = vmatprep.subr.bf16.mxu0 0
    %2028 = vmatpush1.bf16.msra.mxu0 0
    %2029 = vmatprep.subr.bf16.mxu0 0
    %2030 = vmatpush1.bf16.msra.mxu0 0
    %2031 = vmatprep.subr.bf16.mxu0 0
    %2032 = vmatpush1.bf16.msra.mxu0 0
    %2033 = vmatprep.subr.bf16.mxu0 0
    %2034 = vmatpush1.bf16.msra.mxu0 0
    %2035 = vmatprep.subr.bf16.mxu0 0
    %2036 = vmatpush1.bf16.msra.mxu0 0
    %2037 = vmatprep.subr.bf16.mxu0 0
    %2038 = vmatpush1.bf16.msra.mxu0 0
    %2039 = vmatprep.subr.bf16.mxu0 0
    %2040 = vmatpush1.bf16.msra.mxu0 0
    %2041 = vmatprep.subr.bf16.mxu0 0
    %2042 = vmatpush1.bf16.msra.mxu0 0
    %2043 = vmatprep.subr.bf16.mxu0 0
    %2044 = vmatpush1.bf16.msra.mxu0 0
    %2045 = vmatprep.subr.bf16.mxu0 0
    %2046 = vmatpush1.bf16.msra.mxu0 0
    %2047 = vmatprep.subr.bf16.mxu0 0
    %2048 = vmatpush1.bf16.msra.mxu0 0
    %2049 = vmatprep.subr.bf16.mxu0 0
    %2050 = vmatpush1.bf16.msra.mxu0 0
    %2051 = vmatprep.mubr.bf16.mxu0 0
    %2052 = vmatmul.mubr.bf16.gmra.mrb[0].mxu0 %v1888
    %v2053 = vpop.f32.mrb[0].mxu0
    %v2054 = vadd.f32 %v1674, %v2053
    %v2055 = vpop.f32.mrb[0].mxu0
    %v2056 = vadd.f32 %v1678, %v2055
    %v2057 = vpop.f32.mrb[0].mxu0
    %v2058 = vadd.f32 %v1674, %v2057
    %v2059 = vpop.f32.mrb[0].mxu0
    %v2060 = vadd.f32 %v1678, %v2059
    %2061 = vdwg.mxu0
    %2062 = vmatprep.subr.bf16.mxu0 %v1832
    %2063 = vmatpush1.bf16.msra.mxu0 %v1831
    %2064 = vmatprep.subr.bf16.mxu0 %v1848
    %2065 = vmatpush1.bf16.msra.mxu0 %v1847
    %2066 = vmatprep.subr.bf16.mxu0 0
    %2067 = vmatpush1.bf16.msra.mxu0 0
    %2068 = vmatprep.subr.bf16.mxu0 0
    %2069 = vmatpush1.bf16.msra.mxu0 0
    %2070 = vmatprep.subr.bf16.mxu0 0
    %2071 = vmatpush1.bf16.msra.mxu0 0
    %2072 = vmatprep.subr.bf16.mxu0 0
    %2073 = vmatpush1.bf16.msra.mxu0 0
    %2074 = vmatprep.subr.bf16.mxu0 0
    %2075 = vmatpush1.bf16.msra.mxu0 0
    %2076 = vmatprep.subr.bf16.mxu0 0
    %2077 = vmatpush1.bf16.msra.mxu0 0
    %2078 = vmatprep.subr.bf16.mxu0 0
    %2079 = vmatpush1.bf16.msra.mxu0 0
    %2080 = vmatprep.subr.bf16.mxu0 0
    %2081 = vmatpush1.bf16.msra.mxu0 0
    %2082 = vmatprep.subr.bf16.mxu0 0
    %2083 = vmatpush1.bf16.msra.mxu0 0
    %2084 = vmatprep.subr.bf16.mxu0 0
    %2085 = vmatpush1.bf16.msra.mxu0 0
    %2086 = vmatprep.subr.bf16.mxu0 0
    %2087 = vmatpush1.bf16.msra.mxu0 0
    %2088 = vmatprep.subr.bf16.mxu0 0
    %2089 = vmatpush1.bf16.msra.mxu0 0
    %2090 = vmatprep.subr.bf16.mxu0 0
    %2091 = vmatpush1.bf16.msra.mxu0 0
    %2092 = vmatprep.subr.bf16.mxu0 0
    %2093 = vmatpush1.bf16.msra.mxu0 0
    %2094 = vmatprep.mubr.bf16.mxu0 0
    %2095 = vmatmul.mubr.bf16.gmra.mrb[0].mxu0 %v1888
    %v2096 = vpop.f32.mrb[0].mxu0
    %v2097 = vadd.f32 %v1682, %v2096
    %v2098 = vpop.f32.mrb[0].mxu0
    %v2099 = vadd.f32 %v1686, %v2098
    %v2100 = vpop.f32.mrb[0].mxu0
    %v2101 = vadd.f32 %v1682, %v2100
    %v2102 = vpop.f32.mrb[0].mxu0
    %v2103 = vadd.f32 %v1686, %v2102
    %2104 = vdwg.mxu0
    %2105 = vmatprep.subr.bf16.mxu0 %v1834
    %2106 = vmatpush1.bf16.msra.mxu0 %v1833
    %2107 = vmatprep.subr.bf16.mxu0 %v1850
    %2108 = vmatpush1.bf16.msra.mxu0 %v1849
    %2109 = vmatprep.subr.bf16.mxu0 0
    %2110 = vmatpush1.bf16.msra.mxu0 0
    %2111 = vmatprep.subr.bf16.mxu0 0
    %2112 = vmatpush1.bf16.msra.mxu0 0
    %2113 = vmatprep.subr.bf16.mxu0 0
    %2114 = vmatpush1.bf16.msra.mxu0 0
    %2115 = vmatprep.subr.bf16.mxu0 0
    %2116 = vmatpush1.bf16.msra.mxu0 0
    %2117 = vmatprep.subr.bf16.mxu0 0
    %2118 = vmatpush1.bf16.msra.mxu0 0
    %2119 = vmatprep.subr.bf16.mxu0 0
    %2120 = vmatpush1.bf16.msra.mxu0 0
    %2121 = vmatprep.subr.bf16.mxu0 0
    %2122 = vmatpush1.bf16.msra.mxu0 0
    %2123 = vmatprep.subr.bf16.mxu0 0
    %2124 = vmatpush1.bf16.msra.mxu0 0
    %2125 = vmatprep.subr.bf16.mxu0 0
    %2126 = vmatpush1.bf16.msra.mxu0 0
    %2127 = vmatprep.subr.bf16.mxu0 0
    %2128 = vmatpush1.bf16.msra.mxu0 0
    %2129 = vmatprep.subr.bf16.mxu0 0
    %2130 = vmatpush1.bf16.msra.mxu0 0
    %2131 = vmatprep.subr.bf16.mxu0 0
    %2132 = vmatpush1.bf16.msra.mxu0 0
    %2133 = vmatprep.subr.bf16.mxu0 0
    %2134 = vmatpush1.bf16.msra.mxu0 0
    %2135 = vmatprep.subr.bf16.mxu0 0
    %2136 = vmatpush1.bf16.msra.mxu0 0
    %2137 = vmatprep.mubr.bf16.mxu0 0
    %2138 = vmatmul.mubr.bf16.gmra.mrb[0].mxu0 %v1888
    %v2139 = vpop.f32.mrb[0].mxu0
    %v2140 = vadd.f32 %v1690, %v2139
    %v2141 = vpop.f32.mrb[0].mxu0
    %v2142 = vadd.f32 %v1694, %v2141
    %v2143 = vpop.f32.mrb[0].mxu0
    %v2144 = vadd.f32 %v1690, %v2143
    %v2145 = vpop.f32.mrb[0].mxu0
    %v2146 = vadd.f32 %v1694, %v2145
    %2147 = vdwg.mxu0
    %2148 = vmatprep.subr.bf16.mxu0 %v1836
    %2149 = vmatpush1.bf16.msra.mxu0 %v1835
    %2150 = vmatprep.subr.bf16.mxu0 %v1852
    %2151 = vmatpush1.bf16.msra.mxu0 %v1851
    %2152 = vmatprep.subr.bf16.mxu0 0
    %2153 = vmatpush1.bf16.msra.mxu0 0
    %2154 = vmatprep.subr.bf16.mxu0 0
    %2155 = vmatpush1.bf16.msra.mxu0 0
    %2156 = vmatprep.subr.bf16.mxu0 0
    %2157 = vmatpush1.bf16.msra.mxu0 0
    %2158 = vmatprep.subr.bf16.mxu0 0
    %2159 = vmatpush1.bf16.msra.mxu0 0
    %2160 = vmatprep.subr.bf16.mxu0 0
    %2161 = vmatpush1.bf16.msra.mxu0 0
    %2162 = vmatprep.subr.bf16.mxu0 0
    %2163 = vmatpush1.bf16.msra.mxu0 0
    %2164 = vmatprep.subr.bf16.mxu0 0
    %2165 = vmatpush1.bf16.msra.mxu0 0
    %2166 = vmatprep.subr.bf16.mxu0 0
    %2167 = vmatpush1.bf16.msra.mxu0 0
    %2168 = vmatprep.subr.bf16.mxu0 0
    %2169 = vmatpush1.bf16.msra.mxu0 0
    %2170 = vmatprep.subr.bf16.mxu0 0
    %2171 = vmatpush1.bf16.msra.mxu0 0
    %2172 = vmatprep.subr.bf16.mxu0 0
    %2173 = vmatpush1.bf16.msra.mxu0 0
    %2174 = vmatprep.subr.bf16.mxu0 0
    %2175 = vmatpush1.bf16.msra.mxu0 0
    %2176 = vmatprep.subr.bf16.mxu0 0
    %2177 = vmatpush1.bf16.msra.mxu0 0
    %2178 = vmatprep.subr.bf16.mxu0 0
    %2179 = vmatpush1.bf16.msra.mxu0 0
    %2180 = vmatprep.mubr.bf16.mxu0 0
    %2181 = vmatmul.mubr.bf16.gmra.mrb[0].mxu0 %v1888
    %v2182 = vpop.f32.mrb[0].mxu0
    %v2183 = vadd.f32 %v1698, %v2182
    %v2184 = vpop.f32.mrb[0].mxu0
    %v2185 = vadd.f32 %v1702, %v2184
    %v2186 = vpop.f32.mrb[0].mxu0
    %v2187 = vadd.f32 %v1698, %v2186
    %v2188 = vpop.f32.mrb[0].mxu0
    %v2189 = vadd.f32 %v1702, %v2188
    %2190 = vdwg.mxu0
    %2191 = vmatprep.subr.bf16.mxu0 %v1838
    %2192 = vmatpush1.bf16.msra.mxu0 %v1837
    %2193 = vmatprep.subr.bf16.mxu0 %v1854
    %2194 = vmatpush1.bf16.msra.mxu0 %v1853
    %2195 = vmatprep.subr.bf16.mxu0 0
    %2196 = vmatpush1.bf16.msra.mxu0 0
    %2197 = vmatprep.subr.bf16.mxu0 0
    %2198 = vmatpush1.bf16.msra.mxu0 0
    %2199 = vmatprep.subr.bf16.mxu0 0
    %2200 = vmatpush1.bf16.msra.mxu0 0
    %2201 = vmatprep.subr.bf16.mxu0 0
    %2202 = vmatpush1.bf16.msra.mxu0 0
    %2203 = vmatprep.subr.bf16.mxu0 0
    %2204 = vmatpush1.bf16.msra.mxu0 0
    %2205 = vmatprep.subr.bf16.mxu0 0
    %2206 = vmatpush1.bf16.msra.mxu0 0
    %2207 = vmatprep.subr.bf16.mxu0 0
    %2208 = vmatpush1.bf16.msra.mxu0 0
    %2209 = vmatprep.subr.bf16.mxu0 0
    %2210 = vmatpush1.bf16.msra.mxu0 0
    %2211 = vmatprep.subr.bf16.mxu0 0
    %2212 = vmatpush1.bf16.msra.mxu0 0
    %2213 = vmatprep.subr.bf16.mxu0 0
    %2214 = vmatpush1.bf16.msra.mxu0 0
    %2215 = vmatprep.subr.bf16.mxu0 0
    %2216 = vmatpush1.bf16.msra.mxu0 0
    %2217 = vmatprep.subr.bf16.mxu0 0
    %2218 = vmatpush1.bf16.msra.mxu0 0
    %2219 = vmatprep.subr.bf16.mxu0 0
    %2220 = vmatpush1.bf16.msra.mxu0 0
    %2221 = vmatprep.subr.bf16.mxu0 0
    %2222 = vmatpush1.bf16.msra.mxu0 0
    %2223 = vmatprep.mubr.bf16.mxu0 0
    %2224 = vmatmul.mubr.bf16.gmra.mrb[0].mxu0 %v1888
    %v2225 = vpop.f32.mrb[0].mxu0
    %v2226 = vadd.f32 %v1706, %v2225
    %v2227 = vpop.f32.mrb[0].mxu0
    %v2228 = vadd.f32 %v1710, %v2227
    %v2229 = vpop.f32.mrb[0].mxu0
    %v2230 = vadd.f32 %v1706, %v2229
    %v2231 = vpop.f32.mrb[0].mxu0
    %v2232 = vadd.f32 %v1710, %v2231
    %2233 = vdwg.mxu0
    %v2234 = vmax.f32 %v1925, 0.0
    %v2235 = vmax.f32 %v1927, 0.0
    %v2236 = vmax.f32 %v1968, 0.0
    %v2237 = vmax.f32 %v1970, 0.0
    %v2238 = vmax.f32 %v2011, 0.0
    %v2239 = vmax.f32 %v2013, 0.0
    %v2240 = vmax.f32 %v2054, 0.0
    %v2241 = vmax.f32 %v2056, 0.0
    %v2242 = vmax.f32 %v2097, 0.0
    %v2243 = vmax.f32 %v2099, 0.0
    %v2244 = vmax.f32 %v2140, 0.0
    %v2245 = vmax.f32 %v2142, 0.0
    %v2246 = vmax.f32 %v2183, 0.0
    %v2247 = vmax.f32 %v2185, 0.0
    %v2248 = vmax.f32 %v2226, 0.0
    %v2249 = vmax.f32 %v2228, 0.0
    %v2250 = vmax.f32 %v1929, 0.0
    %v2251 = vmax.f32 %v1931, 0.0
    %v2252 = vmax.f32 %v1972, 0.0
    %v2253 = vmax.f32 %v1974, 0.0
    %v2254 = vmax.f32 %v2015, 0.0
    %v2255 = vmax.f32 %v2017, 0.0
    %v2256 = vmax.f32 %v2058, 0.0
    %v2257 = vmax.f32 %v2060, 0.0
    %v2258 = vmax.f32 %v2101, 0.0
    %v2259 = vmax.f32 %v2103, 0.0
    %v2260 = vmax.f32 %v2144, 0.0
    %v2261 = vmax.f32 %v2146, 0.0
    %v2262 = vmax.f32 %v2187, 0.0
    %v2263 = vmax.f32 %v2189, 0.0
    %v2264 = vmax.f32 %v2230, 0.0
    %v2265 = vmax.f32 %v2232, 0.0
    %v2266 = vpack.c.bf16 %v2250, %v2234
    %v2267 = vpack.c.bf16 %v2251, %v2235
    %v2268 = vpack.c.bf16 %v2252, %v2236
    %v2269 = vpack.c.bf16 %v2253, %v2237
    %v2270 = vpack.c.bf16 %v2254, %v2238
    %v2271 = vpack.c.bf16 %v2255, %v2239
    %v2272 = vpack.c.bf16 %v2256, %v2240
    %v2273 = vpack.c.bf16 %v2257, %v2241
    %v2274 = vpack.c.bf16 %v2258, %v2242
    %v2275 = vpack.c.bf16 %v2259, %v2243
    %v2276 = vpack.c.bf16 %v2260, %v2244
    %v2277 = vpack.c.bf16 %v2261, %v2245
    %v2278 = vpack.c.bf16 %v2262, %v2246
    %v2279 = vpack.c.bf16 %v2263, %v2247
    %v2280 = vpack.c.bf16 %v2264, %v2248
    %v2281 = vpack.c.bf16 %v2265, %v2249
    %v2282 = vld [vmem:[%s11] sm:$0xf]
    %v2283 = vld [vmem:[%s11 + $0x4] sm:$0xf]
    %v2284 = vld [vmem:[%s11 + $0x8] sm:$0xf]
    %v2285 = vld [vmem:[%s11 + $0xc] sm:$0xf]
    %v2286 = vld [vmem:[%s11 + $0x10] sm:$0xf]
    %v2287 = vld [vmem:[%s11 + $0x14] sm:$0xf]
    %v2288 = vld [vmem:[%s11 + $0x18] sm:$0xf]
    %v2289 = vld [vmem:[%s11 + $0x1c] sm:$0xf]
    %v2290 = vld [vmem:[%s11 + $0x20] sm:$0xf]
    %v2291 = vld [vmem:[%s11 + $0x24] sm:$0xf]
    %v2292 = vld [vmem:[%s11 + $0x28] sm:$0xf]
    %v2293 = vld [vmem:[%s11 + $0x2c] sm:$0xf]
    %v2294 = vld [vmem:[%s11 + $0x30] sm:$0xf]
    %v2295 = vld [vmem:[%s11 + $0x34] sm:$0xf]
    %v2296 = vld [vmem:[%s11 + $0x38] sm:$0xf]
    %v2297 = vld [vmem:[%s11 + $0x3c] sm:$0xf]
    %v2298 = vld [vmem:[%s11 + $0x40] sm:$0xf]
    %v2299 = vld [vmem:[%s11 + $0x44] sm:$0xf]
    %v2300 = vld [vmem:[%s11 + $0x48] sm:$0xf]
    %v2301 = vld [vmem:[%s11 + $0x4c] sm:$0xf]
    %v2302 = vld [vmem:[%s11 + $0x50] sm:$0xf]
    %v2303 = vld [vmem:[%s11 + $0x54] sm:$0xf]
    %v2304 = vld [vmem:[%s11 + $0x58] sm:$0xf]
    %v2305 = vld [vmem:[%s11 + $0x5c] sm:$0xf]
    %v2306 = vld [vmem:[%s11 + $0x60] sm:$0xf]
    %v2307 = vld [vmem:[%s11 + $0x64] sm:$0xf]
    %v2308 = vld [vmem:[%s11 + $0x68] sm:$0xf]
    %v2309 = vld [vmem:[%s11 + $0x6c] sm:$0xf]
    %v2310 = vld [vmem:[%s11 + $0x70] sm:$0xf]
    %v2311 = vld [vmem:[%s11 + $0x74] sm:$0xf]
    %v2312 = vld [vmem:[%s11 + $0x78] sm:$0xf]
    %v2313 = vld [vmem:[%s11 + $0x7c] sm:$0xf]
    %v2314 = vld [vmem:[%s11 + $0x80] sm:$0xf]
    %v2315 = vld [vmem:[%s11 + $0x84] sm:$0xf]
    %v2316 = vld [vmem:[%s11 + $0x88] sm:$0xf]
    %v2317 = vld [vmem:[%s11 + $0x8c] sm:$0xf]
    %v2318 = vld [vmem:[%s11 + $0x90] sm:$0xf]
    %v2319 = vld [vmem:[%s11 + $0x94] sm:$0xf]
    %v2320 = vld [vmem:[%s11 + $0x98] sm:$0xf]
    %v2321 = vld [vmem:[%s11 + $0x9c] sm:$0xf]
    %v2322 = vld [vmem:[%s11 + $0xa0] sm:$0xf]
    %v2323 = vld [vmem:[%s11 + $0xa4] sm:$0xf]
    %v2324 = vld [vmem:[%s11 + $0xa8] sm:$0xf]
    %v2325 = vld [vmem:[%s11 + $0xac] sm:$0xf]
    %v2326 = vld [vmem:[%s11 + $0xb0] sm:$0xf]
    %v2327 = vld [vmem:[%s11 + $0xb4] sm:$0xf]
    %v2328 = vld [vmem:[%s11 + $0xb8] sm:$0xf]
    %v2329 = vld [vmem:[%s11 + $0xbc] sm:$0xf]
    %v2330 = vld [vmem:[%s11 + $0xc0] sm:$0xf]
    %v2331 = vld [vmem:[%s11 + $0xc4] sm:$0xf]
    %v2332 = vld [vmem:[%s11 + $0xc8] sm:$0xf]
    %v2333 = vld [vmem:[%s11 + $0xcc] sm:$0xf]
    %v2334 = vld [vmem:[%s11 + $0xd0] sm:$0xf]
    %v2335 = vld [vmem:[%s11 + $0xd4] sm:$0xf]
    %v2336 = vld [vmem:[%s11 + $0xd8] sm:$0xf]
    %v2337 = vld [vmem:[%s11 + $0xdc] sm:$0xf]
    %v2338 = vld [vmem:[%s11 + $0xe0] sm:$0xf]
    %v2339 = vld [vmem:[%s11 + $0xe4] sm:$0xf]
    %v2340 = vld [vmem:[%s11 + $0xe8] sm:$0xf]
    %v2341 = vld [vmem:[%s11 + $0xec] sm:$0xf]
    %v2342 = vld [vmem:[%s11 + $0xf0] sm:$0xf]
    %v2343 = vld [vmem:[%s11 + $0xf4] sm:$0xf]
    %v2344 = vld [vmem:[%s11 + $0xf8] sm:$0xf]
    %v2345 = vld [vmem:[%s11 + $0xfc] sm:$0xf]
    %v2346 = vld [vmem:[%s11 + $0x100] sm:$0xf]
    %v2347 = vld [vmem:[%s11 + $0x104] sm:$0xf]
    %v2348 = vld [vmem:[%s11 + $0x108] sm:$0xf]
    %v2349 = vld [vmem:[%s11 + $0x10c] sm:$0xf]
    %v2350 = vld [vmem:[%s11 + $0x110] sm:$0xf]
    %v2351 = vld [vmem:[%s11 + $0x114] sm:$0xf]
    %v2352 = vld [vmem:[%s11 + $0x118] sm:$0xf]
    %v2353 = vld [vmem:[%s11 + $0x11c] sm:$0xf]
    %v2354 = vld [vmem:[%s11 + $0x120] sm:$0xf]
    %v2355 = vld [vmem:[%s11 + $0x124] sm:$0xf]
    %v2356 = vld [vmem:[%s11 + $0x128] sm:$0xf]
    %v2357 = vld [vmem:[%s11 + $0x12c] sm:$0xf]
    %v2358 = vld [vmem:[%s11 + $0x130] sm:$0xf]
    %v2359 = vld [vmem:[%s11 + $0x134] sm:$0xf]
    %v2360 = vld [vmem:[%s11 + $0x138] sm:$0xf]
    %v2361 = vld [vmem:[%s11 + $0x13c] sm:$0xf]
    %v2362 = vld [vmem:[%s11 + $0x140] sm:$0xf]
    %v2363 = vld [vmem:[%s11 + $0x144] sm:$0xf]
    %v2364 = vld [vmem:[%s11 + $0x148] sm:$0xf]
    %v2365 = vld [vmem:[%s11 + $0x14c] sm:$0xf]
    %v2366 = vld [vmem:[%s11 + $0x150] sm:$0xf]
    %v2367 = vld [vmem:[%s11 + $0x154] sm:$0xf]
    %v2368 = vld [vmem:[%s11 + $0x158] sm:$0xf]
    %v2369 = vld [vmem:[%s11 + $0x15c] sm:$0xf]
    %v2370 = vld [vmem:[%s11 + $0x160] sm:$0xf]
    %v2371 = vld [vmem:[%s11 + $0x164] sm:$0xf]
    %v2372 = vld [vmem:[%s11 + $0x168] sm:$0xf]
    %v2373 = vld [vmem:[%s11 + $0x16c] sm:$0xf]
    %v2374 = vld [vmem:[%s11 + $0x170] sm:$0xf]
    %v2375 = vld [vmem:[%s11 + $0x174] sm:$0xf]
    %v2376 = vld [vmem:[%s11 + $0x178] sm:$0xf]
    %v2377 = vld [vmem:[%s11 + $0x17c] sm:$0xf]
    %v2378 = vld [vmem:[%s11 + $0x180] sm:$0xf]
    %v2379 = vld [vmem:[%s11 + $0x184] sm:$0xf]
    %v2380 = vld [vmem:[%s11 + $0x188] sm:$0xf]
    %v2381 = vld [vmem:[%s11 + $0x18c] sm:$0xf]
    %v2382 = vld [vmem:[%s11 + $0x190] sm:$0xf]
    %v2383 = vld [vmem:[%s11 + $0x194] sm:$0xf]
    %v2384 = vld [vmem:[%s11 + $0x198] sm:$0xf]
    %v2385 = vld [vmem:[%s11 + $0x19c] sm:$0xf]
    %v2386 = vld [vmem:[%s11 + $0x1a0] sm:$0xf]
    %v2387 = vld [vmem:[%s11 + $0x1a4] sm:$0xf]
    %v2388 = vld [vmem:[%s11 + $0x1a8] sm:$0xf]
    %v2389 = vld [vmem:[%s11 + $0x1ac] sm:$0xf]
    %v2390 = vld [vmem:[%s11 + $0x1b0] sm:$0xf]
    %v2391 = vld [vmem:[%s11 + $0x1b4] sm:$0xf]
    %v2392 = vld [vmem:[%s11 + $0x1b8] sm:$0xf]
    %v2393 = vld [vmem:[%s11 + $0x1bc] sm:$0xf]
    %v2394 = vld [vmem:[%s11 + $0x1c0] sm:$0xf]
    %v2395 = vld [vmem:[%s11 + $0x1c4] sm:$0xf]
    %v2396 = vld [vmem:[%s11 + $0x1c8] sm:$0xf]
    %v2397 = vld [vmem:[%s11 + $0x1cc] sm:$0xf]
    %v2398 = vld [vmem:[%s11 + $0x1d0] sm:$0xf]
    %v2399 = vld [vmem:[%s11 + $0x1d4] sm:$0xf]
    %v2400 = vld [vmem:[%s11 + $0x1d8] sm:$0xf]
    %v2401 = vld [vmem:[%s11 + $0x1dc] sm:$0xf]
    %v2402 = vld [vmem:[%s11 + $0x1e0] sm:$0xf]
    %v2403 = vld [vmem:[%s11 + $0x1e4] sm:$0xf]
    %v2404 = vld [vmem:[%s11 + $0x1e8] sm:$0xf]
    %v2405 = vld [vmem:[%s11 + $0x1ec] sm:$0xf]
    %v2406 = vld [vmem:[%s11 + $0x1f0] sm:$0xf]
    %v2407 = vld [vmem:[%s11 + $0x1f4] sm:$0xf]
    %v2408 = vld [vmem:[%s11 + $0x1f8] sm:$0xf]
    %v2409 = vld [vmem:[%s11 + $0x1fc] sm:$0xf]
    %v2410 = vld [vmem:[%s11 + $0x200] sm:$0xf]
    %v2411 = vld [vmem:[%s11 + $0x204] sm:$0xf]
    %v2412 = vld [vmem:[%s11 + $0x208] sm:$0xf]
    %v2413 = vld [vmem:[%s11 + $0x20c] sm:$0xf]
    %v2414 = vld [vmem:[%s11 + $0x210] sm:$0xf]
    %v2415 = vld [vmem:[%s11 + $0x214] sm:$0xf]
    %v2416 = vld [vmem:[%s11 + $0x218] sm:$0xf]
    %v2417 = vld [vmem:[%s11 + $0x21c] sm:$0xf]
    %v2418 = vld [vmem:[%s11 + $0x220] sm:$0xf]
    %v2419 = vld [vmem:[%s11 + $0x224] sm:$0xf]
    %v2420 = vld [vmem:[%s11 + $0x228] sm:$0xf]
    %v2421 = vld [vmem:[%s11 + $0x22c] sm:$0xf]
    %v2422 = vld [vmem:[%s11 + $0x230] sm:$0xf]
    %v2423 = vld [vmem:[%s11 + $0x234] sm:$0xf]
    %v2424 = vld [vmem:[%s11 + $0x238] sm:$0xf]
    %v2425 = vld [vmem:[%s11 + $0x23c] sm:$0xf]
    %v2426 = vld [vmem:[%s11 + $0x240] sm:$0xf]
    %v2427 = vld [vmem:[%s11 + $0x244] sm:$0xf]
    %v2428 = vld [vmem:[%s11 + $0x248] sm:$0xf]
    %v2429 = vld [vmem:[%s11 + $0x24c] sm:$0xf]
    %v2430 = vld [vmem:[%s11 + $0x250] sm:$0xf]
    %v2431 = vld [vmem:[%s11 + $0x254] sm:$0xf]
    %v2432 = vld [vmem:[%s11 + $0x258] sm:$0xf]
    %v2433 = vld [vmem:[%s11 + $0x25c] sm:$0xf]
    %v2434 = vld [vmem:[%s11 + $0x260] sm:$0xf]
    %v2435 = vld [vmem:[%s11 + $0x264] sm:$0xf]
    %v2436 = vld [vmem:[%s11 + $0x268] sm:$0xf]
    %v2437 = vld [vmem:[%s11 + $0x26c] sm:$0xf]
    %v2438 = vld [vmem:[%s11 + $0x270] sm:$0xf]
    %v2439 = vld [vmem:[%s11 + $0x274] sm:$0xf]
    %v2440 = vld [vmem:[%s11 + $0x278] sm:$0xf]
    %v2441 = vld [vmem:[%s11 + $0x27c] sm:$0xf]
    %v2442 = vld [vmem:[%s11 + $0x280] sm:$0xf]
    %v2443 = vld [vmem:[%s11 + $0x284] sm:$0xf]
    %v2444 = vld [vmem:[%s11 + $0x288] sm:$0xf]
    %v2445 = vld [vmem:[%s11 + $0x28c] sm:$0xf]
    %v2446 = vld [vmem:[%s11 + $0x290] sm:$0xf]
    %v2447 = vld [vmem:[%s11 + $0x294] sm:$0xf]
    %v2448 = vld [vmem:[%s11 + $0x298] sm:$0xf]
    %v2449 = vld [vmem:[%s11 + $0x29c] sm:$0xf]
    %v2450 = vld [vmem:[%s11 + $0x2a0] sm:$0xf]
    %v2451 = vld [vmem:[%s11 + $0x2a4] sm:$0xf]
    %v2452 = vld [vmem:[%s11 + $0x2a8] sm:$0xf]
    %v2453 = vld [vmem:[%s11 + $0x2ac] sm:$0xf]
    %v2454 = vld [vmem:[%s11 + $0x2b0] sm:$0xf]
    %v2455 = vld [vmem:[%s11 + $0x2b4] sm:$0xf]
    %v2456 = vld [vmem:[%s11 + $0x2b8] sm:$0xf]
    %v2457 = vld [vmem:[%s11 + $0x2bc] sm:$0xf]
    %v2458 = vld [vmem:[%s11 + $0x2c0] sm:$0xf]
    %v2459 = vld [vmem:[%s11 + $0x2c4] sm:$0xf]
    %v2460 = vld [vmem:[%s11 + $0x2c8] sm:$0xf]
    %v2461 = vld [vmem:[%s11 + $0x2cc] sm:$0xf]
    %v2462 = vld [vmem:[%s11 + $0x2d0] sm:$0xf]
    %v2463 = vld [vmem:[%s11 + $0x2d4] sm:$0xf]
    %v2464 = vld [vmem:[%s11 + $0x2d8] sm:$0xf]
    %v2465 = vld [vmem:[%s11 + $0x2dc] sm:$0xf]
    %v2466 = vld [vmem:[%s11 + $0x2e0] sm:$0xf]
    %v2467 = vld [vmem:[%s11 + $0x2e4] sm:$0xf]
    %v2468 = vld [vmem:[%s11 + $0x2e8] sm:$0xf]
    %v2469 = vld [vmem:[%s11 + $0x2ec] sm:$0xf]
    %v2470 = vld [vmem:[%s11 + $0x2f0] sm:$0xf]
    %v2471 = vld [vmem:[%s11 + $0x2f4] sm:$0xf]
    %v2472 = vld [vmem:[%s11 + $0x2f8] sm:$0xf]
    %v2473 = vld [vmem:[%s11 + $0x2fc] sm:$0xf]
    %v2474 = vld [vmem:[%s11 + $0x300] sm:$0xf]
    %v2475 = vld [vmem:[%s11 + $0x304] sm:$0xf]
    %v2476 = vld [vmem:[%s11 + $0x308] sm:$0xf]
    %v2477 = vld [vmem:[%s11 + $0x30c] sm:$0xf]
    %v2478 = vld [vmem:[%s11 + $0x310] sm:$0xf]
    %v2479 = vld [vmem:[%s11 + $0x314] sm:$0xf]
    %v2480 = vld [vmem:[%s11 + $0x318] sm:$0xf]
    %v2481 = vld [vmem:[%s11 + $0x31c] sm:$0xf]
    %v2482 = vld [vmem:[%s11 + $0x320] sm:$0xf]
    %v2483 = vld [vmem:[%s11 + $0x324] sm:$0xf]
    %v2484 = vld [vmem:[%s11 + $0x328] sm:$0xf]
    %v2485 = vld [vmem:[%s11 + $0x32c] sm:$0xf]
    %v2486 = vld [vmem:[%s11 + $0x330] sm:$0xf]
    %v2487 = vld [vmem:[%s11 + $0x334] sm:$0xf]
    %v2488 = vld [vmem:[%s11 + $0x338] sm:$0xf]
    %v2489 = vld [vmem:[%s11 + $0x33c] sm:$0xf]
    %v2490 = vld [vmem:[%s11 + $0x340] sm:$0xf]
    %v2491 = vld [vmem:[%s11 + $0x344] sm:$0xf]
    %v2492 = vld [vmem:[%s11 + $0x348] sm:$0xf]
    %v2493 = vld [vmem:[%s11 + $0x34c] sm:$0xf]
    %v2494 = vld [vmem:[%s11 + $0x350] sm:$0xf]
    %v2495 = vld [vmem:[%s11 + $0x354] sm:$0xf]
    %v2496 = vld [vmem:[%s11 + $0x358] sm:$0xf]
    %v2497 = vld [vmem:[%s11 + $0x35c] sm:$0xf]
    %v2498 = vld [vmem:[%s11 + $0x360] sm:$0xf]
    %v2499 = vld [vmem:[%s11 + $0x364] sm:$0xf]
    %v2500 = vld [vmem:[%s11 + $0x368] sm:$0xf]
    %v2501 = vld [vmem:[%s11 + $0x36c] sm:$0xf]
    %v2502 = vld [vmem:[%s11 + $0x370] sm:$0xf]
    %v2503 = vld [vmem:[%s11 + $0x374] sm:$0xf]
    %v2504 = vld [vmem:[%s11 + $0x378] sm:$0xf]
    %v2505 = vld [vmem:[%s11 + $0x37c] sm:$0xf]
    %v2506 = vld [vmem:[%s11 + $0x380] sm:$0xf]
    %v2507 = vld [vmem:[%s11 + $0x384] sm:$0xf]
    %v2508 = vld [vmem:[%s11 + $0x388] sm:$0xf]
    %v2509 = vld [vmem:[%s11 + $0x38c] sm:$0xf]
    %v2510 = vld [vmem:[%s11 + $0x390] sm:$0xf]
    %v2511 = vld [vmem:[%s11 + $0x394] sm:$0xf]
    %v2512 = vld [vmem:[%s11 + $0x398] sm:$0xf]
    %v2513 = vld [vmem:[%s11 + $0x39c] sm:$0xf]
    %v2514 = vld [vmem:[%s11 + $0x3a0] sm:$0xf]
    %v2515 = vld [vmem:[%s11 + $0x3a4] sm:$0xf]
    %v2516 = vld [vmem:[%s11 + $0x3a8] sm:$0xf]
    %v2517 = vld [vmem:[%s11 + $0x3ac] sm:$0xf]
    %v2518 = vld [vmem:[%s11 + $0x3b0] sm:$0xf]
    %v2519 = vld [vmem:[%s11 + $0x3b4] sm:$0xf]
    %v2520 = vld [vmem:[%s11 + $0x3b8] sm:$0xf]
    %v2521 = vld [vmem:[%s11 + $0x3bc] sm:$0xf]
    %v2522 = vld [vmem:[%s11 + $0x3c0] sm:$0xf]
    %v2523 = vld [vmem:[%s11 + $0x3c4] sm:$0xf]
    %v2524 = vld [vmem:[%s11 + $0x3c8] sm:$0xf]
    %v2525 = vld [vmem:[%s11 + $0x3cc] sm:$0xf]
    %v2526 = vld [vmem:[%s11 + $0x3d0] sm:$0xf]
    %v2527 = vld [vmem:[%s11 + $0x3d4] sm:$0xf]
    %v2528 = vld [vmem:[%s11 + $0x3d8] sm:$0xf]
    %v2529 = vld [vmem:[%s11 + $0x3dc] sm:$0xf]
    %v2530 = vld [vmem:[%s11 + $0x3e0] sm:$0xf]
    %v2531 = vld [vmem:[%s11 + $0x3e4] sm:$0xf]
    %v2532 = vld [vmem:[%s11 + $0x3e8] sm:$0xf]
    %v2533 = vld [vmem:[%s11 + $0x3ec] sm:$0xf]
    %v2534 = vld [vmem:[%s11 + $0x3f0] sm:$0xf]
    %v2535 = vld [vmem:[%s11 + $0x3f4] sm:$0xf]
    %v2536 = vld [vmem:[%s11 + $0x3f8] sm:$0xf]
    %v2537 = vld [vmem:[%s11 + $0x3fc] sm:$0xf]
    %v2538 = vld [vmem:[%s12] sm:$0x1]
    %v2540 = vlaneseq
    %v2541 = vshrl.u32 %v2540, 7
    %v2542 = vsub.s32 0, %v2541
    %v2543 = vrot.slane %v2538, %v2542
    %v2801 = vunpack.c.l.b16 %v2282
    %v2802 = vunpack.c.l.b16 %v2283
    %v2803 = vunpack.c.l.b16 %v2284
    %v2804 = vunpack.c.l.b16 %v2285
    %v2805 = vunpack.c.l.b16 %v2286
    %v2806 = vunpack.c.l.b16 %v2287
    %v2807 = vunpack.c.l.b16 %v2288
    %v2808 = vunpack.c.l.b16 %v2289
    %v2809 = vunpack.c.l.b16 %v2290
    %v2810 = vunpack.c.l.b16 %v2291
    %v2811 = vunpack.c.l.b16 %v2292
    %v2812 = vunpack.c.l.b16 %v2293
    %v2813 = vunpack.c.l.b16 %v2294
    %v2814 = vunpack.c.l.b16 %v2295
    %v2815 = vunpack.c.l.b16 %v2296
    %v2816 = vunpack.c.l.b16 %v2297
    %v2817 = vunpack.c.l.b16 %v2298
    %v2818 = vunpack.c.l.b16 %v2299
    %v2819 = vunpack.c.l.b16 %v2300
    %v2820 = vunpack.c.l.b16 %v2301
    %v2821 = vunpack.c.l.b16 %v2302
    %v2822 = vunpack.c.l.b16 %v2303
    %v2823 = vunpack.c.l.b16 %v2304
    %v2824 = vunpack.c.l.b16 %v2305
    %v2825 = vunpack.c.l.b16 %v2306
    %v2826 = vunpack.c.l.b16 %v2307
    %v2827 = vunpack.c.l.b16 %v2308
    %v2828 = vunpack.c.l.b16 %v2309
    %v2829 = vunpack.c.l.b16 %v2310
    %v2830 = vunpack.c.l.b16 %v2311
    %v2831 = vunpack.c.l.b16 %v2312
    %v2832 = vunpack.c.l.b16 %v2313
    %v2833 = vunpack.c.l.b16 %v2314
    %v2834 = vunpack.c.l.b16 %v2315
    %v2835 = vunpack.c.l.b16 %v2316
    %v2836 = vunpack.c.l.b16 %v2317
    %v2837 = vunpack.c.l.b16 %v2318
    %v2838 = vunpack.c.l.b16 %v2319
    %v2839 = vunpack.c.l.b16 %v2320
    %v2840 = vunpack.c.l.b16 %v2321
    %v2841 = vunpack.c.l.b16 %v2322
    %v2842 = vunpack.c.l.b16 %v2323
    %v2843 = vunpack.c.l.b16 %v2324
    %v2844 = vunpack.c.l.b16 %v2325
    %v2845 = vunpack.c.l.b16 %v2326
    %v2846 = vunpack.c.l.b16 %v2327
    %v2847 = vunpack.c.l.b16 %v2328
    %v2848 = vunpack.c.l.b16 %v2329
    %v2849 = vunpack.c.l.b16 %v2330
    %v2850 = vunpack.c.l.b16 %v2331
    %v2851 = vunpack.c.l.b16 %v2332
    %v2852 = vunpack.c.l.b16 %v2333
    %v2853 = vunpack.c.l.b16 %v2334
    %v2854 = vunpack.c.l.b16 %v2335
    %v2855 = vunpack.c.l.b16 %v2336
    %v2856 = vunpack.c.l.b16 %v2337
    %v2857 = vunpack.c.l.b16 %v2338
    %v2858 = vunpack.c.l.b16 %v2339
    %v2859 = vunpack.c.l.b16 %v2340
    %v2860 = vunpack.c.l.b16 %v2341
    %v2861 = vunpack.c.l.b16 %v2342
    %v2862 = vunpack.c.l.b16 %v2343
    %v2863 = vunpack.c.l.b16 %v2344
    %v2864 = vunpack.c.l.b16 %v2345
    %v2865 = vunpack.c.l.b16 %v2346
    %v2866 = vunpack.c.l.b16 %v2347
    %v2867 = vunpack.c.l.b16 %v2348
    %v2868 = vunpack.c.l.b16 %v2349
    %v2869 = vunpack.c.l.b16 %v2350
    %v2870 = vunpack.c.l.b16 %v2351
    %v2871 = vunpack.c.l.b16 %v2352
    %v2872 = vunpack.c.l.b16 %v2353
    %v2873 = vunpack.c.l.b16 %v2354
    %v2874 = vunpack.c.l.b16 %v2355
    %v2875 = vunpack.c.l.b16 %v2356
    %v2876 = vunpack.c.l.b16 %v2357
    %v2877 = vunpack.c.l.b16 %v2358
    %v2878 = vunpack.c.l.b16 %v2359
    %v2879 = vunpack.c.l.b16 %v2360
    %v2880 = vunpack.c.l.b16 %v2361
    %v2881 = vunpack.c.l.b16 %v2362
    %v2882 = vunpack.c.l.b16 %v2363
    %v2883 = vunpack.c.l.b16 %v2364
    %v2884 = vunpack.c.l.b16 %v2365
    %v2885 = vunpack.c.l.b16 %v2366
    %v2886 = vunpack.c.l.b16 %v2367
    %v2887 = vunpack.c.l.b16 %v2368
    %v2888 = vunpack.c.l.b16 %v2369
    %v2889 = vunpack.c.l.b16 %v2370
    %v2890 = vunpack.c.l.b16 %v2371
    %v2891 = vunpack.c.l.b16 %v2372
    %v2892 = vunpack.c.l.b16 %v2373
    %v2893 = vunpack.c.l.b16 %v2374
    %v2894 = vunpack.c.l.b16 %v2375
    %v2895 = vunpack.c.l.b16 %v2376
    %v2896 = vunpack.c.l.b16 %v2377
    %v2897 = vunpack.c.l.b16 %v2378
    %v2898 = vunpack.c.l.b16 %v2379
    %v2899 = vunpack.c.l.b16 %v2380
    %v2900 = vunpack.c.l.b16 %v2381
    %v2901 = vunpack.c.l.b16 %v2382
    %v2902 = vunpack.c.l.b16 %v2383
    %v2903 = vunpack.c.l.b16 %v2384
    %v2904 = vunpack.c.l.b16 %v2385
    %v2905 = vunpack.c.l.b16 %v2386
    %v2906 = vunpack.c.l.b16 %v2387
    %v2907 = vunpack.c.l.b16 %v2388
    %v2908 = vunpack.c.l.b16 %v2389
    %v2909 = vunpack.c.l.b16 %v2390
    %v2910 = vunpack.c.l.b16 %v2391
    %v2911 = vunpack.c.l.b16 %v2392
    %v2912 = vunpack.c.l.b16 %v2393
    %v2913 = vunpack.c.l.b16 %v2394
    %v2914 = vunpack.c.l.b16 %v2395
    %v2915 = vunpack.c.l.b16 %v2396
    %v2916 = vunpack.c.l.b16 %v2397
    %v2917 = vunpack.c.l.b16 %v2398
    %v2918 = vunpack.c.l.b16 %v2399
    %v2919 = vunpack.c.l.b16 %v2400
    %v2920 = vunpack.c.l.b16 %v2401
    %v2921 = vunpack.c.l.b16 %v2402
    %v2922 = vunpack.c.l.b16 %v2403
    %v2923 = vunpack.c.l.b16 %v2404
    %v2924 = vunpack.c.l.b16 %v2405
    %v2925 = vunpack.c.l.b16 %v2406
    %v2926 = vunpack.c.l.b16 %v2407
    %v2927 = vunpack.c.l.b16 %v2408
    %v2928 = vunpack.c.l.b16 %v2409
    %v2929 = vunpack.c.l.b16 %v2410
    %v2930 = vunpack.c.l.b16 %v2411
    %v2931 = vunpack.c.l.b16 %v2412
    %v2932 = vunpack.c.l.b16 %v2413
    %v2933 = vunpack.c.l.b16 %v2414
    %v2934 = vunpack.c.l.b16 %v2415
    %v2935 = vunpack.c.l.b16 %v2416
    %v2936 = vunpack.c.l.b16 %v2417
    %v2937 = vunpack.c.l.b16 %v2418
    %v2938 = vunpack.c.l.b16 %v2419
    %v2939 = vunpack.c.l.b16 %v2420
    %v2940 = vunpack.c.l.b16 %v2421
    %v2941 = vunpack.c.l.b16 %v2422
    %v2942 = vunpack.c.l.b16 %v2423
    %v2943 = vunpack.c.l.b16 %v2424
    %v2944 = vunpack.c.l.b16 %v2425
    %v2945 = vunpack.c.l.b16 %v2426
    %v2946 = vunpack.c.l.b16 %v2427
    %v2947 = vunpack.c.l.b16 %v2428
    %v2948 = vunpack.c.l.b16 %v2429
    %v2949 = vunpack.c.l.b16 %v2430
    %v2950 = vunpack.c.l.b16 %v2431
    %v2951 = vunpack.c.l.b16 %v2432
    %v2952 = vunpack.c.l.b16 %v2433
    %v2953 = vunpack.c.l.b16 %v2434
    %v2954 = vunpack.c.l.b16 %v2435
    %v2955 = vunpack.c.l.b16 %v2436
    %v2956 = vunpack.c.l.b16 %v2437
    %v2957 = vunpack.c.l.b16 %v2438
    %v2958 = vunpack.c.l.b16 %v2439
    %v2959 = vunpack.c.l.b16 %v2440
    %v2960 = vunpack.c.l.b16 %v2441
    %v2961 = vunpack.c.l.b16 %v2442
    %v2962 = vunpack.c.l.b16 %v2443
    %v2963 = vunpack.c.l.b16 %v2444
    %v2964 = vunpack.c.l.b16 %v2445
    %v2965 = vunpack.c.l.b16 %v2446
    %v2966 = vunpack.c.l.b16 %v2447
    %v2967 = vunpack.c.l.b16 %v2448
    %v2968 = vunpack.c.l.b16 %v2449
    %v2969 = vunpack.c.l.b16 %v2450
    %v2970 = vunpack.c.l.b16 %v2451
    %v2971 = vunpack.c.l.b16 %v2452
    %v2972 = vunpack.c.l.b16 %v2453
    %v2973 = vunpack.c.l.b16 %v2454
    %v2974 = vunpack.c.l.b16 %v2455
    %v2975 = vunpack.c.l.b16 %v2456
    %v2976 = vunpack.c.l.b16 %v2457
    %v2977 = vunpack.c.l.b16 %v2458
    %v2978 = vunpack.c.l.b16 %v2459
    %v2979 = vunpack.c.l.b16 %v2460
    %v2980 = vunpack.c.l.b16 %v2461
    %v2981 = vunpack.c.l.b16 %v2462
    %v2982 = vunpack.c.l.b16 %v2463
    %v2983 = vunpack.c.l.b16 %v2464
    %v2984 = vunpack.c.l.b16 %v2465
    %v2985 = vunpack.c.l.b16 %v2466
    %v2986 = vunpack.c.l.b16 %v2467
    %v2987 = vunpack.c.l.b16 %v2468
    %v2988 = vunpack.c.l.b16 %v2469
    %v2989 = vunpack.c.l.b16 %v2470
    %v2990 = vunpack.c.l.b16 %v2471
    %v2991 = vunpack.c.l.b16 %v2472
    %v2992 = vunpack.c.l.b16 %v2473
    %v2993 = vunpack.c.l.b16 %v2474
    %v2994 = vunpack.c.l.b16 %v2475
    %v2995 = vunpack.c.l.b16 %v2476
    %v2996 = vunpack.c.l.b16 %v2477
    %v2997 = vunpack.c.l.b16 %v2478
    %v2998 = vunpack.c.l.b16 %v2479
    %v2999 = vunpack.c.l.b16 %v2480
    %v3000 = vunpack.c.l.b16 %v2481
    %v3001 = vunpack.c.l.b16 %v2482
    %v3002 = vunpack.c.l.b16 %v2483
    %v3003 = vunpack.c.l.b16 %v2484
    %v3004 = vunpack.c.l.b16 %v2485
    %v3005 = vunpack.c.l.b16 %v2486
    %v3006 = vunpack.c.l.b16 %v2487
    %v3007 = vunpack.c.l.b16 %v2488
    %v3008 = vunpack.c.l.b16 %v2489
    %v3009 = vunpack.c.l.b16 %v2490
    %v3010 = vunpack.c.l.b16 %v2491
    %v3011 = vunpack.c.l.b16 %v2492
    %v3012 = vunpack.c.l.b16 %v2493
    %v3013 = vunpack.c.l.b16 %v2494
    %v3014 = vunpack.c.l.b16 %v2495
    %v3015 = vunpack.c.l.b16 %v2496
    %v3016 = vunpack.c.l.b16 %v2497
    %v3017 = vunpack.c.l.b16 %v2498
    %v3018 = vunpack.c.l.b16 %v2499
    %v3019 = vunpack.c.l.b16 %v2500
    %v3020 = vunpack.c.l.b16 %v2501
    %v3021 = vunpack.c.l.b16 %v2502
    %v3022 = vunpack.c.l.b16 %v2503
    %v3023 = vunpack.c.l.b16 %v2504
    %v3024 = vunpack.c.l.b16 %v2505
    %v3025 = vunpack.c.l.b16 %v2506
    %v3026 = vunpack.c.l.b16 %v2507
    %v3027 = vunpack.c.l.b16 %v2508
    %v3028 = vunpack.c.l.b16 %v2509
    %v3029 = vunpack.c.l.b16 %v2510
    %v3030 = vunpack.c.l.b16 %v2511
    %v3031 = vunpack.c.l.b16 %v2512
    %v3032 = vunpack.c.l.b16 %v2513
    %v3033 = vunpack.c.l.b16 %v2514
    %v3034 = vunpack.c.l.b16 %v2515
    %v3035 = vunpack.c.l.b16 %v2516
    %v3036 = vunpack.c.l.b16 %v2517
    %v3037 = vunpack.c.l.b16 %v2518
    %v3038 = vunpack.c.l.b16 %v2519
    %v3039 = vunpack.c.l.b16 %v2520
    %v3040 = vunpack.c.l.b16 %v2521
    %v3041 = vunpack.c.l.b16 %v2522
    %v3042 = vunpack.c.l.b16 %v2523
    %v3043 = vunpack.c.l.b16 %v2524
    %v3044 = vunpack.c.l.b16 %v2525
    %v3045 = vunpack.c.l.b16 %v2526
    %v3046 = vunpack.c.l.b16 %v2527
    %v3047 = vunpack.c.l.b16 %v2528
    %v3048 = vunpack.c.l.b16 %v2529
    %v3049 = vunpack.c.l.b16 %v2530
    %v3050 = vunpack.c.l.b16 %v2531
    %v3051 = vunpack.c.l.b16 %v2532
    %v3052 = vunpack.c.l.b16 %v2533
    %v3053 = vunpack.c.l.b16 %v2534
    %v3054 = vunpack.c.l.b16 %v2535
    %v3055 = vunpack.c.l.b16 %v2536
    %v3056 = vunpack.c.l.b16 %v2537
    %v3057 = vpack.c.b16 %v2802, %v2801
    %v3058 = vpack.c.b16 %v2804, %v2803
    %v3059 = vpack.c.b16 %v2806, %v2805
    %v3060 = vpack.c.b16 %v2808, %v2807
    %v3061 = vpack.c.b16 %v2810, %v2809
    %v3062 = vpack.c.b16 %v2812, %v2811
    %v3063 = vpack.c.b16 %v2814, %v2813
    %v3064 = vpack.c.b16 %v2816, %v2815
    %v3065 = vpack.c.b16 %v2818, %v2817
    %v3066 = vpack.c.b16 %v2820, %v2819
    %v3067 = vpack.c.b16 %v2822, %v2821
    %v3068 = vpack.c.b16 %v2824, %v2823
    %v3069 = vpack.c.b16 %v2826, %v2825
    %v3070 = vpack.c.b16 %v2828, %v2827
    %v3071 = vpack.c.b16 %v2830, %v2829
    %v3072 = vpack.c.b16 %v2832, %v2831
    %v3073 = vpack.c.b16 %v2834, %v2833
    %v3074 = vpack.c.b16 %v2836, %v2835
    %v3075 = vpack.c.b16 %v2838, %v2837
    %v3076 = vpack.c.b16 %v2840, %v2839
    %v3077 = vpack.c.b16 %v2842, %v2841
    %v3078 = vpack.c.b16 %v2844, %v2843
    %v3079 = vpack.c.b16 %v2846, %v2845
    %v3080 = vpack.c.b16 %v2848, %v2847
    %v3081 = vpack.c.b16 %v2850, %v2849
    %v3082 = vpack.c.b16 %v2852, %v2851
    %v3083 = vpack.c.b16 %v2854, %v2853
    %v3084 = vpack.c.b16 %v2856, %v2855
    %v3085 = vpack.c.b16 %v2858, %v2857
    %v3086 = vpack.c.b16 %v2860, %v2859
    %v3087 = vpack.c.b16 %v2862, %v2861
    %v3088 = vpack.c.b16 %v2864, %v2863
    %v3089 = vpack.c.b16 %v2866, %v2865
    %v3090 = vpack.c.b16 %v2868, %v2867
    %v3091 = vpack.c.b16 %v2870, %v2869
    %v3092 = vpack.c.b16 %v2872, %v2871
    %v3093 = vpack.c.b16 %v2874, %v2873
    %v3094 = vpack.c.b16 %v2876, %v2875
    %v3095 = vpack.c.b16 %v2878, %v2877
    %v3096 = vpack.c.b16 %v2880, %v2879
    %v3097 = vpack.c.b16 %v2882, %v2881
    %v3098 = vpack.c.b16 %v2884, %v2883
    %v3099 = vpack.c.b16 %v2886, %v2885
    %v3100 = vpack.c.b16 %v2888, %v2887
    %v3101 = vpack.c.b16 %v2890, %v2889
    %v3102 = vpack.c.b16 %v2892, %v2891
    %v3103 = vpack.c.b16 %v2894, %v2893
    %v3104 = vpack.c.b16 %v2896, %v2895
    %v3105 = vpack.c.b16 %v2898, %v2897
    %v3106 = vpack.c.b16 %v2900, %v2899
    %v3107 = vpack.c.b16 %v2902, %v2901
    %v3108 = vpack.c.b16 %v2904, %v2903
    %v3109 = vpack.c.b16 %v2906, %v2905
    %v3110 = vpack.c.b16 %v2908, %v2907
    %v3111 = vpack.c.b16 %v2910, %v2909
    %v3112 = vpack.c.b16 %v2912, %v2911
    %v3113 = vpack.c.b16 %v2914, %v2913
    %v3114 = vpack.c.b16 %v2916, %v2915
    %v3115 = vpack.c.b16 %v2918, %v2917
    %v3116 = vpack.c.b16 %v2920, %v2919
    %v3117 = vpack.c.b16 %v2922, %v2921
    %v3118 = vpack.c.b16 %v2924, %v2923
    %v3119 = vpack.c.b16 %v2926, %v2925
    %v3120 = vpack.c.b16 %v2928, %v2927
    %v3121 = vpack.c.b16 %v2930, %v2929
    %v3122 = vpack.c.b16 %v2932, %v2931
    %v3123 = vpack.c.b16 %v2934, %v2933
    %v3124 = vpack.c.b16 %v2936, %v2935
    %v3125 = vpack.c.b16 %v2938, %v2937
    %v3126 = vpack.c.b16 %v2940, %v2939
    %v3127 = vpack.c.b16 %v2942, %v2941
    %v3128 = vpack.c.b16 %v2944, %v2943
    %v3129 = vpack.c.b16 %v2946, %v2945
    %v3130 = vpack.c.b16 %v2948, %v2947
    %v3131 = vpack.c.b16 %v2950, %v2949
    %v3132 = vpack.c.b16 %v2952, %v2951
    %v3133 = vpack.c.b16 %v2954, %v2953
    %v3134 = vpack.c.b16 %v2956, %v2955
    %v3135 = vpack.c.b16 %v2958, %v2957
    %v3136 = vpack.c.b16 %v2960, %v2959
    %v3137 = vpack.c.b16 %v2962, %v2961
    %v3138 = vpack.c.b16 %v2964, %v2963
    %v3139 = vpack.c.b16 %v2966, %v2965
    %v3140 = vpack.c.b16 %v2968, %v2967
    %v3141 = vpack.c.b16 %v2970, %v2969
    %v3142 = vpack.c.b16 %v2972, %v2971
    %v3143 = vpack.c.b16 %v2974, %v2973
    %v3144 = vpack.c.b16 %v2976, %v2975
    %v3145 = vpack.c.b16 %v2978, %v2977
    %v3146 = vpack.c.b16 %v2980, %v2979
    %v3147 = vpack.c.b16 %v2982, %v2981
    %v3148 = vpack.c.b16 %v2984, %v2983
    %v3149 = vpack.c.b16 %v2986, %v2985
    %v3150 = vpack.c.b16 %v2988, %v2987
    %v3151 = vpack.c.b16 %v2990, %v2989
    %v3152 = vpack.c.b16 %v2992, %v2991
    %v3153 = vpack.c.b16 %v2994, %v2993
    %v3154 = vpack.c.b16 %v2996, %v2995
    %v3155 = vpack.c.b16 %v2998, %v2997
    %v3156 = vpack.c.b16 %v3000, %v2999
    %v3157 = vpack.c.b16 %v3002, %v3001
    %v3158 = vpack.c.b16 %v3004, %v3003
    %v3159 = vpack.c.b16 %v3006, %v3005
    %v3160 = vpack.c.b16 %v3008, %v3007
    %v3161 = vpack.c.b16 %v3010, %v3009
    %v3162 = vpack.c.b16 %v3012, %v3011
    %v3163 = vpack.c.b16 %v3014, %v3013
    %v3164 = vpack.c.b16 %v3016, %v3015
    %v3165 = vpack.c.b16 %v3018, %v3017
    %v3166 = vpack.c.b16 %v3020, %v3019
    %v3167 = vpack.c.b16 %v3022, %v3021
    %v3168 = vpack.c.b16 %v3024, %v3023
    %v3169 = vpack.c.b16 %v3026, %v3025
    %v3170 = vpack.c.b16 %v3028, %v3027
    %v3171 = vpack.c.b16 %v3030, %v3029
    %v3172 = vpack.c.b16 %v3032, %v3031
    %v3173 = vpack.c.b16 %v3034, %v3033
    %v3174 = vpack.c.b16 %v3036, %v3035
    %v3175 = vpack.c.b16 %v3038, %v3037
    %v3176 = vpack.c.b16 %v3040, %v3039
    %v3177 = vpack.c.b16 %v3042, %v3041
    %v3178 = vpack.c.b16 %v3044, %v3043
    %v3179 = vpack.c.b16 %v3046, %v3045
    %v3180 = vpack.c.b16 %v3048, %v3047
    %v3181 = vpack.c.b16 %v3050, %v3049
    %v3182 = vpack.c.b16 %v3052, %v3051
    %v3183 = vpack.c.b16 %v3054, %v3053
    %v3184 = vpack.c.b16 %v3056, %v3055
    %3313 = vmatprep.subr.bf16.mxu0 0
    %3314 = vmatpush1.bf16.msra.mxu0 %v3057
    %3315 = vmatprep.subr.bf16.mxu0 0
    %3316 = vmatpush1.bf16.msra.mxu0 %v3058
    %3317 = vmatprep.subr.bf16.mxu0 0
    %3318 = vmatpush1.bf16.msra.mxu0 %v3059
    %3319 = vmatprep.subr.bf16.mxu0 0
    %3320 = vmatpush1.bf16.msra.mxu0 %v3060
    %3321 = vmatprep.subr.bf16.mxu0 0
    %3322 = vmatpush1.bf16.msra.mxu0 %v3061
    %3323 = vmatprep.subr.bf16.mxu0 0
    %3324 = vmatpush1.bf16.msra.mxu0 %v3062
    %3325 = vmatprep.subr.bf16.mxu0 0
    %3326 = vmatpush1.bf16.msra.mxu0 %v3063
    %3327 = vmatprep.subr.bf16.mxu0 0
    %3328 = vmatpush1.bf16.msra.mxu0 %v3064
    %3329 = vmatprep.subr.bf16.mxu0 0
    %3330 = vmatpush1.bf16.msra.mxu0 %v3065
    %3331 = vmatprep.subr.bf16.mxu0 0
    %3332 = vmatpush1.bf16.msra.mxu0 %v3066
    %3333 = vmatprep.subr.bf16.mxu0 0
    %3334 = vmatpush1.bf16.msra.mxu0 %v3067
    %3335 = vmatprep.subr.bf16.mxu0 0
    %3336 = vmatpush1.bf16.msra.mxu0 %v3068
    %3337 = vmatprep.subr.bf16.mxu0 0
    %3338 = vmatpush1.bf16.msra.mxu0 %v3069
    %3339 = vmatprep.subr.bf16.mxu0 0
    %3340 = vmatpush1.bf16.msra.mxu0 %v3070
    %3341 = vmatprep.subr.bf16.mxu0 0
    %3342 = vmatpush1.bf16.msra.mxu0 %v3071
    %3343 = vmatprep.subr.bf16.mxu0 0
    %3344 = vmatpush1.bf16.msra.mxu0 %v3072
    %3345 = vmatprep.mubr.bf16.mxu0 %v2267
    %3346 = vmatmul.mubr.bf16.gmra.mrb[0].mxu0 %v2266
    %v3347 = vpop.f32.mrb[0].mxu0
    %v3348 = vadd.f32 %v2543, %v3347
    %v3349 = vpop.f32.mrb[0].mxu0
    %v3350 = vpop.f32.mrb[0].mxu0
    %v3351 = vadd.f32 %v2543, %v3350
    %v3352 = vpop.f32.mrb[0].mxu0
    %3353 = vdwg.mxu0
    %3354 = vmatprep.subr.bf16.mxu0 0
    %3355 = vmatpush1.bf16.msra.mxu0 %v3073
    %3356 = vmatprep.subr.bf16.mxu0 0
    %3357 = vmatpush1.bf16.msra.mxu0 %v3074
    %3358 = vmatprep.subr.bf16.mxu0 0
    %3359 = vmatpush1.bf16.msra.mxu0 %v3075
    %3360 = vmatprep.subr.bf16.mxu0 0
    %3361 = vmatpush1.bf16.msra.mxu0 %v3076
    %3362 = vmatprep.subr.bf16.mxu0 0
    %3363 = vmatpush1.bf16.msra.mxu0 %v3077
    %3364 = vmatprep.subr.bf16.mxu0 0
    %3365 = vmatpush1.bf16.msra.mxu0 %v3078
    %3366 = vmatprep.subr.bf16.mxu0 0
    %3367 = vmatpush1.bf16.msra.mxu0 %v3079
    %3368 = vmatprep.subr.bf16.mxu0 0
    %3369 = vmatpush1.bf16.msra.mxu0 %v3080
    %3370 = vmatprep.subr.bf16.mxu0 0
    %3371 = vmatpush1.bf16.msra.mxu0 %v3081
    %3372 = vmatprep.subr.bf16.mxu0 0
    %3373 = vmatpush1.bf16.msra.mxu0 %v3082
    %3374 = vmatprep.subr.bf16.mxu0 0
    %3375 = vmatpush1.bf16.msra.mxu0 %v3083
    %3376 = vmatprep.subr.bf16.mxu0 0
    %3377 = vmatpush1.bf16.msra.mxu0 %v3084
    %3378 = vmatprep.subr.bf16.mxu0 0
    %3379 = vmatpush1.bf16.msra.mxu0 %v3085
    %3380 = vmatprep.subr.bf16.mxu0 0
    %3381 = vmatpush1.bf16.msra.mxu0 %v3086
    %3382 = vmatprep.subr.bf16.mxu0 0
    %3383 = vmatpush1.bf16.msra.mxu0 %v3087
    %3384 = vmatprep.subr.bf16.mxu0 0
    %3385 = vmatpush1.bf16.msra.mxu0 %v3088
    %3386 = vmatprep.mubr.bf16.mxu0 %v2269
    %3387 = vmatmul.mubr.bf16.gmra.mrb[0].mxu0 %v2268
    %v3388 = vpop.f32.mrb[0].mxu0
    %v3389 = vadd.f32 %v3348, %v3388
    %v3390 = vpop.f32.mrb[0].mxu0
    %v3391 = vpop.f32.mrb[0].mxu0
    %v3392 = vadd.f32 %v3351, %v3391
    %v3393 = vpop.f32.mrb[0].mxu0
    %3394 = vdwg.mxu0
    %3395 = vmatprep.subr.bf16.mxu0 0
    %3396 = vmatpush1.bf16.msra.mxu0 %v3089
    %3397 = vmatprep.subr.bf16.mxu0 0
    %3398 = vmatpush1.bf16.msra.mxu0 %v3090
    %3399 = vmatprep.subr.bf16.mxu0 0
    %3400 = vmatpush1.bf16.msra.mxu0 %v3091
    %3401 = vmatprep.subr.bf16.mxu0 0
    %3402 = vmatpush1.bf16.msra.mxu0 %v3092
    %3403 = vmatprep.subr.bf16.mxu0 0
    %3404 = vmatpush1.bf16.msra.mxu0 %v3093
    %3405 = vmatprep.subr.bf16.mxu0 0
    %3406 = vmatpush1.bf16.msra.mxu0 %v3094
    %3407 = vmatprep.subr.bf16.mxu0 0
    %3408 = vmatpush1.bf16.msra.mxu0 %v3095
    %3409 = vmatprep.subr.bf16.mxu0 0
    %3410 = vmatpush1.bf16.msra.mxu0 %v3096
    %3411 = vmatprep.subr.bf16.mxu0 0
    %3412 = vmatpush1.bf16.msra.mxu0 %v3097
    %3413 = vmatprep.subr.bf16.mxu0 0
    %3414 = vmatpush1.bf16.msra.mxu0 %v3098
    %3415 = vmatprep.subr.bf16.mxu0 0
    %3416 = vmatpush1.bf16.msra.mxu0 %v3099
    %3417 = vmatprep.subr.bf16.mxu0 0
    %3418 = vmatpush1.bf16.msra.mxu0 %v3100
    %3419 = vmatprep.subr.bf16.mxu0 0
    %3420 = vmatpush1.bf16.msra.mxu0 %v3101
    %3421 = vmatprep.subr.bf16.mxu0 0
    %3422 = vmatpush1.bf16.msra.mxu0 %v3102
    %3423 = vmatprep.subr.bf16.mxu0 0
    %3424 = vmatpush1.bf16.msra.mxu0 %v3103
    %3425 = vmatprep.subr.bf16.mxu0 0
    %3426 = vmatpush1.bf16.msra.mxu0 %v3104
    %3427 = vmatprep.mubr.bf16.mxu0 %v2271
    %3428 = vmatmul.mubr.bf16.gmra.mrb[0].mxu0 %v2270
    %v3429 = vpop.f32.mrb[0].mxu0
    %v3430 = vadd.f32 %v3389, %v3429
    %v3431 = vpop.f32.mrb[0].mxu0
    %v3432 = vpop.f32.mrb[0].mxu0
    %v3433 = vadd.f32 %v3392, %v3432
    %v3434 = vpop.f32.mrb[0].mxu0
    %3435 = vdwg.mxu0
    %3436 = vmatprep.subr.bf16.mxu0 0
    %3437 = vmatpush1.bf16.msra.mxu0 %v3105
    %3438 = vmatprep.subr.bf16.mxu0 0
    %3439 = vmatpush1.bf16.msra.mxu0 %v3106
    %3440 = vmatprep.subr.bf16.mxu0 0
    %3441 = vmatpush1.bf16.msra.mxu0 %v3107
    %3442 = vmatprep.subr.bf16.mxu0 0
    %3443 = vmatpush1.bf16.msra.mxu0 %v3108
    %3444 = vmatprep.subr.bf16.mxu0 0
    %3445 = vmatpush1.bf16.msra.mxu0 %v3109
    %3446 = vmatprep.subr.bf16.mxu0 0
    %3447 = vmatpush1.bf16.msra.mxu0 %v3110
    %3448 = vmatprep.subr.bf16.mxu0 0
    %3449 = vmatpush1.bf16.msra.mxu0 %v3111
    %3450 = vmatprep.subr.bf16.mxu0 0
    %3451 = vmatpush1.bf16.msra.mxu0 %v3112
    %3452 = vmatprep.subr.bf16.mxu0 0
    %3453 = vmatpush1.bf16.msra.mxu0 %v3113
    %3454 = vmatprep.subr.bf16.mxu0 0
    %3455 = vmatpush1.bf16.msra.mxu0 %v3114
    %3456 = vmatprep.subr.bf16.mxu0 0
    %3457 = vmatpush1.bf16.msra.mxu0 %v3115
    %3458 = vmatprep.subr.bf16.mxu0 0
    %3459 = vmatpush1.bf16.msra.mxu0 %v3116
    %3460 = vmatprep.subr.bf16.mxu0 0
    %3461 = vmatpush1.bf16.msra.mxu0 %v3117
    %3462 = vmatprep.subr.bf16.mxu0 0
    %3463 = vmatpush1.bf16.msra.mxu0 %v3118
    %3464 = vmatprep.subr.bf16.mxu0 0
    %3465 = vmatpush1.bf16.msra.mxu0 %v3119
    %3466 = vmatprep.subr.bf16.mxu0 0
    %3467 = vmatpush1.bf16.msra.mxu0 %v3120
    %3468 = vmatprep.mubr.bf16.mxu0 %v2273
    %3469 = vmatmul.mubr.bf16.gmra.mrb[0].mxu0 %v2272
    %v3470 = vpop.f32.mrb[0].mxu0
    %v3471 = vadd.f32 %v3430, %v3470
    %v3472 = vpop.f32.mrb[0].mxu0
    %v3473 = vpop.f32.mrb[0].mxu0
    %v3474 = vadd.f32 %v3433, %v3473
    %v3475 = vpop.f32.mrb[0].mxu0
    %3476 = vdwg.mxu0
    %3477 = vmatprep.subr.bf16.mxu0 0
    %3478 = vmatpush1.bf16.msra.mxu0 %v3121
    %3479 = vmatprep.subr.bf16.mxu0 0
    %3480 = vmatpush1.bf16.msra.mxu0 %v3122
    %3481 = vmatprep.subr.bf16.mxu0 0
    %3482 = vmatpush1.bf16.msra.mxu0 %v3123
    %3483 = vmatprep.subr.bf16.mxu0 0
    %3484 = vmatpush1.bf16.msra.mxu0 %v3124
    %3485 = vmatprep.subr.bf16.mxu0 0
    %3486 = vmatpush1.bf16.msra.mxu0 %v3125
    %3487 = vmatprep.subr.bf16.mxu0 0
    %3488 = vmatpush1.bf16.msra.mxu0 %v3126
    %3489 = vmatprep.subr.bf16.mxu0 0
    %3490 = vmatpush1.bf16.msra.mxu0 %v3127
    %3491 = vmatprep.subr.bf16.mxu0 0
    %3492 = vmatpush1.bf16.msra.mxu0 %v3128
    %3493 = vmatprep.subr.bf16.mxu0 0
    %3494 = vmatpush1.bf16.msra.mxu0 %v3129
    %3495 = vmatprep.subr.bf16.mxu0 0
    %3496 = vmatpush1.bf16.msra.mxu0 %v3130
    %3497 = vmatprep.subr.bf16.mxu0 0
    %3498 = vmatpush1.bf16.msra.mxu0 %v3131
    %3499 = vmatprep.subr.bf16.mxu0 0
    %3500 = vmatpush1.bf16.msra.mxu0 %v3132
    %3501 = vmatprep.subr.bf16.mxu0 0
    %3502 = vmatpush1.bf16.msra.mxu0 %v3133
    %3503 = vmatprep.subr.bf16.mxu0 0
    %3504 = vmatpush1.bf16.msra.mxu0 %v3134
    %3505 = vmatprep.subr.bf16.mxu0 0
    %3506 = vmatpush1.bf16.msra.mxu0 %v3135
    %3507 = vmatprep.subr.bf16.mxu0 0
    %3508 = vmatpush1.bf16.msra.mxu0 %v3136
    %3509 = vmatprep.mubr.bf16.mxu0 %v2275
    %3510 = vmatmul.mubr.bf16.gmra.mrb[0].mxu0 %v2274
    %v3511 = vpop.f32.mrb[0].mxu0
    %v3512 = vadd.f32 %v3471, %v3511
    %v3513 = vpop.f32.mrb[0].mxu0
    %v3514 = vpop.f32.mrb[0].mxu0
    %v3515 = vadd.f32 %v3474, %v3514
    %v3516 = vpop.f32.mrb[0].mxu0
    %3517 = vdwg.mxu0
    %3518 = vmatprep.subr.bf16.mxu0 0
    %3519 = vmatpush1.bf16.msra.mxu0 %v3137
    %3520 = vmatprep.subr.bf16.mxu0 0
    %3521 = vmatpush1.bf16.msra.mxu0 %v3138
    %3522 = vmatprep.subr.bf16.mxu0 0
    %3523 = vmatpush1.bf16.msra.mxu0 %v3139
    %3524 = vmatprep.subr.bf16.mxu0 0
    %3525 = vmatpush1.bf16.msra.mxu0 %v3140
    %3526 = vmatprep.subr.bf16.mxu0 0
    %3527 = vmatpush1.bf16.msra.mxu0 %v3141
    %3528 = vmatprep.subr.bf16.mxu0 0
    %3529 = vmatpush1.bf16.msra.mxu0 %v3142
    %3530 = vmatprep.subr.bf16.mxu0 0
    %3531 = vmatpush1.bf16.msra.mxu0 %v3143
    %3532 = vmatprep.subr.bf16.mxu0 0
    %3533 = vmatpush1.bf16.msra.mxu0 %v3144
    %3534 = vmatprep.subr.bf16.mxu0 0
    %3535 = vmatpush1.bf16.msra.mxu0 %v3145
    %3536 = vmatprep.subr.bf16.mxu0 0
    %3537 = vmatpush1.bf16.msra.mxu0 %v3146
    %3538 = vmatprep.subr.bf16.mxu0 0
    %3539 = vmatpush1.bf16.msra.mxu0 %v3147
    %3540 = vmatprep.subr.bf16.mxu0 0
    %3541 = vmatpush1.bf16.msra.mxu0 %v3148
    %3542 = vmatprep.subr.bf16.mxu0 0
    %3543 = vmatpush1.bf16.msra.mxu0 %v3149
    %3544 = vmatprep.subr.bf16.mxu0 0
    %3545 = vmatpush1.bf16.msra.mxu0 %v3150
    %3546 = vmatprep.subr.bf16.mxu0 0
    %3547 = vmatpush1.bf16.msra.mxu0 %v3151
    %3548 = vmatprep.subr.bf16.mxu0 0
    %3549 = vmatpush1.bf16.msra.mxu0 %v3152
    %3550 = vmatprep.mubr.bf16.mxu0 %v2277
    %3551 = vmatmul.mubr.bf16.gmra.mrb[0].mxu0 %v2276
    %v3552 = vpop.f32.mrb[0].mxu0
    %v3553 = vadd.f32 %v3512, %v3552
    %v3554 = vpop.f32.mrb[0].mxu0
    %v3555 = vpop.f32.mrb[0].mxu0
    %v3556 = vadd.f32 %v3515, %v3555
    %v3557 = vpop.f32.mrb[0].mxu0
    %3558 = vdwg.mxu0
    %3559 = vmatprep.subr.bf16.mxu0 0
    %3560 = vmatpush1.bf16.msra.mxu0 %v3153
    %3561 = vmatprep.subr.bf16.mxu0 0
    %3562 = vmatpush1.bf16.msra.mxu0 %v3154
    %3563 = vmatprep.subr.bf16.mxu0 0
    %3564 = vmatpush1.bf16.msra.mxu0 %v3155
    %3565 = vmatprep.subr.bf16.mxu0 0
    %3566 = vmatpush1.bf16.msra.mxu0 %v3156
    %3567 = vmatprep.subr.bf16.mxu0 0
    %3568 = vmatpush1.bf16.msra.mxu0 %v3157
    %3569 = vmatprep.subr.bf16.mxu0 0
    %3570 = vmatpush1.bf16.msra.mxu0 %v3158
    %3571 = vmatprep.subr.bf16.mxu0 0
    %3572 = vmatpush1.bf16.msra.mxu0 %v3159
    %3573 = vmatprep.subr.bf16.mxu0 0
    %3574 = vmatpush1.bf16.msra.mxu0 %v3160
    %3575 = vmatprep.subr.bf16.mxu0 0
    %3576 = vmatpush1.bf16.msra.mxu0 %v3161
    %3577 = vmatprep.subr.bf16.mxu0 0
    %3578 = vmatpush1.bf16.msra.mxu0 %v3162
    %3579 = vmatprep.subr.bf16.mxu0 0
    %3580 = vmatpush1.bf16.msra.mxu0 %v3163
    %3581 = vmatprep.subr.bf16.mxu0 0
    %3582 = vmatpush1.bf16.msra.mxu0 %v3164
    %3583 = vmatprep.subr.bf16.mxu0 0
    %3584 = vmatpush1.bf16.msra.mxu0 %v3165
    %3585 = vmatprep.subr.bf16.mxu0 0
    %3586 = vmatpush1.bf16.msra.mxu0 %v3166
    %3587 = vmatprep.subr.bf16.mxu0 0
    %3588 = vmatpush1.bf16.msra.mxu0 %v3167
    %3589 = vmatprep.subr.bf16.mxu0 0
    %3590 = vmatpush1.bf16.msra.mxu0 %v3168
    %3591 = vmatprep.mubr.bf16.mxu0 %v2279
    %3592 = vmatmul.mubr.bf16.gmra.mrb[0].mxu0 %v2278
    %v3593 = vpop.f32.mrb[0].mxu0
    %v3594 = vadd.f32 %v3553, %v3593
    %v3595 = vpop.f32.mrb[0].mxu0
    %v3596 = vpop.f32.mrb[0].mxu0
    %v3597 = vadd.f32 %v3556, %v3596
    %v3598 = vpop.f32.mrb[0].mxu0
    %3599 = vdwg.mxu0
    %3600 = vmatprep.subr.bf16.mxu0 0
    %3601 = vmatpush1.bf16.msra.mxu0 %v3169
    %3602 = vmatprep.subr.bf16.mxu0 0
    %3603 = vmatpush1.bf16.msra.mxu0 %v3170
    %3604 = vmatprep.subr.bf16.mxu0 0
    %3605 = vmatpush1.bf16.msra.mxu0 %v3171
    %3606 = vmatprep.subr.bf16.mxu0 0
    %3607 = vmatpush1.bf16.msra.mxu0 %v3172
    %3608 = vmatprep.subr.bf16.mxu0 0
    %3609 = vmatpush1.bf16.msra.mxu0 %v3173
    %3610 = vmatprep.subr.bf16.mxu0 0
    %3611 = vmatpush1.bf16.msra.mxu0 %v3174
    %3612 = vmatprep.subr.bf16.mxu0 0
    %3613 = vmatpush1.bf16.msra.mxu0 %v3175
    %3614 = vmatprep.subr.bf16.mxu0 0
    %3615 = vmatpush1.bf16.msra.mxu0 %v3176
    %3616 = vmatprep.subr.bf16.mxu0 0
    %3617 = vmatpush1.bf16.msra.mxu0 %v3177
    %3618 = vmatprep.subr.bf16.mxu0 0
    %3619 = vmatpush1.bf16.msra.mxu0 %v3178
    %3620 = vmatprep.subr.bf16.mxu0 0
    %3621 = vmatpush1.bf16.msra.mxu0 %v3179
    %3622 = vmatprep.subr.bf16.mxu0 0
    %3623 = vmatpush1.bf16.msra.mxu0 %v3180
    %3624 = vmatprep.subr.bf16.mxu0 0
    %3625 = vmatpush1.bf16.msra.mxu0 %v3181
    %3626 = vmatprep.subr.bf16.mxu0 0
    %3627 = vmatpush1.bf16.msra.mxu0 %v3182
    %3628 = vmatprep.subr.bf16.mxu0 0
    %3629 = vmatpush1.bf16.msra.mxu0 %v3183
    %3630 = vmatprep.subr.bf16.mxu0 0
    %3631 = vmatpush1.bf16.msra.mxu0 %v3184
    %3632 = vmatprep.mubr.bf16.mxu0 %v2281
    %3633 = vmatmul.mubr.bf16.gmra.mrb[0].mxu0 %v2280
    %v3634 = vpop.f32.mrb[0].mxu0
    %v3635 = vadd.f32 %v3594, %v3634
    %v3636 = vpop.f32.mrb[0].mxu0
    %v3637 = vpop.f32.mrb[0].mxu0
    %v3638 = vadd.f32 %v3597, %v3637
    %v3639 = vpop.f32.mrb[0].mxu0
    %3640 = vdwg.mxu0
    %v3641 = vadd.f32 %v1608, %v3635
    %v3642 = vadd.f32 %v1609, %v3638
    %v3643 = vld [vmem:[%s13] sm:$0x1]
    %v3644 = vld [vmem:[%s14] sm:$0x1]
    %v3645 = vsel %vm372, %v3641, 0.0
    %3646 = vadd.xlane.f32.xlu0 %v3645
    %v3647 = vpop.xlane.xlu0 %3646
    %v3648 = vsel %vm372, %v3642, 0.0
    %3649 = vadd.xlane.f32.xlu0 %v3648
    %v3650 = vpop.xlane.xlu0 %3649
    %v3651 = vmul.f32 %v3647, %v1573
    %v3652 = vmul.f32 %v3650, %v1573
    %v3653 = vsub.f32 %v3641, %v3651
    %v3654 = vsub.f32 %v3642, %v3652
    %v3655 = vmul.f32 %v3653, %v3653
    %v3656 = vmul.f32 %v3654, %v3654
    %v3657 = vsel %vm372, %v3655, 0.0
    %3658 = vadd.xlane.f32.xlu0 %v3657
    %v3659 = vpop.xlane.xlu0 %3658
    %v3660 = vsel %vm372, %v3656, 0.0
    %3661 = vadd.xlane.f32.xlu0 %v3660
    %v3662 = vpop.xlane.xlu0 %3661
    %v3663 = vmul.f32 %v3659, %v1573
    %v3664 = vmul.f32 %v3662, %v1573
    %v3665 = vadd.f32 %v3663, 1e-05
    %v3666 = vadd.f32 %v3664, 1e-05
    %v3667 = vrsqrt.pop %v3665
    %v3668 = vrsqrt.pop %v3666
    %v3669 = vmul.f32 %v3653, %v3667
    %v3670 = vmul.f32 %v3654, %v3668
    %v3672 = vlaneseq
    %v3673 = vshrl.u32 %v3672, 7
    %v3674 = vsub.s32 0, %v3673
    %v3675 = vrot.slane %v3643, %v3674
    %v3677 = vmul.f32 %v3669, %v3675
    %v3678 = vmul.f32 %v3670, %v3675
    %v3680 = vlaneseq
    %v3681 = vshrl.u32 %v3680, 7
    %v3682 = vsub.s32 0, %v3681
    %v3683 = vrot.slane %v3644, %v3682
    %v3685 = vadd.f32 %v3677, %v3683
    %v3686 = vadd.f32 %v3678, %v3683
    %v3687 = vpack.c.bf16 %v3686, %v3685
    %s3688 = scalar_lea.vmem %s3, 192
    %v3689 = vld [vmem:[%s3688] sm:$0xff]
    %v3690 = vld [vmem:[%s3688 + $0x8] sm:$0xff]
    %v3691 = vld [vmem:[%s3688 + $0x10] sm:$0xff]
    %v3692 = vld [vmem:[%s3688 + $0x18] sm:$0xff]
    %v3693 = vld [vmem:[%s3688 + $0x20] sm:$0xff]
    %v3694 = vld [vmem:[%s3688 + $0x28] sm:$0xff]
    %v3695 = vld [vmem:[%s3688 + $0x30] sm:$0xff]
    %v3696 = vld [vmem:[%s3688 + $0x38] sm:$0xff]
    %v3697 = vld [vmem:[%s3688 + $0x40] sm:$0xff]
    %v3698 = vld [vmem:[%s3688 + $0x48] sm:$0xff]
    %v3699 = vld [vmem:[%s3688 + $0x50] sm:$0xff]
    %v3700 = vld [vmem:[%s3688 + $0x58] sm:$0xff]
    %v3701 = vld [vmem:[%s3688 + $0x60] sm:$0xff]
    %v3702 = vld [vmem:[%s3688 + $0x68] sm:$0xff]
    %v3703 = vld [vmem:[%s3688 + $0x70] sm:$0xff]
    %v3704 = vld [vmem:[%s3688 + $0x78] sm:$0xff]
    %v3705 = vld [vmem:[%s3688 + $0x80] sm:$0xff]
    %v3706 = vld [vmem:[%s3688 + $0x88] sm:$0xff]
    %v3707 = vld [vmem:[%s3688 + $0x90] sm:$0xff]
    %v3708 = vld [vmem:[%s3688 + $0x98] sm:$0xff]
    %v3709 = vld [vmem:[%s3688 + $0xa0] sm:$0xff]
    %v3710 = vld [vmem:[%s3688 + $0xa8] sm:$0xff]
    %v3711 = vld [vmem:[%s3688 + $0xb0] sm:$0xff]
    %v3712 = vld [vmem:[%s3688 + $0xb8] sm:$0xff]
    %s3713 = scalar_lea.vmem %s4, 12
    %v3714 = vld [vmem:[%s3713] sm:$0xff]
    %v3715 = vld [vmem:[%s3713 + $0x8] sm:$0xf]
    %v3718 = vlaneseq
    %v3719 = vshrl.u32 %v3718, 7
    %v3720 = vsub.s32 0, %v3719
    %v3721 = vrot.slane %v3714, %v3720
    %v3722 = vlaneseq
    %v3723 = vshrl.u32 %v3722, 7
    %v3724 = vsub.s32 1, %v3723
    %v3725 = vrot.slane %v3714, %v3724
    %v3726 = vlaneseq
    %v3727 = vshrl.u32 %v3726, 7
    %v3728 = vsub.s32 2, %v3727
    %v3729 = vrot.slane %v3714, %v3728
    %v3730 = vlaneseq
    %v3731 = vshrl.u32 %v3730, 7
    %v3732 = vsub.s32 3, %v3731
    %v3733 = vrot.slane %v3714, %v3732
    %v3734 = vlaneseq
    %v3735 = vshrl.u32 %v3734, 7
    %v3736 = vsub.s32 4, %v3735
    %v3737 = vrot.slane %v3714, %v3736
    %v3738 = vlaneseq
    %v3739 = vshrl.u32 %v3738, 7
    %v3740 = vsub.s32 5, %v3739
    %v3741 = vrot.slane %v3714, %v3740
    %v3742 = vlaneseq
    %v3743 = vshrl.u32 %v3742, 7
    %v3744 = vsub.s32 6, %v3743
    %v3745 = vrot.slane %v3714, %v3744
    %v3746 = vlaneseq
    %v3747 = vshrl.u32 %v3746, 7
    %v3748 = vsub.s32 7, %v3747
    %v3749 = vrot.slane %v3714, %v3748
    %v3750 = vlaneseq
    %v3751 = vshrl.u32 %v3750, 7
    %v3752 = vsub.s32 0, %v3751
    %v3753 = vrot.slane %v3715, %v3752
    %v3754 = vlaneseq
    %v3755 = vshrl.u32 %v3754, 7
    %v3756 = vsub.s32 1, %v3755
    %v3757 = vrot.slane %v3715, %v3756
    %v3758 = vlaneseq
    %v3759 = vshrl.u32 %v3758, 7
    %v3760 = vsub.s32 2, %v3759
    %v3761 = vrot.slane %v3715, %v3760
    %v3762 = vlaneseq
    %v3763 = vshrl.u32 %v3762, 7
    %v3764 = vsub.s32 3, %v3763
    %v3765 = vrot.slane %v3715, %v3764
    %v3802 = vunpack.c.l.b16 %v3689
    %v3803 = vunpack.c.h.b16 %v3689
    %v3804 = vunpack.c.l.b16 %v3690
    %v3805 = vunpack.c.h.b16 %v3690
    %v3806 = vunpack.c.l.b16 %v3691
    %v3807 = vunpack.c.h.b16 %v3691
    %v3808 = vunpack.c.l.b16 %v3692
    %v3809 = vunpack.c.h.b16 %v3692
    %v3810 = vunpack.c.l.b16 %v3693
    %v3811 = vunpack.c.h.b16 %v3693
    %v3812 = vunpack.c.l.b16 %v3694
    %v3813 = vunpack.c.h.b16 %v3694
    %v3814 = vunpack.c.l.b16 %v3695
    %v3815 = vunpack.c.h.b16 %v3695
    %v3816 = vunpack.c.l.b16 %v3696
    %v3817 = vunpack.c.h.b16 %v3696
    %v3818 = vunpack.c.l.b16 %v3697
    %v3819 = vunpack.c.h.b16 %v3697
    %v3820 = vunpack.c.l.b16 %v3698
    %v3821 = vunpack.c.h.b16 %v3698
    %v3822 = vunpack.c.l.b16 %v3699
    %v3823 = vunpack.c.h.b16 %v3699
    %v3824 = vunpack.c.l.b16 %v3700
    %v3825 = vunpack.c.h.b16 %v3700
    %v3826 = vunpack.c.l.b16 %v3701
    %v3827 = vunpack.c.h.b16 %v3701
    %v3828 = vunpack.c.l.b16 %v3702
    %v3829 = vunpack.c.h.b16 %v3702
    %v3830 = vunpack.c.l.b16 %v3703
    %v3831 = vunpack.c.h.b16 %v3703
    %v3832 = vunpack.c.l.b16 %v3704
    %v3833 = vunpack.c.h.b16 %v3704
    %v3834 = vunpack.c.l.b16 %v3705
    %v3835 = vunpack.c.h.b16 %v3705
    %v3836 = vunpack.c.l.b16 %v3706
    %v3837 = vunpack.c.h.b16 %v3706
    %v3838 = vunpack.c.l.b16 %v3707
    %v3839 = vunpack.c.h.b16 %v3707
    %v3840 = vunpack.c.l.b16 %v3708
    %v3841 = vunpack.c.h.b16 %v3708
    %v3842 = vunpack.c.l.b16 %v3709
    %v3843 = vunpack.c.h.b16 %v3709
    %v3844 = vunpack.c.l.b16 %v3710
    %v3845 = vunpack.c.h.b16 %v3710
    %v3846 = vunpack.c.l.b16 %v3711
    %v3847 = vunpack.c.h.b16 %v3711
    %v3848 = vunpack.c.l.b16 %v3712
    %v3849 = vunpack.c.h.b16 %v3712
    %v3850 = vpack.c.b16 %v3814, %v3802
    %v3851 = vpack.c.b16 %v3815, %v3803
    %v3852 = vpack.c.b16 %v3816, %v3804
    %v3853 = vpack.c.b16 %v3817, %v3805
    %v3854 = vpack.c.b16 %v3818, %v3806
    %v3855 = vpack.c.b16 %v3819, %v3807
    %v3856 = vpack.c.b16 %v3820, %v3808
    %v3857 = vpack.c.b16 %v3821, %v3809
    %v3858 = vpack.c.b16 %v3822, %v3810
    %v3859 = vpack.c.b16 %v3823, %v3811
    %v3860 = vpack.c.b16 %v3824, %v3812
    %v3861 = vpack.c.b16 %v3825, %v3813
    %v3862 = vpack.c.b16 %v3838, %v3826
    %v3863 = vpack.c.b16 %v3839, %v3827
    %v3864 = vpack.c.b16 %v3840, %v3828
    %v3865 = vpack.c.b16 %v3841, %v3829
    %v3866 = vpack.c.b16 %v3842, %v3830
    %v3867 = vpack.c.b16 %v3843, %v3831
    %v3868 = vpack.c.b16 %v3844, %v3832
    %v3869 = vpack.c.b16 %v3845, %v3833
    %v3870 = vpack.c.b16 %v3846, %v3834
    %v3871 = vpack.c.b16 %v3847, %v3835
    %v3872 = vpack.c.b16 %v3848, %v3836
    %v3873 = vpack.c.b16 %v3849, %v3837
    %v3899 = vsel %vm372, %v3687, 0
    %3901 = vmatprep.subr.bf16.mxu0 %v3851
    %3902 = vmatpush1.bf16.msra.mxu0 %v3850
    %3903 = vmatprep.subr.bf16.mxu0 %v3863
    %3904 = vmatpush1.bf16.msra.mxu0 %v3862
    %3905 = vmatprep.subr.bf16.mxu0 0
    %3906 = vmatpush1.bf16.msra.mxu0 0
    %3907 = vmatprep.subr.bf16.mxu0 0
    %3908 = vmatpush1.bf16.msra.mxu0 0
    %3909 = vmatprep.subr.bf16.mxu0 0
    %3910 = vmatpush1.bf16.msra.mxu0 0
    %3911 = vmatprep.subr.bf16.mxu0 0
    %3912 = vmatpush1.bf16.msra.mxu0 0
    %3913 = vmatprep.subr.bf16.mxu0 0
    %3914 = vmatpush1.bf16.msra.mxu0 0
    %3915 = vmatprep.subr.bf16.mxu0 0
    %3916 = vmatpush1.bf16.msra.mxu0 0
    %3917 = vmatprep.subr.bf16.mxu0 0
    %3918 = vmatpush1.bf16.msra.mxu0 0
    %3919 = vmatprep.subr.bf16.mxu0 0
    %3920 = vmatpush1.bf16.msra.mxu0 0
    %3921 = vmatprep.subr.bf16.mxu0 0
    %3922 = vmatpush1.bf16.msra.mxu0 0
    %3923 = vmatprep.subr.bf16.mxu0 0
    %3924 = vmatpush1.bf16.msra.mxu0 0
    %3925 = vmatprep.subr.bf16.mxu0 0
    %3926 = vmatpush1.bf16.msra.mxu0 0
    %3927 = vmatprep.subr.bf16.mxu0 0
    %3928 = vmatpush1.bf16.msra.mxu0 0
    %3929 = vmatprep.subr.bf16.mxu0 0
    %3930 = vmatpush1.bf16.msra.mxu0 0
    %3931 = vmatprep.subr.bf16.mxu0 0
    %3932 = vmatpush1.bf16.msra.mxu0 0
    %3933 = vmatprep.mubr.bf16.mxu0 0
    %3934 = vmatmul.mubr.bf16.gmra.mrb[0].mxu0 %v3899
    %v3935 = vpop.f32.mrb[0].mxu0
    %v3936 = vadd.f32 %v3721, %v3935
    %v3937 = vpop.f32.mrb[0].mxu0
    %v3938 = vadd.f32 %v3725, %v3937
    %v3939 = vpop.f32.mrb[0].mxu0
    %v3940 = vadd.f32 %v3721, %v3939
    %v3941 = vpop.f32.mrb[0].mxu0
    %v3942 = vadd.f32 %v3725, %v3941
    %3943 = vdwg.mxu0
    %3944 = vmatprep.subr.bf16.mxu0 %v3853
    %3945 = vmatpush1.bf16.msra.mxu0 %v3852
    %3946 = vmatprep.subr.bf16.mxu0 %v3865
    %3947 = vmatpush1.bf16.msra.mxu0 %v3864
    %3948 = vmatprep.subr.bf16.mxu0 0
    %3949 = vmatpush1.bf16.msra.mxu0 0
    %3950 = vmatprep.subr.bf16.mxu0 0
    %3951 = vmatpush1.bf16.msra.mxu0 0
    %3952 = vmatprep.subr.bf16.mxu0 0
    %3953 = vmatpush1.bf16.msra.mxu0 0
    %3954 = vmatprep.subr.bf16.mxu0 0
    %3955 = vmatpush1.bf16.msra.mxu0 0
    %3956 = vmatprep.subr.bf16.mxu0 0
    %3957 = vmatpush1.bf16.msra.mxu0 0
    %3958 = vmatprep.subr.bf16.mxu0 0
    %3959 = vmatpush1.bf16.msra.mxu0 0
    %3960 = vmatprep.subr.bf16.mxu0 0
    %3961 = vmatpush1.bf16.msra.mxu0 0
    %3962 = vmatprep.subr.bf16.mxu0 0
    %3963 = vmatpush1.bf16.msra.mxu0 0
    %3964 = vmatprep.subr.bf16.mxu0 0
    %3965 = vmatpush1.bf16.msra.mxu0 0
    %3966 = vmatprep.subr.bf16.mxu0 0
    %3967 = vmatpush1.bf16.msra.mxu0 0
    %3968 = vmatprep.subr.bf16.mxu0 0
    %3969 = vmatpush1.bf16.msra.mxu0 0
    %3970 = vmatprep.subr.bf16.mxu0 0
    %3971 = vmatpush1.bf16.msra.mxu0 0
    %3972 = vmatprep.subr.bf16.mxu0 0
    %3973 = vmatpush1.bf16.msra.mxu0 0
    %3974 = vmatprep.subr.bf16.mxu0 0
    %3975 = vmatpush1.bf16.msra.mxu0 0
    %3976 = vmatprep.mubr.bf16.mxu0 0
    %3977 = vmatmul.mubr.bf16.gmra.mrb[0].mxu0 %v3899
    %v3978 = vpop.f32.mrb[0].mxu0
    %v3979 = vadd.f32 %v3729, %v3978
    %v3980 = vpop.f32.mrb[0].mxu0
    %v3981 = vadd.f32 %v3733, %v3980
    %v3982 = vpop.f32.mrb[0].mxu0
    %v3983 = vadd.f32 %v3729, %v3982
    %v3984 = vpop.f32.mrb[0].mxu0
    %v3985 = vadd.f32 %v3733, %v3984
    %3986 = vdwg.mxu0
    %3987 = vmatprep.subr.bf16.mxu0 %v3855
    %3988 = vmatpush1.bf16.msra.mxu0 %v3854
    %3989 = vmatprep.subr.bf16.mxu0 %v3867
    %3990 = vmatpush1.bf16.msra.mxu0 %v3866
    %3991 = vmatprep.subr.bf16.mxu0 0
    %3992 = vmatpush1.bf16.msra.mxu0 0
    %3993 = vmatprep.subr.bf16.mxu0 0
    %3994 = vmatpush1.bf16.msra.mxu0 0
    %3995 = vmatprep.subr.bf16.mxu0 0
    %3996 = vmatpush1.bf16.msra.mxu0 0
    %3997 = vmatprep.subr.bf16.mxu0 0
    %3998 = vmatpush1.bf16.msra.mxu0 0
    %3999 = vmatprep.subr.bf16.mxu0 0
    %4000 = vmatpush1.bf16.msra.mxu0 0
    %4001 = vmatprep.subr.bf16.mxu0 0
    %4002 = vmatpush1.bf16.msra.mxu0 0
    %4003 = vmatprep.subr.bf16.mxu0 0
    %4004 = vmatpush1.bf16.msra.mxu0 0
    %4005 = vmatprep.subr.bf16.mxu0 0
    %4006 = vmatpush1.bf16.msra.mxu0 0
    %4007 = vmatprep.subr.bf16.mxu0 0
    %4008 = vmatpush1.bf16.msra.mxu0 0
    %4009 = vmatprep.subr.bf16.mxu0 0
    %4010 = vmatpush1.bf16.msra.mxu0 0
    %4011 = vmatprep.subr.bf16.mxu0 0
    %4012 = vmatpush1.bf16.msra.mxu0 0
    %4013 = vmatprep.subr.bf16.mxu0 0
    %4014 = vmatpush1.bf16.msra.mxu0 0
    %4015 = vmatprep.subr.bf16.mxu0 0
    %4016 = vmatpush1.bf16.msra.mxu0 0
    %4017 = vmatprep.subr.bf16.mxu0 0
    %4018 = vmatpush1.bf16.msra.mxu0 0
    %4019 = vmatprep.mubr.bf16.mxu0 0
    %4020 = vmatmul.mubr.bf16.gmra.mrb[0].mxu0 %v3899
    %v4021 = vpop.f32.mrb[0].mxu0
    %v4022 = vadd.f32 %v3737, %v4021
    %v4023 = vpop.f32.mrb[0].mxu0
    %v4024 = vadd.f32 %v3741, %v4023
    %v4025 = vpop.f32.mrb[0].mxu0
    %v4026 = vadd.f32 %v3737, %v4025
    %v4027 = vpop.f32.mrb[0].mxu0
    %v4028 = vadd.f32 %v3741, %v4027
    %4029 = vdwg.mxu0
    %4030 = vmatprep.subr.bf16.mxu0 %v3857
    %4031 = vmatpush1.bf16.msra.mxu0 %v3856
    %4032 = vmatprep.subr.bf16.mxu0 %v3869
    %4033 = vmatpush1.bf16.msra.mxu0 %v3868
    %4034 = vmatprep.subr.bf16.mxu0 0
    %4035 = vmatpush1.bf16.msra.mxu0 0
    %4036 = vmatprep.subr.bf16.mxu0 0
    %4037 = vmatpush1.bf16.msra.mxu0 0
    %4038 = vmatprep.subr.bf16.mxu0 0
    %4039 = vmatpush1.bf16.msra.mxu0 0
    %4040 = vmatprep.subr.bf16.mxu0 0
    %4041 = vmatpush1.bf16.msra.mxu0 0
    %4042 = vmatprep.subr.bf16.mxu0 0
    %4043 = vmatpush1.bf16.msra.mxu0 0
    %4044 = vmatprep.subr.bf16.mxu0 0
    %4045 = vmatpush1.bf16.msra.mxu0 0
    %4046 = vmatprep.subr.bf16.mxu0 0
    %4047 = vmatpush1.bf16.msra.mxu0 0
    %4048 = vmatprep.subr.bf16.mxu0 0
    %4049 = vmatpush1.bf16.msra.mxu0 0
    %4050 = vmatprep.subr.bf16.mxu0 0
    %4051 = vmatpush1.bf16.msra.mxu0 0
    %4052 = vmatprep.subr.bf16.mxu0 0
    %4053 = vmatpush1.bf16.msra.mxu0 0
    %4054 = vmatprep.subr.bf16.mxu0 0
    %4055 = vmatpush1.bf16.msra.mxu0 0
    %4056 = vmatprep.subr.bf16.mxu0 0
    %4057 = vmatpush1.bf16.msra.mxu0 0
    %4058 = vmatprep.subr.bf16.mxu0 0
    %4059 = vmatpush1.bf16.msra.mxu0 0
    %4060 = vmatprep.subr.bf16.mxu0 0
    %4061 = vmatpush1.bf16.msra.mxu0 0
    %4062 = vmatprep.mubr.bf16.mxu0 0
    %4063 = vmatmul.mubr.bf16.gmra.mrb[0].mxu0 %v3899
    %v4064 = vpop.f32.mrb[0].mxu0
    %v4065 = vadd.f32 %v3745, %v4064
    %v4066 = vpop.f32.mrb[0].mxu0
    %v4067 = vadd.f32 %v3749, %v4066
    %v4068 = vpop.f32.mrb[0].mxu0
    %v4069 = vadd.f32 %v3745, %v4068
    %v4070 = vpop.f32.mrb[0].mxu0
    %v4071 = vadd.f32 %v3749, %v4070
    %4072 = vdwg.mxu0
    %4073 = vmatprep.subr.bf16.mxu0 %v3859
    %4074 = vmatpush1.bf16.msra.mxu0 %v3858
    %4075 = vmatprep.subr.bf16.mxu0 %v3871
    %4076 = vmatpush1.bf16.msra.mxu0 %v3870
    %4077 = vmatprep.subr.bf16.mxu0 0
    %4078 = vmatpush1.bf16.msra.mxu0 0
    %4079 = vmatprep.subr.bf16.mxu0 0
    %4080 = vmatpush1.bf16.msra.mxu0 0
    %4081 = vmatprep.subr.bf16.mxu0 0
    %4082 = vmatpush1.bf16.msra.mxu0 0
    %4083 = vmatprep.subr.bf16.mxu0 0
    %4084 = vmatpush1.bf16.msra.mxu0 0
    %4085 = vmatprep.subr.bf16.mxu0 0
    %4086 = vmatpush1.bf16.msra.mxu0 0
    %4087 = vmatprep.subr.bf16.mxu0 0
    %4088 = vmatpush1.bf16.msra.mxu0 0
    %4089 = vmatprep.subr.bf16.mxu0 0
    %4090 = vmatpush1.bf16.msra.mxu0 0
    %4091 = vmatprep.subr.bf16.mxu0 0
    %4092 = vmatpush1.bf16.msra.mxu0 0
    %4093 = vmatprep.subr.bf16.mxu0 0
    %4094 = vmatpush1.bf16.msra.mxu0 0
    %4095 = vmatprep.subr.bf16.mxu0 0
    %4096 = vmatpush1.bf16.msra.mxu0 0
    %4097 = vmatprep.subr.bf16.mxu0 0
    %4098 = vmatpush1.bf16.msra.mxu0 0
    %4099 = vmatprep.subr.bf16.mxu0 0
    %4100 = vmatpush1.bf16.msra.mxu0 0
    %4101 = vmatprep.subr.bf16.mxu0 0
    %4102 = vmatpush1.bf16.msra.mxu0 0
    %4103 = vmatprep.subr.bf16.mxu0 0
    %4104 = vmatpush1.bf16.msra.mxu0 0
    %4105 = vmatprep.mubr.bf16.mxu0 0
    %4106 = vmatmul.mubr.bf16.gmra.mrb[0].mxu0 %v3899
    %v4107 = vpop.f32.mrb[0].mxu0
    %v4108 = vadd.f32 %v3753, %v4107
    %v4109 = vpop.f32.mrb[0].mxu0
    %v4110 = vadd.f32 %v3757, %v4109
    %v4111 = vpop.f32.mrb[0].mxu0
    %v4112 = vadd.f32 %v3753, %v4111
    %v4113 = vpop.f32.mrb[0].mxu0
    %v4114 = vadd.f32 %v3757, %v4113
    %4115 = vdwg.mxu0
    %4116 = vmatprep.subr.bf16.mxu0 %v3861
    %4117 = vmatpush1.bf16.msra.mxu0 %v3860
    %4118 = vmatprep.subr.bf16.mxu0 %v3873
    %4119 = vmatpush1.bf16.msra.mxu0 %v3872
    %4120 = vmatprep.subr.bf16.mxu0 0
    %4121 = vmatpush1.bf16.msra.mxu0 0
    %4122 = vmatprep.subr.bf16.mxu0 0
    %4123 = vmatpush1.bf16.msra.mxu0 0
    %4124 = vmatprep.subr.bf16.mxu0 0
    %4125 = vmatpush1.bf16.msra.mxu0 0
    %4126 = vmatprep.subr.bf16.mxu0 0
    %4127 = vmatpush1.bf16.msra.mxu0 0
    %4128 = vmatprep.subr.bf16.mxu0 0
    %4129 = vmatpush1.bf16.msra.mxu0 0
    %4130 = vmatprep.subr.bf16.mxu0 0
    %4131 = vmatpush1.bf16.msra.mxu0 0
    %4132 = vmatprep.subr.bf16.mxu0 0
    %4133 = vmatpush1.bf16.msra.mxu0 0
    %4134 = vmatprep.subr.bf16.mxu0 0
    %4135 = vmatpush1.bf16.msra.mxu0 0
    %4136 = vmatprep.subr.bf16.mxu0 0
    %4137 = vmatpush1.bf16.msra.mxu0 0
    %4138 = vmatprep.subr.bf16.mxu0 0
    %4139 = vmatpush1.bf16.msra.mxu0 0
    %4140 = vmatprep.subr.bf16.mxu0 0
    %4141 = vmatpush1.bf16.msra.mxu0 0
    %4142 = vmatprep.subr.bf16.mxu0 0
    %4143 = vmatpush1.bf16.msra.mxu0 0
    %4144 = vmatprep.subr.bf16.mxu0 0
    %4145 = vmatpush1.bf16.msra.mxu0 0
    %4146 = vmatprep.subr.bf16.mxu0 0
    %4147 = vmatpush1.bf16.msra.mxu0 0
    %4148 = vmatprep.mubr.bf16.mxu0 0
    %4149 = vmatmul.mubr.bf16.gmra.mrb[0].mxu0 %v3899
    %v4150 = vpop.f32.mrb[0].mxu0
    %v4151 = vadd.f32 %v3761, %v4150
    %v4152 = vpop.f32.mrb[0].mxu0
    %v4153 = vadd.f32 %v3765, %v4152
    %v4154 = vpop.f32.mrb[0].mxu0
    %v4155 = vadd.f32 %v3761, %v4154
    %v4156 = vpop.f32.mrb[0].mxu0
    %v4157 = vadd.f32 %v3765, %v4156
    %4158 = vdwg.mxu0
    %v4159 = vpack.c.bf16 %v3936, %v3936
    %v4160 = vpack.c.bf16 %v3938, %v3938
    %v4161 = vpack.c.bf16 %v3979, %v3979
    %v4162 = vpack.c.bf16 %v3981, %v3981
    %v4163 = vpack.c.bf16 %v3940, %v3940
    %v4164 = vpack.c.bf16 %v3942, %v3942
    %v4165 = vpack.c.bf16 %v3983, %v3983
    %v4166 = vpack.c.bf16 %v3985, %v3985
    %v4167 = vpack.c.bf16 %v4022, %v4022
    %v4168 = vpack.c.bf16 %v4024, %v4024
    %v4169 = vpack.c.bf16 %v4065, %v4065
    %v4170 = vpack.c.bf16 %v4067, %v4067
    %v4171 = vpack.c.bf16 %v4026, %v4026
    %v4172 = vpack.c.bf16 %v4028, %v4028
    %v4173 = vpack.c.bf16 %v4069, %v4069
    %v4174 = vpack.c.bf16 %v4071, %v4071
    %v4175 = vpack.c.bf16 %v4108, %v4108
    %v4176 = vpack.c.bf16 %v4110, %v4110
    %v4177 = vpack.c.bf16 %v4151, %v4151
    %v4178 = vpack.c.bf16 %v4153, %v4153
    %v4179 = vpack.c.bf16 %v4112, %v4112
    %v4180 = vpack.c.bf16 %v4114, %v4114
    %v4181 = vpack.c.bf16 %v4155, %v4155
    %v4182 = vpack.c.bf16 %v4157, %v4157
    %4183 = vmatprep.subr.bf16.mxu0 0
    %4184 = vmatpush1.bf16.xpose.msra.mxu0 %v4167
    %4185 = vmatprep.subr.bf16.mxu0 0
    %4186 = vmatpush1.bf16.xpose.msra.mxu0 0
    %4187 = vmatprep.subr.bf16.mxu0 0
    %4188 = vmatpush1.bf16.xpose.msra.mxu0 0
    %4189 = vmatprep.subr.bf16.mxu0 0
    %4190 = vmatpush1.bf16.xpose.msra.mxu0 0
    %4191 = vmatprep.subr.bf16.mxu0 0
    %4192 = vmatpush1.bf16.xpose.msra.mxu0 0
    %4193 = vmatprep.subr.bf16.mxu0 0
    %4194 = vmatpush1.bf16.xpose.msra.mxu0 0
    %4195 = vmatprep.subr.bf16.mxu0 0
    %4196 = vmatpush1.bf16.xpose.msra.mxu0 0
    %4197 = vmatprep.subr.bf16.mxu0 0
    %4198 = vmatpush1.bf16.xpose.msra.mxu0 0
    %4199 = vmatprep.subr.bf16.mxu0 0
    %4200 = vmatpush1.bf16.xpose.msra.mxu0 0
    %4201 = vmatprep.subr.bf16.mxu0 0
    %4202 = vmatpush1.bf16.xpose.msra.mxu0 0
    %4203 = vmatprep.subr.bf16.mxu0 0
    %4204 = vmatpush1.bf16.xpose.msra.mxu0 0
    %4205 = vmatprep.subr.bf16.mxu0 0
    %4206 = vmatpush1.bf16.xpose.msra.mxu0 0
    %4207 = vmatprep.subr.bf16.mxu0 0
    %4208 = vmatpush1.bf16.xpose.msra.mxu0 0
    %4209 = vmatprep.subr.bf16.mxu0 0
    %4210 = vmatpush1.bf16.xpose.msra.mxu0 0
    %4211 = vmatprep.subr.bf16.mxu0 0
    %4212 = vmatpush1.bf16.xpose.msra.mxu0 0
    %4213 = vmatprep.subr.bf16.mxu0 0
    %4214 = vmatpush1.bf16.xpose.msra.mxu0 0
    %4215 = vmatprep.mubr.bf16.mxu0 0
    %4216 = vmatmul.mubr.bf16.gmra.mrb[0].mxu0 %v4159
    %v4217 = vpop.f32.mrb[0].mxu0
    %v4218 = vadd.f32 %v162, %v4217
    %v4219 = vpop.f32.mrb[0].mxu0
    %v4220 = vpop.f32.mrb[0].mxu0
    %v4221 = vpop.f32.mrb[0].mxu0
    %4222 = vdwg.mxu0
    %4223 = vmatprep.subr.bf16.mxu0 0
    %4224 = vmatpush1.bf16.xpose.msra.mxu0 %v4168
    %4225 = vmatprep.subr.bf16.mxu0 0
    %4226 = vmatpush1.bf16.xpose.msra.mxu0 0
    %4227 = vmatprep.subr.bf16.mxu0 0
    %4228 = vmatpush1.bf16.xpose.msra.mxu0 0
    %4229 = vmatprep.subr.bf16.mxu0 0
    %4230 = vmatpush1.bf16.xpose.msra.mxu0 0
    %4231 = vmatprep.subr.bf16.mxu0 0
    %4232 = vmatpush1.bf16.xpose.msra.mxu0 0
    %4233 = vmatprep.subr.bf16.mxu0 0
    %4234 = vmatpush1.bf16.xpose.msra.mxu0 0
    %4235 = vmatprep.subr.bf16.mxu0 0
    %4236 = vmatpush1.bf16.xpose.msra.mxu0 0
    %4237 = vmatprep.subr.bf16.mxu0 0
    %4238 = vmatpush1.bf16.xpose.msra.mxu0 0
    %4239 = vmatprep.subr.bf16.mxu0 0
    %4240 = vmatpush1.bf16.xpose.msra.mxu0 0
    %4241 = vmatprep.subr.bf16.mxu0 0
    %4242 = vmatpush1.bf16.xpose.msra.mxu0 0
    %4243 = vmatprep.subr.bf16.mxu0 0
    %4244 = vmatpush1.bf16.xpose.msra.mxu0 0
    %4245 = vmatprep.subr.bf16.mxu0 0
    %4246 = vmatpush1.bf16.xpose.msra.mxu0 0
    %4247 = vmatprep.subr.bf16.mxu0 0
    %4248 = vmatpush1.bf16.xpose.msra.mxu0 0
    %4249 = vmatprep.subr.bf16.mxu0 0
    %4250 = vmatpush1.bf16.xpose.msra.mxu0 0
    %4251 = vmatprep.subr.bf16.mxu0 0
    %4252 = vmatpush1.bf16.xpose.msra.mxu0 0
    %4253 = vmatprep.subr.bf16.mxu0 0
    %4254 = vmatpush1.bf16.xpose.msra.mxu0 0
    %4255 = vmatprep.mubr.bf16.mxu0 0
    %4256 = vmatmul.mubr.bf16.gmra.mrb[0].mxu0 %v4160
    %v4257 = vpop.f32.mrb[0].mxu0
    %v4258 = vadd.f32 %v162, %v4257
    %v4259 = vpop.f32.mrb[0].mxu0
    %v4260 = vpop.f32.mrb[0].mxu0
    %v4261 = vpop.f32.mrb[0].mxu0
    %4262 = vdwg.mxu0
    %4263 = vmatprep.subr.bf16.mxu0 0
    %4264 = vmatpush1.bf16.xpose.msra.mxu0 %v4169
    %4265 = vmatprep.subr.bf16.mxu0 0
    %4266 = vmatpush1.bf16.xpose.msra.mxu0 0
    %4267 = vmatprep.subr.bf16.mxu0 0
    %4268 = vmatpush1.bf16.xpose.msra.mxu0 0
    %4269 = vmatprep.subr.bf16.mxu0 0
    %4270 = vmatpush1.bf16.xpose.msra.mxu0 0
    %4271 = vmatprep.subr.bf16.mxu0 0
    %4272 = vmatpush1.bf16.xpose.msra.mxu0 0
    %4273 = vmatprep.subr.bf16.mxu0 0
    %4274 = vmatpush1.bf16.xpose.msra.mxu0 0
    %4275 = vmatprep.subr.bf16.mxu0 0
    %4276 = vmatpush1.bf16.xpose.msra.mxu0 0
    %4277 = vmatprep.subr.bf16.mxu0 0
    %4278 = vmatpush1.bf16.xpose.msra.mxu0 0
    %4279 = vmatprep.subr.bf16.mxu0 0
    %4280 = vmatpush1.bf16.xpose.msra.mxu0 0
    %4281 = vmatprep.subr.bf16.mxu0 0
    %4282 = vmatpush1.bf16.xpose.msra.mxu0 0
    %4283 = vmatprep.subr.bf16.mxu0 0
    %4284 = vmatpush1.bf16.xpose.msra.mxu0 0
    %4285 = vmatprep.subr.bf16.mxu0 0
    %4286 = vmatpush1.bf16.xpose.msra.mxu0 0
    %4287 = vmatprep.subr.bf16.mxu0 0
    %4288 = vmatpush1.bf16.xpose.msra.mxu0 0
    %4289 = vmatprep.subr.bf16.mxu0 0
    %4290 = vmatpush1.bf16.xpose.msra.mxu0 0
    %4291 = vmatprep.subr.bf16.mxu0 0
    %4292 = vmatpush1.bf16.xpose.msra.mxu0 0
    %4293 = vmatprep.subr.bf16.mxu0 0
    %4294 = vmatpush1.bf16.xpose.msra.mxu0 0
    %4295 = vmatprep.mubr.bf16.mxu0 0
    %4296 = vmatmul.mubr.bf16.gmra.mrb[0].mxu0 %v4161
    %v4297 = vpop.f32.mrb[0].mxu0
    %v4298 = vadd.f32 %v162, %v4297
    %v4299 = vpop.f32.mrb[0].mxu0
    %v4300 = vpop.f32.mrb[0].mxu0
    %v4301 = vpop.f32.mrb[0].mxu0
    %4302 = vdwg.mxu0
    %4303 = vmatprep.subr.bf16.mxu0 0
    %4304 = vmatpush1.bf16.xpose.msra.mxu0 %v4170
    %4305 = vmatprep.subr.bf16.mxu0 0
    %4306 = vmatpush1.bf16.xpose.msra.mxu0 0
    %4307 = vmatprep.subr.bf16.mxu0 0
    %4308 = vmatpush1.bf16.xpose.msra.mxu0 0
    %4309 = vmatprep.subr.bf16.mxu0 0
    %4310 = vmatpush1.bf16.xpose.msra.mxu0 0
    %4311 = vmatprep.subr.bf16.mxu0 0
    %4312 = vmatpush1.bf16.xpose.msra.mxu0 0
    %4313 = vmatprep.subr.bf16.mxu0 0
    %4314 = vmatpush1.bf16.xpose.msra.mxu0 0
    %4315 = vmatprep.subr.bf16.mxu0 0
    %4316 = vmatpush1.bf16.xpose.msra.mxu0 0
    %4317 = vmatprep.subr.bf16.mxu0 0
    %4318 = vmatpush1.bf16.xpose.msra.mxu0 0
    %4319 = vmatprep.subr.bf16.mxu0 0
    %4320 = vmatpush1.bf16.xpose.msra.mxu0 0
    %4321 = vmatprep.subr.bf16.mxu0 0
    %4322 = vmatpush1.bf16.xpose.msra.mxu0 0
    %4323 = vmatprep.subr.bf16.mxu0 0
    %4324 = vmatpush1.bf16.xpose.msra.mxu0 0
    %4325 = vmatprep.subr.bf16.mxu0 0
    %4326 = vmatpush1.bf16.xpose.msra.mxu0 0
    %4327 = vmatprep.subr.bf16.mxu0 0
    %4328 = vmatpush1.bf16.xpose.msra.mxu0 0
    %4329 = vmatprep.subr.bf16.mxu0 0
    %4330 = vmatpush1.bf16.xpose.msra.mxu0 0
    %4331 = vmatprep.subr.bf16.mxu0 0
    %4332 = vmatpush1.bf16.xpose.msra.mxu0 0
    %4333 = vmatprep.subr.bf16.mxu0 0
    %4334 = vmatpush1.bf16.xpose.msra.mxu0 0
    %4335 = vmatprep.mubr.bf16.mxu0 0
    %4336 = vmatmul.mubr.bf16.gmra.mrb[0].mxu0 %v4162
    %v4337 = vpop.f32.mrb[0].mxu0
    %v4338 = vadd.f32 %v162, %v4337
    %v4339 = vpop.f32.mrb[0].mxu0
    %v4340 = vpop.f32.mrb[0].mxu0
    %v4341 = vpop.f32.mrb[0].mxu0
    %4342 = vdwg.mxu0
    %4343 = vmatprep.subr.bf16.mxu0 0
    %4344 = vmatpush1.bf16.xpose.msra.mxu0 %v4171
    %4345 = vmatprep.subr.bf16.mxu0 0
    %4346 = vmatpush1.bf16.xpose.msra.mxu0 0
    %4347 = vmatprep.subr.bf16.mxu0 0
    %4348 = vmatpush1.bf16.xpose.msra.mxu0 0
    %4349 = vmatprep.subr.bf16.mxu0 0
    %4350 = vmatpush1.bf16.xpose.msra.mxu0 0
    %4351 = vmatprep.subr.bf16.mxu0 0
    %4352 = vmatpush1.bf16.xpose.msra.mxu0 0
    %4353 = vmatprep.subr.bf16.mxu0 0
    %4354 = vmatpush1.bf16.xpose.msra.mxu0 0
    %4355 = vmatprep.subr.bf16.mxu0 0
    %4356 = vmatpush1.bf16.xpose.msra.mxu0 0
    %4357 = vmatprep.subr.bf16.mxu0 0
    %4358 = vmatpush1.bf16.xpose.msra.mxu0 0
    %4359 = vmatprep.subr.bf16.mxu0 0
    %4360 = vmatpush1.bf16.xpose.msra.mxu0 0
    %4361 = vmatprep.subr.bf16.mxu0 0
    %4362 = vmatpush1.bf16.xpose.msra.mxu0 0
    %4363 = vmatprep.subr.bf16.mxu0 0
    %4364 = vmatpush1.bf16.xpose.msra.mxu0 0
    %4365 = vmatprep.subr.bf16.mxu0 0
    %4366 = vmatpush1.bf16.xpose.msra.mxu0 0
    %4367 = vmatprep.subr.bf16.mxu0 0
    %4368 = vmatpush1.bf16.xpose.msra.mxu0 0
    %4369 = vmatprep.subr.bf16.mxu0 0
    %4370 = vmatpush1.bf16.xpose.msra.mxu0 0
    %4371 = vmatprep.subr.bf16.mxu0 0
    %4372 = vmatpush1.bf16.xpose.msra.mxu0 0
    %4373 = vmatprep.subr.bf16.mxu0 0
    %4374 = vmatpush1.bf16.xpose.msra.mxu0 0
    %4375 = vmatprep.mubr.bf16.mxu0 0
    %4376 = vmatmul.mubr.bf16.gmra.mrb[0].mxu0 %v4163
    %v4377 = vpop.f32.mrb[0].mxu0
    %v4378 = vadd.f32 %v162, %v4377
    %v4379 = vpop.f32.mrb[0].mxu0
    %v4380 = vpop.f32.mrb[0].mxu0
    %v4381 = vpop.f32.mrb[0].mxu0
    %4382 = vdwg.mxu0
    %4383 = vmatprep.subr.bf16.mxu0 0
    %4384 = vmatpush1.bf16.xpose.msra.mxu0 %v4172
    %4385 = vmatprep.subr.bf16.mxu0 0
    %4386 = vmatpush1.bf16.xpose.msra.mxu0 0
    %4387 = vmatprep.subr.bf16.mxu0 0
    %4388 = vmatpush1.bf16.xpose.msra.mxu0 0
    %4389 = vmatprep.subr.bf16.mxu0 0
    %4390 = vmatpush1.bf16.xpose.msra.mxu0 0
    %4391 = vmatprep.subr.bf16.mxu0 0
    %4392 = vmatpush1.bf16.xpose.msra.mxu0 0
    %4393 = vmatprep.subr.bf16.mxu0 0
    %4394 = vmatpush1.bf16.xpose.msra.mxu0 0
    %4395 = vmatprep.subr.bf16.mxu0 0
    %4396 = vmatpush1.bf16.xpose.msra.mxu0 0
    %4397 = vmatprep.subr.bf16.mxu0 0
    %4398 = vmatpush1.bf16.xpose.msra.mxu0 0
    %4399 = vmatprep.subr.bf16.mxu0 0
    %4400 = vmatpush1.bf16.xpose.msra.mxu0 0
    %4401 = vmatprep.subr.bf16.mxu0 0
    %4402 = vmatpush1.bf16.xpose.msra.mxu0 0
    %4403 = vmatprep.subr.bf16.mxu0 0
    %4404 = vmatpush1.bf16.xpose.msra.mxu0 0
    %4405 = vmatprep.subr.bf16.mxu0 0
    %4406 = vmatpush1.bf16.xpose.msra.mxu0 0
    %4407 = vmatprep.subr.bf16.mxu0 0
    %4408 = vmatpush1.bf16.xpose.msra.mxu0 0
    %4409 = vmatprep.subr.bf16.mxu0 0
    %4410 = vmatpush1.bf16.xpose.msra.mxu0 0
    %4411 = vmatprep.subr.bf16.mxu0 0
    %4412 = vmatpush1.bf16.xpose.msra.mxu0 0
    %4413 = vmatprep.subr.bf16.mxu0 0
    %4414 = vmatpush1.bf16.xpose.msra.mxu0 0
    %4415 = vmatprep.mubr.bf16.mxu0 0
    %4416 = vmatmul.mubr.bf16.gmra.mrb[0].mxu0 %v4164
    %v4417 = vpop.f32.mrb[0].mxu0
    %v4418 = vadd.f32 %v162, %v4417
    %v4419 = vpop.f32.mrb[0].mxu0
    %v4420 = vpop.f32.mrb[0].mxu0
    %v4421 = vpop.f32.mrb[0].mxu0
    %4422 = vdwg.mxu0
    %4423 = vmatprep.subr.bf16.mxu0 0
    %4424 = vmatpush1.bf16.xpose.msra.mxu0 %v4173
    %4425 = vmatprep.subr.bf16.mxu0 0
    %4426 = vmatpush1.bf16.xpose.msra.mxu0 0
    %4427 = vmatprep.subr.bf16.mxu0 0
    %4428 = vmatpush1.bf16.xpose.msra.mxu0 0
    %4429 = vmatprep.subr.bf16.mxu0 0
    %4430 = vmatpush1.bf16.xpose.msra.mxu0 0
    %4431 = vmatprep.subr.bf16.mxu0 0
    %4432 = vmatpush1.bf16.xpose.msra.mxu0 0
    %4433 = vmatprep.subr.bf16.mxu0 0
    %4434 = vmatpush1.bf16.xpose.msra.mxu0 0
    %4435 = vmatprep.subr.bf16.mxu0 0
    %4436 = vmatpush1.bf16.xpose.msra.mxu0 0
    %4437 = vmatprep.subr.bf16.mxu0 0
    %4438 = vmatpush1.bf16.xpose.msra.mxu0 0
    %4439 = vmatprep.subr.bf16.mxu0 0
    %4440 = vmatpush1.bf16.xpose.msra.mxu0 0
    %4441 = vmatprep.subr.bf16.mxu0 0
    %4442 = vmatpush1.bf16.xpose.msra.mxu0 0
    %4443 = vmatprep.subr.bf16.mxu0 0
    %4444 = vmatpush1.bf16.xpose.msra.mxu0 0
    %4445 = vmatprep.subr.bf16.mxu0 0
    %4446 = vmatpush1.bf16.xpose.msra.mxu0 0
    %4447 = vmatprep.subr.bf16.mxu0 0
    %4448 = vmatpush1.bf16.xpose.msra.mxu0 0
    %4449 = vmatprep.subr.bf16.mxu0 0
    %4450 = vmatpush1.bf16.xpose.msra.mxu0 0
    %4451 = vmatprep.subr.bf16.mxu0 0
    %4452 = vmatpush1.bf16.xpose.msra.mxu0 0
    %4453 = vmatprep.subr.bf16.mxu0 0
    %4454 = vmatpush1.bf16.xpose.msra.mxu0 0
    %4455 = vmatprep.mubr.bf16.mxu0 0
    %4456 = vmatmul.mubr.bf16.gmra.mrb[0].mxu0 %v4165
    %v4457 = vpop.f32.mrb[0].mxu0
    %v4458 = vadd.f32 %v162, %v4457
    %v4459 = vpop.f32.mrb[0].mxu0
    %v4460 = vpop.f32.mrb[0].mxu0
    %v4461 = vpop.f32.mrb[0].mxu0
    %4462 = vdwg.mxu0
    %4463 = vmatprep.subr.bf16.mxu0 0
    %4464 = vmatpush1.bf16.xpose.msra.mxu0 %v4174
    %4465 = vmatprep.subr.bf16.mxu0 0
    %4466 = vmatpush1.bf16.xpose.msra.mxu0 0
    %4467 = vmatprep.subr.bf16.mxu0 0
    %4468 = vmatpush1.bf16.xpose.msra.mxu0 0
    %4469 = vmatprep.subr.bf16.mxu0 0
    %4470 = vmatpush1.bf16.xpose.msra.mxu0 0
    %4471 = vmatprep.subr.bf16.mxu0 0
    %4472 = vmatpush1.bf16.xpose.msra.mxu0 0
    %4473 = vmatprep.subr.bf16.mxu0 0
    %4474 = vmatpush1.bf16.xpose.msra.mxu0 0
    %4475 = vmatprep.subr.bf16.mxu0 0
    %4476 = vmatpush1.bf16.xpose.msra.mxu0 0
    %4477 = vmatprep.subr.bf16.mxu0 0
    %4478 = vmatpush1.bf16.xpose.msra.mxu0 0
    %4479 = vmatprep.subr.bf16.mxu0 0
    %4480 = vmatpush1.bf16.xpose.msra.mxu0 0
    %4481 = vmatprep.subr.bf16.mxu0 0
    %4482 = vmatpush1.bf16.xpose.msra.mxu0 0
    %4483 = vmatprep.subr.bf16.mxu0 0
    %4484 = vmatpush1.bf16.xpose.msra.mxu0 0
    %4485 = vmatprep.subr.bf16.mxu0 0
    %4486 = vmatpush1.bf16.xpose.msra.mxu0 0
    %4487 = vmatprep.subr.bf16.mxu0 0
    %4488 = vmatpush1.bf16.xpose.msra.mxu0 0
    %4489 = vmatprep.subr.bf16.mxu0 0
    %4490 = vmatpush1.bf16.xpose.msra.mxu0 0
    %4491 = vmatprep.subr.bf16.mxu0 0
    %4492 = vmatpush1.bf16.xpose.msra.mxu0 0
    %4493 = vmatprep.subr.bf16.mxu0 0
    %4494 = vmatpush1.bf16.xpose.msra.mxu0 0
    %4495 = vmatprep.mubr.bf16.mxu0 0
    %4496 = vmatmul.mubr.bf16.gmra.mrb[0].mxu0 %v4166
    %v4497 = vpop.f32.mrb[0].mxu0
    %v4498 = vadd.f32 %v162, %v4497
    %v4499 = vpop.f32.mrb[0].mxu0
    %v4500 = vpop.f32.mrb[0].mxu0
    %v4501 = vpop.f32.mrb[0].mxu0
    %4502 = vdwg.mxu0
    %v4503 = vsel %vm978, %v4218, -inf
    %4504 = vmax.xlane.f32.xlu0 %v4503
    %v4505 = vpop.xlane.xlu0 %4504
    %v4506 = vsel %vm978, %v4258, -inf
    %4507 = vmax.xlane.f32.xlu0 %v4506
    %v4508 = vpop.xlane.xlu0 %4507
    %v4509 = vsel %vm978, %v4298, -inf
    %4510 = vmax.xlane.f32.xlu0 %v4509
    %v4511 = vpop.xlane.xlu0 %4510
    %v4512 = vsel %vm978, %v4338, -inf
    %4513 = vmax.xlane.f32.xlu0 %v4512
    %v4514 = vpop.xlane.xlu0 %4513
    %v4515 = vsel %vm978, %v4378, -inf
    %4516 = vmax.xlane.f32.xlu0 %v4515
    %v4517 = vpop.xlane.xlu0 %4516
    %v4518 = vsel %vm978, %v4418, -inf
    %4519 = vmax.xlane.f32.xlu0 %v4518
    %v4520 = vpop.xlane.xlu0 %4519
    %v4521 = vsel %vm978, %v4458, -inf
    %4522 = vmax.xlane.f32.xlu0 %v4521
    %v4523 = vpop.xlane.xlu0 %4522
    %v4524 = vsel %vm978, %v4498, -inf
    %4525 = vmax.xlane.f32.xlu0 %v4524
    %v4526 = vpop.xlane.xlu0 %4525
    %v4527 = vsub.f32 %v4218, %v4505
    %v4528 = vsub.f32 %v4258, %v4508
    %v4529 = vsub.f32 %v4298, %v4511
    %v4530 = vsub.f32 %v4338, %v4514
    %v4531 = vsub.f32 %v4378, %v4517
    %v4532 = vsub.f32 %v4418, %v4520
    %v4533 = vsub.f32 %v4458, %v4523
    %v4534 = vsub.f32 %v4498, %v4526
    %v4535 = vmul.f32 %v4527, 1.442695
    %v4536 = vpow.pop %v4535
    %v4537 = vmul.f32 %v4528, 1.442695
    %v4538 = vpow.pop %v4537
    %v4539 = vmul.f32 %v4529, 1.442695
    %v4540 = vpow.pop %v4539
    %v4541 = vmul.f32 %v4530, 1.442695
    %v4542 = vpow.pop %v4541
    %v4543 = vmul.f32 %v4531, 1.442695
    %v4544 = vpow.pop %v4543
    %v4545 = vmul.f32 %v4532, 1.442695
    %v4546 = vpow.pop %v4545
    %v4547 = vmul.f32 %v4533, 1.442695
    %v4548 = vpow.pop %v4547
    %v4549 = vmul.f32 %v4534, 1.442695
    %v4550 = vpow.pop %v4549
    %v4551 = vsel %vm978, %v4536, 0.0
    %4552 = vadd.xlane.f32.xlu0 %v4551
    %v4553 = vpop.xlane.xlu0 %4552
    %v4554 = vsel %vm978, %v4538, 0.0
    %4555 = vadd.xlane.f32.xlu0 %v4554
    %v4556 = vpop.xlane.xlu0 %4555
    %v4557 = vsel %vm978, %v4540, 0.0
    %4558 = vadd.xlane.f32.xlu0 %v4557
    %v4559 = vpop.xlane.xlu0 %4558
    %v4560 = vsel %vm978, %v4542, 0.0
    %4561 = vadd.xlane.f32.xlu0 %v4560
    %v4562 = vpop.xlane.xlu0 %4561
    %v4563 = vsel %vm978, %v4544, 0.0
    %4564 = vadd.xlane.f32.xlu0 %v4563
    %v4565 = vpop.xlane.xlu0 %4564
    %v4566 = vsel %vm978, %v4546, 0.0
    %4567 = vadd.xlane.f32.xlu0 %v4566
    %v4568 = vpop.xlane.xlu0 %4567
    %v4569 = vsel %vm978, %v4548, 0.0
    %4570 = vadd.xlane.f32.xlu0 %v4569
    %v4571 = vpop.xlane.xlu0 %4570
    %v4572 = vsel %vm978, %v4550, 0.0
    %4573 = vadd.xlane.f32.xlu0 %v4572
    %v4574 = vpop.xlane.xlu0 %4573
    %v4575 = vrcp.pop %v4553
    %v4576 = vrcp.pop %v4556
    %v4577 = vrcp.pop %v4559
    %v4578 = vrcp.pop %v4562
    %v4579 = vrcp.pop %v4565
    %v4580 = vrcp.pop %v4568
    %v4581 = vrcp.pop %v4571
    %v4582 = vrcp.pop %v4574
    %v4583 = vmul.f32 %v4536, %v4575
    %v4584 = vmul.f32 %v4538, %v4576
    %v4585 = vmul.f32 %v4540, %v4577
    %v4586 = vmul.f32 %v4542, %v4578
    %v4587 = vmul.f32 %v4544, %v4579
    %v4588 = vmul.f32 %v4546, %v4580
    %v4589 = vmul.f32 %v4548, %v4581
    %v4590 = vmul.f32 %v4550, %v4582
    %v4591 = vpack.c.bf16 %v4583, %v4583
    %v4592 = vpack.c.bf16 %v4584, %v4584
    %v4593 = vpack.c.bf16 %v4585, %v4585
    %v4594 = vpack.c.bf16 %v4586, %v4586
    %v4595 = vpack.c.bf16 %v4587, %v4587
    %v4596 = vpack.c.bf16 %v4588, %v4588
    %v4597 = vpack.c.bf16 %v4589, %v4589
    %v4598 = vpack.c.bf16 %v4590, %v4590
    %v4600 = vsel %vm978, %v4591, 0
    %v4603 = vsel %vm1078, %v4175, 0
    %4605 = vmatprep.subr.bf16.mxu0 0
    %4606 = vmatpush1.bf16.msra.mxu0 %v4603
    %4607 = vmatprep.subr.bf16.mxu0 0
    %4608 = vmatpush1.bf16.msra.mxu0 0
    %4609 = vmatprep.subr.bf16.mxu0 0
    %4610 = vmatpush1.bf16.msra.mxu0 0
    %4611 = vmatprep.subr.bf16.mxu0 0
    %4612 = vmatpush1.bf16.msra.mxu0 0
    %4613 = vmatprep.subr.bf16.mxu0 0
    %4614 = vmatpush1.bf16.msra.mxu0 0
    %4615 = vmatprep.subr.bf16.mxu0 0
    %4616 = vmatpush1.bf16.msra.mxu0 0
    %4617 = vmatprep.subr.bf16.mxu0 0
    %4618 = vmatpush1.bf16.msra.mxu0 0
    %4619 = vmatprep.subr.bf16.mxu0 0
    %4620 = vmatpush1.bf16.msra.mxu0 0
    %4621 = vmatprep.subr.bf16.mxu0 0
    %4622 = vmatpush1.bf16.msra.mxu0 0
    %4623 = vmatprep.subr.bf16.mxu0 0
    %4624 = vmatpush1.bf16.msra.mxu0 0
    %4625 = vmatprep.subr.bf16.mxu0 0
    %4626 = vmatpush1.bf16.msra.mxu0 0
    %4627 = vmatprep.subr.bf16.mxu0 0
    %4628 = vmatpush1.bf16.msra.mxu0 0
    %4629 = vmatprep.subr.bf16.mxu0 0
    %4630 = vmatpush1.bf16.msra.mxu0 0
    %4631 = vmatprep.subr.bf16.mxu0 0
    %4632 = vmatpush1.bf16.msra.mxu0 0
    %4633 = vmatprep.subr.bf16.mxu0 0
    %4634 = vmatpush1.bf16.msra.mxu0 0
    %4635 = vmatprep.subr.bf16.mxu0 0
    %4636 = vmatpush1.bf16.msra.mxu0 0
    %4637 = vmatprep.mubr.bf16.mxu0 0
    %4638 = vmatmul.mubr.bf16.gmra.mrb[0].mxu0 %v4600
    %v4639 = vpop.f32.mrb[0].mxu0
    %v4640 = vadd.f32 0.0, %v4639
    %v4641 = vpop.f32.mrb[0].mxu0
    %v4642 = vpop.f32.mrb[0].mxu0
    %v4643 = vpop.f32.mrb[0].mxu0
    %4644 = vdwg.mxu0
    %v4646 = vsel %vm978, %v4592, 0
    %v4649 = vsel %vm1078, %v4176, 0
    %4651 = vmatprep.subr.bf16.mxu0 0
    %4652 = vmatpush1.bf16.msra.mxu0 %v4649
    %4653 = vmatprep.subr.bf16.mxu0 0
    %4654 = vmatpush1.bf16.msra.mxu0 0
    %4655 = vmatprep.subr.bf16.mxu0 0
    %4656 = vmatpush1.bf16.msra.mxu0 0
    %4657 = vmatprep.subr.bf16.mxu0 0
    %4658 = vmatpush1.bf16.msra.mxu0 0
    %4659 = vmatprep.subr.bf16.mxu0 0
    %4660 = vmatpush1.bf16.msra.mxu0 0
    %4661 = vmatprep.subr.bf16.mxu0 0
    %4662 = vmatpush1.bf16.msra.mxu0 0
    %4663 = vmatprep.subr.bf16.mxu0 0
    %4664 = vmatpush1.bf16.msra.mxu0 0
    %4665 = vmatprep.subr.bf16.mxu0 0
    %4666 = vmatpush1.bf16.msra.mxu0 0
    %4667 = vmatprep.subr.bf16.mxu0 0
    %4668 = vmatpush1.bf16.msra.mxu0 0
    %4669 = vmatprep.subr.bf16.mxu0 0
    %4670 = vmatpush1.bf16.msra.mxu0 0
    %4671 = vmatprep.subr.bf16.mxu0 0
    %4672 = vmatpush1.bf16.msra.mxu0 0
    %4673 = vmatprep.subr.bf16.mxu0 0
    %4674 = vmatpush1.bf16.msra.mxu0 0
    %4675 = vmatprep.subr.bf16.mxu0 0
    %4676 = vmatpush1.bf16.msra.mxu0 0
    %4677 = vmatprep.subr.bf16.mxu0 0
    %4678 = vmatpush1.bf16.msra.mxu0 0
    %4679 = vmatprep.subr.bf16.mxu0 0
    %4680 = vmatpush1.bf16.msra.mxu0 0
    %4681 = vmatprep.subr.bf16.mxu0 0
    %4682 = vmatpush1.bf16.msra.mxu0 0
    %4683 = vmatprep.mubr.bf16.mxu0 0
    %4684 = vmatmul.mubr.bf16.gmra.mrb[0].mxu0 %v4646
    %v4685 = vpop.f32.mrb[0].mxu0
    %v4686 = vadd.f32 0.0, %v4685
    %v4687 = vpop.f32.mrb[0].mxu0
    %v4688 = vpop.f32.mrb[0].mxu0
    %v4689 = vpop.f32.mrb[0].mxu0
    %4690 = vdwg.mxu0
    %v4692 = vsel %vm978, %v4593, 0
    %v4695 = vsel %vm1078, %v4177, 0
    %4697 = vmatprep.subr.bf16.mxu0 0
    %4698 = vmatpush1.bf16.msra.mxu0 %v4695
    %4699 = vmatprep.subr.bf16.mxu0 0
    %4700 = vmatpush1.bf16.msra.mxu0 0
    %4701 = vmatprep.subr.bf16.mxu0 0
    %4702 = vmatpush1.bf16.msra.mxu0 0
    %4703 = vmatprep.subr.bf16.mxu0 0
    %4704 = vmatpush1.bf16.msra.mxu0 0
    %4705 = vmatprep.subr.bf16.mxu0 0
    %4706 = vmatpush1.bf16.msra.mxu0 0
    %4707 = vmatprep.subr.bf16.mxu0 0
    %4708 = vmatpush1.bf16.msra.mxu0 0
    %4709 = vmatprep.subr.bf16.mxu0 0
    %4710 = vmatpush1.bf16.msra.mxu0 0
    %4711 = vmatprep.subr.bf16.mxu0 0
    %4712 = vmatpush1.bf16.msra.mxu0 0
    %4713 = vmatprep.subr.bf16.mxu0 0
    %4714 = vmatpush1.bf16.msra.mxu0 0
    %4715 = vmatprep.subr.bf16.mxu0 0
    %4716 = vmatpush1.bf16.msra.mxu0 0
    %4717 = vmatprep.subr.bf16.mxu0 0
    %4718 = vmatpush1.bf16.msra.mxu0 0
    %4719 = vmatprep.subr.bf16.mxu0 0
    %4720 = vmatpush1.bf16.msra.mxu0 0
    %4721 = vmatprep.subr.bf16.mxu0 0
    %4722 = vmatpush1.bf16.msra.mxu0 0
    %4723 = vmatprep.subr.bf16.mxu0 0
    %4724 = vmatpush1.bf16.msra.mxu0 0
    %4725 = vmatprep.subr.bf16.mxu0 0
    %4726 = vmatpush1.bf16.msra.mxu0 0
    %4727 = vmatprep.subr.bf16.mxu0 0
    %4728 = vmatpush1.bf16.msra.mxu0 0
    %4729 = vmatprep.mubr.bf16.mxu0 0
    %4730 = vmatmul.mubr.bf16.gmra.mrb[0].mxu0 %v4692
    %v4731 = vpop.f32.mrb[0].mxu0
    %v4732 = vadd.f32 0.0, %v4731
    %v4733 = vpop.f32.mrb[0].mxu0
    %v4734 = vpop.f32.mrb[0].mxu0
    %v4735 = vpop.f32.mrb[0].mxu0
    %4736 = vdwg.mxu0
    %v4738 = vsel %vm978, %v4594, 0
    %v4741 = vsel %vm1078, %v4178, 0
    %4743 = vmatprep.subr.bf16.mxu0 0
    %4744 = vmatpush1.bf16.msra.mxu0 %v4741
    %4745 = vmatprep.subr.bf16.mxu0 0
    %4746 = vmatpush1.bf16.msra.mxu0 0
    %4747 = vmatprep.subr.bf16.mxu0 0
    %4748 = vmatpush1.bf16.msra.mxu0 0
    %4749 = vmatprep.subr.bf16.mxu0 0
    %4750 = vmatpush1.bf16.msra.mxu0 0
    %4751 = vmatprep.subr.bf16.mxu0 0
    %4752 = vmatpush1.bf16.msra.mxu0 0
    %4753 = vmatprep.subr.bf16.mxu0 0
    %4754 = vmatpush1.bf16.msra.mxu0 0
    %4755 = vmatprep.subr.bf16.mxu0 0
    %4756 = vmatpush1.bf16.msra.mxu0 0
    %4757 = vmatprep.subr.bf16.mxu0 0
    %4758 = vmatpush1.bf16.msra.mxu0 0
    %4759 = vmatprep.subr.bf16.mxu0 0
    %4760 = vmatpush1.bf16.msra.mxu0 0
    %4761 = vmatprep.subr.bf16.mxu0 0
    %4762 = vmatpush1.bf16.msra.mxu0 0
    %4763 = vmatprep.subr.bf16.mxu0 0
    %4764 = vmatpush1.bf16.msra.mxu0 0
    %4765 = vmatprep.subr.bf16.mxu0 0
    %4766 = vmatpush1.bf16.msra.mxu0 0
    %4767 = vmatprep.subr.bf16.mxu0 0
    %4768 = vmatpush1.bf16.msra.mxu0 0
    %4769 = vmatprep.subr.bf16.mxu0 0
    %4770 = vmatpush1.bf16.msra.mxu0 0
    %4771 = vmatprep.subr.bf16.mxu0 0
    %4772 = vmatpush1.bf16.msra.mxu0 0
    %4773 = vmatprep.subr.bf16.mxu0 0
    %4774 = vmatpush1.bf16.msra.mxu0 0
    %4775 = vmatprep.mubr.bf16.mxu0 0
    %4776 = vmatmul.mubr.bf16.gmra.mrb[0].mxu0 %v4738
    %v4777 = vpop.f32.mrb[0].mxu0
    %v4778 = vadd.f32 0.0, %v4777
    %v4779 = vpop.f32.mrb[0].mxu0
    %v4780 = vpop.f32.mrb[0].mxu0
    %v4781 = vpop.f32.mrb[0].mxu0
    %4782 = vdwg.mxu0
    %v4784 = vsel %vm978, %v4595, 0
    %v4787 = vsel %vm1078, %v4179, 0
    %4789 = vmatprep.subr.bf16.mxu0 0
    %4790 = vmatpush1.bf16.msra.mxu0 %v4787
    %4791 = vmatprep.subr.bf16.mxu0 0
    %4792 = vmatpush1.bf16.msra.mxu0 0
    %4793 = vmatprep.subr.bf16.mxu0 0
    %4794 = vmatpush1.bf16.msra.mxu0 0
    %4795 = vmatprep.subr.bf16.mxu0 0
    %4796 = vmatpush1.bf16.msra.mxu0 0
    %4797 = vmatprep.subr.bf16.mxu0 0
    %4798 = vmatpush1.bf16.msra.mxu0 0
    %4799 = vmatprep.subr.bf16.mxu0 0
    %4800 = vmatpush1.bf16.msra.mxu0 0
    %4801 = vmatprep.subr.bf16.mxu0 0
    %4802 = vmatpush1.bf16.msra.mxu0 0
    %4803 = vmatprep.subr.bf16.mxu0 0
    %4804 = vmatpush1.bf16.msra.mxu0 0
    %4805 = vmatprep.subr.bf16.mxu0 0
    %4806 = vmatpush1.bf16.msra.mxu0 0
    %4807 = vmatprep.subr.bf16.mxu0 0
    %4808 = vmatpush1.bf16.msra.mxu0 0
    %4809 = vmatprep.subr.bf16.mxu0 0
    %4810 = vmatpush1.bf16.msra.mxu0 0
    %4811 = vmatprep.subr.bf16.mxu0 0
    %4812 = vmatpush1.bf16.msra.mxu0 0
    %4813 = vmatprep.subr.bf16.mxu0 0
    %4814 = vmatpush1.bf16.msra.mxu0 0
    %4815 = vmatprep.subr.bf16.mxu0 0
    %4816 = vmatpush1.bf16.msra.mxu0 0
    %4817 = vmatprep.subr.bf16.mxu0 0
    %4818 = vmatpush1.bf16.msra.mxu0 0
    %4819 = vmatprep.subr.bf16.mxu0 0
    %4820 = vmatpush1.bf16.msra.mxu0 0
    %4821 = vmatprep.mubr.bf16.mxu0 0
    %4822 = vmatmul.mubr.bf16.gmra.mrb[0].mxu0 %v4784
    %v4823 = vpop.f32.mrb[0].mxu0
    %v4824 = vadd.f32 0.0, %v4823
    %v4825 = vpop.f32.mrb[0].mxu0
    %v4826 = vpop.f32.mrb[0].mxu0
    %v4827 = vpop.f32.mrb[0].mxu0
    %4828 = vdwg.mxu0
    %v4830 = vsel %vm978, %v4596, 0
    %v4833 = vsel %vm1078, %v4180, 0
    %4835 = vmatprep.subr.bf16.mxu0 0
    %4836 = vmatpush1.bf16.msra.mxu0 %v4833
    %4837 = vmatprep.subr.bf16.mxu0 0
    %4838 = vmatpush1.bf16.msra.mxu0 0
    %4839 = vmatprep.subr.bf16.mxu0 0
    %4840 = vmatpush1.bf16.msra.mxu0 0
    %4841 = vmatprep.subr.bf16.mxu0 0
    %4842 = vmatpush1.bf16.msra.mxu0 0
    %4843 = vmatprep.subr.bf16.mxu0 0
    %4844 = vmatpush1.bf16.msra.mxu0 0
    %4845 = vmatprep.subr.bf16.mxu0 0
    %4846 = vmatpush1.bf16.msra.mxu0 0
    %4847 = vmatprep.subr.bf16.mxu0 0
    %4848 = vmatpush1.bf16.msra.mxu0 0
    %4849 = vmatprep.subr.bf16.mxu0 0
    %4850 = vmatpush1.bf16.msra.mxu0 0
    %4851 = vmatprep.subr.bf16.mxu0 0
    %4852 = vmatpush1.bf16.msra.mxu0 0
    %4853 = vmatprep.subr.bf16.mxu0 0
    %4854 = vmatpush1.bf16.msra.mxu0 0
    %4855 = vmatprep.subr.bf16.mxu0 0
    %4856 = vmatpush1.bf16.msra.mxu0 0
    %4857 = vmatprep.subr.bf16.mxu0 0
    %4858 = vmatpush1.bf16.msra.mxu0 0
    %4859 = vmatprep.subr.bf16.mxu0 0
    %4860 = vmatpush1.bf16.msra.mxu0 0
    %4861 = vmatprep.subr.bf16.mxu0 0
    %4862 = vmatpush1.bf16.msra.mxu0 0
    %4863 = vmatprep.subr.bf16.mxu0 0
    %4864 = vmatpush1.bf16.msra.mxu0 0
    %4865 = vmatprep.subr.bf16.mxu0 0
    %4866 = vmatpush1.bf16.msra.mxu0 0
    %4867 = vmatprep.mubr.bf16.mxu0 0
    %4868 = vmatmul.mubr.bf16.gmra.mrb[0].mxu0 %v4830
    %v4869 = vpop.f32.mrb[0].mxu0
    %v4870 = vadd.f32 0.0, %v4869
    %v4871 = vpop.f32.mrb[0].mxu0
    %v4872 = vpop.f32.mrb[0].mxu0
    %v4873 = vpop.f32.mrb[0].mxu0
    %4874 = vdwg.mxu0
    %v4876 = vsel %vm978, %v4597, 0
    %v4879 = vsel %vm1078, %v4181, 0
    %4881 = vmatprep.subr.bf16.mxu0 0
    %4882 = vmatpush1.bf16.msra.mxu0 %v4879
    %4883 = vmatprep.subr.bf16.mxu0 0
    %4884 = vmatpush1.bf16.msra.mxu0 0
    %4885 = vmatprep.subr.bf16.mxu0 0
    %4886 = vmatpush1.bf16.msra.mxu0 0
    %4887 = vmatprep.subr.bf16.mxu0 0
    %4888 = vmatpush1.bf16.msra.mxu0 0
    %4889 = vmatprep.subr.bf16.mxu0 0
    %4890 = vmatpush1.bf16.msra.mxu0 0
    %4891 = vmatprep.subr.bf16.mxu0 0
    %4892 = vmatpush1.bf16.msra.mxu0 0
    %4893 = vmatprep.subr.bf16.mxu0 0
    %4894 = vmatpush1.bf16.msra.mxu0 0
    %4895 = vmatprep.subr.bf16.mxu0 0
    %4896 = vmatpush1.bf16.msra.mxu0 0
    %4897 = vmatprep.subr.bf16.mxu0 0
    %4898 = vmatpush1.bf16.msra.mxu0 0
    %4899 = vmatprep.subr.bf16.mxu0 0
    %4900 = vmatpush1.bf16.msra.mxu0 0
    %4901 = vmatprep.subr.bf16.mxu0 0
    %4902 = vmatpush1.bf16.msra.mxu0 0
    %4903 = vmatprep.subr.bf16.mxu0 0
    %4904 = vmatpush1.bf16.msra.mxu0 0
    %4905 = vmatprep.subr.bf16.mxu0 0
    %4906 = vmatpush1.bf16.msra.mxu0 0
    %4907 = vmatprep.subr.bf16.mxu0 0
    %4908 = vmatpush1.bf16.msra.mxu0 0
    %4909 = vmatprep.subr.bf16.mxu0 0
    %4910 = vmatpush1.bf16.msra.mxu0 0
    %4911 = vmatprep.subr.bf16.mxu0 0
    %4912 = vmatpush1.bf16.msra.mxu0 0
    %4913 = vmatprep.mubr.bf16.mxu0 0
    %4914 = vmatmul.mubr.bf16.gmra.mrb[0].mxu0 %v4876
    %v4915 = vpop.f32.mrb[0].mxu0
    %v4916 = vadd.f32 0.0, %v4915
    %v4917 = vpop.f32.mrb[0].mxu0
    %v4918 = vpop.f32.mrb[0].mxu0
    %v4919 = vpop.f32.mrb[0].mxu0
    %4920 = vdwg.mxu0
    %v4922 = vsel %vm978, %v4598, 0
    %v4925 = vsel %vm1078, %v4182, 0
    %4927 = vmatprep.subr.bf16.mxu0 0
    %4928 = vmatpush1.bf16.msra.mxu0 %v4925
    %4929 = vmatprep.subr.bf16.mxu0 0
    %4930 = vmatpush1.bf16.msra.mxu0 0
    %4931 = vmatprep.subr.bf16.mxu0 0
    %4932 = vmatpush1.bf16.msra.mxu0 0
    %4933 = vmatprep.subr.bf16.mxu0 0
    %4934 = vmatpush1.bf16.msra.mxu0 0
    %4935 = vmatprep.subr.bf16.mxu0 0
    %4936 = vmatpush1.bf16.msra.mxu0 0
    %4937 = vmatprep.subr.bf16.mxu0 0
    %4938 = vmatpush1.bf16.msra.mxu0 0
    %4939 = vmatprep.subr.bf16.mxu0 0
    %4940 = vmatpush1.bf16.msra.mxu0 0
    %4941 = vmatprep.subr.bf16.mxu0 0
    %4942 = vmatpush1.bf16.msra.mxu0 0
    %4943 = vmatprep.subr.bf16.mxu0 0
    %4944 = vmatpush1.bf16.msra.mxu0 0
    %4945 = vmatprep.subr.bf16.mxu0 0
    %4946 = vmatpush1.bf16.msra.mxu0 0
    %4947 = vmatprep.subr.bf16.mxu0 0
    %4948 = vmatpush1.bf16.msra.mxu0 0
    %4949 = vmatprep.subr.bf16.mxu0 0
    %4950 = vmatpush1.bf16.msra.mxu0 0
    %4951 = vmatprep.subr.bf16.mxu0 0
    %4952 = vmatpush1.bf16.msra.mxu0 0
    %4953 = vmatprep.subr.bf16.mxu0 0
    %4954 = vmatpush1.bf16.msra.mxu0 0
    %4955 = vmatprep.subr.bf16.mxu0 0
    %4956 = vmatpush1.bf16.msra.mxu0 0
    %4957 = vmatprep.subr.bf16.mxu0 0
    %4958 = vmatpush1.bf16.msra.mxu0 0
    %4959 = vmatprep.mubr.bf16.mxu0 0
    %4960 = vmatmul.mubr.bf16.gmra.mrb[0].mxu0 %v4922
    %v4961 = vpop.f32.mrb[0].mxu0
    %v4962 = vadd.f32 0.0, %v4961
    %v4963 = vpop.f32.mrb[0].mxu0
    %v4964 = vpop.f32.mrb[0].mxu0
    %v4965 = vpop.f32.mrb[0].mxu0
    %4966 = vdwg.mxu0
    %v4967 = vadd.f32 %v4640, %v4686
    %v4968 = vadd.f32 %v4967, %v4732
    %v4969 = vadd.f32 %v4968, %v4778
    %v4970 = vadd.f32 %v4824, %v4870
    %v4971 = vadd.f32 %v4970, %v4916
    %v4972 = vadd.f32 %v4971, %v4962
    %v4973 = vpack.c.bf16 %v4972, %v4969
    %s4974 = scalar_lea.vmem %s5, 64
    %v4975 = vld [vmem:[%s4974] sm:$0xf]
    %v4976 = vld [vmem:[%s4974 + $0x4] sm:$0xf]
    %v4977 = vld [vmem:[%s4974 + $0x8] sm:$0xf]
    %v4978 = vld [vmem:[%s4974 + $0xc] sm:$0xf]
    %v4979 = vld [vmem:[%s4974 + $0x10] sm:$0xf]
    %v4980 = vld [vmem:[%s4974 + $0x14] sm:$0xf]
    %v4981 = vld [vmem:[%s4974 + $0x18] sm:$0xf]
    %v4982 = vld [vmem:[%s4974 + $0x1c] sm:$0xf]
    %v4983 = vld [vmem:[%s4974 + $0x20] sm:$0xf]
    %v4984 = vld [vmem:[%s4974 + $0x24] sm:$0xf]
    %v4985 = vld [vmem:[%s4974 + $0x28] sm:$0xf]
    %v4986 = vld [vmem:[%s4974 + $0x2c] sm:$0xf]
    %v4987 = vld [vmem:[%s4974 + $0x30] sm:$0xf]
    %v4988 = vld [vmem:[%s4974 + $0x34] sm:$0xf]
    %v4989 = vld [vmem:[%s4974 + $0x38] sm:$0xf]
    %v4990 = vld [vmem:[%s4974 + $0x3c] sm:$0xf]
    %s4991 = scalar_lea.vmem %s6, 1
    %v4992 = vld [vmem:[%s4991] sm:$0x1]
    %v4994 = vlaneseq
    %v4995 = vshrl.u32 %v4994, 7
    %v4996 = vsub.s32 0, %v4995
    %v4997 = vrot.slane %v4992, %v4996
    %v5015 = vunpack.c.l.b16 %v4975
    %v5016 = vunpack.c.l.b16 %v4976
    %v5017 = vunpack.c.l.b16 %v4977
    %v5018 = vunpack.c.l.b16 %v4978
    %v5019 = vunpack.c.l.b16 %v4979
    %v5020 = vunpack.c.l.b16 %v4980
    %v5021 = vunpack.c.l.b16 %v4981
    %v5022 = vunpack.c.l.b16 %v4982
    %v5023 = vunpack.c.l.b16 %v4983
    %v5024 = vunpack.c.l.b16 %v4984
    %v5025 = vunpack.c.l.b16 %v4985
    %v5026 = vunpack.c.l.b16 %v4986
    %v5027 = vunpack.c.l.b16 %v4987
    %v5028 = vunpack.c.l.b16 %v4988
    %v5029 = vunpack.c.l.b16 %v4989
    %v5030 = vunpack.c.l.b16 %v4990
    %v5031 = vpack.c.b16 %v5016, %v5015
    %v5032 = vpack.c.b16 %v5018, %v5017
    %v5033 = vpack.c.b16 %v5020, %v5019
    %v5034 = vpack.c.b16 %v5022, %v5021
    %v5035 = vpack.c.b16 %v5024, %v5023
    %v5036 = vpack.c.b16 %v5026, %v5025
    %v5037 = vpack.c.b16 %v5028, %v5027
    %v5038 = vpack.c.b16 %v5030, %v5029
    %5047 = vmatprep.subr.bf16.mxu0 0
    %5048 = vmatpush1.bf16.msra.mxu0 %v5031
    %5049 = vmatprep.subr.bf16.mxu0 0
    %5050 = vmatpush1.bf16.msra.mxu0 %v5032
    %5051 = vmatprep.subr.bf16.mxu0 0
    %5052 = vmatpush1.bf16.msra.mxu0 %v5033
    %5053 = vmatprep.subr.bf16.mxu0 0
    %5054 = vmatpush1.bf16.msra.mxu0 %v5034
    %5055 = vmatprep.subr.bf16.mxu0 0
    %5056 = vmatpush1.bf16.msra.mxu0 %v5035
    %5057 = vmatprep.subr.bf16.mxu0 0
    %5058 = vmatpush1.bf16.msra.mxu0 %v5036
    %5059 = vmatprep.subr.bf16.mxu0 0
    %5060 = vmatpush1.bf16.msra.mxu0 %v5037
    %5061 = vmatprep.subr.bf16.mxu0 0
    %5062 = vmatpush1.bf16.msra.mxu0 %v5038
    %5063 = vmatprep.subr.bf16.mxu0 0
    %5064 = vmatpush1.bf16.msra.mxu0 0
    %5065 = vmatprep.subr.bf16.mxu0 0
    %5066 = vmatpush1.bf16.msra.mxu0 0
    %5067 = vmatprep.subr.bf16.mxu0 0
    %5068 = vmatpush1.bf16.msra.mxu0 0
    %5069 = vmatprep.subr.bf16.mxu0 0
    %5070 = vmatpush1.bf16.msra.mxu0 0
    %5071 = vmatprep.subr.bf16.mxu0 0
    %5072 = vmatpush1.bf16.msra.mxu0 0
    %5073 = vmatprep.subr.bf16.mxu0 0
    %5074 = vmatpush1.bf16.msra.mxu0 0
    %5075 = vmatprep.subr.bf16.mxu0 0
    %5076 = vmatpush1.bf16.msra.mxu0 0
    %5077 = vmatprep.subr.bf16.mxu0 0
    %5078 = vmatpush1.bf16.msra.mxu0 0
    %5079 = vmatprep.mubr.bf16.mxu0 0
    %5080 = vmatmul.mubr.bf16.gmra.mrb[0].mxu0 %v4973
    %v5081 = vpop.f32.mrb[0].mxu0
    %v5082 = vadd.f32 %v4997, %v5081
    %v5083 = vpop.f32.mrb[0].mxu0
    %v5084 = vpop.f32.mrb[0].mxu0
    %v5085 = vadd.f32 %v4997, %v5084
    %v5086 = vpop.f32.mrb[0].mxu0
    %5087 = vdwg.mxu0
    %v5088 = vadd.f32 %v3685, %v5082
    %v5089 = vadd.f32 %v3686, %v5085
    %s5090 = scalar_lea.vmem %s7, 1
    %v5091 = vld [vmem:[%s5090] sm:$0x1]
    %s5092 = scalar_lea.vmem %s8, 1
    %v5093 = vld [vmem:[%s5092] sm:$0x1]
    %v5094 = vsel %vm372, %v5088, 0.0
    %5095 = vadd.xlane.f32.xlu0 %v5094
    %v5096 = vpop.xlane.xlu0 %5095
    %v5097 = vsel %vm372, %v5089, 0.0
    %5098 = vadd.xlane.f32.xlu0 %v5097
    %v5099 = vpop.xlane.xlu0 %5098
    %v5100 = vmul.f32 %v5096, %v1573
    %v5101 = vmul.f32 %v5099, %v1573
    %v5102 = vsub.f32 %v5088, %v5100
    %v5103 = vsub.f32 %v5089, %v5101
    %v5104 = vmul.f32 %v5102, %v5102
    %v5105 = vmul.f32 %v5103, %v5103
    %v5106 = vsel %vm372, %v5104, 0.0
    %5107 = vadd.xlane.f32.xlu0 %v5106
    %v5108 = vpop.xlane.xlu0 %5107
    %v5109 = vsel %vm372, %v5105, 0.0
    %5110 = vadd.xlane.f32.xlu0 %v5109
    %v5111 = vpop.xlane.xlu0 %5110
    %v5112 = vmul.f32 %v5108, %v1573
    %v5113 = vmul.f32 %v5111, %v1573
    %v5114 = vadd.f32 %v5112, 1e-05
    %v5115 = vadd.f32 %v5113, 1e-05
    %v5116 = vrsqrt.pop %v5114
    %v5117 = vrsqrt.pop %v5115
    %v5118 = vmul.f32 %v5102, %v5116
    %v5119 = vmul.f32 %v5103, %v5117
    %v5121 = vlaneseq
    %v5122 = vshrl.u32 %v5121, 7
    %v5123 = vsub.s32 0, %v5122
    %v5124 = vrot.slane %v5091, %v5123
    %v5126 = vmul.f32 %v5118, %v5124
    %v5127 = vmul.f32 %v5119, %v5124
    %v5129 = vlaneseq
    %v5130 = vshrl.u32 %v5129, 7
    %v5131 = vsub.s32 0, %v5130
    %v5132 = vrot.slane %v5093, %v5131
    %v5134 = vadd.f32 %v5126, %v5132
    %v5135 = vadd.f32 %v5127, %v5132
    %v5136 = vpack.c.bf16 %v5135, %v5134
    %s5137 = scalar_lea.vmem %s9, 256
    %v5138 = vld [vmem:[%s5137] sm:$0xff]
    %v5139 = vld [vmem:[%s5137 + $0x8] sm:$0xff]
    %v5140 = vld [vmem:[%s5137 + $0x10] sm:$0xff]
    %v5141 = vld [vmem:[%s5137 + $0x18] sm:$0xff]
    %v5142 = vld [vmem:[%s5137 + $0x20] sm:$0xff]
    %v5143 = vld [vmem:[%s5137 + $0x28] sm:$0xff]
    %v5144 = vld [vmem:[%s5137 + $0x30] sm:$0xff]
    %v5145 = vld [vmem:[%s5137 + $0x38] sm:$0xff]
    %v5146 = vld [vmem:[%s5137 + $0x40] sm:$0xff]
    %v5147 = vld [vmem:[%s5137 + $0x48] sm:$0xff]
    %v5148 = vld [vmem:[%s5137 + $0x50] sm:$0xff]
    %v5149 = vld [vmem:[%s5137 + $0x58] sm:$0xff]
    %v5150 = vld [vmem:[%s5137 + $0x60] sm:$0xff]
    %v5151 = vld [vmem:[%s5137 + $0x68] sm:$0xff]
    %v5152 = vld [vmem:[%s5137 + $0x70] sm:$0xff]
    %v5153 = vld [vmem:[%s5137 + $0x78] sm:$0xff]
    %v5154 = vld [vmem:[%s5137 + $0x80] sm:$0xff]
    %v5155 = vld [vmem:[%s5137 + $0x88] sm:$0xff]
    %v5156 = vld [vmem:[%s5137 + $0x90] sm:$0xff]
    %v5157 = vld [vmem:[%s5137 + $0x98] sm:$0xff]
    %v5158 = vld [vmem:[%s5137 + $0xa0] sm:$0xff]
    %v5159 = vld [vmem:[%s5137 + $0xa8] sm:$0xff]
    %v5160 = vld [vmem:[%s5137 + $0xb0] sm:$0xff]
    %v5161 = vld [vmem:[%s5137 + $0xb8] sm:$0xff]
    %v5162 = vld [vmem:[%s5137 + $0xc0] sm:$0xff]
    %v5163 = vld [vmem:[%s5137 + $0xc8] sm:$0xff]
    %v5164 = vld [vmem:[%s5137 + $0xd0] sm:$0xff]
    %v5165 = vld [vmem:[%s5137 + $0xd8] sm:$0xff]
    %v5166 = vld [vmem:[%s5137 + $0xe0] sm:$0xff]
    %v5167 = vld [vmem:[%s5137 + $0xe8] sm:$0xff]
    %v5168 = vld [vmem:[%s5137 + $0xf0] sm:$0xff]
    %v5169 = vld [vmem:[%s5137 + $0xf8] sm:$0xff]
    %s5170 = scalar_lea.vmem %s10, 16
    %v5171 = vld [vmem:[%s5170] sm:$0xff]
    %v5172 = vld [vmem:[%s5170 + $0x8] sm:$0xff]
    %v5175 = vlaneseq
    %v5176 = vshrl.u32 %v5175, 7
    %v5177 = vsub.s32 0, %v5176
    %v5178 = vrot.slane %v5171, %v5177
    %v5179 = vlaneseq
    %v5180 = vshrl.u32 %v5179, 7
    %v5181 = vsub.s32 1, %v5180
    %v5182 = vrot.slane %v5171, %v5181
    %v5183 = vlaneseq
    %v5184 = vshrl.u32 %v5183, 7
    %v5185 = vsub.s32 2, %v5184
    %v5186 = vrot.slane %v5171, %v5185
    %v5187 = vlaneseq
    %v5188 = vshrl.u32 %v5187, 7
    %v5189 = vsub.s32 3, %v5188
    %v5190 = vrot.slane %v5171, %v5189
    %v5191 = vlaneseq
    %v5192 = vshrl.u32 %v5191, 7
    %v5193 = vsub.s32 4, %v5192
    %v5194 = vrot.slane %v5171, %v5193
    %v5195 = vlaneseq
    %v5196 = vshrl.u32 %v5195, 7
    %v5197 = vsub.s32 5, %v5196
    %v5198 = vrot.slane %v5171, %v5197
    %v5199 = vlaneseq
    %v5200 = vshrl.u32 %v5199, 7
    %v5201 = vsub.s32 6, %v5200
    %v5202 = vrot.slane %v5171, %v5201
    %v5203 = vlaneseq
    %v5204 = vshrl.u32 %v5203, 7
    %v5205 = vsub.s32 7, %v5204
    %v5206 = vrot.slane %v5171, %v5205
    %v5207 = vlaneseq
    %v5208 = vshrl.u32 %v5207, 7
    %v5209 = vsub.s32 0, %v5208
    %v5210 = vrot.slane %v5172, %v5209
    %v5211 = vlaneseq
    %v5212 = vshrl.u32 %v5211, 7
    %v5213 = vsub.s32 1, %v5212
    %v5214 = vrot.slane %v5172, %v5213
    %v5215 = vlaneseq
    %v5216 = vshrl.u32 %v5215, 7
    %v5217 = vsub.s32 2, %v5216
    %v5218 = vrot.slane %v5172, %v5217
    %v5219 = vlaneseq
    %v5220 = vshrl.u32 %v5219, 7
    %v5221 = vsub.s32 3, %v5220
    %v5222 = vrot.slane %v5172, %v5221
    %v5223 = vlaneseq
    %v5224 = vshrl.u32 %v5223, 7
    %v5225 = vsub.s32 4, %v5224
    %v5226 = vrot.slane %v5172, %v5225
    %v5227 = vlaneseq
    %v5228 = vshrl.u32 %v5227, 7
    %v5229 = vsub.s32 5, %v5228
    %v5230 = vrot.slane %v5172, %v5229
    %v5231 = vlaneseq
    %v5232 = vshrl.u32 %v5231, 7
    %v5233 = vsub.s32 6, %v5232
    %v5234 = vrot.slane %v5172, %v5233
    %v5235 = vlaneseq
    %v5236 = vshrl.u32 %v5235, 7
    %v5237 = vsub.s32 7, %v5236
    %v5238 = vrot.slane %v5172, %v5237
    %v5287 = vunpack.c.l.b16 %v5138
    %v5288 = vunpack.c.h.b16 %v5138
    %v5289 = vunpack.c.l.b16 %v5139
    %v5290 = vunpack.c.h.b16 %v5139
    %v5291 = vunpack.c.l.b16 %v5140
    %v5292 = vunpack.c.h.b16 %v5140
    %v5293 = vunpack.c.l.b16 %v5141
    %v5294 = vunpack.c.h.b16 %v5141
    %v5295 = vunpack.c.l.b16 %v5142
    %v5296 = vunpack.c.h.b16 %v5142
    %v5297 = vunpack.c.l.b16 %v5143
    %v5298 = vunpack.c.h.b16 %v5143
    %v5299 = vunpack.c.l.b16 %v5144
    %v5300 = vunpack.c.h.b16 %v5144
    %v5301 = vunpack.c.l.b16 %v5145
    %v5302 = vunpack.c.h.b16 %v5145
    %v5303 = vunpack.c.l.b16 %v5146
    %v5304 = vunpack.c.h.b16 %v5146
    %v5305 = vunpack.c.l.b16 %v5147
    %v5306 = vunpack.c.h.b16 %v5147
    %v5307 = vunpack.c.l.b16 %v5148
    %v5308 = vunpack.c.h.b16 %v5148
    %v5309 = vunpack.c.l.b16 %v5149
    %v5310 = vunpack.c.h.b16 %v5149
    %v5311 = vunpack.c.l.b16 %v5150
    %v5312 = vunpack.c.h.b16 %v5150
    %v5313 = vunpack.c.l.b16 %v5151
    %v5314 = vunpack.c.h.b16 %v5151
    %v5315 = vunpack.c.l.b16 %v5152
    %v5316 = vunpack.c.h.b16 %v5152
    %v5317 = vunpack.c.l.b16 %v5153
    %v5318 = vunpack.c.h.b16 %v5153
    %v5319 = vunpack.c.l.b16 %v5154
    %v5320 = vunpack.c.h.b16 %v5154
    %v5321 = vunpack.c.l.b16 %v5155
    %v5322 = vunpack.c.h.b16 %v5155
    %v5323 = vunpack.c.l.b16 %v5156
    %v5324 = vunpack.c.h.b16 %v5156
    %v5325 = vunpack.c.l.b16 %v5157
    %v5326 = vunpack.c.h.b16 %v5157
    %v5327 = vunpack.c.l.b16 %v5158
    %v5328 = vunpack.c.h.b16 %v5158
    %v5329 = vunpack.c.l.b16 %v5159
    %v5330 = vunpack.c.h.b16 %v5159
    %v5331 = vunpack.c.l.b16 %v5160
    %v5332 = vunpack.c.h.b16 %v5160
    %v5333 = vunpack.c.l.b16 %v5161
    %v5334 = vunpack.c.h.b16 %v5161
    %v5335 = vunpack.c.l.b16 %v5162
    %v5336 = vunpack.c.h.b16 %v5162
    %v5337 = vunpack.c.l.b16 %v5163
    %v5338 = vunpack.c.h.b16 %v5163
    %v5339 = vunpack.c.l.b16 %v5164
    %v5340 = vunpack.c.h.b16 %v5164
    %v5341 = vunpack.c.l.b16 %v5165
    %v5342 = vunpack.c.h.b16 %v5165
    %v5343 = vunpack.c.l.b16 %v5166
    %v5344 = vunpack.c.h.b16 %v5166
    %v5345 = vunpack.c.l.b16 %v5167
    %v5346 = vunpack.c.h.b16 %v5167
    %v5347 = vunpack.c.l.b16 %v5168
    %v5348 = vunpack.c.h.b16 %v5168
    %v5349 = vunpack.c.l.b16 %v5169
    %v5350 = vunpack.c.h.b16 %v5169
    %v5351 = vpack.c.b16 %v5303, %v5287
    %v5352 = vpack.c.b16 %v5304, %v5288
    %v5353 = vpack.c.b16 %v5305, %v5289
    %v5354 = vpack.c.b16 %v5306, %v5290
    %v5355 = vpack.c.b16 %v5307, %v5291
    %v5356 = vpack.c.b16 %v5308, %v5292
    %v5357 = vpack.c.b16 %v5309, %v5293
    %v5358 = vpack.c.b16 %v5310, %v5294
    %v5359 = vpack.c.b16 %v5311, %v5295
    %v5360 = vpack.c.b16 %v5312, %v5296
    %v5361 = vpack.c.b16 %v5313, %v5297
    %v5362 = vpack.c.b16 %v5314, %v5298
    %v5363 = vpack.c.b16 %v5315, %v5299
    %v5364 = vpack.c.b16 %v5316, %v5300
    %v5365 = vpack.c.b16 %v5317, %v5301
    %v5366 = vpack.c.b16 %v5318, %v5302
    %v5367 = vpack.c.b16 %v5335, %v5319
    %v5368 = vpack.c.b16 %v5336, %v5320
    %v5369 = vpack.c.b16 %v5337, %v5321
    %v5370 = vpack.c.b16 %v5338, %v5322
    %v5371 = vpack.c.b16 %v5339, %v5323
    %v5372 = vpack.c.b16 %v5340, %v5324
    %v5373 = vpack.c.b16 %v5341, %v5325
    %v5374 = vpack.c.b16 %v5342, %v5326
    %v5375 = vpack.c.b16 %v5343, %v5327
    %v5376 = vpack.c.b16 %v5344, %v5328
    %v5377 = vpack.c.b16 %v5345, %v5329
    %v5378 = vpack.c.b16 %v5346, %v5330
    %v5379 = vpack.c.b16 %v5347, %v5331
    %v5380 = vpack.c.b16 %v5348, %v5332
    %v5381 = vpack.c.b16 %v5349, %v5333
    %v5382 = vpack.c.b16 %v5350, %v5334
    %v5416 = vsel %vm372, %v5136, 0
    %5418 = vmatprep.subr.bf16.mxu0 %v5352
    %5419 = vmatpush1.bf16.msra.mxu0 %v5351
    %5420 = vmatprep.subr.bf16.mxu0 %v5368
    %5421 = vmatpush1.bf16.msra.mxu0 %v5367
    %5422 = vmatprep.subr.bf16.mxu0 0
    %5423 = vmatpush1.bf16.msra.mxu0 0
    %5424 = vmatprep.subr.bf16.mxu0 0
    %5425 = vmatpush1.bf16.msra.mxu0 0
    %5426 = vmatprep.subr.bf16.mxu0 0
    %5427 = vmatpush1.bf16.msra.mxu0 0
    %5428 = vmatprep.subr.bf16.mxu0 0
    %5429 = vmatpush1.bf16.msra.mxu0 0
    %5430 = vmatprep.subr.bf16.mxu0 0
    %5431 = vmatpush1.bf16.msra.mxu0 0
    %5432 = vmatprep.subr.bf16.mxu0 0
    %5433 = vmatpush1.bf16.msra.mxu0 0
    %5434 = vmatprep.subr.bf16.mxu0 0
    %5435 = vmatpush1.bf16.msra.mxu0 0
    %5436 = vmatprep.subr.bf16.mxu0 0
    %5437 = vmatpush1.bf16.msra.mxu0 0
    %5438 = vmatprep.subr.bf16.mxu0 0
    %5439 = vmatpush1.bf16.msra.mxu0 0
    %5440 = vmatprep.subr.bf16.mxu0 0
    %5441 = vmatpush1.bf16.msra.mxu0 0
    %5442 = vmatprep.subr.bf16.mxu0 0
    %5443 = vmatpush1.bf16.msra.mxu0 0
    %5444 = vmatprep.subr.bf16.mxu0 0
    %5445 = vmatpush1.bf16.msra.mxu0 0
    %5446 = vmatprep.subr.bf16.mxu0 0
    %5447 = vmatpush1.bf16.msra.mxu0 0
    %5448 = vmatprep.subr.bf16.mxu0 0
    %5449 = vmatpush1.bf16.msra.mxu0 0
    %5450 = vmatprep.mubr.bf16.mxu0 0
    %5451 = vmatmul.mubr.bf16.gmra.mrb[0].mxu0 %v5416
    %v5452 = vpop.f32.mrb[0].mxu0
    %v5453 = vadd.f32 %v5178, %v5452
    %v5454 = vpop.f32.mrb[0].mxu0
    %v5455 = vadd.f32 %v5182, %v5454
    %v5456 = vpop.f32.mrb[0].mxu0
    %v5457 = vadd.f32 %v5178, %v5456
    %v5458 = vpop.f32.mrb[0].mxu0
    %v5459 = vadd.f32 %v5182, %v5458
    %5460 = vdwg.mxu0
    %5461 = vmatprep.subr.bf16.mxu0 %v5354
    %5462 = vmatpush1.bf16.msra.mxu0 %v5353
    %5463 = vmatprep.subr.bf16.mxu0 %v5370
    %5464 = vmatpush1.bf16.msra.mxu0 %v5369
    %5465 = vmatprep.subr.bf16.mxu0 0
    %5466 = vmatpush1.bf16.msra.mxu0 0
    %5467 = vmatprep.subr.bf16.mxu0 0
    %5468 = vmatpush1.bf16.msra.mxu0 0
    %5469 = vmatprep.subr.bf16.mxu0 0
    %5470 = vmatpush1.bf16.msra.mxu0 0
    %5471 = vmatprep.subr.bf16.mxu0 0
    %5472 = vmatpush1.bf16.msra.mxu0 0
    %5473 = vmatprep.subr.bf16.mxu0 0
    %5474 = vmatpush1.bf16.msra.mxu0 0
    %5475 = vmatprep.subr.bf16.mxu0 0
    %5476 = vmatpush1.bf16.msra.mxu0 0
    %5477 = vmatprep.subr.bf16.mxu0 0
    %5478 = vmatpush1.bf16.msra.mxu0 0
    %5479 = vmatprep.subr.bf16.mxu0 0
    %5480 = vmatpush1.bf16.msra.mxu0 0
    %5481 = vmatprep.subr.bf16.mxu0 0
    %5482 = vmatpush1.bf16.msra.mxu0 0
    %5483 = vmatprep.subr.bf16.mxu0 0
    %5484 = vmatpush1.bf16.msra.mxu0 0
    %5485 = vmatprep.subr.bf16.mxu0 0
    %5486 = vmatpush1.bf16.msra.mxu0 0
    %5487 = vmatprep.subr.bf16.mxu0 0
    %5488 = vmatpush1.bf16.msra.mxu0 0
    %5489 = vmatprep.subr.bf16.mxu0 0
    %5490 = vmatpush1.bf16.msra.mxu0 0
    %5491 = vmatprep.subr.bf16.mxu0 0
    %5492 = vmatpush1.bf16.msra.mxu0 0
    %5493 = vmatprep.mubr.bf16.mxu0 0
    %5494 = vmatmul.mubr.bf16.gmra.mrb[0].mxu0 %v5416
    %v5495 = vpop.f32.mrb[0].mxu0
    %v5496 = vadd.f32 %v5186, %v5495
    %v5497 = vpop.f32.mrb[0].mxu0
    %v5498 = vadd.f32 %v5190, %v5497
    %v5499 = vpop.f32.mrb[0].mxu0
    %v5500 = vadd.f32 %v5186, %v5499
    %v5501 = vpop.f32.mrb[0].mxu0
    %v5502 = vadd.f32 %v5190, %v5501
    %5503 = vdwg.mxu0
    %5504 = vmatprep.subr.bf16.mxu0 %v5356
    %5505 = vmatpush1.bf16.msra.mxu0 %v5355
    %5506 = vmatprep.subr.bf16.mxu0 %v5372
    %5507 = vmatpush1.bf16.msra.mxu0 %v5371
    %5508 = vmatprep.subr.bf16.mxu0 0
    %5509 = vmatpush1.bf16.msra.mxu0 0
    %5510 = vmatprep.subr.bf16.mxu0 0
    %5511 = vmatpush1.bf16.msra.mxu0 0
    %5512 = vmatprep.subr.bf16.mxu0 0
    %5513 = vmatpush1.bf16.msra.mxu0 0
    %5514 = vmatprep.subr.bf16.mxu0 0
    %5515 = vmatpush1.bf16.msra.mxu0 0
    %5516 = vmatprep.subr.bf16.mxu0 0
    %5517 = vmatpush1.bf16.msra.mxu0 0
    %5518 = vmatprep.subr.bf16.mxu0 0
    %5519 = vmatpush1.bf16.msra.mxu0 0
    %5520 = vmatprep.subr.bf16.mxu0 0
    %5521 = vmatpush1.bf16.msra.mxu0 0
    %5522 = vmatprep.subr.bf16.mxu0 0
    %5523 = vmatpush1.bf16.msra.mxu0 0
    %5524 = vmatprep.subr.bf16.mxu0 0
    %5525 = vmatpush1.bf16.msra.mxu0 0
    %5526 = vmatprep.subr.bf16.mxu0 0
    %5527 = vmatpush1.bf16.msra.mxu0 0
    %5528 = vmatprep.subr.bf16.mxu0 0
    %5529 = vmatpush1.bf16.msra.mxu0 0
    %5530 = vmatprep.subr.bf16.mxu0 0
    %5531 = vmatpush1.bf16.msra.mxu0 0
    %5532 = vmatprep.subr.bf16.mxu0 0
    %5533 = vmatpush1.bf16.msra.mxu0 0
    %5534 = vmatprep.subr.bf16.mxu0 0
    %5535 = vmatpush1.bf16.msra.mxu0 0
    %5536 = vmatprep.mubr.bf16.mxu0 0
    %5537 = vmatmul.mubr.bf16.gmra.mrb[0].mxu0 %v5416
    %v5538 = vpop.f32.mrb[0].mxu0
    %v5539 = vadd.f32 %v5194, %v5538
    %v5540 = vpop.f32.mrb[0].mxu0
    %v5541 = vadd.f32 %v5198, %v5540
    %v5542 = vpop.f32.mrb[0].mxu0
    %v5543 = vadd.f32 %v5194, %v5542
    %v5544 = vpop.f32.mrb[0].mxu0
    %v5545 = vadd.f32 %v5198, %v5544
    %5546 = vdwg.mxu0
    %5547 = vmatprep.subr.bf16.mxu0 %v5358
    %5548 = vmatpush1.bf16.msra.mxu0 %v5357
    %5549 = vmatprep.subr.bf16.mxu0 %v5374
    %5550 = vmatpush1.bf16.msra.mxu0 %v5373
    %5551 = vmatprep.subr.bf16.mxu0 0
    %5552 = vmatpush1.bf16.msra.mxu0 0
    %5553 = vmatprep.subr.bf16.mxu0 0
    %5554 = vmatpush1.bf16.msra.mxu0 0
    %5555 = vmatprep.subr.bf16.mxu0 0
    %5556 = vmatpush1.bf16.msra.mxu0 0
    %5557 = vmatprep.subr.bf16.mxu0 0
    %5558 = vmatpush1.bf16.msra.mxu0 0
    %5559 = vmatprep.subr.bf16.mxu0 0
    %5560 = vmatpush1.bf16.msra.mxu0 0
    %5561 = vmatprep.subr.bf16.mxu0 0
    %5562 = vmatpush1.bf16.msra.mxu0 0
    %5563 = vmatprep.subr.bf16.mxu0 0
    %5564 = vmatpush1.bf16.msra.mxu0 0
    %5565 = vmatprep.subr.bf16.mxu0 0
    %5566 = vmatpush1.bf16.msra.mxu0 0
    %5567 = vmatprep.subr.bf16.mxu0 0
    %5568 = vmatpush1.bf16.msra.mxu0 0
    %5569 = vmatprep.subr.bf16.mxu0 0
    %5570 = vmatpush1.bf16.msra.mxu0 0
    %5571 = vmatprep.subr.bf16.mxu0 0
    %5572 = vmatpush1.bf16.msra.mxu0 0
    %5573 = vmatprep.subr.bf16.mxu0 0
    %5574 = vmatpush1.bf16.msra.mxu0 0
    %5575 = vmatprep.subr.bf16.mxu0 0
    %5576 = vmatpush1.bf16.msra.mxu0 0
    %5577 = vmatprep.subr.bf16.mxu0 0
    %5578 = vmatpush1.bf16.msra.mxu0 0
    %5579 = vmatprep.mubr.bf16.mxu0 0
    %5580 = vmatmul.mubr.bf16.gmra.mrb[0].mxu0 %v5416
    %v5581 = vpop.f32.mrb[0].mxu0
    %v5582 = vadd.f32 %v5202, %v5581
    %v5583 = vpop.f32.mrb[0].mxu0
    %v5584 = vadd.f32 %v5206, %v5583
    %v5585 = vpop.f32.mrb[0].mxu0
    %v5586 = vadd.f32 %v5202, %v5585
    %v5587 = vpop.f32.mrb[0].mxu0
    %v5588 = vadd.f32 %v5206, %v5587
    %5589 = vdwg.mxu0
    %5590 = vmatprep.subr.bf16.mxu0 %v5360
    %5591 = vmatpush1.bf16.msra.mxu0 %v5359
    %5592 = vmatprep.subr.bf16.mxu0 %v5376
    %5593 = vmatpush1.bf16.msra.mxu0 %v5375
    %5594 = vmatprep.subr.bf16.mxu0 0
    %5595 = vmatpush1.bf16.msra.mxu0 0
    %5596 = vmatprep.subr.bf16.mxu0 0
    %5597 = vmatpush1.bf16.msra.mxu0 0
    %5598 = vmatprep.subr.bf16.mxu0 0
    %5599 = vmatpush1.bf16.msra.mxu0 0
    %5600 = vmatprep.subr.bf16.mxu0 0
    %5601 = vmatpush1.bf16.msra.mxu0 0
    %5602 = vmatprep.subr.bf16.mxu0 0
    %5603 = vmatpush1.bf16.msra.mxu0 0
    %5604 = vmatprep.subr.bf16.mxu0 0
    %5605 = vmatpush1.bf16.msra.mxu0 0
    %5606 = vmatprep.subr.bf16.mxu0 0
    %5607 = vmatpush1.bf16.msra.mxu0 0
    %5608 = vmatprep.subr.bf16.mxu0 0
    %5609 = vmatpush1.bf16.msra.mxu0 0
    %5610 = vmatprep.subr.bf16.mxu0 0
    %5611 = vmatpush1.bf16.msra.mxu0 0
    %5612 = vmatprep.subr.bf16.mxu0 0
    %5613 = vmatpush1.bf16.msra.mxu0 0
    %5614 = vmatprep.subr.bf16.mxu0 0
    %5615 = vmatpush1.bf16.msra.mxu0 0
    %5616 = vmatprep.subr.bf16.mxu0 0
    %5617 = vmatpush1.bf16.msra.mxu0 0
    %5618 = vmatprep.subr.bf16.mxu0 0
    %5619 = vmatpush1.bf16.msra.mxu0 0
    %5620 = vmatprep.subr.bf16.mxu0 0
    %5621 = vmatpush1.bf16.msra.mxu0 0
    %5622 = vmatprep.mubr.bf16.mxu0 0
    %5623 = vmatmul.mubr.bf16.gmra.mrb[0].mxu0 %v5416
    %v5624 = vpop.f32.mrb[0].mxu0
    %v5625 = vadd.f32 %v5210, %v5624
    %v5626 = vpop.f32.mrb[0].mxu0
    %v5627 = vadd.f32 %v5214, %v5626
    %v5628 = vpop.f32.mrb[0].mxu0
    %v5629 = vadd.f32 %v5210, %v5628
    %v5630 = vpop.f32.mrb[0].mxu0
    %v5631 = vadd.f32 %v5214, %v5630
    %5632 = vdwg.mxu0
    %5633 = vmatprep.subr.bf16.mxu0 %v5362
    %5634 = vmatpush1.bf16.msra.mxu0 %v5361
    %5635 = vmatprep.subr.bf16.mxu0 %v5378
    %5636 = vmatpush1.bf16.msra.mxu0 %v5377
    %5637 = vmatprep.subr.bf16.mxu0 0
    %5638 = vmatpush1.bf16.msra.mxu0 0
    %5639 = vmatprep.subr.bf16.mxu0 0
    %5640 = vmatpush1.bf16.msra.mxu0 0
    %5641 = vmatprep.subr.bf16.mxu0 0
    %5642 = vmatpush1.bf16.msra.mxu0 0
    %5643 = vmatprep.subr.bf16.mxu0 0
    %5644 = vmatpush1.bf16.msra.mxu0 0
    %5645 = vmatprep.subr.bf16.mxu0 0
    %5646 = vmatpush1.bf16.msra.mxu0 0
    %5647 = vmatprep.subr.bf16.mxu0 0
    %5648 = vmatpush1.bf16.msra.mxu0 0
    %5649 = vmatprep.subr.bf16.mxu0 0
    %5650 = vmatpush1.bf16.msra.mxu0 0
    %5651 = vmatprep.subr.bf16.mxu0 0
    %5652 = vmatpush1.bf16.msra.mxu0 0
    %5653 = vmatprep.subr.bf16.mxu0 0
    %5654 = vmatpush1.bf16.msra.mxu0 0
    %5655 = vmatprep.subr.bf16.mxu0 0
    %5656 = vmatpush1.bf16.msra.mxu0 0
    %5657 = vmatprep.subr.bf16.mxu0 0
    %5658 = vmatpush1.bf16.msra.mxu0 0
    %5659 = vmatprep.subr.bf16.mxu0 0
    %5660 = vmatpush1.bf16.msra.mxu0 0
    %5661 = vmatprep.subr.bf16.mxu0 0
    %5662 = vmatpush1.bf16.msra.mxu0 0
    %5663 = vmatprep.subr.bf16.mxu0 0
    %5664 = vmatpush1.bf16.msra.mxu0 0
    %5665 = vmatprep.mubr.bf16.mxu0 0
    %5666 = vmatmul.mubr.bf16.gmra.mrb[0].mxu0 %v5416
    %v5667 = vpop.f32.mrb[0].mxu0
    %v5668 = vadd.f32 %v5218, %v5667
    %v5669 = vpop.f32.mrb[0].mxu0
    %v5670 = vadd.f32 %v5222, %v5669
    %v5671 = vpop.f32.mrb[0].mxu0
    %v5672 = vadd.f32 %v5218, %v5671
    %v5673 = vpop.f32.mrb[0].mxu0
    %v5674 = vadd.f32 %v5222, %v5673
    %5675 = vdwg.mxu0
    %5676 = vmatprep.subr.bf16.mxu0 %v5364
    %5677 = vmatpush1.bf16.msra.mxu0 %v5363
    %5678 = vmatprep.subr.bf16.mxu0 %v5380
    %5679 = vmatpush1.bf16.msra.mxu0 %v5379
    %5680 = vmatprep.subr.bf16.mxu0 0
    %5681 = vmatpush1.bf16.msra.mxu0 0
    %5682 = vmatprep.subr.bf16.mxu0 0
    %5683 = vmatpush1.bf16.msra.mxu0 0
    %5684 = vmatprep.subr.bf16.mxu0 0
    %5685 = vmatpush1.bf16.msra.mxu0 0
    %5686 = vmatprep.subr.bf16.mxu0 0
    %5687 = vmatpush1.bf16.msra.mxu0 0
    %5688 = vmatprep.subr.bf16.mxu0 0
    %5689 = vmatpush1.bf16.msra.mxu0 0
    %5690 = vmatprep.subr.bf16.mxu0 0
    %5691 = vmatpush1.bf16.msra.mxu0 0
    %5692 = vmatprep.subr.bf16.mxu0 0
    %5693 = vmatpush1.bf16.msra.mxu0 0
    %5694 = vmatprep.subr.bf16.mxu0 0
    %5695 = vmatpush1.bf16.msra.mxu0 0
    %5696 = vmatprep.subr.bf16.mxu0 0
    %5697 = vmatpush1.bf16.msra.mxu0 0
    %5698 = vmatprep.subr.bf16.mxu0 0
    %5699 = vmatpush1.bf16.msra.mxu0 0
    %5700 = vmatprep.subr.bf16.mxu0 0
    %5701 = vmatpush1.bf16.msra.mxu0 0
    %5702 = vmatprep.subr.bf16.mxu0 0
    %5703 = vmatpush1.bf16.msra.mxu0 0
    %5704 = vmatprep.subr.bf16.mxu0 0
    %5705 = vmatpush1.bf16.msra.mxu0 0
    %5706 = vmatprep.subr.bf16.mxu0 0
    %5707 = vmatpush1.bf16.msra.mxu0 0
    %5708 = vmatprep.mubr.bf16.mxu0 0
    %5709 = vmatmul.mubr.bf16.gmra.mrb[0].mxu0 %v5416
    %v5710 = vpop.f32.mrb[0].mxu0
    %v5711 = vadd.f32 %v5226, %v5710
    %v5712 = vpop.f32.mrb[0].mxu0
    %v5713 = vadd.f32 %v5230, %v5712
    %v5714 = vpop.f32.mrb[0].mxu0
    %v5715 = vadd.f32 %v5226, %v5714
    %v5716 = vpop.f32.mrb[0].mxu0
    %v5717 = vadd.f32 %v5230, %v5716
    %5718 = vdwg.mxu0
    %5719 = vmatprep.subr.bf16.mxu0 %v5366
    %5720 = vmatpush1.bf16.msra.mxu0 %v5365
    %5721 = vmatprep.subr.bf16.mxu0 %v5382
    %5722 = vmatpush1.bf16.msra.mxu0 %v5381
    %5723 = vmatprep.subr.bf16.mxu0 0
    %5724 = vmatpush1.bf16.msra.mxu0 0
    %5725 = vmatprep.subr.bf16.mxu0 0
    %5726 = vmatpush1.bf16.msra.mxu0 0
    %5727 = vmatprep.subr.bf16.mxu0 0
    %5728 = vmatpush1.bf16.msra.mxu0 0
    %5729 = vmatprep.subr.bf16.mxu0 0
    %5730 = vmatpush1.bf16.msra.mxu0 0
    %5731 = vmatprep.subr.bf16.mxu0 0
    %5732 = vmatpush1.bf16.msra.mxu0 0
    %5733 = vmatprep.subr.bf16.mxu0 0
    %5734 = vmatpush1.bf16.msra.mxu0 0
    %5735 = vmatprep.subr.bf16.mxu0 0
    %5736 = vmatpush1.bf16.msra.mxu0 0
    %5737 = vmatprep.subr.bf16.mxu0 0
    %5738 = vmatpush1.bf16.msra.mxu0 0
    %5739 = vmatprep.subr.bf16.mxu0 0
    %5740 = vmatpush1.bf16.msra.mxu0 0
    %5741 = vmatprep.subr.bf16.mxu0 0
    %5742 = vmatpush1.bf16.msra.mxu0 0
    %5743 = vmatprep.subr.bf16.mxu0 0
    %5744 = vmatpush1.bf16.msra.mxu0 0
    %5745 = vmatprep.subr.bf16.mxu0 0
    %5746 = vmatpush1.bf16.msra.mxu0 0
    %5747 = vmatprep.subr.bf16.mxu0 0
    %5748 = vmatpush1.bf16.msra.mxu0 0
    %5749 = vmatprep.subr.bf16.mxu0 0
    %5750 = vmatpush1.bf16.msra.mxu0 0
    %5751 = vmatprep.mubr.bf16.mxu0 0
    %5752 = vmatmul.mubr.bf16.gmra.mrb[0].mxu0 %v5416
    %v5753 = vpop.f32.mrb[0].mxu0
    %v5754 = vadd.f32 %v5234, %v5753
    %v5755 = vpop.f32.mrb[0].mxu0
    %v5756 = vadd.f32 %v5238, %v5755
    %v5757 = vpop.f32.mrb[0].mxu0
    %v5758 = vadd.f32 %v5234, %v5757
    %v5759 = vpop.f32.mrb[0].mxu0
    %v5760 = vadd.f32 %v5238, %v5759
    %5761 = vdwg.mxu0
    %v5762 = vmax.f32 %v5453, 0.0
    %v5763 = vmax.f32 %v5455, 0.0
    %v5764 = vmax.f32 %v5496, 0.0
    %v5765 = vmax.f32 %v5498, 0.0
    %v5766 = vmax.f32 %v5539, 0.0
    %v5767 = vmax.f32 %v5541, 0.0
    %v5768 = vmax.f32 %v5582, 0.0
    %v5769 = vmax.f32 %v5584, 0.0
    %v5770 = vmax.f32 %v5625, 0.0
    %v5771 = vmax.f32 %v5627, 0.0
    %v5772 = vmax.f32 %v5668, 0.0
    %v5773 = vmax.f32 %v5670, 0.0
    %v5774 = vmax.f32 %v5711, 0.0
    %v5775 = vmax.f32 %v5713, 0.0
    %v5776 = vmax.f32 %v5754, 0.0
    %v5777 = vmax.f32 %v5756, 0.0
    %v5778 = vmax.f32 %v5457, 0.0
    %v5779 = vmax.f32 %v5459, 0.0
    %v5780 = vmax.f32 %v5500, 0.0
    %v5781 = vmax.f32 %v5502, 0.0
    %v5782 = vmax.f32 %v5543, 0.0
    %v5783 = vmax.f32 %v5545, 0.0
    %v5784 = vmax.f32 %v5586, 0.0
    %v5785 = vmax.f32 %v5588, 0.0
    %v5786 = vmax.f32 %v5629, 0.0
    %v5787 = vmax.f32 %v5631, 0.0
    %v5788 = vmax.f32 %v5672, 0.0
    %v5789 = vmax.f32 %v5674, 0.0
    %v5790 = vmax.f32 %v5715, 0.0
    %v5791 = vmax.f32 %v5717, 0.0
    %v5792 = vmax.f32 %v5758, 0.0
    %v5793 = vmax.f32 %v5760, 0.0
    %v5794 = vpack.c.bf16 %v5778, %v5762
    %v5795 = vpack.c.bf16 %v5779, %v5763
    %v5796 = vpack.c.bf16 %v5780, %v5764
    %v5797 = vpack.c.bf16 %v5781, %v5765
    %v5798 = vpack.c.bf16 %v5782, %v5766
    %v5799 = vpack.c.bf16 %v5783, %v5767
    %v5800 = vpack.c.bf16 %v5784, %v5768
    %v5801 = vpack.c.bf16 %v5785, %v5769
    %v5802 = vpack.c.bf16 %v5786, %v5770
    %v5803 = vpack.c.bf16 %v5787, %v5771
    %v5804 = vpack.c.bf16 %v5788, %v5772
    %v5805 = vpack.c.bf16 %v5789, %v5773
    %v5806 = vpack.c.bf16 %v5790, %v5774
    %v5807 = vpack.c.bf16 %v5791, %v5775
    %v5808 = vpack.c.bf16 %v5792, %v5776
    %v5809 = vpack.c.bf16 %v5793, %v5777
    %s5810 = scalar_lea.vmem %s11, 1024
    %v5811 = vld [vmem:[%s5810] sm:$0xf]
    %v5812 = vld [vmem:[%s5810 + $0x4] sm:$0xf]
    %v5813 = vld [vmem:[%s5810 + $0x8] sm:$0xf]
    %v5814 = vld [vmem:[%s5810 + $0xc] sm:$0xf]
    %v5815 = vld [vmem:[%s5810 + $0x10] sm:$0xf]
    %v5816 = vld [vmem:[%s5810 + $0x14] sm:$0xf]
    %v5817 = vld [vmem:[%s5810 + $0x18] sm:$0xf]
    %v5818 = vld [vmem:[%s5810 + $0x1c] sm:$0xf]
    %v5819 = vld [vmem:[%s5810 + $0x20] sm:$0xf]
    %v5820 = vld [vmem:[%s5810 + $0x24] sm:$0xf]
    %v5821 = vld [vmem:[%s5810 + $0x28] sm:$0xf]
    %v5822 = vld [vmem:[%s5810 + $0x2c] sm:$0xf]
    %v5823 = vld [vmem:[%s5810 + $0x30] sm:$0xf]
    %v5824 = vld [vmem:[%s5810 + $0x34] sm:$0xf]
    %v5825 = vld [vmem:[%s5810 + $0x38] sm:$0xf]
    %v5826 = vld [vmem:[%s5810 + $0x3c] sm:$0xf]
    %v5827 = vld [vmem:[%s5810 + $0x40] sm:$0xf]
    %v5828 = vld [vmem:[%s5810 + $0x44] sm:$0xf]
    %v5829 = vld [vmem:[%s5810 + $0x48] sm:$0xf]
    %v5830 = vld [vmem:[%s5810 + $0x4c] sm:$0xf]
    %v5831 = vld [vmem:[%s5810 + $0x50] sm:$0xf]
    %v5832 = vld [vmem:[%s5810 + $0x54] sm:$0xf]
    %v5833 = vld [vmem:[%s5810 + $0x58] sm:$0xf]
    %v5834 = vld [vmem:[%s5810 + $0x5c] sm:$0xf]
    %v5835 = vld [vmem:[%s5810 + $0x60] sm:$0xf]
    %v5836 = vld [vmem:[%s5810 + $0x64] sm:$0xf]
    %v5837 = vld [vmem:[%s5810 + $0x68] sm:$0xf]
    %v5838 = vld [vmem:[%s5810 + $0x6c] sm:$0xf]
    %v5839 = vld [vmem:[%s5810 + $0x70] sm:$0xf]
    %v5840 = vld [vmem:[%s5810 + $0x74] sm:$0xf]
    %v5841 = vld [vmem:[%s5810 + $0x78] sm:$0xf]
    %v5842 = vld [vmem:[%s5810 + $0x7c] sm:$0xf]
    %v5843 = vld [vmem:[%s5810 + $0x80] sm:$0xf]
    %v5844 = vld [vmem:[%s5810 + $0x84] sm:$0xf]
    %v5845 = vld [vmem:[%s5810 + $0x88] sm:$0xf]
    %v5846 = vld [vmem:[%s5810 + $0x8c] sm:$0xf]
    %v5847 = vld [vmem:[%s5810 + $0x90] sm:$0xf]
    %v5848 = vld [vmem:[%s5810 + $0x94] sm:$0xf]
    %v5849 = vld [vmem:[%s5810 + $0x98] sm:$0xf]
    %v5850 = vld [vmem:[%s5810 + $0x9c] sm:$0xf]
    %v5851 = vld [vmem:[%s5810 + $0xa0] sm:$0xf]
    %v5852 = vld [vmem:[%s5810 + $0xa4] sm:$0xf]
    %v5853 = vld [vmem:[%s5810 + $0xa8] sm:$0xf]
    %v5854 = vld [vmem:[%s5810 + $0xac] sm:$0xf]
    %v5855 = vld [vmem:[%s5810 + $0xb0] sm:$0xf]
    %v5856 = vld [vmem:[%s5810 + $0xb4] sm:$0xf]
    %v5857 = vld [vmem:[%s5810 + $0xb8] sm:$0xf]
    %v5858 = vld [vmem:[%s5810 + $0xbc] sm:$0xf]
    %v5859 = vld [vmem:[%s5810 + $0xc0] sm:$0xf]
    %v5860 = vld [vmem:[%s5810 + $0xc4] sm:$0xf]
    %v5861 = vld [vmem:[%s5810 + $0xc8] sm:$0xf]
    %v5862 = vld [vmem:[%s5810 + $0xcc] sm:$0xf]
    %v5863 = vld [vmem:[%s5810 + $0xd0] sm:$0xf]
    %v5864 = vld [vmem:[%s5810 + $0xd4] sm:$0xf]
    %v5865 = vld [vmem:[%s5810 + $0xd8] sm:$0xf]
    %v5866 = vld [vmem:[%s5810 + $0xdc] sm:$0xf]
    %v5867 = vld [vmem:[%s5810 + $0xe0] sm:$0xf]
    %v5868 = vld [vmem:[%s5810 + $0xe4] sm:$0xf]
    %v5869 = vld [vmem:[%s5810 + $0xe8] sm:$0xf]
    %v5870 = vld [vmem:[%s5810 + $0xec] sm:$0xf]
    %v5871 = vld [vmem:[%s5810 + $0xf0] sm:$0xf]
    %v5872 = vld [vmem:[%s5810 + $0xf4] sm:$0xf]
    %v5873 = vld [vmem:[%s5810 + $0xf8] sm:$0xf]
    %v5874 = vld [vmem:[%s5810 + $0xfc] sm:$0xf]
    %v5875 = vld [vmem:[%s5810 + $0x100] sm:$0xf]
    %v5876 = vld [vmem:[%s5810 + $0x104] sm:$0xf]
    %v5877 = vld [vmem:[%s5810 + $0x108] sm:$0xf]
    %v5878 = vld [vmem:[%s5810 + $0x10c] sm:$0xf]
    %v5879 = vld [vmem:[%s5810 + $0x110] sm:$0xf]
    %v5880 = vld [vmem:[%s5810 + $0x114] sm:$0xf]
    %v5881 = vld [vmem:[%s5810 + $0x118] sm:$0xf]
    %v5882 = vld [vmem:[%s5810 + $0x11c] sm:$0xf]
    %v5883 = vld [vmem:[%s5810 + $0x120] sm:$0xf]
    %v5884 = vld [vmem:[%s5810 + $0x124] sm:$0xf]
    %v5885 = vld [vmem:[%s5810 + $0x128] sm:$0xf]
    %v5886 = vld [vmem:[%s5810 + $0x12c] sm:$0xf]
    %v5887 = vld [vmem:[%s5810 + $0x130] sm:$0xf]
    %v5888 = vld [vmem:[%s5810 + $0x134] sm:$0xf]
    %v5889 = vld [vmem:[%s5810 + $0x138] sm:$0xf]
    %v5890 = vld [vmem:[%s5810 + $0x13c] sm:$0xf]
    %v5891 = vld [vmem:[%s5810 + $0x140] sm:$0xf]
    %v5892 = vld [vmem:[%s5810 + $0x144] sm:$0xf]
    %v5893 = vld [vmem:[%s5810 + $0x148] sm:$0xf]
    %v5894 = vld [vmem:[%s5810 + $0x14c] sm:$0xf]
    %v5895 = vld [vmem:[%s5810 + $0x150] sm:$0xf]
    %v5896 = vld [vmem:[%s5810 + $0x154] sm:$0xf]
    %v5897 = vld [vmem:[%s5810 + $0x158] sm:$0xf]
    %v5898 = vld [vmem:[%s5810 + $0x15c] sm:$0xf]
    %v5899 = vld [vmem:[%s5810 + $0x160] sm:$0xf]
    %v5900 = vld [vmem:[%s5810 + $0x164] sm:$0xf]
    %v5901 = vld [vmem:[%s5810 + $0x168] sm:$0xf]
    %v5902 = vld [vmem:[%s5810 + $0x16c] sm:$0xf]
    %v5903 = vld [vmem:[%s5810 + $0x170] sm:$0xf]
    %v5904 = vld [vmem:[%s5810 + $0x174] sm:$0xf]
    %v5905 = vld [vmem:[%s5810 + $0x178] sm:$0xf]
    %v5906 = vld [vmem:[%s5810 + $0x17c] sm:$0xf]
    %v5907 = vld [vmem:[%s5810 + $0x180] sm:$0xf]
    %v5908 = vld [vmem:[%s5810 + $0x184] sm:$0xf]
    %v5909 = vld [vmem:[%s5810 + $0x188] sm:$0xf]
    %v5910 = vld [vmem:[%s5810 + $0x18c] sm:$0xf]
    %v5911 = vld [vmem:[%s5810 + $0x190] sm:$0xf]
    %v5912 = vld [vmem:[%s5810 + $0x194] sm:$0xf]
    %v5913 = vld [vmem:[%s5810 + $0x198] sm:$0xf]
    %v5914 = vld [vmem:[%s5810 + $0x19c] sm:$0xf]
    %v5915 = vld [vmem:[%s5810 + $0x1a0] sm:$0xf]
    %v5916 = vld [vmem:[%s5810 + $0x1a4] sm:$0xf]
    %v5917 = vld [vmem:[%s5810 + $0x1a8] sm:$0xf]
    %v5918 = vld [vmem:[%s5810 + $0x1ac] sm:$0xf]
    %v5919 = vld [vmem:[%s5810 + $0x1b0] sm:$0xf]
    %v5920 = vld [vmem:[%s5810 + $0x1b4] sm:$0xf]
    %v5921 = vld [vmem:[%s5810 + $0x1b8] sm:$0xf]
    %v5922 = vld [vmem:[%s5810 + $0x1bc] sm:$0xf]
    %v5923 = vld [vmem:[%s5810 + $0x1c0] sm:$0xf]
    %v5924 = vld [vmem:[%s5810 + $0x1c4] sm:$0xf]
    %v5925 = vld [vmem:[%s5810 + $0x1c8] sm:$0xf]
    %v5926 = vld [vmem:[%s5810 + $0x1cc] sm:$0xf]
    %v5927 = vld [vmem:[%s5810 + $0x1d0] sm:$0xf]
    %v5928 = vld [vmem:[%s5810 + $0x1d4] sm:$0xf]
    %v5929 = vld [vmem:[%s5810 + $0x1d8] sm:$0xf]
    %v5930 = vld [vmem:[%s5810 + $0x1dc] sm:$0xf]
    %v5931 = vld [vmem:[%s5810 + $0x1e0] sm:$0xf]
    %v5932 = vld [vmem:[%s5810 + $0x1e4] sm:$0xf]
    %v5933 = vld [vmem:[%s5810 + $0x1e8] sm:$0xf]
    %v5934 = vld [vmem:[%s5810 + $0x1ec] sm:$0xf]
    %v5935 = vld [vmem:[%s5810 + $0x1f0] sm:$0xf]
    %v5936 = vld [vmem:[%s5810 + $0x1f4] sm:$0xf]
    %v5937 = vld [vmem:[%s5810 + $0x1f8] sm:$0xf]
    %v5938 = vld [vmem:[%s5810 + $0x1fc] sm:$0xf]
    %v5939 = vld [vmem:[%s5810 + $0x200] sm:$0xf]
    %v5940 = vld [vmem:[%s5810 + $0x204] sm:$0xf]
    %v5941 = vld [vmem:[%s5810 + $0x208] sm:$0xf]
    %v5942 = vld [vmem:[%s5810 + $0x20c] sm:$0xf]
    %v5943 = vld [vmem:[%s5810 + $0x210] sm:$0xf]
    %v5944 = vld [vmem:[%s5810 + $0x214] sm:$0xf]
    %v5945 = vld [vmem:[%s5810 + $0x218] sm:$0xf]
    %v5946 = vld [vmem:[%s5810 + $0x21c] sm:$0xf]
    %v5947 = vld [vmem:[%s5810 + $0x220] sm:$0xf]
    %v5948 = vld [vmem:[%s5810 + $0x224] sm:$0xf]
    %v5949 = vld [vmem:[%s5810 + $0x228] sm:$0xf]
    %v5950 = vld [vmem:[%s5810 + $0x22c] sm:$0xf]
    %v5951 = vld [vmem:[%s5810 + $0x230] sm:$0xf]
    %v5952 = vld [vmem:[%s5810 + $0x234] sm:$0xf]
    %v5953 = vld [vmem:[%s5810 + $0x238] sm:$0xf]
    %v5954 = vld [vmem:[%s5810 + $0x23c] sm:$0xf]
    %v5955 = vld [vmem:[%s5810 + $0x240] sm:$0xf]
    %v5956 = vld [vmem:[%s5810 + $0x244] sm:$0xf]
    %v5957 = vld [vmem:[%s5810 + $0x248] sm:$0xf]
    %v5958 = vld [vmem:[%s5810 + $0x24c] sm:$0xf]
    %v5959 = vld [vmem:[%s5810 + $0x250] sm:$0xf]
    %v5960 = vld [vmem:[%s5810 + $0x254] sm:$0xf]
    %v5961 = vld [vmem:[%s5810 + $0x258] sm:$0xf]
    %v5962 = vld [vmem:[%s5810 + $0x25c] sm:$0xf]
    %v5963 = vld [vmem:[%s5810 + $0x260] sm:$0xf]
    %v5964 = vld [vmem:[%s5810 + $0x264] sm:$0xf]
    %v5965 = vld [vmem:[%s5810 + $0x268] sm:$0xf]
    %v5966 = vld [vmem:[%s5810 + $0x26c] sm:$0xf]
    %v5967 = vld [vmem:[%s5810 + $0x270] sm:$0xf]
    %v5968 = vld [vmem:[%s5810 + $0x274] sm:$0xf]
    %v5969 = vld [vmem:[%s5810 + $0x278] sm:$0xf]
    %v5970 = vld [vmem:[%s5810 + $0x27c] sm:$0xf]
    %v5971 = vld [vmem:[%s5810 + $0x280] sm:$0xf]
    %v5972 = vld [vmem:[%s5810 + $0x284] sm:$0xf]
    %v5973 = vld [vmem:[%s5810 + $0x288] sm:$0xf]
    %v5974 = vld [vmem:[%s5810 + $0x28c] sm:$0xf]
    %v5975 = vld [vmem:[%s5810 + $0x290] sm:$0xf]
    %v5976 = vld [vmem:[%s5810 + $0x294] sm:$0xf]
    %v5977 = vld [vmem:[%s5810 + $0x298] sm:$0xf]
    %v5978 = vld [vmem:[%s5810 + $0x29c] sm:$0xf]
    %v5979 = vld [vmem:[%s5810 + $0x2a0] sm:$0xf]
    %v5980 = vld [vmem:[%s5810 + $0x2a4] sm:$0xf]
    %v5981 = vld [vmem:[%s5810 + $0x2a8] sm:$0xf]
    %v5982 = vld [vmem:[%s5810 + $0x2ac] sm:$0xf]
    %v5983 = vld [vmem:[%s5810 + $0x2b0] sm:$0xf]
    %v5984 = vld [vmem:[%s5810 + $0x2b4] sm:$0xf]
    %v5985 = vld [vmem:[%s5810 + $0x2b8] sm:$0xf]
    %v5986 = vld [vmem:[%s5810 + $0x2bc] sm:$0xf]
    %v5987 = vld [vmem:[%s5810 + $0x2c0] sm:$0xf]
    %v5988 = vld [vmem:[%s5810 + $0x2c4] sm:$0xf]
    %v5989 = vld [vmem:[%s5810 + $0x2c8] sm:$0xf]
    %v5990 = vld [vmem:[%s5810 + $0x2cc] sm:$0xf]
    %v5991 = vld [vmem:[%s5810 + $0x2d0] sm:$0xf]
    %v5992 = vld [vmem:[%s5810 + $0x2d4] sm:$0xf]
    %v5993 = vld [vmem:[%s5810 + $0x2d8] sm:$0xf]
    %v5994 = vld [vmem:[%s5810 + $0x2dc] sm:$0xf]
    %v5995 = vld [vmem:[%s5810 + $0x2e0] sm:$0xf]
    %v5996 = vld [vmem:[%s5810 + $0x2e4] sm:$0xf]
    %v5997 = vld [vmem:[%s5810 + $0x2e8] sm:$0xf]
    %v5998 = vld [vmem:[%s5810 + $0x2ec] sm:$0xf]
    %v5999 = vld [vmem:[%s5810 + $0x2f0] sm:$0xf]
    %v6000 = vld [vmem:[%s5810 + $0x2f4] sm:$0xf]
    %v6001 = vld [vmem:[%s5810 + $0x2f8] sm:$0xf]
    %v6002 = vld [vmem:[%s5810 + $0x2fc] sm:$0xf]
    %v6003 = vld [vmem:[%s5810 + $0x300] sm:$0xf]
    %v6004 = vld [vmem:[%s5810 + $0x304] sm:$0xf]
    %v6005 = vld [vmem:[%s5810 + $0x308] sm:$0xf]
    %v6006 = vld [vmem:[%s5810 + $0x30c] sm:$0xf]
    %v6007 = vld [vmem:[%s5810 + $0x310] sm:$0xf]
    %v6008 = vld [vmem:[%s5810 + $0x314] sm:$0xf]
    %v6009 = vld [vmem:[%s5810 + $0x318] sm:$0xf]
    %v6010 = vld [vmem:[%s5810 + $0x31c] sm:$0xf]
    %v6011 = vld [vmem:[%s5810 + $0x320] sm:$0xf]
    %v6012 = vld [vmem:[%s5810 + $0x324] sm:$0xf]
    %v6013 = vld [vmem:[%s5810 + $0x328] sm:$0xf]
    %v6014 = vld [vmem:[%s5810 + $0x32c] sm:$0xf]
    %v6015 = vld [vmem:[%s5810 + $0x330] sm:$0xf]
    %v6016 = vld [vmem:[%s5810 + $0x334] sm:$0xf]
    %v6017 = vld [vmem:[%s5810 + $0x338] sm:$0xf]
    %v6018 = vld [vmem:[%s5810 + $0x33c] sm:$0xf]
    %v6019 = vld [vmem:[%s5810 + $0x340] sm:$0xf]
    %v6020 = vld [vmem:[%s5810 + $0x344] sm:$0xf]
    %v6021 = vld [vmem:[%s5810 + $0x348] sm:$0xf]
    %v6022 = vld [vmem:[%s5810 + $0x34c] sm:$0xf]
    %v6023 = vld [vmem:[%s5810 + $0x350] sm:$0xf]
    %v6024 = vld [vmem:[%s5810 + $0x354] sm:$0xf]
    %v6025 = vld [vmem:[%s5810 + $0x358] sm:$0xf]
    %v6026 = vld [vmem:[%s5810 + $0x35c] sm:$0xf]
    %v6027 = vld [vmem:[%s5810 + $0x360] sm:$0xf]
    %v6028 = vld [vmem:[%s5810 + $0x364] sm:$0xf]
    %v6029 = vld [vmem:[%s5810 + $0x368] sm:$0xf]
    %v6030 = vld [vmem:[%s5810 + $0x36c] sm:$0xf]
    %v6031 = vld [vmem:[%s5810 + $0x370] sm:$0xf]
    %v6032 = vld [vmem:[%s5810 + $0x374] sm:$0xf]
    %v6033 = vld [vmem:[%s5810 + $0x378] sm:$0xf]
    %v6034 = vld [vmem:[%s5810 + $0x37c] sm:$0xf]
    %v6035 = vld [vmem:[%s5810 + $0x380] sm:$0xf]
    %v6036 = vld [vmem:[%s5810 + $0x384] sm:$0xf]
    %v6037 = vld [vmem:[%s5810 + $0x388] sm:$0xf]
    %v6038 = vld [vmem:[%s5810 + $0x38c] sm:$0xf]
    %v6039 = vld [vmem:[%s5810 + $0x390] sm:$0xf]
    %v6040 = vld [vmem:[%s5810 + $0x394] sm:$0xf]
    %v6041 = vld [vmem:[%s5810 + $0x398] sm:$0xf]
    %v6042 = vld [vmem:[%s5810 + $0x39c] sm:$0xf]
    %v6043 = vld [vmem:[%s5810 + $0x3a0] sm:$0xf]
    %v6044 = vld [vmem:[%s5810 + $0x3a4] sm:$0xf]
    %v6045 = vld [vmem:[%s5810 + $0x3a8] sm:$0xf]
    %v6046 = vld [vmem:[%s5810 + $0x3ac] sm:$0xf]
    %v6047 = vld [vmem:[%s5810 + $0x3b0] sm:$0xf]
    %v6048 = vld [vmem:[%s5810 + $0x3b4] sm:$0xf]
    %v6049 = vld [vmem:[%s5810 + $0x3b8] sm:$0xf]
    %v6050 = vld [vmem:[%s5810 + $0x3bc] sm:$0xf]
    %v6051 = vld [vmem:[%s5810 + $0x3c0] sm:$0xf]
    %v6052 = vld [vmem:[%s5810 + $0x3c4] sm:$0xf]
    %v6053 = vld [vmem:[%s5810 + $0x3c8] sm:$0xf]
    %v6054 = vld [vmem:[%s5810 + $0x3cc] sm:$0xf]
    %v6055 = vld [vmem:[%s5810 + $0x3d0] sm:$0xf]
    %v6056 = vld [vmem:[%s5810 + $0x3d4] sm:$0xf]
    %v6057 = vld [vmem:[%s5810 + $0x3d8] sm:$0xf]
    %v6058 = vld [vmem:[%s5810 + $0x3dc] sm:$0xf]
    %v6059 = vld [vmem:[%s5810 + $0x3e0] sm:$0xf]
    %v6060 = vld [vmem:[%s5810 + $0x3e4] sm:$0xf]
    %v6061 = vld [vmem:[%s5810 + $0x3e8] sm:$0xf]
    %v6062 = vld [vmem:[%s5810 + $0x3ec] sm:$0xf]
    %v6063 = vld [vmem:[%s5810 + $0x3f0] sm:$0xf]
    %v6064 = vld [vmem:[%s5810 + $0x3f4] sm:$0xf]
    %v6065 = vld [vmem:[%s5810 + $0x3f8] sm:$0xf]
    %v6066 = vld [vmem:[%s5810 + $0x3fc] sm:$0xf]
    %s6067 = scalar_lea.vmem %s12, 1
    %v6068 = vld [vmem:[%s6067] sm:$0x1]
    %v6070 = vlaneseq
    %v6071 = vshrl.u32 %v6070, 7
    %v6072 = vsub.s32 0, %v6071
    %v6073 = vrot.slane %v6068, %v6072
    %v6331 = vunpack.c.l.b16 %v5811
    %v6332 = vunpack.c.l.b16 %v5812
    %v6333 = vunpack.c.l.b16 %v5813
    %v6334 = vunpack.c.l.b16 %v5814
    %v6335 = vunpack.c.l.b16 %v5815
    %v6336 = vunpack.c.l.b16 %v5816
    %v6337 = vunpack.c.l.b16 %v5817
    %v6338 = vunpack.c.l.b16 %v5818
    %v6339 = vunpack.c.l.b16 %v5819
    %v6340 = vunpack.c.l.b16 %v5820
    %v6341 = vunpack.c.l.b16 %v5821
    %v6342 = vunpack.c.l.b16 %v5822
    %v6343 = vunpack.c.l.b16 %v5823
    %v6344 = vunpack.c.l.b16 %v5824
    %v6345 = vunpack.c.l.b16 %v5825
    %v6346 = vunpack.c.l.b16 %v5826
    %v6347 = vunpack.c.l.b16 %v5827
    %v6348 = vunpack.c.l.b16 %v5828
    %v6349 = vunpack.c.l.b16 %v5829
    %v6350 = vunpack.c.l.b16 %v5830
    %v6351 = vunpack.c.l.b16 %v5831
    %v6352 = vunpack.c.l.b16 %v5832
    %v6353 = vunpack.c.l.b16 %v5833
    %v6354 = vunpack.c.l.b16 %v5834
    %v6355 = vunpack.c.l.b16 %v5835
    %v6356 = vunpack.c.l.b16 %v5836
    %v6357 = vunpack.c.l.b16 %v5837
    %v6358 = vunpack.c.l.b16 %v5838
    %v6359 = vunpack.c.l.b16 %v5839
    %v6360 = vunpack.c.l.b16 %v5840
    %v6361 = vunpack.c.l.b16 %v5841
    %v6362 = vunpack.c.l.b16 %v5842
    %v6363 = vunpack.c.l.b16 %v5843
    %v6364 = vunpack.c.l.b16 %v5844
    %v6365 = vunpack.c.l.b16 %v5845
    %v6366 = vunpack.c.l.b16 %v5846
    %v6367 = vunpack.c.l.b16 %v5847
    %v6368 = vunpack.c.l.b16 %v5848
    %v6369 = vunpack.c.l.b16 %v5849
    %v6370 = vunpack.c.l.b16 %v5850
    %v6371 = vunpack.c.l.b16 %v5851
    %v6372 = vunpack.c.l.b16 %v5852
    %v6373 = vunpack.c.l.b16 %v5853
    %v6374 = vunpack.c.l.b16 %v5854
    %v6375 = vunpack.c.l.b16 %v5855
    %v6376 = vunpack.c.l.b16 %v5856
    %v6377 = vunpack.c.l.b16 %v5857
    %v6378 = vunpack.c.l.b16 %v5858
    %v6379 = vunpack.c.l.b16 %v5859
    %v6380 = vunpack.c.l.b16 %v5860
    %v6381 = vunpack.c.l.b16 %v5861
    %v6382 = vunpack.c.l.b16 %v5862
    %v6383 = vunpack.c.l.b16 %v5863
    %v6384 = vunpack.c.l.b16 %v5864
    %v6385 = vunpack.c.l.b16 %v5865
    %v6386 = vunpack.c.l.b16 %v5866
    %v6387 = vunpack.c.l.b16 %v5867
    %v6388 = vunpack.c.l.b16 %v5868
    %v6389 = vunpack.c.l.b16 %v5869
    %v6390 = vunpack.c.l.b16 %v5870
    %v6391 = vunpack.c.l.b16 %v5871
    %v6392 = vunpack.c.l.b16 %v5872
    %v6393 = vunpack.c.l.b16 %v5873
    %v6394 = vunpack.c.l.b16 %v5874
    %v6395 = vunpack.c.l.b16 %v5875
    %v6396 = vunpack.c.l.b16 %v5876
    %v6397 = vunpack.c.l.b16 %v5877
    %v6398 = vunpack.c.l.b16 %v5878
    %v6399 = vunpack.c.l.b16 %v5879
    %v6400 = vunpack.c.l.b16 %v5880
    %v6401 = vunpack.c.l.b16 %v5881
    %v6402 = vunpack.c.l.b16 %v5882
    %v6403 = vunpack.c.l.b16 %v5883
    %v6404 = vunpack.c.l.b16 %v5884
    %v6405 = vunpack.c.l.b16 %v5885
    %v6406 = vunpack.c.l.b16 %v5886
    %v6407 = vunpack.c.l.b16 %v5887
    %v6408 = vunpack.c.l.b16 %v5888
    %v6409 = vunpack.c.l.b16 %v5889
    %v6410 = vunpack.c.l.b16 %v5890
    %v6411 = vunpack.c.l.b16 %v5891
    %v6412 = vunpack.c.l.b16 %v5892
    %v6413 = vunpack.c.l.b16 %v5893
    %v6414 = vunpack.c.l.b16 %v5894
    %v6415 = vunpack.c.l.b16 %v5895
    %v6416 = vunpack.c.l.b16 %v5896
    %v6417 = vunpack.c.l.b16 %v5897
    %v6418 = vunpack.c.l.b16 %v5898
    %v6419 = vunpack.c.l.b16 %v5899
    %v6420 = vunpack.c.l.b16 %v5900
    %v6421 = vunpack.c.l.b16 %v5901
    %v6422 = vunpack.c.l.b16 %v5902
    %v6423 = vunpack.c.l.b16 %v5903
    %v6424 = vunpack.c.l.b16 %v5904
    %v6425 = vunpack.c.l.b16 %v5905
    %v6426 = vunpack.c.l.b16 %v5906
    %v6427 = vunpack.c.l.b16 %v5907
    %v6428 = vunpack.c.l.b16 %v5908
    %v6429 = vunpack.c.l.b16 %v5909
    %v6430 = vunpack.c.l.b16 %v5910
    %v6431 = vunpack.c.l.b16 %v5911
    %v6432 = vunpack.c.l.b16 %v5912
    %v6433 = vunpack.c.l.b16 %v5913
    %v6434 = vunpack.c.l.b16 %v5914
    %v6435 = vunpack.c.l.b16 %v5915
    %v6436 = vunpack.c.l.b16 %v5916
    %v6437 = vunpack.c.l.b16 %v5917
    %v6438 = vunpack.c.l.b16 %v5918
    %v6439 = vunpack.c.l.b16 %v5919
    %v6440 = vunpack.c.l.b16 %v5920
    %v6441 = vunpack.c.l.b16 %v5921
    %v6442 = vunpack.c.l.b16 %v5922
    %v6443 = vunpack.c.l.b16 %v5923
    %v6444 = vunpack.c.l.b16 %v5924
    %v6445 = vunpack.c.l.b16 %v5925
    %v6446 = vunpack.c.l.b16 %v5926
    %v6447 = vunpack.c.l.b16 %v5927
    %v6448 = vunpack.c.l.b16 %v5928
    %v6449 = vunpack.c.l.b16 %v5929
    %v6450 = vunpack.c.l.b16 %v5930
    %v6451 = vunpack.c.l.b16 %v5931
    %v6452 = vunpack.c.l.b16 %v5932
    %v6453 = vunpack.c.l.b16 %v5933
    %v6454 = vunpack.c.l.b16 %v5934
    %v6455 = vunpack.c.l.b16 %v5935
    %v6456 = vunpack.c.l.b16 %v5936
    %v6457 = vunpack.c.l.b16 %v5937
    %v6458 = vunpack.c.l.b16 %v5938
    %v6459 = vunpack.c.l.b16 %v5939
    %v6460 = vunpack.c.l.b16 %v5940
    %v6461 = vunpack.c.l.b16 %v5941
    %v6462 = vunpack.c.l.b16 %v5942
    %v6463 = vunpack.c.l.b16 %v5943
    %v6464 = vunpack.c.l.b16 %v5944
    %v6465 = vunpack.c.l.b16 %v5945
    %v6466 = vunpack.c.l.b16 %v5946
    %v6467 = vunpack.c.l.b16 %v5947
    %v6468 = vunpack.c.l.b16 %v5948
    %v6469 = vunpack.c.l.b16 %v5949
    %v6470 = vunpack.c.l.b16 %v5950
    %v6471 = vunpack.c.l.b16 %v5951
    %v6472 = vunpack.c.l.b16 %v5952
    %v6473 = vunpack.c.l.b16 %v5953
    %v6474 = vunpack.c.l.b16 %v5954
    %v6475 = vunpack.c.l.b16 %v5955
    %v6476 = vunpack.c.l.b16 %v5956
    %v6477 = vunpack.c.l.b16 %v5957
    %v6478 = vunpack.c.l.b16 %v5958
    %v6479 = vunpack.c.l.b16 %v5959
    %v6480 = vunpack.c.l.b16 %v5960
    %v6481 = vunpack.c.l.b16 %v5961
    %v6482 = vunpack.c.l.b16 %v5962
    %v6483 = vunpack.c.l.b16 %v5963
    %v6484 = vunpack.c.l.b16 %v5964
    %v6485 = vunpack.c.l.b16 %v5965
    %v6486 = vunpack.c.l.b16 %v5966
    %v6487 = vunpack.c.l.b16 %v5967
    %v6488 = vunpack.c.l.b16 %v5968
    %v6489 = vunpack.c.l.b16 %v5969
    %v6490 = vunpack.c.l.b16 %v5970
    %v6491 = vunpack.c.l.b16 %v5971
    %v6492 = vunpack.c.l.b16 %v5972
    %v6493 = vunpack.c.l.b16 %v5973
    %v6494 = vunpack.c.l.b16 %v5974
    %v6495 = vunpack.c.l.b16 %v5975
    %v6496 = vunpack.c.l.b16 %v5976
    %v6497 = vunpack.c.l.b16 %v5977
    %v6498 = vunpack.c.l.b16 %v5978
    %v6499 = vunpack.c.l.b16 %v5979
    %v6500 = vunpack.c.l.b16 %v5980
    %v6501 = vunpack.c.l.b16 %v5981
    %v6502 = vunpack.c.l.b16 %v5982
    %v6503 = vunpack.c.l.b16 %v5983
    %v6504 = vunpack.c.l.b16 %v5984
    %v6505 = vunpack.c.l.b16 %v5985
    %v6506 = vunpack.c.l.b16 %v5986
    %v6507 = vunpack.c.l.b16 %v5987
    %v6508 = vunpack.c.l.b16 %v5988
    %v6509 = vunpack.c.l.b16 %v5989
    %v6510 = vunpack.c.l.b16 %v5990
    %v6511 = vunpack.c.l.b16 %v5991
    %v6512 = vunpack.c.l.b16 %v5992
    %v6513 = vunpack.c.l.b16 %v5993
    %v6514 = vunpack.c.l.b16 %v5994
    %v6515 = vunpack.c.l.b16 %v5995
    %v6516 = vunpack.c.l.b16 %v5996
    %v6517 = vunpack.c.l.b16 %v5997
    %v6518 = vunpack.c.l.b16 %v5998
    %v6519 = vunpack.c.l.b16 %v5999
    %v6520 = vunpack.c.l.b16 %v6000
    %v6521 = vunpack.c.l.b16 %v6001
    %v6522 = vunpack.c.l.b16 %v6002
    %v6523 = vunpack.c.l.b16 %v6003
    %v6524 = vunpack.c.l.b16 %v6004
    %v6525 = vunpack.c.l.b16 %v6005
    %v6526 = vunpack.c.l.b16 %v6006
    %v6527 = vunpack.c.l.b16 %v6007
    %v6528 = vunpack.c.l.b16 %v6008
    %v6529 = vunpack.c.l.b16 %v6009
    %v6530 = vunpack.c.l.b16 %v6010
    %v6531 = vunpack.c.l.b16 %v6011
    %v6532 = vunpack.c.l.b16 %v6012
    %v6533 = vunpack.c.l.b16 %v6013
    %v6534 = vunpack.c.l.b16 %v6014
    %v6535 = vunpack.c.l.b16 %v6015
    %v6536 = vunpack.c.l.b16 %v6016
    %v6537 = vunpack.c.l.b16 %v6017
    %v6538 = vunpack.c.l.b16 %v6018
    %v6539 = vunpack.c.l.b16 %v6019
    %v6540 = vunpack.c.l.b16 %v6020
    %v6541 = vunpack.c.l.b16 %v6021
    %v6542 = vunpack.c.l.b16 %v6022
    %v6543 = vunpack.c.l.b16 %v6023
    %v6544 = vunpack.c.l.b16 %v6024
    %v6545 = vunpack.c.l.b16 %v6025
    %v6546 = vunpack.c.l.b16 %v6026
    %v6547 = vunpack.c.l.b16 %v6027
    %v6548 = vunpack.c.l.b16 %v6028
    %v6549 = vunpack.c.l.b16 %v6029
    %v6550 = vunpack.c.l.b16 %v6030
    %v6551 = vunpack.c.l.b16 %v6031
    %v6552 = vunpack.c.l.b16 %v6032
    %v6553 = vunpack.c.l.b16 %v6033
    %v6554 = vunpack.c.l.b16 %v6034
    %v6555 = vunpack.c.l.b16 %v6035
    %v6556 = vunpack.c.l.b16 %v6036
    %v6557 = vunpack.c.l.b16 %v6037
    %v6558 = vunpack.c.l.b16 %v6038
    %v6559 = vunpack.c.l.b16 %v6039
    %v6560 = vunpack.c.l.b16 %v6040
    %v6561 = vunpack.c.l.b16 %v6041
    %v6562 = vunpack.c.l.b16 %v6042
    %v6563 = vunpack.c.l.b16 %v6043
    %v6564 = vunpack.c.l.b16 %v6044
    %v6565 = vunpack.c.l.b16 %v6045
    %v6566 = vunpack.c.l.b16 %v6046
    %v6567 = vunpack.c.l.b16 %v6047
    %v6568 = vunpack.c.l.b16 %v6048
    %v6569 = vunpack.c.l.b16 %v6049
    %v6570 = vunpack.c.l.b16 %v6050
    %v6571 = vunpack.c.l.b16 %v6051
    %v6572 = vunpack.c.l.b16 %v6052
    %v6573 = vunpack.c.l.b16 %v6053
    %v6574 = vunpack.c.l.b16 %v6054
    %v6575 = vunpack.c.l.b16 %v6055
    %v6576 = vunpack.c.l.b16 %v6056
    %v6577 = vunpack.c.l.b16 %v6057
    %v6578 = vunpack.c.l.b16 %v6058
    %v6579 = vunpack.c.l.b16 %v6059
    %v6580 = vunpack.c.l.b16 %v6060
    %v6581 = vunpack.c.l.b16 %v6061
    %v6582 = vunpack.c.l.b16 %v6062
    %v6583 = vunpack.c.l.b16 %v6063
    %v6584 = vunpack.c.l.b16 %v6064
    %v6585 = vunpack.c.l.b16 %v6065
    %v6586 = vunpack.c.l.b16 %v6066
    %v6587 = vpack.c.b16 %v6332, %v6331
    %v6588 = vpack.c.b16 %v6334, %v6333
    %v6589 = vpack.c.b16 %v6336, %v6335
    %v6590 = vpack.c.b16 %v6338, %v6337
    %v6591 = vpack.c.b16 %v6340, %v6339
    %v6592 = vpack.c.b16 %v6342, %v6341
    %v6593 = vpack.c.b16 %v6344, %v6343
    %v6594 = vpack.c.b16 %v6346, %v6345
    %v6595 = vpack.c.b16 %v6348, %v6347
    %v6596 = vpack.c.b16 %v6350, %v6349
    %v6597 = vpack.c.b16 %v6352, %v6351
    %v6598 = vpack.c.b16 %v6354, %v6353
    %v6599 = vpack.c.b16 %v6356, %v6355
    %v6600 = vpack.c.b16 %v6358, %v6357
    %v6601 = vpack.c.b16 %v6360, %v6359
    %v6602 = vpack.c.b16 %v6362, %v6361
    %v6603 = vpack.c.b16 %v6364, %v6363
    %v6604 = vpack.c.b16 %v6366, %v6365
    %v6605 = vpack.c.b16 %v6368, %v6367
    %v6606 = vpack.c.b16 %v6370, %v6369
    %v6607 = vpack.c.b16 %v6372, %v6371
    %v6608 = vpack.c.b16 %v6374, %v6373
    %v6609 = vpack.c.b16 %v6376, %v6375
    %v6610 = vpack.c.b16 %v6378, %v6377
    %v6611 = vpack.c.b16 %v6380, %v6379
    %v6612 = vpack.c.b16 %v6382, %v6381
    %v6613 = vpack.c.b16 %v6384, %v6383
    %v6614 = vpack.c.b16 %v6386, %v6385
    %v6615 = vpack.c.b16 %v6388, %v6387
    %v6616 = vpack.c.b16 %v6390, %v6389
    %v6617 = vpack.c.b16 %v6392, %v6391
    %v6618 = vpack.c.b16 %v6394, %v6393
    %v6619 = vpack.c.b16 %v6396, %v6395
    %v6620 = vpack.c.b16 %v6398, %v6397
    %v6621 = vpack.c.b16 %v6400, %v6399
    %v6622 = vpack.c.b16 %v6402, %v6401
    %v6623 = vpack.c.b16 %v6404, %v6403
    %v6624 = vpack.c.b16 %v6406, %v6405
    %v6625 = vpack.c.b16 %v6408, %v6407
    %v6626 = vpack.c.b16 %v6410, %v6409
    %v6627 = vpack.c.b16 %v6412, %v6411
    %v6628 = vpack.c.b16 %v6414, %v6413
    %v6629 = vpack.c.b16 %v6416, %v6415
    %v6630 = vpack.c.b16 %v6418, %v6417
    %v6631 = vpack.c.b16 %v6420, %v6419
    %v6632 = vpack.c.b16 %v6422, %v6421
    %v6633 = vpack.c.b16 %v6424, %v6423
    %v6634 = vpack.c.b16 %v6426, %v6425
    %v6635 = vpack.c.b16 %v6428, %v6427
    %v6636 = vpack.c.b16 %v6430, %v6429
    %v6637 = vpack.c.b16 %v6432, %v6431
    %v6638 = vpack.c.b16 %v6434, %v6433
    %v6639 = vpack.c.b16 %v6436, %v6435
    %v6640 = vpack.c.b16 %v6438, %v6437
    %v6641 = vpack.c.b16 %v6440, %v6439
    %v6642 = vpack.c.b16 %v6442, %v6441
    %v6643 = vpack.c.b16 %v6444, %v6443
    %v6644 = vpack.c.b16 %v6446, %v6445
    %v6645 = vpack.c.b16 %v6448, %v6447
    %v6646 = vpack.c.b16 %v6450, %v6449
    %v6647 = vpack.c.b16 %v6452, %v6451
    %v6648 = vpack.c.b16 %v6454, %v6453
    %v6649 = vpack.c.b16 %v6456, %v6455
    %v6650 = vpack.c.b16 %v6458, %v6457
    %v6651 = vpack.c.b16 %v6460, %v6459
    %v6652 = vpack.c.b16 %v6462, %v6461
    %v6653 = vpack.c.b16 %v6464, %v6463
    %v6654 = vpack.c.b16 %v6466, %v6465
    %v6655 = vpack.c.b16 %v6468, %v6467
    %v6656 = vpack.c.b16 %v6470, %v6469
    %v6657 = vpack.c.b16 %v6472, %v6471
    %v6658 = vpack.c.b16 %v6474, %v6473
    %v6659 = vpack.c.b16 %v6476, %v6475
    %v6660 = vpack.c.b16 %v6478, %v6477
    %v6661 = vpack.c.b16 %v6480, %v6479
    %v6662 = vpack.c.b16 %v6482, %v6481
    %v6663 = vpack.c.b16 %v6484, %v6483
    %v6664 = vpack.c.b16 %v6486, %v6485
    %v6665 = vpack.c.b16 %v6488, %v6487
    %v6666 = vpack.c.b16 %v6490, %v6489
    %v6667 = vpack.c.b16 %v6492, %v6491
    %v6668 = vpack.c.b16 %v6494, %v6493
    %v6669 = vpack.c.b16 %v6496, %v6495
    %v6670 = vpack.c.b16 %v6498, %v6497
    %v6671 = vpack.c.b16 %v6500, %v6499
    %v6672 = vpack.c.b16 %v6502, %v6501
    %v6673 = vpack.c.b16 %v6504, %v6503
    %v6674 = vpack.c.b16 %v6506, %v6505
    %v6675 = vpack.c.b16 %v6508, %v6507
    %v6676 = vpack.c.b16 %v6510, %v6509
    %v6677 = vpack.c.b16 %v6512, %v6511
    %v6678 = vpack.c.b16 %v6514, %v6513
    %v6679 = vpack.c.b16 %v6516, %v6515
    %v6680 = vpack.c.b16 %v6518, %v6517
    %v6681 = vpack.c.b16 %v6520, %v6519
    %v6682 = vpack.c.b16 %v6522, %v6521
    %v6683 = vpack.c.b16 %v6524, %v6523
    %v6684 = vpack.c.b16 %v6526, %v6525
    %v6685 = vpack.c.b16 %v6528, %v6527
    %v6686 = vpack.c.b16 %v6530, %v6529
    %v6687 = vpack.c.b16 %v6532, %v6531
    %v6688 = vpack.c.b16 %v6534, %v6533
    %v6689 = vpack.c.b16 %v6536, %v6535
    %v6690 = vpack.c.b16 %v6538, %v6537
    %v6691 = vpack.c.b16 %v6540, %v6539
    %v6692 = vpack.c.b16 %v6542, %v6541
    %v6693 = vpack.c.b16 %v6544, %v6543
    %v6694 = vpack.c.b16 %v6546, %v6545
    %v6695 = vpack.c.b16 %v6548, %v6547
    %v6696 = vpack.c.b16 %v6550, %v6549
    %v6697 = vpack.c.b16 %v6552, %v6551
    %v6698 = vpack.c.b16 %v6554, %v6553
    %v6699 = vpack.c.b16 %v6556, %v6555
    %v6700 = vpack.c.b16 %v6558, %v6557
    %v6701 = vpack.c.b16 %v6560, %v6559
    %v6702 = vpack.c.b16 %v6562, %v6561
    %v6703 = vpack.c.b16 %v6564, %v6563
    %v6704 = vpack.c.b16 %v6566, %v6565
    %v6705 = vpack.c.b16 %v6568, %v6567
    %v6706 = vpack.c.b16 %v6570, %v6569
    %v6707 = vpack.c.b16 %v6572, %v6571
    %v6708 = vpack.c.b16 %v6574, %v6573
    %v6709 = vpack.c.b16 %v6576, %v6575
    %v6710 = vpack.c.b16 %v6578, %v6577
    %v6711 = vpack.c.b16 %v6580, %v6579
    %v6712 = vpack.c.b16 %v6582, %v6581
    %v6713 = vpack.c.b16 %v6584, %v6583
    %v6714 = vpack.c.b16 %v6586, %v6585
    %6843 = vmatprep.subr.bf16.mxu0 0
    %6844 = vmatpush1.bf16.msra.mxu0 %v6587
    %6845 = vmatprep.subr.bf16.mxu0 0
    %6846 = vmatpush1.bf16.msra.mxu0 %v6588
    %6847 = vmatprep.subr.bf16.mxu0 0
    %6848 = vmatpush1.bf16.msra.mxu0 %v6589
    %6849 = vmatprep.subr.bf16.mxu0 0
    %6850 = vmatpush1.bf16.msra.mxu0 %v6590
    %6851 = vmatprep.subr.bf16.mxu0 0
    %6852 = vmatpush1.bf16.msra.mxu0 %v6591
    %6853 = vmatprep.subr.bf16.mxu0 0
    %6854 = vmatpush1.bf16.msra.mxu0 %v6592
    %6855 = vmatprep.subr.bf16.mxu0 0
    %6856 = vmatpush1.bf16.msra.mxu0 %v6593
    %6857 = vmatprep.subr.bf16.mxu0 0
    %6858 = vmatpush1.bf16.msra.mxu0 %v6594
    %6859 = vmatprep.subr.bf16.mxu0 0
    %6860 = vmatpush1.bf16.msra.mxu0 %v6595
    %6861 = vmatprep.subr.bf16.mxu0 0
    %6862 = vmatpush1.bf16.msra.mxu0 %v6596
    %6863 = vmatprep.subr.bf16.mxu0 0
    %6864 = vmatpush1.bf16.msra.mxu0 %v6597
    %6865 = vmatprep.subr.bf16.mxu0 0
    %6866 = vmatpush1.bf16.msra.mxu0 %v6598
    %6867 = vmatprep.subr.bf16.mxu0 0
    %6868 = vmatpush1.bf16.msra.mxu0 %v6599
    %6869 = vmatprep.subr.bf16.mxu0 0
    %6870 = vmatpush1.bf16.msra.mxu0 %v6600
    %6871 = vmatprep.subr.bf16.mxu0 0
    %6872 = vmatpush1.bf16.msra.mxu0 %v6601
    %6873 = vmatprep.subr.bf16.mxu0 0
    %6874 = vmatpush1.bf16.msra.mxu0 %v6602
    %6875 = vmatprep.mubr.bf16.mxu0 %v5795
    %6876 = vmatmul.mubr.bf16.gmra.mrb[0].mxu0 %v5794
    %v6877 = vpop.f32.mrb[0].mxu0
    %v6878 = vadd.f32 %v6073, %v6877
    %v6879 = vpop.f32.mrb[0].mxu0
    %v6880 = vpop.f32.mrb[0].mxu0
    %v6881 = vadd.f32 %v6073, %v6880
    %v6882 = vpop.f32.mrb[0].mxu0
    %6883 = vdwg.mxu0
    %6884 = vmatprep.subr.bf16.mxu0 0
    %6885 = vmatpush1.bf16.msra.mxu0 %v6603
    %6886 = vmatprep.subr.bf16.mxu0 0
    %6887 = vmatpush1.bf16.msra.mxu0 %v6604
    %6888 = vmatprep.subr.bf16.mxu0 0
    %6889 = vmatpush1.bf16.msra.mxu0 %v6605
    %6890 = vmatprep.subr.bf16.mxu0 0
    %6891 = vmatpush1.bf16.msra.mxu0 %v6606
    %6892 = vmatprep.subr.bf16.mxu0 0
    %6893 = vmatpush1.bf16.msra.mxu0 %v6607
    %6894 = vmatprep.subr.bf16.mxu0 0
    %6895 = vmatpush1.bf16.msra.mxu0 %v6608
    %6896 = vmatprep.subr.bf16.mxu0 0
    %6897 = vmatpush1.bf16.msra.mxu0 %v6609
    %6898 = vmatprep.subr.bf16.mxu0 0
    %6899 = vmatpush1.bf16.msra.mxu0 %v6610
    %6900 = vmatprep.subr.bf16.mxu0 0
    %6901 = vmatpush1.bf16.msra.mxu0 %v6611
    %6902 = vmatprep.subr.bf16.mxu0 0
    %6903 = vmatpush1.bf16.msra.mxu0 %v6612
    %6904 = vmatprep.subr.bf16.mxu0 0
    %6905 = vmatpush1.bf16.msra.mxu0 %v6613
    %6906 = vmatprep.subr.bf16.mxu0 0
    %6907 = vmatpush1.bf16.msra.mxu0 %v6614
    %6908 = vmatprep.subr.bf16.mxu0 0
    %6909 = vmatpush1.bf16.msra.mxu0 %v6615
    %6910 = vmatprep.subr.bf16.mxu0 0
    %6911 = vmatpush1.bf16.msra.mxu0 %v6616
    %6912 = vmatprep.subr.bf16.mxu0 0
    %6913 = vmatpush1.bf16.msra.mxu0 %v6617
    %6914 = vmatprep.subr.bf16.mxu0 0
    %6915 = vmatpush1.bf16.msra.mxu0 %v6618
    %6916 = vmatprep.mubr.bf16.mxu0 %v5797
    %6917 = vmatmul.mubr.bf16.gmra.mrb[0].mxu0 %v5796
    %v6918 = vpop.f32.mrb[0].mxu0
    %v6919 = vadd.f32 %v6878, %v6918
    %v6920 = vpop.f32.mrb[0].mxu0
    %v6921 = vpop.f32.mrb[0].mxu0
    %v6922 = vadd.f32 %v6881, %v6921
    %v6923 = vpop.f32.mrb[0].mxu0
    %6924 = vdwg.mxu0
    %6925 = vmatprep.subr.bf16.mxu0 0
    %6926 = vmatpush1.bf16.msra.mxu0 %v6619
    %6927 = vmatprep.subr.bf16.mxu0 0
    %6928 = vmatpush1.bf16.msra.mxu0 %v6620
    %6929 = vmatprep.subr.bf16.mxu0 0
    %6930 = vmatpush1.bf16.msra.mxu0 %v6621
    %6931 = vmatprep.subr.bf16.mxu0 0
    %6932 = vmatpush1.bf16.msra.mxu0 %v6622
    %6933 = vmatprep.subr.bf16.mxu0 0
    %6934 = vmatpush1.bf16.msra.mxu0 %v6623
    %6935 = vmatprep.subr.bf16.mxu0 0
    %6936 = vmatpush1.bf16.msra.mxu0 %v6624
    %6937 = vmatprep.subr.bf16.mxu0 0
    %6938 = vmatpush1.bf16.msra.mxu0 %v6625
    %6939 = vmatprep.subr.bf16.mxu0 0
    %6940 = vmatpush1.bf16.msra.mxu0 %v6626
    %6941 = vmatprep.subr.bf16.mxu0 0
    %6942 = vmatpush1.bf16.msra.mxu0 %v6627
    %6943 = vmatprep.subr.bf16.mxu0 0
    %6944 = vmatpush1.bf16.msra.mxu0 %v6628
    %6945 = vmatprep.subr.bf16.mxu0 0
    %6946 = vmatpush1.bf16.msra.mxu0 %v6629
    %6947 = vmatprep.subr.bf16.mxu0 0
    %6948 = vmatpush1.bf16.msra.mxu0 %v6630
    %6949 = vmatprep.subr.bf16.mxu0 0
    %6950 = vmatpush1.bf16.msra.mxu0 %v6631
    %6951 = vmatprep.subr.bf16.mxu0 0
    %6952 = vmatpush1.bf16.msra.mxu0 %v6632
    %6953 = vmatprep.subr.bf16.mxu0 0
    %6954 = vmatpush1.bf16.msra.mxu0 %v6633
    %6955 = vmatprep.subr.bf16.mxu0 0
    %6956 = vmatpush1.bf16.msra.mxu0 %v6634
    %6957 = vmatprep.mubr.bf16.mxu0 %v5799
    %6958 = vmatmul.mubr.bf16.gmra.mrb[0].mxu0 %v5798
    %v6959 = vpop.f32.mrb[0].mxu0
    %v6960 = vadd.f32 %v6919, %v6959
    %v6961 = vpop.f32.mrb[0].mxu0
    %v6962 = vpop.f32.mrb[0].mxu0
    %v6963 = vadd.f32 %v6922, %v6962
    %v6964 = vpop.f32.mrb[0].mxu0
    %6965 = vdwg.mxu0
    %6966 = vmatprep.subr.bf16.mxu0 0
    %6967 = vmatpush1.bf16.msra.mxu0 %v6635
    %6968 = vmatprep.subr.bf16.mxu0 0
    %6969 = vmatpush1.bf16.msra.mxu0 %v6636
    %6970 = vmatprep.subr.bf16.mxu0 0
    %6971 = vmatpush1.bf16.msra.mxu0 %v6637
    %6972 = vmatprep.subr.bf16.mxu0 0
    %6973 = vmatpush1.bf16.msra.mxu0 %v6638
    %6974 = vmatprep.subr.bf16.mxu0 0
    %6975 = vmatpush1.bf16.msra.mxu0 %v6639
    %6976 = vmatprep.subr.bf16.mxu0 0
    %6977 = vmatpush1.bf16.msra.mxu0 %v6640
    %6978 = vmatprep.subr.bf16.mxu0 0
    %6979 = vmatpush1.bf16.msra.mxu0 %v6641
    %6980 = vmatprep.subr.bf16.mxu0 0
    %6981 = vmatpush1.bf16.msra.mxu0 %v6642
    %6982 = vmatprep.subr.bf16.mxu0 0
    %6983 = vmatpush1.bf16.msra.mxu0 %v6643
    %6984 = vmatprep.subr.bf16.mxu0 0
    %6985 = vmatpush1.bf16.msra.mxu0 %v6644
    %6986 = vmatprep.subr.bf16.mxu0 0
    %6987 = vmatpush1.bf16.msra.mxu0 %v6645
    %6988 = vmatprep.subr.bf16.mxu0 0
    %6989 = vmatpush1.bf16.msra.mxu0 %v6646
    %6990 = vmatprep.subr.bf16.mxu0 0
    %6991 = vmatpush1.bf16.msra.mxu0 %v6647
    %6992 = vmatprep.subr.bf16.mxu0 0
    %6993 = vmatpush1.bf16.msra.mxu0 %v6648
    %6994 = vmatprep.subr.bf16.mxu0 0
    %6995 = vmatpush1.bf16.msra.mxu0 %v6649
    %6996 = vmatprep.subr.bf16.mxu0 0
    %6997 = vmatpush1.bf16.msra.mxu0 %v6650
    %6998 = vmatprep.mubr.bf16.mxu0 %v5801
    %6999 = vmatmul.mubr.bf16.gmra.mrb[0].mxu0 %v5800
    %v7000 = vpop.f32.mrb[0].mxu0
    %v7001 = vadd.f32 %v6960, %v7000
    %v7002 = vpop.f32.mrb[0].mxu0
    %v7003 = vpop.f32.mrb[0].mxu0
    %v7004 = vadd.f32 %v6963, %v7003
    %v7005 = vpop.f32.mrb[0].mxu0
    %7006 = vdwg.mxu0
    %7007 = vmatprep.subr.bf16.mxu0 0
    %7008 = vmatpush1.bf16.msra.mxu0 %v6651
    %7009 = vmatprep.subr.bf16.mxu0 0
    %7010 = vmatpush1.bf16.msra.mxu0 %v6652
    %7011 = vmatprep.subr.bf16.mxu0 0
    %7012 = vmatpush1.bf16.msra.mxu0 %v6653
    %7013 = vmatprep.subr.bf16.mxu0 0
    %7014 = vmatpush1.bf16.msra.mxu0 %v6654
    %7015 = vmatprep.subr.bf16.mxu0 0
    %7016 = vmatpush1.bf16.msra.mxu0 %v6655
    %7017 = vmatprep.subr.bf16.mxu0 0
    %7018 = vmatpush1.bf16.msra.mxu0 %v6656
    %7019 = vmatprep.subr.bf16.mxu0 0
    %7020 = vmatpush1.bf16.msra.mxu0 %v6657
    %7021 = vmatprep.subr.bf16.mxu0 0
    %7022 = vmatpush1.bf16.msra.mxu0 %v6658
    %7023 = vmatprep.subr.bf16.mxu0 0
    %7024 = vmatpush1.bf16.msra.mxu0 %v6659
    %7025 = vmatprep.subr.bf16.mxu0 0
    %7026 = vmatpush1.bf16.msra.mxu0 %v6660
    %7027 = vmatprep.subr.bf16.mxu0 0
    %7028 = vmatpush1.bf16.msra.mxu0 %v6661
    %7029 = vmatprep.subr.bf16.mxu0 0
    %7030 = vmatpush1.bf16.msra.mxu0 %v6662
    %7031 = vmatprep.subr.bf16.mxu0 0
    %7032 = vmatpush1.bf16.msra.mxu0 %v6663
    %7033 = vmatprep.subr.bf16.mxu0 0
    %7034 = vmatpush1.bf16.msra.mxu0 %v6664
    %7035 = vmatprep.subr.bf16.mxu0 0
    %7036 = vmatpush1.bf16.msra.mxu0 %v6665
    %7037 = vmatprep.subr.bf16.mxu0 0
    %7038 = vmatpush1.bf16.msra.mxu0 %v6666
    %7039 = vmatprep.mubr.bf16.mxu0 %v5803
    %7040 = vmatmul.mubr.bf16.gmra.mrb[0].mxu0 %v5802
    %v7041 = vpop.f32.mrb[0].mxu0
    %v7042 = vadd.f32 %v7001, %v7041
    %v7043 = vpop.f32.mrb[0].mxu0
    %v7044 = vpop.f32.mrb[0].mxu0
    %v7045 = vadd.f32 %v7004, %v7044
    %v7046 = vpop.f32.mrb[0].mxu0
    %7047 = vdwg.mxu0
    %7048 = vmatprep.subr.bf16.mxu0 0
    %7049 = vmatpush1.bf16.msra.mxu0 %v6667
    %7050 = vmatprep.subr.bf16.mxu0 0
    %7051 = vmatpush1.bf16.msra.mxu0 %v6668
    %7052 = vmatprep.subr.bf16.mxu0 0
    %7053 = vmatpush1.bf16.msra.mxu0 %v6669
    %7054 = vmatprep.subr.bf16.mxu0 0
    %7055 = vmatpush1.bf16.msra.mxu0 %v6670
    %7056 = vmatprep.subr.bf16.mxu0 0
    %7057 = vmatpush1.bf16.msra.mxu0 %v6671
    %7058 = vmatprep.subr.bf16.mxu0 0
    %7059 = vmatpush1.bf16.msra.mxu0 %v6672
    %7060 = vmatprep.subr.bf16.mxu0 0
    %7061 = vmatpush1.bf16.msra.mxu0 %v6673
    %7062 = vmatprep.subr.bf16.mxu0 0
    %7063 = vmatpush1.bf16.msra.mxu0 %v6674
    %7064 = vmatprep.subr.bf16.mxu0 0
    %7065 = vmatpush1.bf16.msra.mxu0 %v6675
    %7066 = vmatprep.subr.bf16.mxu0 0
    %7067 = vmatpush1.bf16.msra.mxu0 %v6676
    %7068 = vmatprep.subr.bf16.mxu0 0
    %7069 = vmatpush1.bf16.msra.mxu0 %v6677
    %7070 = vmatprep.subr.bf16.mxu0 0
    %7071 = vmatpush1.bf16.msra.mxu0 %v6678
    %7072 = vmatprep.subr.bf16.mxu0 0
    %7073 = vmatpush1.bf16.msra.mxu0 %v6679
    %7074 = vmatprep.subr.bf16.mxu0 0
    %7075 = vmatpush1.bf16.msra.mxu0 %v6680
    %7076 = vmatprep.subr.bf16.mxu0 0
    %7077 = vmatpush1.bf16.msra.mxu0 %v6681
    %7078 = vmatprep.subr.bf16.mxu0 0
    %7079 = vmatpush1.bf16.msra.mxu0 %v6682
    %7080 = vmatprep.mubr.bf16.mxu0 %v5805
    %7081 = vmatmul.mubr.bf16.gmra.mrb[0].mxu0 %v5804
    %v7082 = vpop.f32.mrb[0].mxu0
    %v7083 = vadd.f32 %v7042, %v7082
    %v7084 = vpop.f32.mrb[0].mxu0
    %v7085 = vpop.f32.mrb[0].mxu0
    %v7086 = vadd.f32 %v7045, %v7085
    %v7087 = vpop.f32.mrb[0].mxu0
    %7088 = vdwg.mxu0
    %7089 = vmatprep.subr.bf16.mxu0 0
    %7090 = vmatpush1.bf16.msra.mxu0 %v6683
    %7091 = vmatprep.subr.bf16.mxu0 0
    %7092 = vmatpush1.bf16.msra.mxu0 %v6684
    %7093 = vmatprep.subr.bf16.mxu0 0
    %7094 = vmatpush1.bf16.msra.mxu0 %v6685
    %7095 = vmatprep.subr.bf16.mxu0 0
    %7096 = vmatpush1.bf16.msra.mxu0 %v6686
    %7097 = vmatprep.subr.bf16.mxu0 0
    %7098 = vmatpush1.bf16.msra.mxu0 %v6687
    %7099 = vmatprep.subr.bf16.mxu0 0
    %7100 = vmatpush1.bf16.msra.mxu0 %v6688
    %7101 = vmatprep.subr.bf16.mxu0 0
    %7102 = vmatpush1.bf16.msra.mxu0 %v6689
    %7103 = vmatprep.subr.bf16.mxu0 0
    %7104 = vmatpush1.bf16.msra.mxu0 %v6690
    %7105 = vmatprep.subr.bf16.mxu0 0
    %7106 = vmatpush1.bf16.msra.mxu0 %v6691
    %7107 = vmatprep.subr.bf16.mxu0 0
    %7108 = vmatpush1.bf16.msra.mxu0 %v6692
    %7109 = vmatprep.subr.bf16.mxu0 0
    %7110 = vmatpush1.bf16.msra.mxu0 %v6693
    %7111 = vmatprep.subr.bf16.mxu0 0
    %7112 = vmatpush1.bf16.msra.mxu0 %v6694
    %7113 = vmatprep.subr.bf16.mxu0 0
    %7114 = vmatpush1.bf16.msra.mxu0 %v6695
    %7115 = vmatprep.subr.bf16.mxu0 0
    %7116 = vmatpush1.bf16.msra.mxu0 %v6696
    %7117 = vmatprep.subr.bf16.mxu0 0
    %7118 = vmatpush1.bf16.msra.mxu0 %v6697
    %7119 = vmatprep.subr.bf16.mxu0 0
    %7120 = vmatpush1.bf16.msra.mxu0 %v6698
    %7121 = vmatprep.mubr.bf16.mxu0 %v5807
    %7122 = vmatmul.mubr.bf16.gmra.mrb[0].mxu0 %v5806
    %v7123 = vpop.f32.mrb[0].mxu0
    %v7124 = vadd.f32 %v7083, %v7123
    %v7125 = vpop.f32.mrb[0].mxu0
    %v7126 = vpop.f32.mrb[0].mxu0
    %v7127 = vadd.f32 %v7086, %v7126
    %v7128 = vpop.f32.mrb[0].mxu0
    %7129 = vdwg.mxu0
    %7130 = vmatprep.subr.bf16.mxu0 0
    %7131 = vmatpush1.bf16.msra.mxu0 %v6699
    %7132 = vmatprep.subr.bf16.mxu0 0
    %7133 = vmatpush1.bf16.msra.mxu0 %v6700
    %7134 = vmatprep.subr.bf16.mxu0 0
    %7135 = vmatpush1.bf16.msra.mxu0 %v6701
    %7136 = vmatprep.subr.bf16.mxu0 0
    %7137 = vmatpush1.bf16.msra.mxu0 %v6702
    %7138 = vmatprep.subr.bf16.mxu0 0
    %7139 = vmatpush1.bf16.msra.mxu0 %v6703
    %7140 = vmatprep.subr.bf16.mxu0 0
    %7141 = vmatpush1.bf16.msra.mxu0 %v6704
    %7142 = vmatprep.subr.bf16.mxu0 0
    %7143 = vmatpush1.bf16.msra.mxu0 %v6705
    %7144 = vmatprep.subr.bf16.mxu0 0
    %7145 = vmatpush1.bf16.msra.mxu0 %v6706
    %7146 = vmatprep.subr.bf16.mxu0 0
    %7147 = vmatpush1.bf16.msra.mxu0 %v6707
    %7148 = vmatprep.subr.bf16.mxu0 0
    %7149 = vmatpush1.bf16.msra.mxu0 %v6708
    %7150 = vmatprep.subr.bf16.mxu0 0
    %7151 = vmatpush1.bf16.msra.mxu0 %v6709
    %7152 = vmatprep.subr.bf16.mxu0 0
    %7153 = vmatpush1.bf16.msra.mxu0 %v6710
    %7154 = vmatprep.subr.bf16.mxu0 0
    %7155 = vmatpush1.bf16.msra.mxu0 %v6711
    %7156 = vmatprep.subr.bf16.mxu0 0
    %7157 = vmatpush1.bf16.msra.mxu0 %v6712
    %7158 = vmatprep.subr.bf16.mxu0 0
    %7159 = vmatpush1.bf16.msra.mxu0 %v6713
    %7160 = vmatprep.subr.bf16.mxu0 0
    %7161 = vmatpush1.bf16.msra.mxu0 %v6714
    %7162 = vmatprep.mubr.bf16.mxu0 %v5809
    %7163 = vmatmul.mubr.bf16.gmra.mrb[0].mxu0 %v5808
    %v7164 = vpop.f32.mrb[0].mxu0
    %v7165 = vadd.f32 %v7124, %v7164
    %v7166 = vpop.f32.mrb[0].mxu0
    %v7167 = vpop.f32.mrb[0].mxu0
    %v7168 = vadd.f32 %v7127, %v7167
    %v7169 = vpop.f32.mrb[0].mxu0
    %7170 = vdwg.mxu0
    %v7171 = vadd.f32 %v5134, %v7165
    %v7172 = vadd.f32 %v5135, %v7168
    %s7173 = scalar_lea.vmem %s13, 1
    %v7174 = vld [vmem:[%s7173] sm:$0x1]
    %s7175 = scalar_lea.vmem %s14, 1
    %v7176 = vld [vmem:[%s7175] sm:$0x1]
    %v7177 = vsel %vm372, %v7171, 0.0
    %7178 = vadd.xlane.f32.xlu0 %v7177
    %v7179 = vpop.xlane.xlu0 %7178
    %v7180 = vsel %vm372, %v7172, 0.0
    %7181 = vadd.xlane.f32.xlu0 %v7180
    %v7182 = vpop.xlane.xlu0 %7181
    %v7183 = vmul.f32 %v7179, %v1573
    %v7184 = vmul.f32 %v7182, %v1573
    %v7185 = vsub.f32 %v7171, %v7183
    %v7186 = vsub.f32 %v7172, %v7184
    %v7187 = vmul.f32 %v7185, %v7185
    %v7188 = vmul.f32 %v7186, %v7186
    %v7189 = vsel %vm372, %v7187, 0.0
    %7190 = vadd.xlane.f32.xlu0 %v7189
    %v7191 = vpop.xlane.xlu0 %7190
    %v7192 = vsel %vm372, %v7188, 0.0
    %7193 = vadd.xlane.f32.xlu0 %v7192
    %v7194 = vpop.xlane.xlu0 %7193
    %v7195 = vmul.f32 %v7191, %v1573
    %v7196 = vmul.f32 %v7194, %v1573
    %v7197 = vadd.f32 %v7195, 1e-05
    %v7198 = vadd.f32 %v7196, 1e-05
    %v7199 = vrsqrt.pop %v7197
    %v7200 = vrsqrt.pop %v7198
    %v7201 = vmul.f32 %v7185, %v7199
    %v7202 = vmul.f32 %v7186, %v7200
    %v7204 = vlaneseq
    %v7205 = vshrl.u32 %v7204, 7
    %v7206 = vsub.s32 0, %v7205
    %v7207 = vrot.slane %v7174, %v7206
    %v7209 = vmul.f32 %v7201, %v7207
    %v7210 = vmul.f32 %v7202, %v7207
    %v7212 = vlaneseq
    %v7213 = vshrl.u32 %v7212, 7
    %v7214 = vsub.s32 0, %v7213
    %v7215 = vrot.slane %v7176, %v7214
    %v7217 = vadd.f32 %v7209, %v7215
    %v7218 = vadd.f32 %v7210, %v7215
    %v7219 = vpack.c.bf16 %v7218, %v7217
    %v7220 = vld [vmem:[%s15] sm:$0xf]
    %v7221 = vld [vmem:[%s15 + $0x4] sm:$0xf]
    %v7222 = vld [vmem:[%s15 + $0x8] sm:$0xf]
    %v7223 = vld [vmem:[%s15 + $0xc] sm:$0xf]
    %v7224 = vld [vmem:[%s16] sm:$0x1]
    %v7226 = vlaneseq
    %v7227 = vshrl.u32 %v7226, 7
    %v7228 = vsub.s32 0, %v7227
    %v7229 = vrot.slane %v7224, %v7228
    %v7235 = vunpack.c.l.b16 %v7220
    %v7236 = vunpack.c.l.b16 %v7221
    %v7237 = vunpack.c.l.b16 %v7222
    %v7238 = vunpack.c.l.b16 %v7223
    %v7239 = vpack.c.b16 %v7236, %v7235
    %v7240 = vpack.c.b16 %v7238, %v7237
    %v7244 = vsel %vm372, %v7219, 0
    %7246 = vmatprep.subr.bf16.mxu0 0
    %7247 = vmatpush1.bf16.msra.mxu0 %v7239
    %7248 = vmatprep.subr.bf16.mxu0 0
    %7249 = vmatpush1.bf16.msra.mxu0 %v7240
    %7250 = vmatprep.subr.bf16.mxu0 0
    %7251 = vmatpush1.bf16.msra.mxu0 0
    %7252 = vmatprep.subr.bf16.mxu0 0
    %7253 = vmatpush1.bf16.msra.mxu0 0
    %7254 = vmatprep.subr.bf16.mxu0 0
    %7255 = vmatpush1.bf16.msra.mxu0 0
    %7256 = vmatprep.subr.bf16.mxu0 0
    %7257 = vmatpush1.bf16.msra.mxu0 0
    %7258 = vmatprep.subr.bf16.mxu0 0
    %7259 = vmatpush1.bf16.msra.mxu0 0
    %7260 = vmatprep.subr.bf16.mxu0 0
    %7261 = vmatpush1.bf16.msra.mxu0 0
    %7262 = vmatprep.subr.bf16.mxu0 0
    %7263 = vmatpush1.bf16.msra.mxu0 0
    %7264 = vmatprep.subr.bf16.mxu0 0
    %7265 = vmatpush1.bf16.msra.mxu0 0
    %7266 = vmatprep.subr.bf16.mxu0 0
    %7267 = vmatpush1.bf16.msra.mxu0 0
    %7268 = vmatprep.subr.bf16.mxu0 0
    %7269 = vmatpush1.bf16.msra.mxu0 0
    %7270 = vmatprep.subr.bf16.mxu0 0
    %7271 = vmatpush1.bf16.msra.mxu0 0
    %7272 = vmatprep.subr.bf16.mxu0 0
    %7273 = vmatpush1.bf16.msra.mxu0 0
    %7274 = vmatprep.subr.bf16.mxu0 0
    %7275 = vmatpush1.bf16.msra.mxu0 0
    %7276 = vmatprep.subr.bf16.mxu0 0
    %7277 = vmatpush1.bf16.msra.mxu0 0
    %7278 = vmatprep.mubr.bf16.mxu0 0
    %7279 = vmatmul.mubr.bf16.gmra.mrb[0].mxu0 %v7244
    %v7280 = vpop.f32.mrb[0].mxu0
    %v7281 = vadd.f32 %v7229, %v7280
    %v7282 = vpop.f32.mrb[0].mxu0
    %v7283 = vpop.f32.mrb[0].mxu0
    %v7284 = vadd.f32 %v7229, %v7283
    %v7285 = vpop.f32.mrb[0].mxu0
    %7286 = vdwg.mxu0
    %7287 = vst [vmem:[#allocation2] sm:$0xff] %v7281
    %7288 = vst [vmem:[#allocation2 + $0x8] sm:$0xff] %v7284
    // Predicated region
    $region70: #{tpu_custom_call.1} parent=1 // pred_check
      _
    $region71: #{tpu_custom_call.1} parent=1 // pred_check_branch
      %7290 = sbr.rel (0) target = $region73
    $region72: #{tpu_custom_call.1} parent=1 // pred_region
      %s7292 = ssub.s32 256, 256
      %7293 = vsyncadd [#allocation3], %s7292
      %s7294 = sshll.u32 [#allocation2], 4
      %s7295 = int_to_ptr.vmem [resolvable:$true] %s7294
      %7300 = dma.vmem_to_hbm [thread:$0]  %s7295, 256, %s17, [#allocation3], 128, 128, 8
    $region73: #{tpu_custom_call.1} parent=1 // pred_fallthru
      _
    // Predicated region
    $region74: #{tpu_custom_call.1} parent=1 // pred_check
      _
    $region75: #{tpu_custom_call.1} parent=1 // pred_check_branch
      %7302 = sbr.rel (0) target = $region77
    $region76: #{tpu_custom_call.1} parent=1 // pred_region
      %7303 = dma.done [#allocation3], 256
    $region77: #{tpu_custom_call.1} parent=1 // pred_fallthru
      _
    %7304 = vsyncpa [#allocation3], 1

</llo_original>
